<compile_context>
chip_gen: v7x
topology: tpu7x:2x2x1
jax: 0.10.0
libtpu: 0.0.40
codegen_flags: <defaults>
</compile_context>

<pallas_src>
import functools

import jax
import jax.numpy as jnp
import numpy as np
from jax.experimental import pallas as pl
from jax.experimental.pallas import tpu as pltpu


def _round_up(n, m):
    return (n + m - 1) // m * m


def _gru_kernel(nchunks_ref, lens_ref, x_ref, w_i_ref, w_h_ref, b_i_ref,
                b_hn_ref, w_l_ref, b_l_ref, out_ref, h_ref, *, Tt, Hp):
    """One grid step = (one batch block) x (one chunk of Tt timesteps)."""
    b_blk = pl.program_id(0)
    t_chunk = pl.program_id(1)

    @pl.when(t_chunk == 0)
    def _():
        h_ref[...] = jnp.zeros_like(h_ref)

    Bb = h_ref.shape[0]
    Dp = x_ref.shape[-1]

    # Skip chunks that are entirely past every sequence in this batch block
    # (packed-sequence semantics: those steps would never touch h anyway).
    @pl.when(t_chunk < nchunks_ref[b_blk])
    def _():
        # --- input projection for the whole chunk: one wide MXU GEMM ---------
        # x_ref is time-major (Tt, Bb, Dp); collapsing the leading dims is
        # layout-free because Bb is a multiple of 8 (rows stay time-major).
        xg = x_ref[...].reshape(Tt * Bb, Dp)
        gx = (jnp.dot(xg, w_i_ref[...], preferred_element_type=jnp.float32)
              + b_i_ref[...])                                 # [Tt*Bb, 3Hp] f32

        w_h = w_h_ref[...]
        b_hn = b_hn_ref[...]
        lens = lens_ref[...]                                  # [Bb, 1] int32
        h = h_ref[...]                                        # [Bb, Hp] f32
        base_t = t_chunk * Tt

        # --- serial recurrence over Tt steps (statically unrolled) -----------
        for tt in range(Tt):
            g = gx[tt * Bb:(tt + 1) * Bb, :]                  # aligned static slice
            gh = jnp.dot(h.astype(w_h.dtype), w_h,
                         preferred_element_type=jnp.float32)  # [Bb, 3Hp]
            r = jax.nn.sigmoid(g[:, 0:Hp] + gh[:, 0:Hp])
            z = jax.nn.sigmoid(g[:, Hp:2 * Hp] + gh[:, Hp:2 * Hp])
            n = jnp.tanh(g[:, 2 * Hp:3 * Hp]
                         + r * (gh[:, 2 * Hp:3 * Hp] + b_hn))
            h_new = (1.0 - z) * n + z * h
            # pack_padded_sequence semantics: padded timesteps never touch h.
            valid = (base_t + tt) < lens                      # [Bb, 1] bool
            h = jnp.where(valid, h_new, h)

        h_ref[...] = h

    # Final linear projection once per batch block, on the last time chunk.
    @pl.when(t_chunk == pl.num_programs(1) - 1)
    def _():
        out_ref[...] = (jnp.dot(h_ref[...].astype(w_l_ref.dtype), w_l_ref[...],
                                preferred_element_type=jnp.float32)
                        + b_l_ref[...])


def gru_classifier_forward(x, mask, params, *, t_block=16,
                           compute_dtype=jnp.bfloat16):
    """x: [B, T, D] float32, mask: [B, T] 0/1 (left-aligned). Returns [B, O] f32."""
    B, T, D = x.shape
    H = params["w_hr"].shape[0]
    O = params["w_l"].shape[1]
    f32 = jnp.float32

    # Lane/sublane-dense padded extents.
    Bb = min(128, _round_up(B, 16))        # batch rows per block (MXU M fill)
    Bp = _round_up(B, Bb)
    Hp = 128 if H <= 128 else _round_up(H, 256)   # 256-align for v6e/v7x MXU tiles
    Op = _round_up(O, 128)
    Dp = _round_up(D, 128)
    Tt = t_block
    Tp = _round_up(T, Tt)
    G = 3 * Hp

    def pad2(a, r, c):
        a = a.astype(f32)
        return jnp.pad(a, ((0, r - a.shape[0]), (0, c - a.shape[1])))

    # Fused, zero-padded gate weights, layout [ r | z | n ], each block Hp wide.
    w_i = jnp.concatenate([pad2(params["w_ir"], Dp, Hp),
                           pad2(params["w_iz"], Dp, Hp),
                           pad2(params["w_in"], Dp, Hp)], axis=1)   # [Dp, 3Hp]
    w_h = jnp.concatenate([pad2(params["w_hr"], Hp, Hp),
                           pad2(params["w_hz"], Hp, Hp),
                           pad2(params["w_hn"], Hp, Hp)], axis=1)   # [Hp, 3Hp]
    # b_r = b_ir+b_hr and b_z = b_iz+b_hz fold into the precomputed input
    # projection; b_hn must stay inside the r*(...) term.
    b_i = jnp.concatenate([pad2(params["b_r"], 1, Hp),
                           pad2(params["b_z"], 1, Hp),
                           pad2(params["b_in"], 1, Hp)], axis=1)    # [1, 3Hp]
    b_hn = pad2(params["b_hn"], 1, Hp)                              # [1, Hp]
    w_l = pad2(params["w_l"], Hp, Op)                               # [Hp, Op]
    b_l = pad2(params["b_l"], 1, Op)                                # [1, Op]

    # Time-major, zero-padded x: transpose folded into the (required) padding copy.
    x_tm = jnp.zeros((Tp, Bp, Dp), f32).at[:T, :B, :D].set(
        jnp.swapaxes(x.astype(f32), 0, 1))

    lens_flat = mask.sum(axis=1).astype(jnp.int32)
    lens_pad = jnp.zeros((Bp,), jnp.int32).at[:B].set(lens_flat)
    lens = lens_pad.reshape(Bp, 1)

    # Per-batch-block number of useful time chunks (scalar-prefetched to SMEM).
    n_chunks = ((jnp.max(lens_pad.reshape(Bp // Bb, Bb), axis=1) + Tt - 1)
                // Tt).astype(jnp.int32)

    if compute_dtype != f32:
        # bf16 MXU path; accumulation stays f32 in-kernel.
        x_tm = x_tm.astype(compute_dtype)
        w_i = w_i.astype(compute_dtype)
        w_h = w_h.astype(compute_dtype)
        w_l = w_l.astype(compute_dtype)

    # Explicit VMEM budget (weights single-buffered target, x/out double-buffered,
    # gx chunk temp + per-step temps), floor 32 MiB (covers v5e's 16 MiB scoped
    # default at large H), cap 60 MiB (fits v7x's 64 MiB physical VMEM).
    cbytes = np.dtype(compute_dtype).itemsize
    est = (2 * Tt * Bb * Dp * cbytes
           + 2 * Bb * 4
           + (Dp * G + Hp * G + Hp * Op) * cbytes
           + (G + Hp + Op) * 4
           + 2 * Bb * Op * 4
           + Bb * Hp * 4
           + Tt * Bb * G * 4
           + 4 * Bb * G * 4)
    vmem_limit = int(min(max(2 * est, 32 << 20), 60 << 20))

    kernel = functools.partial(_gru_kernel, Tt=Tt, Hp=Hp)

    def _call(single_buffer_weights):
        if single_buffer_weights:
            const = lambda shape: pl.BlockSpec(shape, lambda b, t, nc: (0, 0),
                                               pipeline_mode=pl.Buffered(1))
        else:
            const = lambda shape: pl.BlockSpec(shape, lambda b, t, nc: (0, 0))
        return pl.pallas_call(
            kernel,
            out_shape=jax.ShapeDtypeStruct((Bp, Op), f32),
            grid_spec=pltpu.PrefetchScalarGridSpec(
                num_scalar_prefetch=1,                     # per-block chunk counts
                grid=(Bp // Bb, Tp // Tt),                 # (batch blocks, time chunks)
                in_specs=[
                    pl.BlockSpec((Bb, 1), lambda b, t, nc: (b, 0)),        # lengths
                    pl.BlockSpec((Tt, Bb, Dp), lambda b, t, nc: (t, b, 0)),  # x chunk
                    const((Dp, G)),                                          # fused W_i
                    const((Hp, G)),                                          # fused W_h
                    const((1, G)),                                           # fused bias
                    const((1, Hp)),                                          # b_hn
                    const((Hp, Op)),                                         # linear W
                    const((1, Op)),                                          # linear b
                ],
                out_specs=pl.BlockSpec((Bb, Op), lambda b, t, nc: (b, 0)),
                scratch_shapes=[pltpu.VMEM((Bb, Hp), jnp.float32)],  # carried hidden
            ),
            compiler_params=pltpu.CompilerParams(
                dimension_semantics=("parallel", "arbitrary"),
                vmem_limit_bytes=vmem_limit),
        )(n_chunks, lens, x_tm, w_i, w_h, b_i, b_hn, w_l, b_l)

    try:
        out = _call(True)
    except Exception:
        # pipeline_mode=pl.Buffered(1) unsupported in this jax build -> default
        # double-buffering of the constant weight blocks (correctness unaffected).
        out = _call(False)

    return out[:B, :O]


def make_params(key, input_dim, hidden_dim, output_dim):
    """Deterministic parameter init (PyTorch-style uniform bounds, own values)."""
    ks = jax.random.split(key, 16)
    bnd = 1.0 / np.sqrt(hidden_dim)
    u = lambda k, shp: jax.random.uniform(k, shp, jnp.float32, -bnd, bnd)
    D, H, O = input_dim, hidden_dim, output_dim
    return dict(
        w_ir=u(ks[0], (D, H)), w_iz=u(ks[1], (D, H)), w_in=u(ks[2], (D, H)),
        w_hr=u(ks[3], (H, H)), w_hz=u(ks[4], (H, H)), w_hn=u(ks[5], (H, H)),
        # b_r = b_ir + b_hr, b_z = b_iz + b_hz (combined); b_in, b_hn kept apart
        b_r=u(ks[6], (1, H)), b_z=u(ks[7], (1, H)),
        b_in=u(ks[8], (1, H)), b_hn=u(ks[9], (1, H)),
        w_l=u(ks[10], (H, O)), b_l=u(ks[11], (1, O)),
    )


def reference_forward(x, mask, p):
    """Pure-JAX reference (same GRU equations, packed-sequence semantics)."""
    B, T, D = x.shape
    lengths = mask.sum(axis=1).astype(jnp.int32)

    def step(h, inp):
        x_t, t = inp
        r = jax.nn.sigmoid(x_t @ p["w_ir"] + h @ p["w_hr"] + p["b_r"])
        z = jax.nn.sigmoid(x_t @ p["w_iz"] + h @ p["w_hz"] + p["b_z"])
        n = jnp.tanh(x_t @ p["w_in"] + p["b_in"]
                     + r * (h @ p["w_hn"] + p["b_hn"]))
        h_new = (1.0 - z) * n + z * h
        valid = (t < lengths)[:, None]
        h = jnp.where(valid, h_new, h)
        return h, None

    h0 = jnp.zeros((B, p["w_hr"].shape[0]), jnp.float32)
    xs = (jnp.transpose(x, (1, 0, 2)), jnp.arange(T))
    h_last, _ = jax.lax.scan(step, h0, xs)
    return h_last @ p["w_l"] + p["b_l"]


if __name__ == "__main__":
    # hidden_dim=128 matches the module default; small B/T/D/O for the self-test.
    B, T, D, H, O = 4, 10, 16, 128, 5

    key = jax.random.PRNGKey(0)
    k_x, k_p = jax.random.split(key)
    x = jax.random.normal(k_x, (B, T, D), jnp.float32)

    # Variable-length, left-aligned mask (lengths 10, 7, 4, 1).
    lengths = jnp.array([10, 7, 4, 1], dtype=jnp.int32)
    mask = (jnp.arange(T)[None, :] < lengths[:, None]).astype(jnp.float32)

    params = make_params(k_p, D, H, O)
    ref = reference_forward(x, mask, params)

    # Default path: bf16 MXU compute with f32 accumulation (loose tolerance).
    out_bf16 = jax.block_until_ready(gru_classifier_forward(x, mask, params))
    np.testing.assert_allclose(np.asarray(out_bf16), np.asarray(ref),
                               rtol=1e-1, atol=1e-1)

    # Exact-f32 path: tight tolerance against the pure-JAX reference.
    out_f32 = jax.block_until_ready(
        gru_classifier_forward(x, mask, params, compute_dtype=jnp.float32))
    np.testing.assert_allclose(np.asarray(out_f32), np.asarray(ref),
                               rtol=2e-4, atol=2e-4)

    print("KERNEL_OK")
</pallas_src>

<mosaic_0001>
module attributes {stable_mosaic.version = 11 : i64} {
  func.func @_gru_kernel(%arg0: i32, %arg1: i32, %arg2: memref<1xi32, #tpu.memory_space<smem>>, %arg3: memref<16x1xi32, #tpu.memory_space<vmem>>, %arg4: memref<16x16x128xbf16, #tpu.memory_space<vmem>>, %arg5: memref<128x384xbf16, #tpu.memory_space<vmem>>, %arg6: memref<128x384xbf16, #tpu.memory_space<vmem>>, %arg7: memref<1x384xf32, #tpu.memory_space<vmem>>, %arg8: memref<1x128xf32, #tpu.memory_space<vmem>>, %arg9: memref<128x128xbf16, #tpu.memory_space<vmem>>, %arg10: memref<1x128xf32, #tpu.memory_space<vmem>>, %arg11: memref<16x128xf32, #tpu.memory_space<vmem>>, %arg12: memref<16x128xf32, #tpu.memory_space<vmem>>) attributes {dimension_semantics = [#tpu.dimension_semantics<parallel>, #tpu.dimension_semantics<arbitrary>], iteration_bounds = array<i64: 1, 1>, scalar_prefetch = 1 : i64, scratch_operands = 1 : i64, tpu.core_type = #tpu.core_type<tc>, window_params = [{transform_indices = @transform_0, window_bounds = array<i64: 16, 1>}, {transform_indices = @transform_1, window_bounds = array<i64: 16, 16, 128>}, {pipeline_mode = #tpu.pipeline_mode<synchronous>, transform_indices = @transform_2, window_bounds = array<i64: 128, 384>}, {pipeline_mode = #tpu.pipeline_mode<synchronous>, transform_indices = @transform_3, window_bounds = array<i64: 128, 384>}, {pipeline_mode = #tpu.pipeline_mode<synchronous>, transform_indices = @transform_4, window_bounds = array<i64: 1, 384>}, {pipeline_mode = #tpu.pipeline_mode<synchronous>, transform_indices = @transform_5, window_bounds = array<i64: 1, 128>}, {pipeline_mode = #tpu.pipeline_mode<synchronous>, transform_indices = @transform_6, window_bounds = array<i64: 128, 128>}, {pipeline_mode = #tpu.pipeline_mode<synchronous>, transform_indices = @transform_7, window_bounds = array<i64: 1, 128>}, {transform_indices = @transform_8, window_bounds = array<i64: 16, 128>}]} {
    %c0_i32 = arith.constant 0 : i32
    %0 = arith.cmpi eq, %arg1, %c0_i32 : i32
    %1 = arith.extui %0 : i1 to i32
    %c0_i32_0 = arith.constant 0 : i32
    %2 = arith.cmpi ne, %1, %c0_i32_0 : i32
    scf.if %2 {
      %cst = arith.constant 0.000000e+00 : f32
      %11 = vector.broadcast %cst : f32 to vector<16x128xf32>
      %c0 = arith.constant 0 : index
      %c0_4 = arith.constant 0 : index
      %12 = vector.load %arg12[%c0, %c0_4] : memref<16x128xf32, #tpu.memory_space<vmem>>, vector<16x128xf32>
      tpu.vector_store %arg12[%c0, %c0_4], %11 {strides = array<i32>} : memref<16x128xf32, #tpu.memory_space<vmem>>, vector<16x128xf32>,
    } else {
    }
    %3 = arith.index_cast %arg0 : i32 to index
    %4 = memref.load %arg2[%3] : memref<1xi32, #tpu.memory_space<smem>>
    %5 = arith.cmpi slt, %arg1, %4 : i32
    %6 = arith.extui %5 : i1 to i32
    %c0_i32_1 = arith.constant 0 : i32
    %7 = arith.cmpi ne, %6, %c0_i32_1 : i32
    scf.if %7 {
      %c0 = arith.constant 0 : index
      %c0_4 = arith.constant 0 : index
      %c0_5 = arith.constant 0 : index
      %11 = vector.load %arg4[%c0, %c0_4, %c0_5] : memref<16x16x128xbf16, #tpu.memory_space<vmem>>, vector<16x16x128xbf16>
      %12 = vector.shape_cast %11 : vector<16x16x128xbf16> to vector<256x128xbf16>
      %c0_6 = arith.constant 0 : index
      %c0_7 = arith.constant 0 : index
      %13 = vector.load %arg5[%c0_6, %c0_7] : memref<128x384xbf16, #tpu.memory_space<vmem>>, vector<128x384xbf16>
      %cst = arith.constant dense<0.000000e+00> : vector<256x384xf32>
      %14 = tpu.matmul %12, %13, %cst {dimension_numbers = #tpu.dot_dimension_numbers<[1], [0], [0], [1], [0, 0, 1, 1], [], []>} : vector<256x128xbf16>, vector<128x384xbf16>, vector<256x384xf32> -> vector<256x384xf32>
      %c0_8 = arith.constant 0 : index
      %c0_9 = arith.constant 0 : index
      %15 = vector.load %arg7[%c0_8, %c0_9] : memref<1x384xf32, #tpu.memory_space<vmem>>, vector<1x384xf32>
      %16 = vector.broadcast %15 : vector<1x384xf32> to vector<256x384xf32>
      %17 = arith.addf %14, %16 : vector<256x384xf32>
      %c0_10 = arith.constant 0 : index
      %c0_11 = arith.constant 0 : index
      %18 = vector.load %arg6[%c0_10, %c0_11] : memref<128x384xbf16, #tpu.memory_space<vmem>>, vector<128x384xbf16>
      %c0_12 = arith.constant 0 : index
      %c0_13 = arith.constant 0 : index
      %19 = vector.load %arg8[%c0_12, %c0_13] : memref<1x128xf32, #tpu.memory_space<vmem>>, vector<1x128xf32>
      %c0_14 = arith.constant 0 : index
      %c0_15 = arith.constant 0 : index
      %20 = vector.load %arg3[%c0_14, %c0_15] : memref<16x1xi32, #tpu.memory_space<vmem>>, vector<16x1xi32>
      %c0_16 = arith.constant 0 : index
      %c0_17 = arith.constant 0 : index
      %21 = vector.load %arg12[%c0_16, %c0_17] : memref<16x128xf32, #tpu.memory_space<vmem>>, vector<16x128xf32>
      %c16_i32 = arith.constant 16 : i32
      %22 = arith.muli %arg1, %c16_i32 : i32
      %23 = vector.extract_strided_slice %17 {offsets = [0, 0], sizes = [16, 384], strides = [1, 1]} : vector<256x384xf32> to vector<16x384xf32>
      %24 = arith.truncf %21 : vector<16x128xf32> to vector<16x128xbf16>
      %cst_18 = arith.constant dense<0.000000e+00> : vector<16x384xf32>
      %25 = tpu.matmul %24, %18, %cst_18 {dimension_numbers = #tpu.dot_dimension_numbers<[1], [0], [0], [1], [0, 0, 1, 1], [], []>} : vector<16x128xbf16>, vector<128x384xbf16>, vector<16x384xf32> -> vector<16x384xf32>
      %26 = vector.extract_strided_slice %23 {offsets = [0, 0], sizes = [16, 128], strides = [1, 1]} : vector<16x384xf32> to vector<16x128xf32>
      %27 = vector.extract_strided_slice %25 {offsets = [0, 0], sizes = [16, 128], strides = [1, 1]} : vector<16x384xf32> to vector<16x128xf32>
      %28 = arith.addf %26, %27 : vector<16x128xf32>
      %29 = arith.negf %28 : vector<16x128xf32>
      %30 = math.exp %29 : vector<16x128xf32>
      %cst_19 = arith.constant 1.000000e+00 : f32
      %31 = vector.broadcast %cst_19 : f32 to vector<16x128xf32>
      %32 = arith.addf %31, %30 : vector<16x128xf32>
      %33 = arith.divf %31, %32 : vector<16x128xf32>
      %34 = vector.extract_strided_slice %23 {offsets = [0, 128], sizes = [16, 128], strides = [1, 1]} : vector<16x384xf32> to vector<16x128xf32>
      %35 = vector.extract_strided_slice %25 {offsets = [0, 128], sizes = [16, 128], strides = [1, 1]} : vector<16x384xf32> to vector<16x128xf32>
      %36 = arith.addf %34, %35 : vector<16x128xf32>
      %37 = arith.negf %36 : vector<16x128xf32>
      %38 = math.exp %37 : vector<16x128xf32>
      %cst_20 = arith.constant 1.000000e+00 : f32
      %39 = vector.broadcast %cst_20 : f32 to vector<16x128xf32>
      %40 = arith.addf %39, %38 : vector<16x128xf32>
      %41 = arith.divf %39, %40 : vector<16x128xf32>
      %42 = vector.extract_strided_slice %23 {offsets = [0, 256], sizes = [16, 128], strides = [1, 1]} : vector<16x384xf32> to vector<16x128xf32>
      %43 = vector.extract_strided_slice %25 {offsets = [0, 256], sizes = [16, 128], strides = [1, 1]} : vector<16x384xf32> to vector<16x128xf32>
      %44 = vector.broadcast %19 : vector<1x128xf32> to vector<16x128xf32>
      %45 = arith.addf %43, %44 : vector<16x128xf32>
      %46 = arith.mulf %33, %45 : vector<16x128xf32>
      %47 = arith.addf %42, %46 : vector<16x128xf32>
      %48 = math.tanh %47 : vector<16x128xf32>
      %cst_21 = arith.constant 1.000000e+00 : f32
      %49 = vector.broadcast %cst_21 : f32 to vector<16x128xf32>
      %50 = arith.subf %49, %41 : vector<16x128xf32>
      %51 = arith.mulf %50, %48 : vector<16x128xf32>
      %52 = arith.mulf %41, %21 : vector<16x128xf32>
      %53 = arith.addf %51, %52 : vector<16x128xf32>
      %c0_i32_22 = arith.constant 0 : i32
      %54 = arith.addi %22, %c0_i32_22 : i32
      %55 = vector.broadcast %54 : i32 to vector<16x1xi32>
      %56 = arith.cmpi slt, %55, %20 : vector<16x1xi32>
      %57 = vector.shape_cast %56 : vector<16x1xi1> to vector<16x1xi1>
      %58 = vector.broadcast %57 : vector<16x1xi1> to vector<16x128xi1>
      %59 = arith.select %58, %53, %21 : vector<16x128xi1>, vector<16x128xf32>
      %60 = vector.extract_strided_slice %17 {offsets = [16, 0], sizes = [16, 384], strides = [1, 1]} : vector<256x384xf32> to vector<16x384xf32>
      %61 = arith.truncf %59 : vector<16x128xf32> to vector<16x128xbf16>
      %cst_23 = arith.constant dense<0.000000e+00> : vector<16x384xf32>
      %62 = tpu.matmul %61, %18, %cst_23 {dimension_numbers = #tpu.dot_dimension_numbers<[1], [0], [0], [1], [0, 0, 1, 1], [], []>} : vector<16x128xbf16>, vector<128x384xbf16>, vector<16x384xf32> -> vector<16x384xf32>
      %63 = vector.extract_strided_slice %60 {offsets = [0, 0], sizes = [16, 128], strides = [1, 1]} : vector<16x384xf32> to vector<16x128xf32>
      %64 = vector.extract_strided_slice %62 {offsets = [0, 0], sizes = [16, 128], strides = [1, 1]} : vector<16x384xf32> to vector<16x128xf32>
      %65 = arith.addf %63, %64 : vector<16x128xf32>
      %66 = arith.negf %65 : vector<16x128xf32>
      %67 = math.exp %66 : vector<16x128xf32>
      %cst_24 = arith.constant 1.000000e+00 : f32
      %68 = vector.broadcast %cst_24 : f32 to vector<16x128xf32>
      %69 = arith.addf %68, %67 : vector<16x128xf32>
      %70 = arith.divf %68, %69 : vector<16x128xf32>
      %71 = vector.extract_strided_slice %60 {offsets = [0, 128], sizes = [16, 128], strides = [1, 1]} : vector<16x384xf32> to vector<16x128xf32>
      %72 = vector.extract_strided_slice %62 {offsets = [0, 128], sizes = [16, 128], strides = [1, 1]} : vector<16x384xf32> to vector<16x128xf32>
      %73 = arith.addf %71, %72 : vector<16x128xf32>
      %74 = arith.negf %73 : vector<16x128xf32>
      %75 = math.exp %74 : vector<16x128xf32>
      %cst_25 = arith.constant 1.000000e+00 : f32
      %76 = vector.broadcast %cst_25 : f32 to vector<16x128xf32>
      %77 = arith.addf %76, %75 : vector<16x128xf32>
      %78 = arith.divf %76, %77 : vector<16x128xf32>
      %79 = vector.extract_strided_slice %60 {offsets = [0, 256], sizes = [16, 128], strides = [1, 1]} : vector<16x384xf32> to vector<16x128xf32>
      %80 = vector.extract_strided_slice %62 {offsets = [0, 256], sizes = [16, 128], strides = [1, 1]} : vector<16x384xf32> to vector<16x128xf32>
      %81 = vector.broadcast %19 : vector<1x128xf32> to vector<16x128xf32>
      %82 = arith.addf %80, %81 : vector<16x128xf32>
      %83 = arith.mulf %70, %82 : vector<16x128xf32>
      %84 = arith.addf %79, %83 : vector<16x128xf32>
      %85 = math.tanh %84 : vector<16x128xf32>
      %cst_26 = arith.constant 1.000000e+00 : f32
      %86 = vector.broadcast %cst_26 : f32 to vector<16x128xf32>
      %87 = arith.subf %86, %78 : vector<16x128xf32>
      %88 = arith.mulf %87, %85 : vector<16x128xf32>
      %89 = arith.mulf %78, %59 : vector<16x128xf32>
      %90 = arith.addf %88, %89 : vector<16x128xf32>
      %c1_i32 = arith.constant 1 : i32
      %91 = arith.addi %22, %c1_i32 : i32
      %92 = vector.broadcast %91 : i32 to vector<16x1xi32>
      %93 = arith.cmpi slt, %92, %20 : vector<16x1xi32>
      %94 = vector.shape_cast %93 : vector<16x1xi1> to vector<16x1xi1>
      %95 = vector.broadcast %94 : vector<16x1xi1> to vector<16x128xi1>
      %96 = arith.select %95, %90, %59 : vector<16x128xi1>, vector<16x128xf32>
      %97 = vector.extract_strided_slice %17 {offsets = [32, 0], sizes = [16, 384], strides = [1, 1]} : vector<256x384xf32> to vector<16x384xf32>
      %98 = arith.truncf %96 : vector<16x128xf32> to vector<16x128xbf16>
      %cst_27 = arith.constant dense<0.000000e+00> : vector<16x384xf32>
      %99 = tpu.matmul %98, %18, %cst_27 {dimension_numbers = #tpu.dot_dimension_numbers<[1], [0], [0], [1], [0, 0, 1, 1], [], []>} : vector<16x128xbf16>, vector<128x384xbf16>, vector<16x384xf32> -> vector<16x384xf32>
      %100 = vector.extract_strided_slice %97 {offsets = [0, 0], sizes = [16, 128], strides = [1, 1]} : vector<16x384xf32> to vector<16x128xf32>
      %101 = vector.extract_strided_slice %99 {offsets = [0, 0], sizes = [16, 128], strides = [1, 1]} : vector<16x384xf32> to vector<16x128xf32>
      %102 = arith.addf %100, %101 : vector<16x128xf32>
      %103 = arith.negf %102 : vector<16x128xf32>
      %104 = math.exp %103 : vector<16x128xf32>
      %cst_28 = arith.constant 1.000000e+00 : f32
      %105 = vector.broadcast %cst_28 : f32 to vector<16x128xf32>
      %106 = arith.addf %105, %104 : vector<16x128xf32>
      %107 = arith.divf %105, %106 : vector<16x128xf32>
      %108 = vector.extract_strided_slice %97 {offsets = [0, 128], sizes = [16, 128], strides = [1, 1]} : vector<16x384xf32> to vector<16x128xf32>
      %109 = vector.extract_strided_slice %99 {offsets = [0, 128], sizes = [16, 128], strides = [1, 1]} : vector<16x384xf32> to vector<16x128xf32>
      %110 = arith.addf %108, %109 : vector<16x128xf32>
      %111 = arith.negf %110 : vector<16x128xf32>
      %112 = math.exp %111 : vector<16x128xf32>
      %cst_29 = arith.constant 1.000000e+00 : f32
      %113 = vector.broadcast %cst_29 : f32 to vector<16x128xf32>
      %114 = arith.addf %113, %112 : vector<16x128xf32>
      %115 = arith.divf %113, %114 : vector<16x128xf32>
      %116 = vector.extract_strided_slice %97 {offsets = [0, 256], sizes = [16, 128], strides = [1, 1]} : vector<16x384xf32> to vector<16x128xf32>
      %117 = vector.extract_strided_slice %99 {offsets = [0, 256], sizes = [16, 128], strides = [1, 1]} : vector<16x384xf32> to vector<16x128xf32>
      %118 = vector.broadcast %19 : vector<1x128xf32> to vector<16x128xf32>
      %119 = arith.addf %117, %118 : vector<16x128xf32>
      %120 = arith.mulf %107, %119 : vector<16x128xf32>
      %121 = arith.addf %116, %120 : vector<16x128xf32>
      %122 = math.tanh %121 : vector<16x128xf32>
      %cst_30 = arith.constant 1.000000e+00 : f32
      %123 = vector.broadcast %cst_30 : f32 to vector<16x128xf32>
      %124 = arith.subf %123, %115 : vector<16x128xf32>
      %125 = arith.mulf %124, %122 : vector<16x128xf32>
      %126 = arith.mulf %115, %96 : vector<16x128xf32>
      %127 = arith.addf %125, %126 : vector<16x128xf32>
      %c2_i32 = arith.constant 2 : i32
      %128 = arith.addi %22, %c2_i32 : i32
      %129 = vector.broadcast %128 : i32 to vector<16x1xi32>
      %130 = arith.cmpi slt, %129, %20 : vector<16x1xi32>
      %131 = vector.shape_cast %130 : vector<16x1xi1> to vector<16x1xi1>
      %132 = vector.broadcast %131 : vector<16x1xi1> to vector<16x128xi1>
      %133 = arith.select %132, %127, %96 : vector<16x128xi1>, vector<16x128xf32>
      %134 = vector.extract_strided_slice %17 {offsets = [48, 0], sizes = [16, 384], strides = [1, 1]} : vector<256x384xf32> to vector<16x384xf32>
      %135 = arith.truncf %133 : vector<16x128xf32> to vector<16x128xbf16>
      %cst_31 = arith.constant dense<0.000000e+00> : vector<16x384xf32>
      %136 = tpu.matmul %135, %18, %cst_31 {dimension_numbers = #tpu.dot_dimension_numbers<[1], [0], [0], [1], [0, 0, 1, 1], [], []>} : vector<16x128xbf16>, vector<128x384xbf16>, vector<16x384xf32> -> vector<16x384xf32>
      %137 = vector.extract_strided_slice %134 {offsets = [0, 0], sizes = [16, 128], strides = [1, 1]} : vector<16x384xf32> to vector<16x128xf32>
      %138 = vector.extract_strided_slice %136 {offsets = [0, 0], sizes = [16, 128], strides = [1, 1]} : vector<16x384xf32> to vector<16x128xf32>
      %139 = arith.addf %137, %138 : vector<16x128xf32>
      %140 = arith.negf %139 : vector<16x128xf32>
      %141 = math.exp %140 : vector<16x128xf32>
      %cst_32 = arith.constant 1.000000e+00 : f32
      %142 = vector.broadcast %cst_32 : f32 to vector<16x128xf32>
      %143 = arith.addf %142, %141 : vector<16x128xf32>
      %144 = arith.divf %142, %143 : vector<16x128xf32>
      %145 = vector.extract_strided_slice %134 {offsets = [0, 128], sizes = [16, 128], strides = [1, 1]} : vector<16x384xf32> to vector<16x128xf32>
      %146 = vector.extract_strided_slice %136 {offsets = [0, 128], sizes = [16, 128], strides = [1, 1]} : vector<16x384xf32> to vector<16x128xf32>
      %147 = arith.addf %145, %146 : vector<16x128xf32>
      %148 = arith.negf %147 : vector<16x128xf32>
      %149 = math.exp %148 : vector<16x128xf32>
      %cst_33 = arith.constant 1.000000e+00 : f32
      %150 = vector.broadcast %cst_33 : f32 to vector<16x128xf32>
      %151 = arith.addf %150, %149 : vector<16x128xf32>
      %152 = arith.divf %150, %151 : vector<16x128xf32>
      %153 = vector.extract_strided_slice %134 {offsets = [0, 256], sizes = [16, 128], strides = [1, 1]} : vector<16x384xf32> to vector<16x128xf32>
      %154 = vector.extract_strided_slice %136 {offsets = [0, 256], sizes = [16, 128], strides = [1, 1]} : vector<16x384xf32> to vector<16x128xf32>
      %155 = vector.broadcast %19 : vector<1x128xf32> to vector<16x128xf32>
      %156 = arith.addf %154, %155 : vector<16x128xf32>
      %157 = arith.mulf %144, %156 : vector<16x128xf32>
      %158 = arith.addf %153, %157 : vector<16x128xf32>
      %159 = math.tanh %158 : vector<16x128xf32>
      %cst_34 = arith.constant 1.000000e+00 : f32
      %160 = vector.broadcast %cst_34 : f32 to vector<16x128xf32>
      %161 = arith.subf %160, %152 : vector<16x128xf32>
      %162 = arith.mulf %161, %159 : vector<16x128xf32>
      %163 = arith.mulf %152, %133 : vector<16x128xf32>
      %164 = arith.addf %162, %163 : vector<16x128xf32>
      %c3_i32 = arith.constant 3 : i32
      %165 = arith.addi %22, %c3_i32 : i32
      %166 = vector.broadcast %165 : i32 to vector<16x1xi32>
      %167 = arith.cmpi slt, %166, %20 : vector<16x1xi32>
      %168 = vector.shape_cast %167 : vector<16x1xi1> to vector<16x1xi1>
      %169 = vector.broadcast %168 : vector<16x1xi1> to vector<16x128xi1>
      %170 = arith.select %169, %164, %133 : vector<16x128xi1>, vector<16x128xf32>
      %171 = vector.extract_strided_slice %17 {offsets = [64, 0], sizes = [16, 384], strides = [1, 1]} : vector<256x384xf32> to vector<16x384xf32>
      %172 = arith.truncf %170 : vector<16x128xf32> to vector<16x128xbf16>
      %cst_35 = arith.constant dense<0.000000e+00> : vector<16x384xf32>
      %173 = tpu.matmul %172, %18, %cst_35 {dimension_numbers = #tpu.dot_dimension_numbers<[1], [0], [0], [1], [0, 0, 1, 1], [], []>} : vector<16x128xbf16>, vector<128x384xbf16>, vector<16x384xf32> -> vector<16x384xf32>
      %174 = vector.extract_strided_slice %171 {offsets = [0, 0], sizes = [16, 128], strides = [1, 1]} : vector<16x384xf32> to vector<16x128xf32>
      %175 = vector.extract_strided_slice %173 {offsets = [0, 0], sizes = [16, 128], strides = [1, 1]} : vector<16x384xf32> to vector<16x128xf32>
      %176 = arith.addf %174, %175 : vector<16x128xf32>
      %177 = arith.negf %176 : vector<16x128xf32>
      %178 = math.exp %177 : vector<16x128xf32>
      %cst_36 = arith.constant 1.000000e+00 : f32
      %179 = vector.broadcast %cst_36 : f32 to vector<16x128xf32>
      %180 = arith.addf %179, %178 : vector<16x128xf32>
      %181 = arith.divf %179, %180 : vector<16x128xf32>
      %182 = vector.extract_strided_slice %171 {offsets = [0, 128], sizes = [16, 128], strides = [1, 1]} : vector<16x384xf32> to vector<16x128xf32>
      %183 = vector.extract_strided_slice %173 {offsets = [0, 128], sizes = [16, 128], strides = [1, 1]} : vector<16x384xf32> to vector<16x128xf32>
      %184 = arith.addf %182, %183 : vector<16x128xf32>
      %185 = arith.negf %184 : vector<16x128xf32>
      %186 = math.exp %185 : vector<16x128xf32>
      %cst_37 = arith.constant 1.000000e+00 : f32
      %187 = vector.broadcast %cst_37 : f32 to vector<16x128xf32>
      %188 = arith.addf %187, %186 : vector<16x128xf32>
      %189 = arith.divf %187, %188 : vector<16x128xf32>
      %190 = vector.extract_strided_slice %171 {offsets = [0, 256], sizes = [16, 128], strides = [1, 1]} : vector<16x384xf32> to vector<16x128xf32>
      %191 = vector.extract_strided_slice %173 {offsets = [0, 256], sizes = [16, 128], strides = [1, 1]} : vector<16x384xf32> to vector<16x128xf32>
      %192 = vector.broadcast %19 : vector<1x128xf32> to vector<16x128xf32>
      %193 = arith.addf %191, %192 : vector<16x128xf32>
      %194 = arith.mulf %181, %193 : vector<16x128xf32>
      %195 = arith.addf %190, %194 : vector<16x128xf32>
      %196 = math.tanh %195 : vector<16x128xf32>
      %cst_38 = arith.constant 1.000000e+00 : f32
      %197 = vector.broadcast %cst_38 : f32 to vector<16x128xf32>
      %198 = arith.subf %197, %189 : vector<16x128xf32>
      %199 = arith.mulf %198, %196 : vector<16x128xf32>
      %200 = arith.mulf %189, %170 : vector<16x128xf32>
      %201 = arith.addf %199, %200 : vector<16x128xf32>
      %c4_i32 = arith.constant 4 : i32
      %202 = arith.addi %22, %c4_i32 : i32
      %203 = vector.broadcast %202 : i32 to vector<16x1xi32>
      %204 = arith.cmpi slt, %203, %20 : vector<16x1xi32>
      %205 = vector.shape_cast %204 : vector<16x1xi1> to vector<16x1xi1>
      %206 = vector.broadcast %205 : vector<16x1xi1> to vector<16x128xi1>
      %207 = arith.select %206, %201, %170 : vector<16x128xi1>, vector<16x128xf32>
      %208 = vector.extract_strided_slice %17 {offsets = [80, 0], sizes = [16, 384], strides = [1, 1]} : vector<256x384xf32> to vector<16x384xf32>
      %209 = arith.truncf %207 : vector<16x128xf32> to vector<16x128xbf16>
      %cst_39 = arith.constant dense<0.000000e+00> : vector<16x384xf32>
      %210 = tpu.matmul %209, %18, %cst_39 {dimension_numbers = #tpu.dot_dimension_numbers<[1], [0], [0], [1], [0, 0, 1, 1], [], []>} : vector<16x128xbf16>, vector<128x384xbf16>, vector<16x384xf32> -> vector<16x384xf32>
      %211 = vector.extract_strided_slice %208 {offsets = [0, 0], sizes = [16, 128], strides = [1, 1]} : vector<16x384xf32> to vector<16x128xf32>
      %212 = vector.extract_strided_slice %210 {offsets = [0, 0], sizes = [16, 128], strides = [1, 1]} : vector<16x384xf32> to vector<16x128xf32>
      %213 = arith.addf %211, %212 : vector<16x128xf32>
      %214 = arith.negf %213 : vector<16x128xf32>
      %215 = math.exp %214 : vector<16x128xf32>
      %cst_40 = arith.constant 1.000000e+00 : f32
      %216 = vector.broadcast %cst_40 : f32 to vector<16x128xf32>
      %217 = arith.addf %216, %215 : vector<16x128xf32>
      %218 = arith.divf %216, %217 : vector<16x128xf32>
      %219 = vector.extract_strided_slice %208 {offsets = [0, 128], sizes = [16, 128], strides = [1, 1]} : vector<16x384xf32> to vector<16x128xf32>
      %220 = vector.extract_strided_slice %210 {offsets = [0, 128], sizes = [16, 128], strides = [1, 1]} : vector<16x384xf32> to vector<16x128xf32>
      %221 = arith.addf %219, %220 : vector<16x128xf32>
      %222 = arith.negf %221 : vector<16x128xf32>
      %223 = math.exp %222 : vector<16x128xf32>
      %cst_41 = arith.constant 1.000000e+00 : f32
      %224 = vector.broadcast %cst_41 : f32 to vector<16x128xf32>
      %225 = arith.addf %224, %223 : vector<16x128xf32>
      %226 = arith.divf %224, %225 : vector<16x128xf32>
      %227 = vector.extract_strided_slice %208 {offsets = [0, 256], sizes = [16, 128], strides = [1, 1]} : vector<16x384xf32> to vector<16x128xf32>
      %228 = vector.extract_strided_slice %210 {offsets = [0, 256], sizes = [16, 128], strides = [1, 1]} : vector<16x384xf32> to vector<16x128xf32>
      %229 = vector.broadcast %19 : vector<1x128xf32> to vector<16x128xf32>
      %230 = arith.addf %228, %229 : vector<16x128xf32>
      %231 = arith.mulf %218, %230 : vector<16x128xf32>
      %232 = arith.addf %227, %231 : vector<16x128xf32>
      %233 = math.tanh %232 : vector<16x128xf32>
      %cst_42 = arith.constant 1.000000e+00 : f32
      %234 = vector.broadcast %cst_42 : f32 to vector<16x128xf32>
      %235 = arith.subf %234, %226 : vector<16x128xf32>
      %236 = arith.mulf %235, %233 : vector<16x128xf32>
      %237 = arith.mulf %226, %207 : vector<16x128xf32>
      %238 = arith.addf %236, %237 : vector<16x128xf32>
      %c5_i32 = arith.constant 5 : i32
      %239 = arith.addi %22, %c5_i32 : i32
      %240 = vector.broadcast %239 : i32 to vector<16x1xi32>
      %241 = arith.cmpi slt, %240, %20 : vector<16x1xi32>
      %242 = vector.shape_cast %241 : vector<16x1xi1> to vector<16x1xi1>
      %243 = vector.broadcast %242 : vector<16x1xi1> to vector<16x128xi1>
      %244 = arith.select %243, %238, %207 : vector<16x128xi1>, vector<16x128xf32>
      %245 = vector.extract_strided_slice %17 {offsets = [96, 0], sizes = [16, 384], strides = [1, 1]} : vector<256x384xf32> to vector<16x384xf32>
      %246 = arith.truncf %244 : vector<16x128xf32> to vector<16x128xbf16>
      %cst_43 = arith.constant dense<0.000000e+00> : vector<16x384xf32>
      %247 = tpu.matmul %246, %18, %cst_43 {dimension_numbers = #tpu.dot_dimension_numbers<[1], [0], [0], [1], [0, 0, 1, 1], [], []>} : vector<16x128xbf16>, vector<128x384xbf16>, vector<16x384xf32> -> vector<16x384xf32>
      %248 = vector.extract_strided_slice %245 {offsets = [0, 0], sizes = [16, 128], strides = [1, 1]} : vector<16x384xf32> to vector<16x128xf32>
      %249 = vector.extract_strided_slice %247 {offsets = [0, 0], sizes = [16, 128], strides = [1, 1]} : vector<16x384xf32> to vector<16x128xf32>
      %250 = arith.addf %248, %249 : vector<16x128xf32>
      %251 = arith.negf %250 : vector<16x128xf32>
      %252 = math.exp %251 : vector<16x128xf32>
      %cst_44 = arith.constant 1.000000e+00 : f32
      %253 = vector.broadcast %cst_44 : f32 to vector<16x128xf32>
      %254 = arith.addf %253, %252 : vector<16x128xf32>
      %255 = arith.divf %253, %254 : vector<16x128xf32>
      %256 = vector.extract_strided_slice %245 {offsets = [0, 128], sizes = [16, 128], strides = [1, 1]} : vector<16x384xf32> to vector<16x128xf32>
      %257 = vector.extract_strided_slice %247 {offsets = [0, 128], sizes = [16, 128], strides = [1, 1]} : vector<16x384xf32> to vector<16x128xf32>
      %258 = arith.addf %256, %257 : vector<16x128xf32>
      %259 = arith.negf %258 : vector<16x128xf32>
      %260 = math.exp %259 : vector<16x128xf32>
      %cst_45 = arith.constant 1.000000e+00 : f32
      %261 = vector.broadcast %cst_45 : f32 to vector<16x128xf32>
      %262 = arith.addf %261, %260 : vector<16x128xf32>
      %263 = arith.divf %261, %262 : vector<16x128xf32>
      %264 = vector.extract_strided_slice %245 {offsets = [0, 256], sizes = [16, 128], strides = [1, 1]} : vector<16x384xf32> to vector<16x128xf32>
      %265 = vector.extract_strided_slice %247 {offsets = [0, 256], sizes = [16, 128], strides = [1, 1]} : vector<16x384xf32> to vector<16x128xf32>
      %266 = vector.broadcast %19 : vector<1x128xf32> to vector<16x128xf32>
      %267 = arith.addf %265, %266 : vector<16x128xf32>
      %268 = arith.mulf %255, %267 : vector<16x128xf32>
      %269 = arith.addf %264, %268 : vector<16x128xf32>
      %270 = math.tanh %269 : vector<16x128xf32>
      %cst_46 = arith.constant 1.000000e+00 : f32
      %271 = vector.broadcast %cst_46 : f32 to vector<16x128xf32>
      %272 = arith.subf %271, %263 : vector<16x128xf32>
      %273 = arith.mulf %272, %270 : vector<16x128xf32>
      %274 = arith.mulf %263, %244 : vector<16x128xf32>
      %275 = arith.addf %273, %274 : vector<16x128xf32>
      %c6_i32 = arith.constant 6 : i32
      %276 = arith.addi %22, %c6_i32 : i32
      %277 = vector.broadcast %276 : i32 to vector<16x1xi32>
      %278 = arith.cmpi slt, %277, %20 : vector<16x1xi32>
      %279 = vector.shape_cast %278 : vector<16x1xi1> to vector<16x1xi1>
      %280 = vector.broadcast %279 : vector<16x1xi1> to vector<16x128xi1>
      %281 = arith.select %280, %275, %244 : vector<16x128xi1>, vector<16x128xf32>
      %282 = vector.extract_strided_slice %17 {offsets = [112, 0], sizes = [16, 384], strides = [1, 1]} : vector<256x384xf32> to vector<16x384xf32>
      %283 = arith.truncf %281 : vector<16x128xf32> to vector<16x128xbf16>
      %cst_47 = arith.constant dense<0.000000e+00> : vector<16x384xf32>
      %284 = tpu.matmul %283, %18, %cst_47 {dimension_numbers = #tpu.dot_dimension_numbers<[1], [0], [0], [1], [0, 0, 1, 1], [], []>} : vector<16x128xbf16>, vector<128x384xbf16>, vector<16x384xf32> -> vector<16x384xf32>
      %285 = vector.extract_strided_slice %282 {offsets = [0, 0], sizes = [16, 128], strides = [1, 1]} : vector<16x384xf32> to vector<16x128xf32>
      %286 = vector.extract_strided_slice %284 {offsets = [0, 0], sizes = [16, 128], strides = [1, 1]} : vector<16x384xf32> to vector<16x128xf32>
      %287 = arith.addf %285, %286 : vector<16x128xf32>
      %288 = arith.negf %287 : vector<16x128xf32>
      %289 = math.exp %288 : vector<16x128xf32>
      %cst_48 = arith.constant 1.000000e+00 : f32
      %290 = vector.broadcast %cst_48 : f32 to vector<16x128xf32>
      %291 = arith.addf %290, %289 : vector<16x128xf32>
      %292 = arith.divf %290, %291 : vector<16x128xf32>
      %293 = vector.extract_strided_slice %282 {offsets = [0, 128], sizes = [16, 128], strides = [1, 1]} : vector<16x384xf32> to vector<16x128xf32>
      %294 = vector.extract_strided_slice %284 {offsets = [0, 128], sizes = [16, 128], strides = [1, 1]} : vector<16x384xf32> to vector<16x128xf32>
      %295 = arith.addf %293, %294 : vector<16x128xf32>
      %296 = arith.negf %295 : vector<16x128xf32>
      %297 = math.exp %296 : vector<16x128xf32>
      %cst_49 = arith.constant 1.000000e+00 : f32
      %298 = vector.broadcast %cst_49 : f32 to vector<16x128xf32>
      %299 = arith.addf %298, %297 : vector<16x128xf32>
      %300 = arith.divf %298, %299 : vector<16x128xf32>
      %301 = vector.extract_strided_slice %282 {offsets = [0, 256], sizes = [16, 128], strides = [1, 1]} : vector<16x384xf32> to vector<16x128xf32>
      %302 = vector.extract_strided_slice %284 {offsets = [0, 256], sizes = [16, 128], strides = [1, 1]} : vector<16x384xf32> to vector<16x128xf32>
      %303 = vector.broadcast %19 : vector<1x128xf32> to vector<16x128xf32>
      %304 = arith.addf %302, %303 : vector<16x128xf32>
      %305 = arith.mulf %292, %304 : vector<16x128xf32>
      %306 = arith.addf %301, %305 : vector<16x128xf32>
      %307 = math.tanh %306 : vector<16x128xf32>
      %cst_50 = arith.constant 1.000000e+00 : f32
      %308 = vector.broadcast %cst_50 : f32 to vector<16x128xf32>
      %309 = arith.subf %308, %300 : vector<16x128xf32>
      %310 = arith.mulf %309, %307 : vector<16x128xf32>
      %311 = arith.mulf %300, %281 : vector<16x128xf32>
      %312 = arith.addf %310, %311 : vector<16x128xf32>
      %c7_i32 = arith.constant 7 : i32
      %313 = arith.addi %22, %c7_i32 : i32
      %314 = vector.broadcast %313 : i32 to vector<16x1xi32>
      %315 = arith.cmpi slt, %314, %20 : vector<16x1xi32>
      %316 = vector.shape_cast %315 : vector<16x1xi1> to vector<16x1xi1>
      %317 = vector.broadcast %316 : vector<16x1xi1> to vector<16x128xi1>
      %318 = arith.select %317, %312, %281 : vector<16x128xi1>, vector<16x128xf32>
      %319 = vector.extract_strided_slice %17 {offsets = [128, 0], sizes = [16, 384], strides = [1, 1]} : vector<256x384xf32> to vector<16x384xf32>
      %320 = arith.truncf %318 : vector<16x128xf32> to vector<16x128xbf16>
      %cst_51 = arith.constant dense<0.000000e+00> : vector<16x384xf32>
      %321 = tpu.matmul %320, %18, %cst_51 {dimension_numbers = #tpu.dot_dimension_numbers<[1], [0], [0], [1], [0, 0, 1, 1], [], []>} : vector<16x128xbf16>, vector<128x384xbf16>, vector<16x384xf32> -> vector<16x384xf32>
      %322 = vector.extract_strided_slice %319 {offsets = [0, 0], sizes = [16, 128], strides = [1, 1]} : vector<16x384xf32> to vector<16x128xf32>
      %323 = vector.extract_strided_slice %321 {offsets = [0, 0], sizes = [16, 128], strides = [1, 1]} : vector<16x384xf32> to vector<16x128xf32>
      %324 = arith.addf %322, %323 : vector<16x128xf32>
      %325 = arith.negf %324 : vector<16x128xf32>
      %326 = math.exp %325 : vector<16x128xf32>
      %cst_52 = arith.constant 1.000000e+00 : f32
      %327 = vector.broadcast %cst_52 : f32 to vector<16x128xf32>
      %328 = arith.addf %327, %326 : vector<16x128xf32>
      %329 = arith.divf %327, %328 : vector<16x128xf32>
      %330 = vector.extract_strided_slice %319 {offsets = [0, 128], sizes = [16, 128], strides = [1, 1]} : vector<16x384xf32> to vector<16x128xf32>
      %331 = vector.extract_strided_slice %321 {offsets = [0, 128], sizes = [16, 128], strides = [1, 1]} : vector<16x384xf32> to vector<16x128xf32>
      %332 = arith.addf %330, %331 : vector<16x128xf32>
      %333 = arith.negf %332 : vector<16x128xf32>
      %334 = math.exp %333 : vector<16x128xf32>
      %cst_53 = arith.constant 1.000000e+00 : f32
      %335 = vector.broadcast %cst_53 : f32 to vector<16x128xf32>
      %336 = arith.addf %335, %334 : vector<16x128xf32>
      %337 = arith.divf %335, %336 : vector<16x128xf32>
      %338 = vector.extract_strided_slice %319 {offsets = [0, 256], sizes = [16, 128], strides = [1, 1]} : vector<16x384xf32> to vector<16x128xf32>
      %339 = vector.extract_strided_slice %321 {offsets = [0, 256], sizes = [16, 128], strides = [1, 1]} : vector<16x384xf32> to vector<16x128xf32>
      %340 = vector.broadcast %19 : vector<1x128xf32> to vector<16x128xf32>
      %341 = arith.addf %339, %340 : vector<16x128xf32>
      %342 = arith.mulf %329, %341 : vector<16x128xf32>
      %343 = arith.addf %338, %342 : vector<16x128xf32>
      %344 = math.tanh %343 : vector<16x128xf32>
      %cst_54 = arith.constant 1.000000e+00 : f32
      %345 = vector.broadcast %cst_54 : f32 to vector<16x128xf32>
      %346 = arith.subf %345, %337 : vector<16x128xf32>
      %347 = arith.mulf %346, %344 : vector<16x128xf32>
      %348 = arith.mulf %337, %318 : vector<16x128xf32>
      %349 = arith.addf %347, %348 : vector<16x128xf32>
      %c8_i32 = arith.constant 8 : i32
      %350 = arith.addi %22, %c8_i32 : i32
      %351 = vector.broadcast %350 : i32 to vector<16x1xi32>
      %352 = arith.cmpi slt, %351, %20 : vector<16x1xi32>
      %353 = vector.shape_cast %352 : vector<16x1xi1> to vector<16x1xi1>
      %354 = vector.broadcast %353 : vector<16x1xi1> to vector<16x128xi1>
      %355 = arith.select %354, %349, %318 : vector<16x128xi1>, vector<16x128xf32>
      %356 = vector.extract_strided_slice %17 {offsets = [144, 0], sizes = [16, 384], strides = [1, 1]} : vector<256x384xf32> to vector<16x384xf32>
      %357 = arith.truncf %355 : vector<16x128xf32> to vector<16x128xbf16>
      %cst_55 = arith.constant dense<0.000000e+00> : vector<16x384xf32>
      %358 = tpu.matmul %357, %18, %cst_55 {dimension_numbers = #tpu.dot_dimension_numbers<[1], [0], [0], [1], [0, 0, 1, 1], [], []>} : vector<16x128xbf16>, vector<128x384xbf16>, vector<16x384xf32> -> vector<16x384xf32>
      %359 = vector.extract_strided_slice %356 {offsets = [0, 0], sizes = [16, 128], strides = [1, 1]} : vector<16x384xf32> to vector<16x128xf32>
      %360 = vector.extract_strided_slice %358 {offsets = [0, 0], sizes = [16, 128], strides = [1, 1]} : vector<16x384xf32> to vector<16x128xf32>
      %361 = arith.addf %359, %360 : vector<16x128xf32>
      %362 = arith.negf %361 : vector<16x128xf32>
      %363 = math.exp %362 : vector<16x128xf32>
      %cst_56 = arith.constant 1.000000e+00 : f32
      %364 = vector.broadcast %cst_56 : f32 to vector<16x128xf32>
      %365 = arith.addf %364, %363 : vector<16x128xf32>
      %366 = arith.divf %364, %365 : vector<16x128xf32>
      %367 = vector.extract_strided_slice %356 {offsets = [0, 128], sizes = [16, 128], strides = [1, 1]} : vector<16x384xf32> to vector<16x128xf32>
      %368 = vector.extract_strided_slice %358 {offsets = [0, 128], sizes = [16, 128], strides = [1, 1]} : vector<16x384xf32> to vector<16x128xf32>
      %369 = arith.addf %367, %368 : vector<16x128xf32>
      %370 = arith.negf %369 : vector<16x128xf32>
      %371 = math.exp %370 : vector<16x128xf32>
      %cst_57 = arith.constant 1.000000e+00 : f32
      %372 = vector.broadcast %cst_57 : f32 to vector<16x128xf32>
      %373 = arith.addf %372, %371 : vector<16x128xf32>
      %374 = arith.divf %372, %373 : vector<16x128xf32>
      %375 = vector.extract_strided_slice %356 {offsets = [0, 256], sizes = [16, 128], strides = [1, 1]} : vector<16x384xf32> to vector<16x128xf32>
      %376 = vector.extract_strided_slice %358 {offsets = [0, 256], sizes = [16, 128], strides = [1, 1]} : vector<16x384xf32> to vector<16x128xf32>
      %377 = vector.broadcast %19 : vector<1x128xf32> to vector<16x128xf32>
      %378 = arith.addf %376, %377 : vector<16x128xf32>
      %379 = arith.mulf %366, %378 : vector<16x128xf32>
      %380 = arith.addf %375, %379 : vector<16x128xf32>
      %381 = math.tanh %380 : vector<16x128xf32>
      %cst_58 = arith.constant 1.000000e+00 : f32
      %382 = vector.broadcast %cst_58 : f32 to vector<16x128xf32>
      %383 = arith.subf %382, %374 : vector<16x128xf32>
      %384 = arith.mulf %383, %381 : vector<16x128xf32>
      %385 = arith.mulf %374, %355 : vector<16x128xf32>
      %386 = arith.addf %384, %385 : vector<16x128xf32>
      %c9_i32 = arith.constant 9 : i32
      %387 = arith.addi %22, %c9_i32 : i32
      %388 = vector.broadcast %387 : i32 to vector<16x1xi32>
      %389 = arith.cmpi slt, %388, %20 : vector<16x1xi32>
      %390 = vector.shape_cast %389 : vector<16x1xi1> to vector<16x1xi1>
      %391 = vector.broadcast %390 : vector<16x1xi1> to vector<16x128xi1>
      %392 = arith.select %391, %386, %355 : vector<16x128xi1>, vector<16x128xf32>
      %393 = vector.extract_strided_slice %17 {offsets = [160, 0], sizes = [16, 384], strides = [1, 1]} : vector<256x384xf32> to vector<16x384xf32>
      %394 = arith.truncf %392 : vector<16x128xf32> to vector<16x128xbf16>
      %cst_59 = arith.constant dense<0.000000e+00> : vector<16x384xf32>
      %395 = tpu.matmul %394, %18, %cst_59 {dimension_numbers = #tpu.dot_dimension_numbers<[1], [0], [0], [1], [0, 0, 1, 1], [], []>} : vector<16x128xbf16>, vector<128x384xbf16>, vector<16x384xf32> -> vector<16x384xf32>
      %396 = vector.extract_strided_slice %393 {offsets = [0, 0], sizes = [16, 128], strides = [1, 1]} : vector<16x384xf32> to vector<16x128xf32>
      %397 = vector.extract_strided_slice %395 {offsets = [0, 0], sizes = [16, 128], strides = [1, 1]} : vector<16x384xf32> to vector<16x128xf32>
      %398 = arith.addf %396, %397 : vector<16x128xf32>
      %399 = arith.negf %398 : vector<16x128xf32>
      %400 = math.exp %399 : vector<16x128xf32>
      %cst_60 = arith.constant 1.000000e+00 : f32
      %401 = vector.broadcast %cst_60 : f32 to vector<16x128xf32>
      %402 = arith.addf %401, %400 : vector<16x128xf32>
      %403 = arith.divf %401, %402 : vector<16x128xf32>
      %404 = vector.extract_strided_slice %393 {offsets = [0, 128], sizes = [16, 128], strides = [1, 1]} : vector<16x384xf32> to vector<16x128xf32>
      %405 = vector.extract_strided_slice %395 {offsets = [0, 128], sizes = [16, 128], strides = [1, 1]} : vector<16x384xf32> to vector<16x128xf32>
      %406 = arith.addf %404, %405 : vector<16x128xf32>
      %407 = arith.negf %406 : vector<16x128xf32>
      %408 = math.exp %407 : vector<16x128xf32>
      %cst_61 = arith.constant 1.000000e+00 : f32
      %409 = vector.broadcast %cst_61 : f32 to vector<16x128xf32>
      %410 = arith.addf %409, %408 : vector<16x128xf32>
      %411 = arith.divf %409, %410 : vector<16x128xf32>
      %412 = vector.extract_strided_slice %393 {offsets = [0, 256], sizes = [16, 128], strides = [1, 1]} : vector<16x384xf32> to vector<16x128xf32>
      %413 = vector.extract_strided_slice %395 {offsets = [0, 256], sizes = [16, 128], strides = [1, 1]} : vector<16x384xf32> to vector<16x128xf32>
      %414 = vector.broadcast %19 : vector<1x128xf32> to vector<16x128xf32>
      %415 = arith.addf %413, %414 : vector<16x128xf32>
      %416 = arith.mulf %403, %415 : vector<16x128xf32>
      %417 = arith.addf %412, %416 : vector<16x128xf32>
      %418 = math.tanh %417 : vector<16x128xf32>
      %cst_62 = arith.constant 1.000000e+00 : f32
      %419 = vector.broadcast %cst_62 : f32 to vector<16x128xf32>
      %420 = arith.subf %419, %411 : vector<16x128xf32>
      %421 = arith.mulf %420, %418 : vector<16x128xf32>
      %422 = arith.mulf %411, %392 : vector<16x128xf32>
      %423 = arith.addf %421, %422 : vector<16x128xf32>
      %c10_i32 = arith.constant 10 : i32
      %424 = arith.addi %22, %c10_i32 : i32
      %425 = vector.broadcast %424 : i32 to vector<16x1xi32>
      %426 = arith.cmpi slt, %425, %20 : vector<16x1xi32>
      %427 = vector.shape_cast %426 : vector<16x1xi1> to vector<16x1xi1>
      %428 = vector.broadcast %427 : vector<16x1xi1> to vector<16x128xi1>
      %429 = arith.select %428, %423, %392 : vector<16x128xi1>, vector<16x128xf32>
      %430 = vector.extract_strided_slice %17 {offsets = [176, 0], sizes = [16, 384], strides = [1, 1]} : vector<256x384xf32> to vector<16x384xf32>
      %431 = arith.truncf %429 : vector<16x128xf32> to vector<16x128xbf16>
      %cst_63 = arith.constant dense<0.000000e+00> : vector<16x384xf32>
      %432 = tpu.matmul %431, %18, %cst_63 {dimension_numbers = #tpu.dot_dimension_numbers<[1], [0], [0], [1], [0, 0, 1, 1], [], []>} : vector<16x128xbf16>, vector<128x384xbf16>, vector<16x384xf32> -> vector<16x384xf32>
      %433 = vector.extract_strided_slice %430 {offsets = [0, 0], sizes = [16, 128], strides = [1, 1]} : vector<16x384xf32> to vector<16x128xf32>
      %434 = vector.extract_strided_slice %432 {offsets = [0, 0], sizes = [16, 128], strides = [1, 1]} : vector<16x384xf32> to vector<16x128xf32>
      %435 = arith.addf %433, %434 : vector<16x128xf32>
      %436 = arith.negf %435 : vector<16x128xf32>
      %437 = math.exp %436 : vector<16x128xf32>
      %cst_64 = arith.constant 1.000000e+00 : f32
      %438 = vector.broadcast %cst_64 : f32 to vector<16x128xf32>
      %439 = arith.addf %438, %437 : vector<16x128xf32>
      %440 = arith.divf %438, %439 : vector<16x128xf32>
      %441 = vector.extract_strided_slice %430 {offsets = [0, 128], sizes = [16, 128], strides = [1, 1]} : vector<16x384xf32> to vector<16x128xf32>
      %442 = vector.extract_strided_slice %432 {offsets = [0, 128], sizes = [16, 128], strides = [1, 1]} : vector<16x384xf32> to vector<16x128xf32>
      %443 = arith.addf %441, %442 : vector<16x128xf32>
      %444 = arith.negf %443 : vector<16x128xf32>
      %445 = math.exp %444 : vector<16x128xf32>
      %cst_65 = arith.constant 1.000000e+00 : f32
      %446 = vector.broadcast %cst_65 : f32 to vector<16x128xf32>
      %447 = arith.addf %446, %445 : vector<16x128xf32>
      %448 = arith.divf %446, %447 : vector<16x128xf32>
      %449 = vector.extract_strided_slice %430 {offsets = [0, 256], sizes = [16, 128], strides = [1, 1]} : vector<16x384xf32> to vector<16x128xf32>
      %450 = vector.extract_strided_slice %432 {offsets = [0, 256], sizes = [16, 128], strides = [1, 1]} : vector<16x384xf32> to vector<16x128xf32>
      %451 = vector.broadcast %19 : vector<1x128xf32> to vector<16x128xf32>
      %452 = arith.addf %450, %451 : vector<16x128xf32>
      %453 = arith.mulf %440, %452 : vector<16x128xf32>
      %454 = arith.addf %449, %453 : vector<16x128xf32>
      %455 = math.tanh %454 : vector<16x128xf32>
      %cst_66 = arith.constant 1.000000e+00 : f32
      %456 = vector.broadcast %cst_66 : f32 to vector<16x128xf32>
      %457 = arith.subf %456, %448 : vector<16x128xf32>
      %458 = arith.mulf %457, %455 : vector<16x128xf32>
      %459 = arith.mulf %448, %429 : vector<16x128xf32>
      %460 = arith.addf %458, %459 : vector<16x128xf32>
      %c11_i32 = arith.constant 11 : i32
      %461 = arith.addi %22, %c11_i32 : i32
      %462 = vector.broadcast %461 : i32 to vector<16x1xi32>
      %463 = arith.cmpi slt, %462, %20 : vector<16x1xi32>
      %464 = vector.shape_cast %463 : vector<16x1xi1> to vector<16x1xi1>
      %465 = vector.broadcast %464 : vector<16x1xi1> to vector<16x128xi1>
      %466 = arith.select %465, %460, %429 : vector<16x128xi1>, vector<16x128xf32>
      %467 = vector.extract_strided_slice %17 {offsets = [192, 0], sizes = [16, 384], strides = [1, 1]} : vector<256x384xf32> to vector<16x384xf32>
      %468 = arith.truncf %466 : vector<16x128xf32> to vector<16x128xbf16>
      %cst_67 = arith.constant dense<0.000000e+00> : vector<16x384xf32>
      %469 = tpu.matmul %468, %18, %cst_67 {dimension_numbers = #tpu.dot_dimension_numbers<[1], [0], [0], [1], [0, 0, 1, 1], [], []>} : vector<16x128xbf16>, vector<128x384xbf16>, vector<16x384xf32> -> vector<16x384xf32>
      %470 = vector.extract_strided_slice %467 {offsets = [0, 0], sizes = [16, 128], strides = [1, 1]} : vector<16x384xf32> to vector<16x128xf32>
      %471 = vector.extract_strided_slice %469 {offsets = [0, 0], sizes = [16, 128], strides = [1, 1]} : vector<16x384xf32> to vector<16x128xf32>
      %472 = arith.addf %470, %471 : vector<16x128xf32>
      %473 = arith.negf %472 : vector<16x128xf32>
      %474 = math.exp %473 : vector<16x128xf32>
      %cst_68 = arith.constant 1.000000e+00 : f32
      %475 = vector.broadcast %cst_68 : f32 to vector<16x128xf32>
      %476 = arith.addf %475, %474 : vector<16x128xf32>
      %477 = arith.divf %475, %476 : vector<16x128xf32>
      %478 = vector.extract_strided_slice %467 {offsets = [0, 128], sizes = [16, 128], strides = [1, 1]} : vector<16x384xf32> to vector<16x128xf32>
      %479 = vector.extract_strided_slice %469 {offsets = [0, 128], sizes = [16, 128], strides = [1, 1]} : vector<16x384xf32> to vector<16x128xf32>
      %480 = arith.addf %478, %479 : vector<16x128xf32>
      %481 = arith.negf %480 : vector<16x128xf32>
      %482 = math.exp %481 : vector<16x128xf32>
      %cst_69 = arith.constant 1.000000e+00 : f32
      %483 = vector.broadcast %cst_69 : f32 to vector<16x128xf32>
      %484 = arith.addf %483, %482 : vector<16x128xf32>
      %485 = arith.divf %483, %484 : vector<16x128xf32>
      %486 = vector.extract_strided_slice %467 {offsets = [0, 256], sizes = [16, 128], strides = [1, 1]} : vector<16x384xf32> to vector<16x128xf32>
      %487 = vector.extract_strided_slice %469 {offsets = [0, 256], sizes = [16, 128], strides = [1, 1]} : vector<16x384xf32> to vector<16x128xf32>
      %488 = vector.broadcast %19 : vector<1x128xf32> to vector<16x128xf32>
      %489 = arith.addf %487, %488 : vector<16x128xf32>
      %490 = arith.mulf %477, %489 : vector<16x128xf32>
      %491 = arith.addf %486, %490 : vector<16x128xf32>
      %492 = math.tanh %491 : vector<16x128xf32>
      %cst_70 = arith.constant 1.000000e+00 : f32
      %493 = vector.broadcast %cst_70 : f32 to vector<16x128xf32>
      %494 = arith.subf %493, %485 : vector<16x128xf32>
      %495 = arith.mulf %494, %492 : vector<16x128xf32>
      %496 = arith.mulf %485, %466 : vector<16x128xf32>
      %497 = arith.addf %495, %496 : vector<16x128xf32>
      %c12_i32 = arith.constant 12 : i32
      %498 = arith.addi %22, %c12_i32 : i32
      %499 = vector.broadcast %498 : i32 to vector<16x1xi32>
      %500 = arith.cmpi slt, %499, %20 : vector<16x1xi32>
      %501 = vector.shape_cast %500 : vector<16x1xi1> to vector<16x1xi1>
      %502 = vector.broadcast %501 : vector<16x1xi1> to vector<16x128xi1>
      %503 = arith.select %502, %497, %466 : vector<16x128xi1>, vector<16x128xf32>
      %504 = vector.extract_strided_slice %17 {offsets = [208, 0], sizes = [16, 384], strides = [1, 1]} : vector<256x384xf32> to vector<16x384xf32>
      %505 = arith.truncf %503 : vector<16x128xf32> to vector<16x128xbf16>
      %cst_71 = arith.constant dense<0.000000e+00> : vector<16x384xf32>
      %506 = tpu.matmul %505, %18, %cst_71 {dimension_numbers = #tpu.dot_dimension_numbers<[1], [0], [0], [1], [0, 0, 1, 1], [], []>} : vector<16x128xbf16>, vector<128x384xbf16>, vector<16x384xf32> -> vector<16x384xf32>
      %507 = vector.extract_strided_slice %504 {offsets = [0, 0], sizes = [16, 128], strides = [1, 1]} : vector<16x384xf32> to vector<16x128xf32>
      %508 = vector.extract_strided_slice %506 {offsets = [0, 0], sizes = [16, 128], strides = [1, 1]} : vector<16x384xf32> to vector<16x128xf32>
      %509 = arith.addf %507, %508 : vector<16x128xf32>
      %510 = arith.negf %509 : vector<16x128xf32>
      %511 = math.exp %510 : vector<16x128xf32>
      %cst_72 = arith.constant 1.000000e+00 : f32
      %512 = vector.broadcast %cst_72 : f32 to vector<16x128xf32>
      %513 = arith.addf %512, %511 : vector<16x128xf32>
      %514 = arith.divf %512, %513 : vector<16x128xf32>
      %515 = vector.extract_strided_slice %504 {offsets = [0, 128], sizes = [16, 128], strides = [1, 1]} : vector<16x384xf32> to vector<16x128xf32>
      %516 = vector.extract_strided_slice %506 {offsets = [0, 128], sizes = [16, 128], strides = [1, 1]} : vector<16x384xf32> to vector<16x128xf32>
      %517 = arith.addf %515, %516 : vector<16x128xf32>
      %518 = arith.negf %517 : vector<16x128xf32>
      %519 = math.exp %518 : vector<16x128xf32>
      %cst_73 = arith.constant 1.000000e+00 : f32
      %520 = vector.broadcast %cst_73 : f32 to vector<16x128xf32>
      %521 = arith.addf %520, %519 : vector<16x128xf32>
      %522 = arith.divf %520, %521 : vector<16x128xf32>
      %523 = vector.extract_strided_slice %504 {offsets = [0, 256], sizes = [16, 128], strides = [1, 1]} : vector<16x384xf32> to vector<16x128xf32>
      %524 = vector.extract_strided_slice %506 {offsets = [0, 256], sizes = [16, 128], strides = [1, 1]} : vector<16x384xf32> to vector<16x128xf32>
      %525 = vector.broadcast %19 : vector<1x128xf32> to vector<16x128xf32>
      %526 = arith.addf %524, %525 : vector<16x128xf32>
      %527 = arith.mulf %514, %526 : vector<16x128xf32>
      %528 = arith.addf %523, %527 : vector<16x128xf32>
      %529 = math.tanh %528 : vector<16x128xf32>
      %cst_74 = arith.constant 1.000000e+00 : f32
      %530 = vector.broadcast %cst_74 : f32 to vector<16x128xf32>
      %531 = arith.subf %530, %522 : vector<16x128xf32>
      %532 = arith.mulf %531, %529 : vector<16x128xf32>
      %533 = arith.mulf %522, %503 : vector<16x128xf32>
      %534 = arith.addf %532, %533 : vector<16x128xf32>
      %c13_i32 = arith.constant 13 : i32
      %535 = arith.addi %22, %c13_i32 : i32
      %536 = vector.broadcast %535 : i32 to vector<16x1xi32>
      %537 = arith.cmpi slt, %536, %20 : vector<16x1xi32>
      %538 = vector.shape_cast %537 : vector<16x1xi1> to vector<16x1xi1>
      %539 = vector.broadcast %538 : vector<16x1xi1> to vector<16x128xi1>
      %540 = arith.select %539, %534, %503 : vector<16x128xi1>, vector<16x128xf32>
      %541 = vector.extract_strided_slice %17 {offsets = [224, 0], sizes = [16, 384], strides = [1, 1]} : vector<256x384xf32> to vector<16x384xf32>
      %542 = arith.truncf %540 : vector<16x128xf32> to vector<16x128xbf16>
      %cst_75 = arith.constant dense<0.000000e+00> : vector<16x384xf32>
      %543 = tpu.matmul %542, %18, %cst_75 {dimension_numbers = #tpu.dot_dimension_numbers<[1], [0], [0], [1], [0, 0, 1, 1], [], []>} : vector<16x128xbf16>, vector<128x384xbf16>, vector<16x384xf32> -> vector<16x384xf32>
      %544 = vector.extract_strided_slice %541 {offsets = [0, 0], sizes = [16, 128], strides = [1, 1]} : vector<16x384xf32> to vector<16x128xf32>
      %545 = vector.extract_strided_slice %543 {offsets = [0, 0], sizes = [16, 128], strides = [1, 1]} : vector<16x384xf32> to vector<16x128xf32>
      %546 = arith.addf %544, %545 : vector<16x128xf32>
      %547 = arith.negf %546 : vector<16x128xf32>
      %548 = math.exp %547 : vector<16x128xf32>
      %cst_76 = arith.constant 1.000000e+00 : f32
      %549 = vector.broadcast %cst_76 : f32 to vector<16x128xf32>
      %550 = arith.addf %549, %548 : vector<16x128xf32>
      %551 = arith.divf %549, %550 : vector<16x128xf32>
      %552 = vector.extract_strided_slice %541 {offsets = [0, 128], sizes = [16, 128], strides = [1, 1]} : vector<16x384xf32> to vector<16x128xf32>
      %553 = vector.extract_strided_slice %543 {offsets = [0, 128], sizes = [16, 128], strides = [1, 1]} : vector<16x384xf32> to vector<16x128xf32>
      %554 = arith.addf %552, %553 : vector<16x128xf32>
      %555 = arith.negf %554 : vector<16x128xf32>
      %556 = math.exp %555 : vector<16x128xf32>
      %cst_77 = arith.constant 1.000000e+00 : f32
      %557 = vector.broadcast %cst_77 : f32 to vector<16x128xf32>
      %558 = arith.addf %557, %556 : vector<16x128xf32>
      %559 = arith.divf %557, %558 : vector<16x128xf32>
      %560 = vector.extract_strided_slice %541 {offsets = [0, 256], sizes = [16, 128], strides = [1, 1]} : vector<16x384xf32> to vector<16x128xf32>
      %561 = vector.extract_strided_slice %543 {offsets = [0, 256], sizes = [16, 128], strides = [1, 1]} : vector<16x384xf32> to vector<16x128xf32>
      %562 = vector.broadcast %19 : vector<1x128xf32> to vector<16x128xf32>
      %563 = arith.addf %561, %562 : vector<16x128xf32>
      %564 = arith.mulf %551, %563 : vector<16x128xf32>
      %565 = arith.addf %560, %564 : vector<16x128xf32>
      %566 = math.tanh %565 : vector<16x128xf32>
      %cst_78 = arith.constant 1.000000e+00 : f32
      %567 = vector.broadcast %cst_78 : f32 to vector<16x128xf32>
      %568 = arith.subf %567, %559 : vector<16x128xf32>
      %569 = arith.mulf %568, %566 : vector<16x128xf32>
      %570 = arith.mulf %559, %540 : vector<16x128xf32>
      %571 = arith.addf %569, %570 : vector<16x128xf32>
      %c14_i32 = arith.constant 14 : i32
      %572 = arith.addi %22, %c14_i32 : i32
      %573 = vector.broadcast %572 : i32 to vector<16x1xi32>
      %574 = arith.cmpi slt, %573, %20 : vector<16x1xi32>
      %575 = vector.shape_cast %574 : vector<16x1xi1> to vector<16x1xi1>
      %576 = vector.broadcast %575 : vector<16x1xi1> to vector<16x128xi1>
      %577 = arith.select %576, %571, %540 : vector<16x128xi1>, vector<16x128xf32>
      %578 = vector.extract_strided_slice %17 {offsets = [240, 0], sizes = [16, 384], strides = [1, 1]} : vector<256x384xf32> to vector<16x384xf32>
      %579 = arith.truncf %577 : vector<16x128xf32> to vector<16x128xbf16>
      %cst_79 = arith.constant dense<0.000000e+00> : vector<16x384xf32>
      %580 = tpu.matmul %579, %18, %cst_79 {dimension_numbers = #tpu.dot_dimension_numbers<[1], [0], [0], [1], [0, 0, 1, 1], [], []>} : vector<16x128xbf16>, vector<128x384xbf16>, vector<16x384xf32> -> vector<16x384xf32>
      %581 = vector.extract_strided_slice %578 {offsets = [0, 0], sizes = [16, 128], strides = [1, 1]} : vector<16x384xf32> to vector<16x128xf32>
      %582 = vector.extract_strided_slice %580 {offsets = [0, 0], sizes = [16, 128], strides = [1, 1]} : vector<16x384xf32> to vector<16x128xf32>
      %583 = arith.addf %581, %582 : vector<16x128xf32>
      %584 = arith.negf %583 : vector<16x128xf32>
      %585 = math.exp %584 : vector<16x128xf32>
      %cst_80 = arith.constant 1.000000e+00 : f32
      %586 = vector.broadcast %cst_80 : f32 to vector<16x128xf32>
      %587 = arith.addf %586, %585 : vector<16x128xf32>
      %588 = arith.divf %586, %587 : vector<16x128xf32>
      %589 = vector.extract_strided_slice %578 {offsets = [0, 128], sizes = [16, 128], strides = [1, 1]} : vector<16x384xf32> to vector<16x128xf32>
      %590 = vector.extract_strided_slice %580 {offsets = [0, 128], sizes = [16, 128], strides = [1, 1]} : vector<16x384xf32> to vector<16x128xf32>
      %591 = arith.addf %589, %590 : vector<16x128xf32>
      %592 = arith.negf %591 : vector<16x128xf32>
      %593 = math.exp %592 : vector<16x128xf32>
      %cst_81 = arith.constant 1.000000e+00 : f32
      %594 = vector.broadcast %cst_81 : f32 to vector<16x128xf32>
      %595 = arith.addf %594, %593 : vector<16x128xf32>
      %596 = arith.divf %594, %595 : vector<16x128xf32>
      %597 = vector.extract_strided_slice %578 {offsets = [0, 256], sizes = [16, 128], strides = [1, 1]} : vector<16x384xf32> to vector<16x128xf32>
      %598 = vector.extract_strided_slice %580 {offsets = [0, 256], sizes = [16, 128], strides = [1, 1]} : vector<16x384xf32> to vector<16x128xf32>
      %599 = vector.broadcast %19 : vector<1x128xf32> to vector<16x128xf32>
      %600 = arith.addf %598, %599 : vector<16x128xf32>
      %601 = arith.mulf %588, %600 : vector<16x128xf32>
      %602 = arith.addf %597, %601 : vector<16x128xf32>
      %603 = math.tanh %602 : vector<16x128xf32>
      %cst_82 = arith.constant 1.000000e+00 : f32
      %604 = vector.broadcast %cst_82 : f32 to vector<16x128xf32>
      %605 = arith.subf %604, %596 : vector<16x128xf32>
      %606 = arith.mulf %605, %603 : vector<16x128xf32>
      %607 = arith.mulf %596, %577 : vector<16x128xf32>
      %608 = arith.addf %606, %607 : vector<16x128xf32>
      %c15_i32 = arith.constant 15 : i32
      %609 = arith.addi %22, %c15_i32 : i32
      %610 = vector.broadcast %609 : i32 to vector<16x1xi32>
      %611 = arith.cmpi slt, %610, %20 : vector<16x1xi32>
      %612 = vector.shape_cast %611 : vector<16x1xi1> to vector<16x1xi1>
      %613 = vector.broadcast %612 : vector<16x1xi1> to vector<16x128xi1>
      %614 = arith.select %613, %608, %577 : vector<16x128xi1>, vector<16x128xf32>
      %c0_83 = arith.constant 0 : index
      %c0_84 = arith.constant 0 : index
      %615 = vector.load %arg12[%c0_83, %c0_84] : memref<16x128xf32, #tpu.memory_space<vmem>>, vector<16x128xf32>
      tpu.vector_store %arg12[%c0_83, %c0_84], %614 {strides = array<i32>} : memref<16x128xf32, #tpu.memory_space<vmem>>, vector<16x128xf32>,
    } else {
    }
    %c0_i32_2 = arith.constant 0 : i32
    %8 = arith.cmpi eq, %arg1, %c0_i32_2 : i32
    %9 = arith.extui %8 : i1 to i32
    %c0_i32_3 = arith.constant 0 : i32
    %10 = arith.cmpi ne, %9, %c0_i32_3 : i32
    scf.if %10 {
      %c0 = arith.constant 0 : index
      %c0_4 = arith.constant 0 : index
      %11 = vector.load %arg12[%c0, %c0_4] : memref<16x128xf32, #tpu.memory_space<vmem>>, vector<16x128xf32>
      %12 = arith.truncf %11 : vector<16x128xf32> to vector<16x128xbf16>
      %c0_5 = arith.constant 0 : index
      %c0_6 = arith.constant 0 : index
      %13 = vector.load %arg9[%c0_5, %c0_6] : memref<128x128xbf16, #tpu.memory_space<vmem>>, vector<128x128xbf16>
      %cst = arith.constant dense<0.000000e+00> : vector<16x128xf32>
      %14 = tpu.matmul %12, %13, %cst {dimension_numbers = #tpu.dot_dimension_numbers<[1], [0], [0], [1], [0, 0, 1, 1], [], []>} : vector<16x128xbf16>, vector<128x128xbf16>, vector<16x128xf32> -> vector<16x128xf32>
      %c0_7 = arith.constant 0 : index
      %c0_8 = arith.constant 0 : index
      %15 = vector.load %arg10[%c0_7, %c0_8] : memref<1x128xf32, #tpu.memory_space<vmem>>, vector<1x128xf32>
      %16 = vector.broadcast %15 : vector<1x128xf32> to vector<16x128xf32>
      %17 = arith.addf %14, %16 : vector<16x128xf32>
      %c0_9 = arith.constant 0 : index
      %c0_10 = arith.constant 0 : index
      %18 = vector.load %arg11[%c0_9, %c0_10] : memref<16x128xf32, #tpu.memory_space<vmem>>, vector<16x128xf32>
      tpu.vector_store %arg11[%c0_9, %c0_10], %17 {strides = array<i32>} : memref<16x128xf32, #tpu.memory_space<vmem>>, vector<16x128xf32>,
    } else {
    }
    return
  }
  func.func @transform_0(%arg0: i32, %arg1: i32, %arg2: memref<1xi32, #tpu.memory_space<smem>>) -> (i32, i32) {
    %c0_i32 = arith.constant 0 : i32
    %c0_i32_0 = arith.constant 0 : i32
    return %arg0, %c0_i32 : i32, i32
  }
  func.func @transform_1(%arg0: i32, %arg1: i32, %arg2: memref<1xi32, #tpu.memory_space<smem>>) -> (i32, i32, i32) {
    %c0_i32 = arith.constant 0 : i32
    %c0_i32_0 = arith.constant 0 : i32
    return %arg1, %arg0, %c0_i32 : i32, i32, i32
  }
  func.func @transform_2(%arg0: i32, %arg1: i32, %arg2: memref<1xi32, #tpu.memory_space<smem>>) -> (i32, i32) {
    %c0_i32 = arith.constant 0 : i32
    %c0_i32_0 = arith.constant 0 : i32
    %c0_i32_1 = arith.constant 0 : i32
    return %c0_i32, %c0_i32_0 : i32, i32
  }
  func.func @transform_3(%arg0: i32, %arg1: i32, %arg2: memref<1xi32, #tpu.memory_space<smem>>) -> (i32, i32) {
    %c0_i32 = arith.constant 0 : i32
    %c0_i32_0 = arith.constant 0 : i32
    %c0_i32_1 = arith.constant 0 : i32
    return %c0_i32, %c0_i32_0 : i32, i32
  }
  func.func @transform_4(%arg0: i32, %arg1: i32, %arg2: memref<1xi32, #tpu.memory_space<smem>>) -> (i32, i32) {
    %c0_i32 = arith.constant 0 : i32
    %c0_i32_0 = arith.constant 0 : i32
    %c0_i32_1 = arith.constant 0 : i32
    return %c0_i32, %c0_i32_0 : i32, i32
  }
  func.func @transform_5(%arg0: i32, %arg1: i32, %arg2: memref<1xi32, #tpu.memory_space<smem>>) -> (i32, i32) {
    %c0_i32 = arith.constant 0 : i32
    %c0_i32_0 = arith.constant 0 : i32
    %c0_i32_1 = arith.constant 0 : i32
    return %c0_i32, %c0_i32_0 : i32, i32
  }
  func.func @transform_6(%arg0: i32, %arg1: i32, %arg2: memref<1xi32, #tpu.memory_space<smem>>) -> (i32, i32) {
    %c0_i32 = arith.constant 0 : i32
    %c0_i32_0 = arith.constant 0 : i32
    %c0_i32_1 = arith.constant 0 : i32
    return %c0_i32, %c0_i32_0 : i32, i32
  }
  func.func @transform_7(%arg0: i32, %arg1: i32, %arg2: memref<1xi32, #tpu.memory_space<smem>>) -> (i32, i32) {
    %c0_i32 = arith.constant 0 : i32
    %c0_i32_0 = arith.constant 0 : i32
    %c0_i32_1 = arith.constant 0 : i32
    return %c0_i32, %c0_i32_0 : i32, i32
  }
  func.func @transform_8(%arg0: i32, %arg1: i32, %arg2: memref<1xi32, #tpu.memory_space<smem>>) -> (i32, i32) {
    %c0_i32 = arith.constant 0 : i32
    %c0_i32_0 = arith.constant 0 : i32
    return %arg0, %c0_i32 : i32, i32
  }
}

module attributes {stable_mosaic.version = 11 : i64} {
  func.func @_gru_kernel(%arg0: i32, %arg1: i32, %arg2: memref<1xi32, #tpu.memory_space<smem>>, %arg3: memref<16x1xi32, #tpu.memory_space<vmem>>, %arg4: memref<16x16x128xbf16, #tpu.memory_space<vmem>>, %arg5: memref<128x384xbf16, #tpu.memory_space<vmem>>, %arg6: memref<128x384xbf16, #tpu.memory_space<vmem>>, %arg7: memref<1x384xf32, #tpu.memory_space<vmem>>, %arg8: memref<1x128xf32, #tpu.memory_space<vmem>>, %arg9: memref<128x128xbf16, #tpu.memory_space<vmem>>, %arg10: memref<1x128xf32, #tpu.memory_space<vmem>>, %arg11: memref<16x128xf32, #tpu.memory_space<vmem>>, %arg12: memref<16x128xf32, #tpu.memory_space<vmem>>) attributes {dimension_semantics = [#tpu.dimension_semantics<parallel>, #tpu.dimension_semantics<arbitrary>], iteration_bounds = array<i64: 1, 1>, scalar_prefetch = 1 : i64, scratch_operands = 1 : i64, tpu.core_type = #tpu.core_type<tc>, window_params = [{transform_indices = @transform_0, window_bounds = array<i64: 16, 1>}, {transform_indices = @transform_1, window_bounds = array<i64: 16, 16, 128>}, {pipeline_mode = #tpu.pipeline_mode<synchronous>, transform_indices = @transform_2, window_bounds = array<i64: 128, 384>}, {pipeline_mode = #tpu.pipeline_mode<synchronous>, transform_indices = @transform_3, window_bounds = array<i64: 128, 384>}, {pipeline_mode = #tpu.pipeline_mode<synchronous>, transform_indices = @transform_4, window_bounds = array<i64: 1, 384>}, {pipeline_mode = #tpu.pipeline_mode<synchronous>, transform_indices = @transform_5, window_bounds = array<i64: 1, 128>}, {pipeline_mode = #tpu.pipeline_mode<synchronous>, transform_indices = @transform_6, window_bounds = array<i64: 128, 128>}, {pipeline_mode = #tpu.pipeline_mode<synchronous>, transform_indices = @transform_7, window_bounds = array<i64: 1, 128>}, {transform_indices = @transform_8, window_bounds = array<i64: 16, 128>}]} {
    %c0_i32 = arith.constant 0 : i32
    %0 = arith.cmpi eq, %arg1, %c0_i32 : i32
    %1 = arith.extui %0 : i1 to i32
    %c0_i32_0 = arith.constant 0 : i32
    %2 = arith.cmpi ne, %1, %c0_i32_0 : i32
    scf.if %2 {
      %cst = arith.constant 0.000000e+00 : f32
      %11 = vector.broadcast %cst : f32 to vector<16x128xf32>
      %c0 = arith.constant 0 : index
      %c0_4 = arith.constant 0 : index
      %12 = vector.load %arg12[%c0, %c0_4] : memref<16x128xf32, #tpu.memory_space<vmem>>, vector<16x128xf32>
      tpu.vector_store %arg12[%c0, %c0_4], %11 {strides = array<i32>} : memref<16x128xf32, #tpu.memory_space<vmem>>, vector<16x128xf32>,
    } else {
    }
    %3 = arith.index_cast %arg0 : i32 to index
    %4 = memref.load %arg2[%3] : memref<1xi32, #tpu.memory_space<smem>>
    %5 = arith.cmpi slt, %arg1, %4 : i32
    %6 = arith.extui %5 : i1 to i32
    %c0_i32_1 = arith.constant 0 : i32
    %7 = arith.cmpi ne, %6, %c0_i32_1 : i32
    scf.if %7 {
      %c0 = arith.constant 0 : index
      %c0_4 = arith.constant 0 : index
      %c0_5 = arith.constant 0 : index
      %11 = vector.load %arg4[%c0, %c0_4, %c0_5] : memref<16x16x128xbf16, #tpu.memory_space<vmem>>, vector<16x16x128xbf16>
      %12 = vector.shape_cast %11 : vector<16x16x128xbf16> to vector<256x128xbf16>
      %c0_6 = arith.constant 0 : index
      %c0_7 = arith.constant 0 : index
      %13 = vector.load %arg5[%c0_6, %c0_7] : memref<128x384xbf16, #tpu.memory_space<vmem>>, vector<128x384xbf16>
      %cst = arith.constant dense<0.000000e+00> : vector<256x384xf32>
      %14 = tpu.matmul %12, %13, %cst {dimension_numbers = #tpu.dot_dimension_numbers<[1], [0], [0], [1], [0, 0, 1, 1], [], []>} : vector<256x128xbf16>, vector<128x384xbf16>, vector<256x384xf32> -> vector<256x384xf32>
      %c0_8 = arith.constant 0 : index
      %c0_9 = arith.constant 0 : index
      %15 = vector.load %arg7[%c0_8, %c0_9] : memref<1x384xf32, #tpu.memory_space<vmem>>, vector<1x384xf32>
      %16 = vector.broadcast %15 : vector<1x384xf32> to vector<256x384xf32>
      %17 = arith.addf %14, %16 : vector<256x384xf32>
      %c0_10 = arith.constant 0 : index
      %c0_11 = arith.constant 0 : index
      %18 = vector.load %arg6[%c0_10, %c0_11] : memref<128x384xbf16, #tpu.memory_space<vmem>>, vector<128x384xbf16>
      %c0_12 = arith.constant 0 : index
      %c0_13 = arith.constant 0 : index
      %19 = vector.load %arg8[%c0_12, %c0_13] : memref<1x128xf32, #tpu.memory_space<vmem>>, vector<1x128xf32>
      %c0_14 = arith.constant 0 : index
      %c0_15 = arith.constant 0 : index
      %20 = vector.load %arg3[%c0_14, %c0_15] : memref<16x1xi32, #tpu.memory_space<vmem>>, vector<16x1xi32>
      %c0_16 = arith.constant 0 : index
      %c0_17 = arith.constant 0 : index
      %21 = vector.load %arg12[%c0_16, %c0_17] : memref<16x128xf32, #tpu.memory_space<vmem>>, vector<16x128xf32>
      %c16_i32 = arith.constant 16 : i32
      %22 = arith.muli %arg1, %c16_i32 : i32
      %23 = vector.extract_strided_slice %17 {offsets = [0, 0], sizes = [16, 384], strides = [1, 1]} : vector<256x384xf32> to vector<16x384xf32>
      %24 = arith.truncf %21 : vector<16x128xf32> to vector<16x128xbf16>
      %cst_18 = arith.constant dense<0.000000e+00> : vector<16x384xf32>
      %25 = tpu.matmul %24, %18, %cst_18 {dimension_numbers = #tpu.dot_dimension_numbers<[1], [0], [0], [1], [0, 0, 1, 1], [], []>} : vector<16x128xbf16>, vector<128x384xbf16>, vector<16x384xf32> -> vector<16x384xf32>
      %26 = vector.extract_strided_slice %23 {offsets = [0, 0], sizes = [16, 128], strides = [1, 1]} : vector<16x384xf32> to vector<16x128xf32>
      %27 = vector.extract_strided_slice %25 {offsets = [0, 0], sizes = [16, 128], strides = [1, 1]} : vector<16x384xf32> to vector<16x128xf32>
      %28 = arith.addf %26, %27 : vector<16x128xf32>
      %29 = arith.negf %28 : vector<16x128xf32>
      %30 = math.exp %29 : vector<16x128xf32>
      %cst_19 = arith.constant 1.000000e+00 : f32
      %31 = vector.broadcast %cst_19 : f32 to vector<16x128xf32>
      %32 = arith.addf %31, %30 : vector<16x128xf32>
      %33 = arith.divf %31, %32 : vector<16x128xf32>
      %34 = vector.extract_strided_slice %23 {offsets = [0, 128], sizes = [16, 128], strides = [1, 1]} : vector<16x384xf32> to vector<16x128xf32>
      %35 = vector.extract_strided_slice %25 {offsets = [0, 128], sizes = [16, 128], strides = [1, 1]} : vector<16x384xf32> to vector<16x128xf32>
      %36 = arith.addf %34, %35 : vector<16x128xf32>
      %37 = arith.negf %36 : vector<16x128xf32>
      %38 = math.exp %37 : vector<16x128xf32>
      %cst_20 = arith.constant 1.000000e+00 : f32
      %39 = vector.broadcast %cst_20 : f32 to vector<16x128xf32>
      %40 = arith.addf %39, %38 : vector<16x128xf32>
      %41 = arith.divf %39, %40 : vector<16x128xf32>
      %42 = vector.extract_strided_slice %23 {offsets = [0, 256], sizes = [16, 128], strides = [1, 1]} : vector<16x384xf32> to vector<16x128xf32>
      %43 = vector.extract_strided_slice %25 {offsets = [0, 256], sizes = [16, 128], strides = [1, 1]} : vector<16x384xf32> to vector<16x128xf32>
      %44 = vector.broadcast %19 : vector<1x128xf32> to vector<16x128xf32>
      %45 = arith.addf %43, %44 : vector<16x128xf32>
      %46 = arith.mulf %33, %45 : vector<16x128xf32>
      %47 = arith.addf %42, %46 : vector<16x128xf32>
      %48 = math.tanh %47 : vector<16x128xf32>
      %cst_21 = arith.constant 1.000000e+00 : f32
      %49 = vector.broadcast %cst_21 : f32 to vector<16x128xf32>
      %50 = arith.subf %49, %41 : vector<16x128xf32>
      %51 = arith.mulf %50, %48 : vector<16x128xf32>
      %52 = arith.mulf %41, %21 : vector<16x128xf32>
      %53 = arith.addf %51, %52 : vector<16x128xf32>
      %c0_i32_22 = arith.constant 0 : i32
      %54 = arith.addi %22, %c0_i32_22 : i32
      %55 = vector.broadcast %54 : i32 to vector<16x1xi32>
      %56 = arith.cmpi slt, %55, %20 : vector<16x1xi32>
      %57 = vector.shape_cast %56 : vector<16x1xi1> to vector<16x1xi1>
      %58 = vector.broadcast %57 : vector<16x1xi1> to vector<16x128xi1>
      %59 = arith.select %58, %53, %21 : vector<16x128xi1>, vector<16x128xf32>
      %60 = vector.extract_strided_slice %17 {offsets = [16, 0], sizes = [16, 384], strides = [1, 1]} : vector<256x384xf32> to vector<16x384xf32>
      %61 = arith.truncf %59 : vector<16x128xf32> to vector<16x128xbf16>
      %cst_23 = arith.constant dense<0.000000e+00> : vector<16x384xf32>
      %62 = tpu.matmul %61, %18, %cst_23 {dimension_numbers = #tpu.dot_dimension_numbers<[1], [0], [0], [1], [0, 0, 1, 1], [], []>} : vector<16x128xbf16>, vector<128x384xbf16>, vector<16x384xf32> -> vector<16x384xf32>
      %63 = vector.extract_strided_slice %60 {offsets = [0, 0], sizes = [16, 128], strides = [1, 1]} : vector<16x384xf32> to vector<16x128xf32>
      %64 = vector.extract_strided_slice %62 {offsets = [0, 0], sizes = [16, 128], strides = [1, 1]} : vector<16x384xf32> to vector<16x128xf32>
      %65 = arith.addf %63, %64 : vector<16x128xf32>
      %66 = arith.negf %65 : vector<16x128xf32>
      %67 = math.exp %66 : vector<16x128xf32>
      %cst_24 = arith.constant 1.000000e+00 : f32
      %68 = vector.broadcast %cst_24 : f32 to vector<16x128xf32>
      %69 = arith.addf %68, %67 : vector<16x128xf32>
      %70 = arith.divf %68, %69 : vector<16x128xf32>
      %71 = vector.extract_strided_slice %60 {offsets = [0, 128], sizes = [16, 128], strides = [1, 1]} : vector<16x384xf32> to vector<16x128xf32>
      %72 = vector.extract_strided_slice %62 {offsets = [0, 128], sizes = [16, 128], strides = [1, 1]} : vector<16x384xf32> to vector<16x128xf32>
      %73 = arith.addf %71, %72 : vector<16x128xf32>
      %74 = arith.negf %73 : vector<16x128xf32>
      %75 = math.exp %74 : vector<16x128xf32>
      %cst_25 = arith.constant 1.000000e+00 : f32
      %76 = vector.broadcast %cst_25 : f32 to vector<16x128xf32>
      %77 = arith.addf %76, %75 : vector<16x128xf32>
      %78 = arith.divf %76, %77 : vector<16x128xf32>
      %79 = vector.extract_strided_slice %60 {offsets = [0, 256], sizes = [16, 128], strides = [1, 1]} : vector<16x384xf32> to vector<16x128xf32>
      %80 = vector.extract_strided_slice %62 {offsets = [0, 256], sizes = [16, 128], strides = [1, 1]} : vector<16x384xf32> to vector<16x128xf32>
      %81 = vector.broadcast %19 : vector<1x128xf32> to vector<16x128xf32>
      %82 = arith.addf %80, %81 : vector<16x128xf32>
      %83 = arith.mulf %70, %82 : vector<16x128xf32>
      %84 = arith.addf %79, %83 : vector<16x128xf32>
      %85 = math.tanh %84 : vector<16x128xf32>
      %cst_26 = arith.constant 1.000000e+00 : f32
      %86 = vector.broadcast %cst_26 : f32 to vector<16x128xf32>
      %87 = arith.subf %86, %78 : vector<16x128xf32>
      %88 = arith.mulf %87, %85 : vector<16x128xf32>
      %89 = arith.mulf %78, %59 : vector<16x128xf32>
      %90 = arith.addf %88, %89 : vector<16x128xf32>
      %c1_i32 = arith.constant 1 : i32
      %91 = arith.addi %22, %c1_i32 : i32
      %92 = vector.broadcast %91 : i32 to vector<16x1xi32>
      %93 = arith.cmpi slt, %92, %20 : vector<16x1xi32>
      %94 = vector.shape_cast %93 : vector<16x1xi1> to vector<16x1xi1>
      %95 = vector.broadcast %94 : vector<16x1xi1> to vector<16x128xi1>
      %96 = arith.select %95, %90, %59 : vector<16x128xi1>, vector<16x128xf32>
      %97 = vector.extract_strided_slice %17 {offsets = [32, 0], sizes = [16, 384], strides = [1, 1]} : vector<256x384xf32> to vector<16x384xf32>
      %98 = arith.truncf %96 : vector<16x128xf32> to vector<16x128xbf16>
      %cst_27 = arith.constant dense<0.000000e+00> : vector<16x384xf32>
      %99 = tpu.matmul %98, %18, %cst_27 {dimension_numbers = #tpu.dot_dimension_numbers<[1], [0], [0], [1], [0, 0, 1, 1], [], []>} : vector<16x128xbf16>, vector<128x384xbf16>, vector<16x384xf32> -> vector<16x384xf32>
      %100 = vector.extract_strided_slice %97 {offsets = [0, 0], sizes = [16, 128], strides = [1, 1]} : vector<16x384xf32> to vector<16x128xf32>
      %101 = vector.extract_strided_slice %99 {offsets = [0, 0], sizes = [16, 128], strides = [1, 1]} : vector<16x384xf32> to vector<16x128xf32>
      %102 = arith.addf %100, %101 : vector<16x128xf32>
      %103 = arith.negf %102 : vector<16x128xf32>
      %104 = math.exp %103 : vector<16x128xf32>
      %cst_28 = arith.constant 1.000000e+00 : f32
      %105 = vector.broadcast %cst_28 : f32 to vector<16x128xf32>
      %106 = arith.addf %105, %104 : vector<16x128xf32>
      %107 = arith.divf %105, %106 : vector<16x128xf32>
      %108 = vector.extract_strided_slice %97 {offsets = [0, 128], sizes = [16, 128], strides = [1, 1]} : vector<16x384xf32> to vector<16x128xf32>
      %109 = vector.extract_strided_slice %99 {offsets = [0, 128], sizes = [16, 128], strides = [1, 1]} : vector<16x384xf32> to vector<16x128xf32>
      %110 = arith.addf %108, %109 : vector<16x128xf32>
      %111 = arith.negf %110 : vector<16x128xf32>
      %112 = math.exp %111 : vector<16x128xf32>
      %cst_29 = arith.constant 1.000000e+00 : f32
      %113 = vector.broadcast %cst_29 : f32 to vector<16x128xf32>
      %114 = arith.addf %113, %112 : vector<16x128xf32>
      %115 = arith.divf %113, %114 : vector<16x128xf32>
      %116 = vector.extract_strided_slice %97 {offsets = [0, 256], sizes = [16, 128], strides = [1, 1]} : vector<16x384xf32> to vector<16x128xf32>
      %117 = vector.extract_strided_slice %99 {offsets = [0, 256], sizes = [16, 128], strides = [1, 1]} : vector<16x384xf32> to vector<16x128xf32>
      %118 = vector.broadcast %19 : vector<1x128xf32> to vector<16x128xf32>
      %119 = arith.addf %117, %118 : vector<16x128xf32>
      %120 = arith.mulf %107, %119 : vector<16x128xf32>
      %121 = arith.addf %116, %120 : vector<16x128xf32>
      %122 = math.tanh %121 : vector<16x128xf32>
      %cst_30 = arith.constant 1.000000e+00 : f32
      %123 = vector.broadcast %cst_30 : f32 to vector<16x128xf32>
      %124 = arith.subf %123, %115 : vector<16x128xf32>
      %125 = arith.mulf %124, %122 : vector<16x128xf32>
      %126 = arith.mulf %115, %96 : vector<16x128xf32>
      %127 = arith.addf %125, %126 : vector<16x128xf32>
      %c2_i32 = arith.constant 2 : i32
      %128 = arith.addi %22, %c2_i32 : i32
      %129 = vector.broadcast %128 : i32 to vector<16x1xi32>
      %130 = arith.cmpi slt, %129, %20 : vector<16x1xi32>
      %131 = vector.shape_cast %130 : vector<16x1xi1> to vector<16x1xi1>
      %132 = vector.broadcast %131 : vector<16x1xi1> to vector<16x128xi1>
      %133 = arith.select %132, %127, %96 : vector<16x128xi1>, vector<16x128xf32>
      %134 = vector.extract_strided_slice %17 {offsets = [48, 0], sizes = [16, 384], strides = [1, 1]} : vector<256x384xf32> to vector<16x384xf32>
      %135 = arith.truncf %133 : vector<16x128xf32> to vector<16x128xbf16>
      %cst_31 = arith.constant dense<0.000000e+00> : vector<16x384xf32>
      %136 = tpu.matmul %135, %18, %cst_31 {dimension_numbers = #tpu.dot_dimension_numbers<[1], [0], [0], [1], [0, 0, 1, 1], [], []>} : vector<16x128xbf16>, vector<128x384xbf16>, vector<16x384xf32> -> vector<16x384xf32>
      %137 = vector.extract_strided_slice %134 {offsets = [0, 0], sizes = [16, 128], strides = [1, 1]} : vector<16x384xf32> to vector<16x128xf32>
      %138 = vector.extract_strided_slice %136 {offsets = [0, 0], sizes = [16, 128], strides = [1, 1]} : vector<16x384xf32> to vector<16x128xf32>
      %139 = arith.addf %137, %138 : vector<16x128xf32>
      %140 = arith.negf %139 : vector<16x128xf32>
      %141 = math.exp %140 : vector<16x128xf32>
      %cst_32 = arith.constant 1.000000e+00 : f32
      %142 = vector.broadcast %cst_32 : f32 to vector<16x128xf32>
      %143 = arith.addf %142, %141 : vector<16x128xf32>
      %144 = arith.divf %142, %143 : vector<16x128xf32>
      %145 = vector.extract_strided_slice %134 {offsets = [0, 128], sizes = [16, 128], strides = [1, 1]} : vector<16x384xf32> to vector<16x128xf32>
      %146 = vector.extract_strided_slice %136 {offsets = [0, 128], sizes = [16, 128], strides = [1, 1]} : vector<16x384xf32> to vector<16x128xf32>
      %147 = arith.addf %145, %146 : vector<16x128xf32>
      %148 = arith.negf %147 : vector<16x128xf32>
      %149 = math.exp %148 : vector<16x128xf32>
      %cst_33 = arith.constant 1.000000e+00 : f32
      %150 = vector.broadcast %cst_33 : f32 to vector<16x128xf32>
      %151 = arith.addf %150, %149 : vector<16x128xf32>
      %152 = arith.divf %150, %151 : vector<16x128xf32>
      %153 = vector.extract_strided_slice %134 {offsets = [0, 256], sizes = [16, 128], strides = [1, 1]} : vector<16x384xf32> to vector<16x128xf32>
      %154 = vector.extract_strided_slice %136 {offsets = [0, 256], sizes = [16, 128], strides = [1, 1]} : vector<16x384xf32> to vector<16x128xf32>
      %155 = vector.broadcast %19 : vector<1x128xf32> to vector<16x128xf32>
      %156 = arith.addf %154, %155 : vector<16x128xf32>
      %157 = arith.mulf %144, %156 : vector<16x128xf32>
      %158 = arith.addf %153, %157 : vector<16x128xf32>
      %159 = math.tanh %158 : vector<16x128xf32>
      %cst_34 = arith.constant 1.000000e+00 : f32
      %160 = vector.broadcast %cst_34 : f32 to vector<16x128xf32>
      %161 = arith.subf %160, %152 : vector<16x128xf32>
      %162 = arith.mulf %161, %159 : vector<16x128xf32>
      %163 = arith.mulf %152, %133 : vector<16x128xf32>
      %164 = arith.addf %162, %163 : vector<16x128xf32>
      %c3_i32 = arith.constant 3 : i32
      %165 = arith.addi %22, %c3_i32 : i32
      %166 = vector.broadcast %165 : i32 to vector<16x1xi32>
      %167 = arith.cmpi slt, %166, %20 : vector<16x1xi32>
      %168 = vector.shape_cast %167 : vector<16x1xi1> to vector<16x1xi1>
      %169 = vector.broadcast %168 : vector<16x1xi1> to vector<16x128xi1>
      %170 = arith.select %169, %164, %133 : vector<16x128xi1>, vector<16x128xf32>
      %171 = vector.extract_strided_slice %17 {offsets = [64, 0], sizes = [16, 384], strides = [1, 1]} : vector<256x384xf32> to vector<16x384xf32>
      %172 = arith.truncf %170 : vector<16x128xf32> to vector<16x128xbf16>
      %cst_35 = arith.constant dense<0.000000e+00> : vector<16x384xf32>
      %173 = tpu.matmul %172, %18, %cst_35 {dimension_numbers = #tpu.dot_dimension_numbers<[1], [0], [0], [1], [0, 0, 1, 1], [], []>} : vector<16x128xbf16>, vector<128x384xbf16>, vector<16x384xf32> -> vector<16x384xf32>
      %174 = vector.extract_strided_slice %171 {offsets = [0, 0], sizes = [16, 128], strides = [1, 1]} : vector<16x384xf32> to vector<16x128xf32>
      %175 = vector.extract_strided_slice %173 {offsets = [0, 0], sizes = [16, 128], strides = [1, 1]} : vector<16x384xf32> to vector<16x128xf32>
      %176 = arith.addf %174, %175 : vector<16x128xf32>
      %177 = arith.negf %176 : vector<16x128xf32>
      %178 = math.exp %177 : vector<16x128xf32>
      %cst_36 = arith.constant 1.000000e+00 : f32
      %179 = vector.broadcast %cst_36 : f32 to vector<16x128xf32>
      %180 = arith.addf %179, %178 : vector<16x128xf32>
      %181 = arith.divf %179, %180 : vector<16x128xf32>
      %182 = vector.extract_strided_slice %171 {offsets = [0, 128], sizes = [16, 128], strides = [1, 1]} : vector<16x384xf32> to vector<16x128xf32>
      %183 = vector.extract_strided_slice %173 {offsets = [0, 128], sizes = [16, 128], strides = [1, 1]} : vector<16x384xf32> to vector<16x128xf32>
      %184 = arith.addf %182, %183 : vector<16x128xf32>
      %185 = arith.negf %184 : vector<16x128xf32>
      %186 = math.exp %185 : vector<16x128xf32>
      %cst_37 = arith.constant 1.000000e+00 : f32
      %187 = vector.broadcast %cst_37 : f32 to vector<16x128xf32>
      %188 = arith.addf %187, %186 : vector<16x128xf32>
      %189 = arith.divf %187, %188 : vector<16x128xf32>
      %190 = vector.extract_strided_slice %171 {offsets = [0, 256], sizes = [16, 128], strides = [1, 1]} : vector<16x384xf32> to vector<16x128xf32>
      %191 = vector.extract_strided_slice %173 {offsets = [0, 256], sizes = [16, 128], strides = [1, 1]} : vector<16x384xf32> to vector<16x128xf32>
      %192 = vector.broadcast %19 : vector<1x128xf32> to vector<16x128xf32>
      %193 = arith.addf %191, %192 : vector<16x128xf32>
      %194 = arith.mulf %181, %193 : vector<16x128xf32>
      %195 = arith.addf %190, %194 : vector<16x128xf32>
      %196 = math.tanh %195 : vector<16x128xf32>
      %cst_38 = arith.constant 1.000000e+00 : f32
      %197 = vector.broadcast %cst_38 : f32 to vector<16x128xf32>
      %198 = arith.subf %197, %189 : vector<16x128xf32>
      %199 = arith.mulf %198, %196 : vector<16x128xf32>
      %200 = arith.mulf %189, %170 : vector<16x128xf32>
      %201 = arith.addf %199, %200 : vector<16x128xf32>
      %c4_i32 = arith.constant 4 : i32
      %202 = arith.addi %22, %c4_i32 : i32
      %203 = vector.broadcast %202 : i32 to vector<16x1xi32>
      %204 = arith.cmpi slt, %203, %20 : vector<16x1xi32>
      %205 = vector.shape_cast %204 : vector<16x1xi1> to vector<16x1xi1>
      %206 = vector.broadcast %205 : vector<16x1xi1> to vector<16x128xi1>
      %207 = arith.select %206, %201, %170 : vector<16x128xi1>, vector<16x128xf32>
      %208 = vector.extract_strided_slice %17 {offsets = [80, 0], sizes = [16, 384], strides = [1, 1]} : vector<256x384xf32> to vector<16x384xf32>
      %209 = arith.truncf %207 : vector<16x128xf32> to vector<16x128xbf16>
      %cst_39 = arith.constant dense<0.000000e+00> : vector<16x384xf32>
      %210 = tpu.matmul %209, %18, %cst_39 {dimension_numbers = #tpu.dot_dimension_numbers<[1], [0], [0], [1], [0, 0, 1, 1], [], []>} : vector<16x128xbf16>, vector<128x384xbf16>, vector<16x384xf32> -> vector<16x384xf32>
      %211 = vector.extract_strided_slice %208 {offsets = [0, 0], sizes = [16, 128], strides = [1, 1]} : vector<16x384xf32> to vector<16x128xf32>
      %212 = vector.extract_strided_slice %210 {offsets = [0, 0], sizes = [16, 128], strides = [1, 1]} : vector<16x384xf32> to vector<16x128xf32>
      %213 = arith.addf %211, %212 : vector<16x128xf32>
      %214 = arith.negf %213 : vector<16x128xf32>
      %215 = math.exp %214 : vector<16x128xf32>
      %cst_40 = arith.constant 1.000000e+00 : f32
      %216 = vector.broadcast %cst_40 : f32 to vector<16x128xf32>
      %217 = arith.addf %216, %215 : vector<16x128xf32>
      %218 = arith.divf %216, %217 : vector<16x128xf32>
      %219 = vector.extract_strided_slice %208 {offsets = [0, 128], sizes = [16, 128], strides = [1, 1]} : vector<16x384xf32> to vector<16x128xf32>
      %220 = vector.extract_strided_slice %210 {offsets = [0, 128], sizes = [16, 128], strides = [1, 1]} : vector<16x384xf32> to vector<16x128xf32>
      %221 = arith.addf %219, %220 : vector<16x128xf32>
      %222 = arith.negf %221 : vector<16x128xf32>
      %223 = math.exp %222 : vector<16x128xf32>
      %cst_41 = arith.constant 1.000000e+00 : f32
      %224 = vector.broadcast %cst_41 : f32 to vector<16x128xf32>
      %225 = arith.addf %224, %223 : vector<16x128xf32>
      %226 = arith.divf %224, %225 : vector<16x128xf32>
      %227 = vector.extract_strided_slice %208 {offsets = [0, 256], sizes = [16, 128], strides = [1, 1]} : vector<16x384xf32> to vector<16x128xf32>
      %228 = vector.extract_strided_slice %210 {offsets = [0, 256], sizes = [16, 128], strides = [1, 1]} : vector<16x384xf32> to vector<16x128xf32>
      %229 = vector.broadcast %19 : vector<1x128xf32> to vector<16x128xf32>
      %230 = arith.addf %228, %229 : vector<16x128xf32>
      %231 = arith.mulf %218, %230 : vector<16x128xf32>
      %232 = arith.addf %227, %231 : vector<16x128xf32>
      %233 = math.tanh %232 : vector<16x128xf32>
      %cst_42 = arith.constant 1.000000e+00 : f32
      %234 = vector.broadcast %cst_42 : f32 to vector<16x128xf32>
      %235 = arith.subf %234, %226 : vector<16x128xf32>
      %236 = arith.mulf %235, %233 : vector<16x128xf32>
      %237 = arith.mulf %226, %207 : vector<16x128xf32>
      %238 = arith.addf %236, %237 : vector<16x128xf32>
      %c5_i32 = arith.constant 5 : i32
      %239 = arith.addi %22, %c5_i32 : i32
      %240 = vector.broadcast %239 : i32 to vector<16x1xi32>
      %241 = arith.cmpi slt, %240, %20 : vector<16x1xi32>
      %242 = vector.shape_cast %241 : vector<16x1xi1> to vector<16x1xi1>
      %243 = vector.broadcast %242 : vector<16x1xi1> to vector<16x128xi1>
      %244 = arith.select %243, %238, %207 : vector<16x128xi1>, vector<16x128xf32>
      %245 = vector.extract_strided_slice %17 {offsets = [96, 0], sizes = [16, 384], strides = [1, 1]} : vector<256x384xf32> to vector<16x384xf32>
      %246 = arith.truncf %244 : vector<16x128xf32> to vector<16x128xbf16>
      %cst_43 = arith.constant dense<0.000000e+00> : vector<16x384xf32>
      %247 = tpu.matmul %246, %18, %cst_43 {dimension_numbers = #tpu.dot_dimension_numbers<[1], [0], [0], [1], [0, 0, 1, 1], [], []>} : vector<16x128xbf16>, vector<128x384xbf16>, vector<16x384xf32> -> vector<16x384xf32>
      %248 = vector.extract_strided_slice %245 {offsets = [0, 0], sizes = [16, 128], strides = [1, 1]} : vector<16x384xf32> to vector<16x128xf32>
      %249 = vector.extract_strided_slice %247 {offsets = [0, 0], sizes = [16, 128], strides = [1, 1]} : vector<16x384xf32> to vector<16x128xf32>
      %250 = arith.addf %248, %249 : vector<16x128xf32>
      %251 = arith.negf %250 : vector<16x128xf32>
      %252 = math.exp %251 : vector<16x128xf32>
      %cst_44 = arith.constant 1.000000e+00 : f32
      %253 = vector.broadcast %cst_44 : f32 to vector<16x128xf32>
      %254 = arith.addf %253, %252 : vector<16x128xf32>
      %255 = arith.divf %253, %254 : vector<16x128xf32>
      %256 = vector.extract_strided_slice %245 {offsets = [0, 128], sizes = [16, 128], strides = [1, 1]} : vector<16x384xf32> to vector<16x128xf32>
      %257 = vector.extract_strided_slice %247 {offsets = [0, 128], sizes = [16, 128], strides = [1, 1]} : vector<16x384xf32> to vector<16x128xf32>
      %258 = arith.addf %256, %257 : vector<16x128xf32>
      %259 = arith.negf %258 : vector<16x128xf32>
      %260 = math.exp %259 : vector<16x128xf32>
      %cst_45 = arith.constant 1.000000e+00 : f32
      %261 = vector.broadcast %cst_45 : f32 to vector<16x128xf32>
      %262 = arith.addf %261, %260 : vector<16x128xf32>
      %263 = arith.divf %261, %262 : vector<16x128xf32>
      %264 = vector.extract_strided_slice %245 {offsets = [0, 256], sizes = [16, 128], strides = [1, 1]} : vector<16x384xf32> to vector<16x128xf32>
      %265 = vector.extract_strided_slice %247 {offsets = [0, 256], sizes = [16, 128], strides = [1, 1]} : vector<16x384xf32> to vector<16x128xf32>
      %266 = vector.broadcast %19 : vector<1x128xf32> to vector<16x128xf32>
      %267 = arith.addf %265, %266 : vector<16x128xf32>
      %268 = arith.mulf %255, %267 : vector<16x128xf32>
      %269 = arith.addf %264, %268 : vector<16x128xf32>
      %270 = math.tanh %269 : vector<16x128xf32>
      %cst_46 = arith.constant 1.000000e+00 : f32
      %271 = vector.broadcast %cst_46 : f32 to vector<16x128xf32>
      %272 = arith.subf %271, %263 : vector<16x128xf32>
      %273 = arith.mulf %272, %270 : vector<16x128xf32>
      %274 = arith.mulf %263, %244 : vector<16x128xf32>
      %275 = arith.addf %273, %274 : vector<16x128xf32>
      %c6_i32 = arith.constant 6 : i32
      %276 = arith.addi %22, %c6_i32 : i32
      %277 = vector.broadcast %276 : i32 to vector<16x1xi32>
      %278 = arith.cmpi slt, %277, %20 : vector<16x1xi32>
      %279 = vector.shape_cast %278 : vector<16x1xi1> to vector<16x1xi1>
      %280 = vector.broadcast %279 : vector<16x1xi1> to vector<16x128xi1>
      %281 = arith.select %280, %275, %244 : vector<16x128xi1>, vector<16x128xf32>
      %282 = vector.extract_strided_slice %17 {offsets = [112, 0], sizes = [16, 384], strides = [1, 1]} : vector<256x384xf32> to vector<16x384xf32>
      %283 = arith.truncf %281 : vector<16x128xf32> to vector<16x128xbf16>
      %cst_47 = arith.constant dense<0.000000e+00> : vector<16x384xf32>
      %284 = tpu.matmul %283, %18, %cst_47 {dimension_numbers = #tpu.dot_dimension_numbers<[1], [0], [0], [1], [0, 0, 1, 1], [], []>} : vector<16x128xbf16>, vector<128x384xbf16>, vector<16x384xf32> -> vector<16x384xf32>
      %285 = vector.extract_strided_slice %282 {offsets = [0, 0], sizes = [16, 128], strides = [1, 1]} : vector<16x384xf32> to vector<16x128xf32>
      %286 = vector.extract_strided_slice %284 {offsets = [0, 0], sizes = [16, 128], strides = [1, 1]} : vector<16x384xf32> to vector<16x128xf32>
      %287 = arith.addf %285, %286 : vector<16x128xf32>
      %288 = arith.negf %287 : vector<16x128xf32>
      %289 = math.exp %288 : vector<16x128xf32>
      %cst_48 = arith.constant 1.000000e+00 : f32
      %290 = vector.broadcast %cst_48 : f32 to vector<16x128xf32>
      %291 = arith.addf %290, %289 : vector<16x128xf32>
      %292 = arith.divf %290, %291 : vector<16x128xf32>
      %293 = vector.extract_strided_slice %282 {offsets = [0, 128], sizes = [16, 128], strides = [1, 1]} : vector<16x384xf32> to vector<16x128xf32>
      %294 = vector.extract_strided_slice %284 {offsets = [0, 128], sizes = [16, 128], strides = [1, 1]} : vector<16x384xf32> to vector<16x128xf32>
      %295 = arith.addf %293, %294 : vector<16x128xf32>
      %296 = arith.negf %295 : vector<16x128xf32>
      %297 = math.exp %296 : vector<16x128xf32>
      %cst_49 = arith.constant 1.000000e+00 : f32
      %298 = vector.broadcast %cst_49 : f32 to vector<16x128xf32>
      %299 = arith.addf %298, %297 : vector<16x128xf32>
      %300 = arith.divf %298, %299 : vector<16x128xf32>
      %301 = vector.extract_strided_slice %282 {offsets = [0, 256], sizes = [16, 128], strides = [1, 1]} : vector<16x384xf32> to vector<16x128xf32>
      %302 = vector.extract_strided_slice %284 {offsets = [0, 256], sizes = [16, 128], strides = [1, 1]} : vector<16x384xf32> to vector<16x128xf32>
      %303 = vector.broadcast %19 : vector<1x128xf32> to vector<16x128xf32>
      %304 = arith.addf %302, %303 : vector<16x128xf32>
      %305 = arith.mulf %292, %304 : vector<16x128xf32>
      %306 = arith.addf %301, %305 : vector<16x128xf32>
      %307 = math.tanh %306 : vector<16x128xf32>
      %cst_50 = arith.constant 1.000000e+00 : f32
      %308 = vector.broadcast %cst_50 : f32 to vector<16x128xf32>
      %309 = arith.subf %308, %300 : vector<16x128xf32>
      %310 = arith.mulf %309, %307 : vector<16x128xf32>
      %311 = arith.mulf %300, %281 : vector<16x128xf32>
      %312 = arith.addf %310, %311 : vector<16x128xf32>
      %c7_i32 = arith.constant 7 : i32
      %313 = arith.addi %22, %c7_i32 : i32
      %314 = vector.broadcast %313 : i32 to vector<16x1xi32>
      %315 = arith.cmpi slt, %314, %20 : vector<16x1xi32>
      %316 = vector.shape_cast %315 : vector<16x1xi1> to vector<16x1xi1>
      %317 = vector.broadcast %316 : vector<16x1xi1> to vector<16x128xi1>
      %318 = arith.select %317, %312, %281 : vector<16x128xi1>, vector<16x128xf32>
      %319 = vector.extract_strided_slice %17 {offsets = [128, 0], sizes = [16, 384], strides = [1, 1]} : vector<256x384xf32> to vector<16x384xf32>
      %320 = arith.truncf %318 : vector<16x128xf32> to vector<16x128xbf16>
      %cst_51 = arith.constant dense<0.000000e+00> : vector<16x384xf32>
      %321 = tpu.matmul %320, %18, %cst_51 {dimension_numbers = #tpu.dot_dimension_numbers<[1], [0], [0], [1], [0, 0, 1, 1], [], []>} : vector<16x128xbf16>, vector<128x384xbf16>, vector<16x384xf32> -> vector<16x384xf32>
      %322 = vector.extract_strided_slice %319 {offsets = [0, 0], sizes = [16, 128], strides = [1, 1]} : vector<16x384xf32> to vector<16x128xf32>
      %323 = vector.extract_strided_slice %321 {offsets = [0, 0], sizes = [16, 128], strides = [1, 1]} : vector<16x384xf32> to vector<16x128xf32>
      %324 = arith.addf %322, %323 : vector<16x128xf32>
      %325 = arith.negf %324 : vector<16x128xf32>
      %326 = math.exp %325 : vector<16x128xf32>
      %cst_52 = arith.constant 1.000000e+00 : f32
      %327 = vector.broadcast %cst_52 : f32 to vector<16x128xf32>
      %328 = arith.addf %327, %326 : vector<16x128xf32>
      %329 = arith.divf %327, %328 : vector<16x128xf32>
      %330 = vector.extract_strided_slice %319 {offsets = [0, 128], sizes = [16, 128], strides = [1, 1]} : vector<16x384xf32> to vector<16x128xf32>
      %331 = vector.extract_strided_slice %321 {offsets = [0, 128], sizes = [16, 128], strides = [1, 1]} : vector<16x384xf32> to vector<16x128xf32>
      %332 = arith.addf %330, %331 : vector<16x128xf32>
      %333 = arith.negf %332 : vector<16x128xf32>
      %334 = math.exp %333 : vector<16x128xf32>
      %cst_53 = arith.constant 1.000000e+00 : f32
      %335 = vector.broadcast %cst_53 : f32 to vector<16x128xf32>
      %336 = arith.addf %335, %334 : vector<16x128xf32>
      %337 = arith.divf %335, %336 : vector<16x128xf32>
      %338 = vector.extract_strided_slice %319 {offsets = [0, 256], sizes = [16, 128], strides = [1, 1]} : vector<16x384xf32> to vector<16x128xf32>
      %339 = vector.extract_strided_slice %321 {offsets = [0, 256], sizes = [16, 128], strides = [1, 1]} : vector<16x384xf32> to vector<16x128xf32>
      %340 = vector.broadcast %19 : vector<1x128xf32> to vector<16x128xf32>
      %341 = arith.addf %339, %340 : vector<16x128xf32>
      %342 = arith.mulf %329, %341 : vector<16x128xf32>
      %343 = arith.addf %338, %342 : vector<16x128xf32>
      %344 = math.tanh %343 : vector<16x128xf32>
      %cst_54 = arith.constant 1.000000e+00 : f32
      %345 = vector.broadcast %cst_54 : f32 to vector<16x128xf32>
      %346 = arith.subf %345, %337 : vector<16x128xf32>
      %347 = arith.mulf %346, %344 : vector<16x128xf32>
      %348 = arith.mulf %337, %318 : vector<16x128xf32>
      %349 = arith.addf %347, %348 : vector<16x128xf32>
      %c8_i32 = arith.constant 8 : i32
      %350 = arith.addi %22, %c8_i32 : i32
      %351 = vector.broadcast %350 : i32 to vector<16x1xi32>
      %352 = arith.cmpi slt, %351, %20 : vector<16x1xi32>
      %353 = vector.shape_cast %352 : vector<16x1xi1> to vector<16x1xi1>
      %354 = vector.broadcast %353 : vector<16x1xi1> to vector<16x128xi1>
      %355 = arith.select %354, %349, %318 : vector<16x128xi1>, vector<16x128xf32>
      %356 = vector.extract_strided_slice %17 {offsets = [144, 0], sizes = [16, 384], strides = [1, 1]} : vector<256x384xf32> to vector<16x384xf32>
      %357 = arith.truncf %355 : vector<16x128xf32> to vector<16x128xbf16>
      %cst_55 = arith.constant dense<0.000000e+00> : vector<16x384xf32>
      %358 = tpu.matmul %357, %18, %cst_55 {dimension_numbers = #tpu.dot_dimension_numbers<[1], [0], [0], [1], [0, 0, 1, 1], [], []>} : vector<16x128xbf16>, vector<128x384xbf16>, vector<16x384xf32> -> vector<16x384xf32>
      %359 = vector.extract_strided_slice %356 {offsets = [0, 0], sizes = [16, 128], strides = [1, 1]} : vector<16x384xf32> to vector<16x128xf32>
      %360 = vector.extract_strided_slice %358 {offsets = [0, 0], sizes = [16, 128], strides = [1, 1]} : vector<16x384xf32> to vector<16x128xf32>
      %361 = arith.addf %359, %360 : vector<16x128xf32>
      %362 = arith.negf %361 : vector<16x128xf32>
      %363 = math.exp %362 : vector<16x128xf32>
      %cst_56 = arith.constant 1.000000e+00 : f32
      %364 = vector.broadcast %cst_56 : f32 to vector<16x128xf32>
      %365 = arith.addf %364, %363 : vector<16x128xf32>
      %366 = arith.divf %364, %365 : vector<16x128xf32>
      %367 = vector.extract_strided_slice %356 {offsets = [0, 128], sizes = [16, 128], strides = [1, 1]} : vector<16x384xf32> to vector<16x128xf32>
      %368 = vector.extract_strided_slice %358 {offsets = [0, 128], sizes = [16, 128], strides = [1, 1]} : vector<16x384xf32> to vector<16x128xf32>
      %369 = arith.addf %367, %368 : vector<16x128xf32>
      %370 = arith.negf %369 : vector<16x128xf32>
      %371 = math.exp %370 : vector<16x128xf32>
      %cst_57 = arith.constant 1.000000e+00 : f32
      %372 = vector.broadcast %cst_57 : f32 to vector<16x128xf32>
      %373 = arith.addf %372, %371 : vector<16x128xf32>
      %374 = arith.divf %372, %373 : vector<16x128xf32>
      %375 = vector.extract_strided_slice %356 {offsets = [0, 256], sizes = [16, 128], strides = [1, 1]} : vector<16x384xf32> to vector<16x128xf32>
      %376 = vector.extract_strided_slice %358 {offsets = [0, 256], sizes = [16, 128], strides = [1, 1]} : vector<16x384xf32> to vector<16x128xf32>
      %377 = vector.broadcast %19 : vector<1x128xf32> to vector<16x128xf32>
      %378 = arith.addf %376, %377 : vector<16x128xf32>
      %379 = arith.mulf %366, %378 : vector<16x128xf32>
      %380 = arith.addf %375, %379 : vector<16x128xf32>
      %381 = math.tanh %380 : vector<16x128xf32>
      %cst_58 = arith.constant 1.000000e+00 : f32
      %382 = vector.broadcast %cst_58 : f32 to vector<16x128xf32>
      %383 = arith.subf %382, %374 : vector<16x128xf32>
      %384 = arith.mulf %383, %381 : vector<16x128xf32>
      %385 = arith.mulf %374, %355 : vector<16x128xf32>
      %386 = arith.addf %384, %385 : vector<16x128xf32>
      %c9_i32 = arith.constant 9 : i32
      %387 = arith.addi %22, %c9_i32 : i32
      %388 = vector.broadcast %387 : i32 to vector<16x1xi32>
      %389 = arith.cmpi slt, %388, %20 : vector<16x1xi32>
      %390 = vector.shape_cast %389 : vector<16x1xi1> to vector<16x1xi1>
      %391 = vector.broadcast %390 : vector<16x1xi1> to vector<16x128xi1>
      %392 = arith.select %391, %386, %355 : vector<16x128xi1>, vector<16x128xf32>
      %393 = vector.extract_strided_slice %17 {offsets = [160, 0], sizes = [16, 384], strides = [1, 1]} : vector<256x384xf32> to vector<16x384xf32>
      %394 = arith.truncf %392 : vector<16x128xf32> to vector<16x128xbf16>
      %cst_59 = arith.constant dense<0.000000e+00> : vector<16x384xf32>
      %395 = tpu.matmul %394, %18, %cst_59 {dimension_numbers = #tpu.dot_dimension_numbers<[1], [0], [0], [1], [0, 0, 1, 1], [], []>} : vector<16x128xbf16>, vector<128x384xbf16>, vector<16x384xf32> -> vector<16x384xf32>
      %396 = vector.extract_strided_slice %393 {offsets = [0, 0], sizes = [16, 128], strides = [1, 1]} : vector<16x384xf32> to vector<16x128xf32>
      %397 = vector.extract_strided_slice %395 {offsets = [0, 0], sizes = [16, 128], strides = [1, 1]} : vector<16x384xf32> to vector<16x128xf32>
      %398 = arith.addf %396, %397 : vector<16x128xf32>
      %399 = arith.negf %398 : vector<16x128xf32>
      %400 = math.exp %399 : vector<16x128xf32>
      %cst_60 = arith.constant 1.000000e+00 : f32
      %401 = vector.broadcast %cst_60 : f32 to vector<16x128xf32>
      %402 = arith.addf %401, %400 : vector<16x128xf32>
      %403 = arith.divf %401, %402 : vector<16x128xf32>
      %404 = vector.extract_strided_slice %393 {offsets = [0, 128], sizes = [16, 128], strides = [1, 1]} : vector<16x384xf32> to vector<16x128xf32>
      %405 = vector.extract_strided_slice %395 {offsets = [0, 128], sizes = [16, 128], strides = [1, 1]} : vector<16x384xf32> to vector<16x128xf32>
      %406 = arith.addf %404, %405 : vector<16x128xf32>
      %407 = arith.negf %406 : vector<16x128xf32>
      %408 = math.exp %407 : vector<16x128xf32>
      %cst_61 = arith.constant 1.000000e+00 : f32
      %409 = vector.broadcast %cst_61 : f32 to vector<16x128xf32>
      %410 = arith.addf %409, %408 : vector<16x128xf32>
      %411 = arith.divf %409, %410 : vector<16x128xf32>
      %412 = vector.extract_strided_slice %393 {offsets = [0, 256], sizes = [16, 128], strides = [1, 1]} : vector<16x384xf32> to vector<16x128xf32>
      %413 = vector.extract_strided_slice %395 {offsets = [0, 256], sizes = [16, 128], strides = [1, 1]} : vector<16x384xf32> to vector<16x128xf32>
      %414 = vector.broadcast %19 : vector<1x128xf32> to vector<16x128xf32>
      %415 = arith.addf %413, %414 : vector<16x128xf32>
      %416 = arith.mulf %403, %415 : vector<16x128xf32>
      %417 = arith.addf %412, %416 : vector<16x128xf32>
      %418 = math.tanh %417 : vector<16x128xf32>
      %cst_62 = arith.constant 1.000000e+00 : f32
      %419 = vector.broadcast %cst_62 : f32 to vector<16x128xf32>
      %420 = arith.subf %419, %411 : vector<16x128xf32>
      %421 = arith.mulf %420, %418 : vector<16x128xf32>
      %422 = arith.mulf %411, %392 : vector<16x128xf32>
      %423 = arith.addf %421, %422 : vector<16x128xf32>
      %c10_i32 = arith.constant 10 : i32
      %424 = arith.addi %22, %c10_i32 : i32
      %425 = vector.broadcast %424 : i32 to vector<16x1xi32>
      %426 = arith.cmpi slt, %425, %20 : vector<16x1xi32>
      %427 = vector.shape_cast %426 : vector<16x1xi1> to vector<16x1xi1>
      %428 = vector.broadcast %427 : vector<16x1xi1> to vector<16x128xi1>
      %429 = arith.select %428, %423, %392 : vector<16x128xi1>, vector<16x128xf32>
      %430 = vector.extract_strided_slice %17 {offsets = [176, 0], sizes = [16, 384], strides = [1, 1]} : vector<256x384xf32> to vector<16x384xf32>
      %431 = arith.truncf %429 : vector<16x128xf32> to vector<16x128xbf16>
      %cst_63 = arith.constant dense<0.000000e+00> : vector<16x384xf32>
      %432 = tpu.matmul %431, %18, %cst_63 {dimension_numbers = #tpu.dot_dimension_numbers<[1], [0], [0], [1], [0, 0, 1, 1], [], []>} : vector<16x128xbf16>, vector<128x384xbf16>, vector<16x384xf32> -> vector<16x384xf32>
      %433 = vector.extract_strided_slice %430 {offsets = [0, 0], sizes = [16, 128], strides = [1, 1]} : vector<16x384xf32> to vector<16x128xf32>
      %434 = vector.extract_strided_slice %432 {offsets = [0, 0], sizes = [16, 128], strides = [1, 1]} : vector<16x384xf32> to vector<16x128xf32>
      %435 = arith.addf %433, %434 : vector<16x128xf32>
      %436 = arith.negf %435 : vector<16x128xf32>
      %437 = math.exp %436 : vector<16x128xf32>
      %cst_64 = arith.constant 1.000000e+00 : f32
      %438 = vector.broadcast %cst_64 : f32 to vector<16x128xf32>
      %439 = arith.addf %438, %437 : vector<16x128xf32>
      %440 = arith.divf %438, %439 : vector<16x128xf32>
      %441 = vector.extract_strided_slice %430 {offsets = [0, 128], sizes = [16, 128], strides = [1, 1]} : vector<16x384xf32> to vector<16x128xf32>
      %442 = vector.extract_strided_slice %432 {offsets = [0, 128], sizes = [16, 128], strides = [1, 1]} : vector<16x384xf32> to vector<16x128xf32>
      %443 = arith.addf %441, %442 : vector<16x128xf32>
      %444 = arith.negf %443 : vector<16x128xf32>
      %445 = math.exp %444 : vector<16x128xf32>
      %cst_65 = arith.constant 1.000000e+00 : f32
      %446 = vector.broadcast %cst_65 : f32 to vector<16x128xf32>
      %447 = arith.addf %446, %445 : vector<16x128xf32>
      %448 = arith.divf %446, %447 : vector<16x128xf32>
      %449 = vector.extract_strided_slice %430 {offsets = [0, 256], sizes = [16, 128], strides = [1, 1]} : vector<16x384xf32> to vector<16x128xf32>
      %450 = vector.extract_strided_slice %432 {offsets = [0, 256], sizes = [16, 128], strides = [1, 1]} : vector<16x384xf32> to vector<16x128xf32>
      %451 = vector.broadcast %19 : vector<1x128xf32> to vector<16x128xf32>
      %452 = arith.addf %450, %451 : vector<16x128xf32>
      %453 = arith.mulf %440, %452 : vector<16x128xf32>
      %454 = arith.addf %449, %453 : vector<16x128xf32>
      %455 = math.tanh %454 : vector<16x128xf32>
      %cst_66 = arith.constant 1.000000e+00 : f32
      %456 = vector.broadcast %cst_66 : f32 to vector<16x128xf32>
      %457 = arith.subf %456, %448 : vector<16x128xf32>
      %458 = arith.mulf %457, %455 : vector<16x128xf32>
      %459 = arith.mulf %448, %429 : vector<16x128xf32>
      %460 = arith.addf %458, %459 : vector<16x128xf32>
      %c11_i32 = arith.constant 11 : i32
      %461 = arith.addi %22, %c11_i32 : i32
      %462 = vector.broadcast %461 : i32 to vector<16x1xi32>
      %463 = arith.cmpi slt, %462, %20 : vector<16x1xi32>
      %464 = vector.shape_cast %463 : vector<16x1xi1> to vector<16x1xi1>
      %465 = vector.broadcast %464 : vector<16x1xi1> to vector<16x128xi1>
      %466 = arith.select %465, %460, %429 : vector<16x128xi1>, vector<16x128xf32>
      %467 = vector.extract_strided_slice %17 {offsets = [192, 0], sizes = [16, 384], strides = [1, 1]} : vector<256x384xf32> to vector<16x384xf32>
      %468 = arith.truncf %466 : vector<16x128xf32> to vector<16x128xbf16>
      %cst_67 = arith.constant dense<0.000000e+00> : vector<16x384xf32>
      %469 = tpu.matmul %468, %18, %cst_67 {dimension_numbers = #tpu.dot_dimension_numbers<[1], [0], [0], [1], [0, 0, 1, 1], [], []>} : vector<16x128xbf16>, vector<128x384xbf16>, vector<16x384xf32> -> vector<16x384xf32>
      %470 = vector.extract_strided_slice %467 {offsets = [0, 0], sizes = [16, 128], strides = [1, 1]} : vector<16x384xf32> to vector<16x128xf32>
      %471 = vector.extract_strided_slice %469 {offsets = [0, 0], sizes = [16, 128], strides = [1, 1]} : vector<16x384xf32> to vector<16x128xf32>
      %472 = arith.addf %470, %471 : vector<16x128xf32>
      %473 = arith.negf %472 : vector<16x128xf32>
      %474 = math.exp %473 : vector<16x128xf32>
      %cst_68 = arith.constant 1.000000e+00 : f32
      %475 = vector.broadcast %cst_68 : f32 to vector<16x128xf32>
      %476 = arith.addf %475, %474 : vector<16x128xf32>
      %477 = arith.divf %475, %476 : vector<16x128xf32>
      %478 = vector.extract_strided_slice %467 {offsets = [0, 128], sizes = [16, 128], strides = [1, 1]} : vector<16x384xf32> to vector<16x128xf32>
      %479 = vector.extract_strided_slice %469 {offsets = [0, 128], sizes = [16, 128], strides = [1, 1]} : vector<16x384xf32> to vector<16x128xf32>
      %480 = arith.addf %478, %479 : vector<16x128xf32>
      %481 = arith.negf %480 : vector<16x128xf32>
      %482 = math.exp %481 : vector<16x128xf32>
      %cst_69 = arith.constant 1.000000e+00 : f32
      %483 = vector.broadcast %cst_69 : f32 to vector<16x128xf32>
      %484 = arith.addf %483, %482 : vector<16x128xf32>
      %485 = arith.divf %483, %484 : vector<16x128xf32>
      %486 = vector.extract_strided_slice %467 {offsets = [0, 256], sizes = [16, 128], strides = [1, 1]} : vector<16x384xf32> to vector<16x128xf32>
      %487 = vector.extract_strided_slice %469 {offsets = [0, 256], sizes = [16, 128], strides = [1, 1]} : vector<16x384xf32> to vector<16x128xf32>
      %488 = vector.broadcast %19 : vector<1x128xf32> to vector<16x128xf32>
      %489 = arith.addf %487, %488 : vector<16x128xf32>
      %490 = arith.mulf %477, %489 : vector<16x128xf32>
      %491 = arith.addf %486, %490 : vector<16x128xf32>
      %492 = math.tanh %491 : vector<16x128xf32>
      %cst_70 = arith.constant 1.000000e+00 : f32
      %493 = vector.broadcast %cst_70 : f32 to vector<16x128xf32>
      %494 = arith.subf %493, %485 : vector<16x128xf32>
      %495 = arith.mulf %494, %492 : vector<16x128xf32>
      %496 = arith.mulf %485, %466 : vector<16x128xf32>
      %497 = arith.addf %495, %496 : vector<16x128xf32>
      %c12_i32 = arith.constant 12 : i32
      %498 = arith.addi %22, %c12_i32 : i32
      %499 = vector.broadcast %498 : i32 to vector<16x1xi32>
      %500 = arith.cmpi slt, %499, %20 : vector<16x1xi32>
      %501 = vector.shape_cast %500 : vector<16x1xi1> to vector<16x1xi1>
      %502 = vector.broadcast %501 : vector<16x1xi1> to vector<16x128xi1>
      %503 = arith.select %502, %497, %466 : vector<16x128xi1>, vector<16x128xf32>
      %504 = vector.extract_strided_slice %17 {offsets = [208, 0], sizes = [16, 384], strides = [1, 1]} : vector<256x384xf32> to vector<16x384xf32>
      %505 = arith.truncf %503 : vector<16x128xf32> to vector<16x128xbf16>
      %cst_71 = arith.constant dense<0.000000e+00> : vector<16x384xf32>
      %506 = tpu.matmul %505, %18, %cst_71 {dimension_numbers = #tpu.dot_dimension_numbers<[1], [0], [0], [1], [0, 0, 1, 1], [], []>} : vector<16x128xbf16>, vector<128x384xbf16>, vector<16x384xf32> -> vector<16x384xf32>
      %507 = vector.extract_strided_slice %504 {offsets = [0, 0], sizes = [16, 128], strides = [1, 1]} : vector<16x384xf32> to vector<16x128xf32>
      %508 = vector.extract_strided_slice %506 {offsets = [0, 0], sizes = [16, 128], strides = [1, 1]} : vector<16x384xf32> to vector<16x128xf32>
      %509 = arith.addf %507, %508 : vector<16x128xf32>
      %510 = arith.negf %509 : vector<16x128xf32>
      %511 = math.exp %510 : vector<16x128xf32>
      %cst_72 = arith.constant 1.000000e+00 : f32
      %512 = vector.broadcast %cst_72 : f32 to vector<16x128xf32>
      %513 = arith.addf %512, %511 : vector<16x128xf32>
      %514 = arith.divf %512, %513 : vector<16x128xf32>
      %515 = vector.extract_strided_slice %504 {offsets = [0, 128], sizes = [16, 128], strides = [1, 1]} : vector<16x384xf32> to vector<16x128xf32>
      %516 = vector.extract_strided_slice %506 {offsets = [0, 128], sizes = [16, 128], strides = [1, 1]} : vector<16x384xf32> to vector<16x128xf32>
      %517 = arith.addf %515, %516 : vector<16x128xf32>
      %518 = arith.negf %517 : vector<16x128xf32>
      %519 = math.exp %518 : vector<16x128xf32>
      %cst_73 = arith.constant 1.000000e+00 : f32
      %520 = vector.broadcast %cst_73 : f32 to vector<16x128xf32>
      %521 = arith.addf %520, %519 : vector<16x128xf32>
      %522 = arith.divf %520, %521 : vector<16x128xf32>
      %523 = vector.extract_strided_slice %504 {offsets = [0, 256], sizes = [16, 128], strides = [1, 1]} : vector<16x384xf32> to vector<16x128xf32>
      %524 = vector.extract_strided_slice %506 {offsets = [0, 256], sizes = [16, 128], strides = [1, 1]} : vector<16x384xf32> to vector<16x128xf32>
      %525 = vector.broadcast %19 : vector<1x128xf32> to vector<16x128xf32>
      %526 = arith.addf %524, %525 : vector<16x128xf32>
      %527 = arith.mulf %514, %526 : vector<16x128xf32>
      %528 = arith.addf %523, %527 : vector<16x128xf32>
      %529 = math.tanh %528 : vector<16x128xf32>
      %cst_74 = arith.constant 1.000000e+00 : f32
      %530 = vector.broadcast %cst_74 : f32 to vector<16x128xf32>
      %531 = arith.subf %530, %522 : vector<16x128xf32>
      %532 = arith.mulf %531, %529 : vector<16x128xf32>
      %533 = arith.mulf %522, %503 : vector<16x128xf32>
      %534 = arith.addf %532, %533 : vector<16x128xf32>
      %c13_i32 = arith.constant 13 : i32
      %535 = arith.addi %22, %c13_i32 : i32
      %536 = vector.broadcast %535 : i32 to vector<16x1xi32>
      %537 = arith.cmpi slt, %536, %20 : vector<16x1xi32>
      %538 = vector.shape_cast %537 : vector<16x1xi1> to vector<16x1xi1>
      %539 = vector.broadcast %538 : vector<16x1xi1> to vector<16x128xi1>
      %540 = arith.select %539, %534, %503 : vector<16x128xi1>, vector<16x128xf32>
      %541 = vector.extract_strided_slice %17 {offsets = [224, 0], sizes = [16, 384], strides = [1, 1]} : vector<256x384xf32> to vector<16x384xf32>
      %542 = arith.truncf %540 : vector<16x128xf32> to vector<16x128xbf16>
      %cst_75 = arith.constant dense<0.000000e+00> : vector<16x384xf32>
      %543 = tpu.matmul %542, %18, %cst_75 {dimension_numbers = #tpu.dot_dimension_numbers<[1], [0], [0], [1], [0, 0, 1, 1], [], []>} : vector<16x128xbf16>, vector<128x384xbf16>, vector<16x384xf32> -> vector<16x384xf32>
      %544 = vector.extract_strided_slice %541 {offsets = [0, 0], sizes = [16, 128], strides = [1, 1]} : vector<16x384xf32> to vector<16x128xf32>
      %545 = vector.extract_strided_slice %543 {offsets = [0, 0], sizes = [16, 128], strides = [1, 1]} : vector<16x384xf32> to vector<16x128xf32>
      %546 = arith.addf %544, %545 : vector<16x128xf32>
      %547 = arith.negf %546 : vector<16x128xf32>
      %548 = math.exp %547 : vector<16x128xf32>
      %cst_76 = arith.constant 1.000000e+00 : f32
      %549 = vector.broadcast %cst_76 : f32 to vector<16x128xf32>
      %550 = arith.addf %549, %548 : vector<16x128xf32>
      %551 = arith.divf %549, %550 : vector<16x128xf32>
      %552 = vector.extract_strided_slice %541 {offsets = [0, 128], sizes = [16, 128], strides = [1, 1]} : vector<16x384xf32> to vector<16x128xf32>
      %553 = vector.extract_strided_slice %543 {offsets = [0, 128], sizes = [16, 128], strides = [1, 1]} : vector<16x384xf32> to vector<16x128xf32>
      %554 = arith.addf %552, %553 : vector<16x128xf32>
      %555 = arith.negf %554 : vector<16x128xf32>
      %556 = math.exp %555 : vector<16x128xf32>
      %cst_77 = arith.constant 1.000000e+00 : f32
      %557 = vector.broadcast %cst_77 : f32 to vector<16x128xf32>
      %558 = arith.addf %557, %556 : vector<16x128xf32>
      %559 = arith.divf %557, %558 : vector<16x128xf32>
      %560 = vector.extract_strided_slice %541 {offsets = [0, 256], sizes = [16, 128], strides = [1, 1]} : vector<16x384xf32> to vector<16x128xf32>
      %561 = vector.extract_strided_slice %543 {offsets = [0, 256], sizes = [16, 128], strides = [1, 1]} : vector<16x384xf32> to vector<16x128xf32>
      %562 = vector.broadcast %19 : vector<1x128xf32> to vector<16x128xf32>
      %563 = arith.addf %561, %562 : vector<16x128xf32>
      %564 = arith.mulf %551, %563 : vector<16x128xf32>
      %565 = arith.addf %560, %564 : vector<16x128xf32>
      %566 = math.tanh %565 : vector<16x128xf32>
      %cst_78 = arith.constant 1.000000e+00 : f32
      %567 = vector.broadcast %cst_78 : f32 to vector<16x128xf32>
      %568 = arith.subf %567, %559 : vector<16x128xf32>
      %569 = arith.mulf %568, %566 : vector<16x128xf32>
      %570 = arith.mulf %559, %540 : vector<16x128xf32>
      %571 = arith.addf %569, %570 : vector<16x128xf32>
      %c14_i32 = arith.constant 14 : i32
      %572 = arith.addi %22, %c14_i32 : i32
      %573 = vector.broadcast %572 : i32 to vector<16x1xi32>
      %574 = arith.cmpi slt, %573, %20 : vector<16x1xi32>
      %575 = vector.shape_cast %574 : vector<16x1xi1> to vector<16x1xi1>
      %576 = vector.broadcast %575 : vector<16x1xi1> to vector<16x128xi1>
      %577 = arith.select %576, %571, %540 : vector<16x128xi1>, vector<16x128xf32>
      %578 = vector.extract_strided_slice %17 {offsets = [240, 0], sizes = [16, 384], strides = [1, 1]} : vector<256x384xf32> to vector<16x384xf32>
      %579 = arith.truncf %577 : vector<16x128xf32> to vector<16x128xbf16>
      %cst_79 = arith.constant dense<0.000000e+00> : vector<16x384xf32>
      %580 = tpu.matmul %579, %18, %cst_79 {dimension_numbers = #tpu.dot_dimension_numbers<[1], [0], [0], [1], [0, 0, 1, 1], [], []>} : vector<16x128xbf16>, vector<128x384xbf16>, vector<16x384xf32> -> vector<16x384xf32>
      %581 = vector.extract_strided_slice %578 {offsets = [0, 0], sizes = [16, 128], strides = [1, 1]} : vector<16x384xf32> to vector<16x128xf32>
      %582 = vector.extract_strided_slice %580 {offsets = [0, 0], sizes = [16, 128], strides = [1, 1]} : vector<16x384xf32> to vector<16x128xf32>
      %583 = arith.addf %581, %582 : vector<16x128xf32>
      %584 = arith.negf %583 : vector<16x128xf32>
      %585 = math.exp %584 : vector<16x128xf32>
      %cst_80 = arith.constant 1.000000e+00 : f32
      %586 = vector.broadcast %cst_80 : f32 to vector<16x128xf32>
      %587 = arith.addf %586, %585 : vector<16x128xf32>
      %588 = arith.divf %586, %587 : vector<16x128xf32>
      %589 = vector.extract_strided_slice %578 {offsets = [0, 128], sizes = [16, 128], strides = [1, 1]} : vector<16x384xf32> to vector<16x128xf32>
      %590 = vector.extract_strided_slice %580 {offsets = [0, 128], sizes = [16, 128], strides = [1, 1]} : vector<16x384xf32> to vector<16x128xf32>
      %591 = arith.addf %589, %590 : vector<16x128xf32>
      %592 = arith.negf %591 : vector<16x128xf32>
      %593 = math.exp %592 : vector<16x128xf32>
      %cst_81 = arith.constant 1.000000e+00 : f32
      %594 = vector.broadcast %cst_81 : f32 to vector<16x128xf32>
      %595 = arith.addf %594, %593 : vector<16x128xf32>
      %596 = arith.divf %594, %595 : vector<16x128xf32>
      %597 = vector.extract_strided_slice %578 {offsets = [0, 256], sizes = [16, 128], strides = [1, 1]} : vector<16x384xf32> to vector<16x128xf32>
      %598 = vector.extract_strided_slice %580 {offsets = [0, 256], sizes = [16, 128], strides = [1, 1]} : vector<16x384xf32> to vector<16x128xf32>
      %599 = vector.broadcast %19 : vector<1x128xf32> to vector<16x128xf32>
      %600 = arith.addf %598, %599 : vector<16x128xf32>
      %601 = arith.mulf %588, %600 : vector<16x128xf32>
      %602 = arith.addf %597, %601 : vector<16x128xf32>
      %603 = math.tanh %602 : vector<16x128xf32>
      %cst_82 = arith.constant 1.000000e+00 : f32
      %604 = vector.broadcast %cst_82 : f32 to vector<16x128xf32>
      %605 = arith.subf %604, %596 : vector<16x128xf32>
      %606 = arith.mulf %605, %603 : vector<16x128xf32>
      %607 = arith.mulf %596, %577 : vector<16x128xf32>
      %608 = arith.addf %606, %607 : vector<16x128xf32>
      %c15_i32 = arith.constant 15 : i32
      %609 = arith.addi %22, %c15_i32 : i32
      %610 = vector.broadcast %609 : i32 to vector<16x1xi32>
      %611 = arith.cmpi slt, %610, %20 : vector<16x1xi32>
      %612 = vector.shape_cast %611 : vector<16x1xi1> to vector<16x1xi1>
      %613 = vector.broadcast %612 : vector<16x1xi1> to vector<16x128xi1>
      %614 = arith.select %613, %608, %577 : vector<16x128xi1>, vector<16x128xf32>
      %c0_83 = arith.constant 0 : index
      %c0_84 = arith.constant 0 : index
      %615 = vector.load %arg12[%c0_83, %c0_84] : memref<16x128xf32, #tpu.memory_space<vmem>>, vector<16x128xf32>
      tpu.vector_store %arg12[%c0_83, %c0_84], %614 {strides = array<i32>} : memref<16x128xf32, #tpu.memory_space<vmem>>, vector<16x128xf32>,
    } else {
    }
    %c0_i32_2 = arith.constant 0 : i32
    %8 = arith.cmpi eq, %arg1, %c0_i32_2 : i32
    %9 = arith.extui %8 : i1 to i32
    %c0_i32_3 = arith.constant 0 : i32
    %10 = arith.cmpi ne, %9, %c0_i32_3 : i32
    scf.if %10 {
      %c0 = arith.constant 0 : index
      %c0_4 = arith.constant 0 : index
      %11 = vector.load %arg12[%c0, %c0_4] : memref<16x128xf32, #tpu.memory_space<vmem>>, vector<16x128xf32>
      %12 = arith.truncf %11 : vector<16x128xf32> to vector<16x128xbf16>
      %c0_5 = arith.constant 0 : index
      %c0_6 = arith.constant 0 : index
      %13 = vector.load %arg9[%c0_5, %c0_6] : memref<128x128xbf16, #tpu.memory_space<vmem>>, vector<128x128xbf16>
      %cst = arith.constant dense<0.000000e+00> : vector<16x128xf32>
      %14 = tpu.matmul %12, %13, %cst {dimension_numbers = #tpu.dot_dimension_numbers<[1], [0], [0], [1], [0, 0, 1, 1], [], []>} : vector<16x128xbf16>, vector<128x128xbf16>, vector<16x128xf32> -> vector<16x128xf32>
      %c0_7 = arith.constant 0 : index
      %c0_8 = arith.constant 0 : index
      %15 = vector.load %arg10[%c0_7, %c0_8] : memref<1x128xf32, #tpu.memory_space<vmem>>, vector<1x128xf32>
      %16 = vector.broadcast %15 : vector<1x128xf32> to vector<16x128xf32>
      %17 = arith.addf %14, %16 : vector<16x128xf32>
      %c0_9 = arith.constant 0 : index
      %c0_10 = arith.constant 0 : index
      %18 = vector.load %arg11[%c0_9, %c0_10] : memref<16x128xf32, #tpu.memory_space<vmem>>, vector<16x128xf32>
      tpu.vector_store %arg11[%c0_9, %c0_10], %17 {strides = array<i32>} : memref<16x128xf32, #tpu.memory_space<vmem>>, vector<16x128xf32>,
    } else {
    }
    return
  }
  func.func @transform_0(%arg0: i32, %arg1: i32, %arg2: memref<1xi32, #tpu.memory_space<smem>>) -> (i32, i32) {
    %c0_i32 = arith.constant 0 : i32
    %c0_i32_0 = arith.constant 0 : i32
    return %arg0, %c0_i32 : i32, i32
  }
  func.func @transform_1(%arg0: i32, %arg1: i32, %arg2: memref<1xi32, #tpu.memory_space<smem>>) -> (i32, i32, i32) {
    %c0_i32 = arith.constant 0 : i32
    %c0_i32_0 = arith.constant 0 : i32
    return %arg1, %arg0, %c0_i32 : i32, i32, i32
  }
  func.func @transform_2(%arg0: i32, %arg1: i32, %arg2: memref<1xi32, #tpu.memory_space<smem>>) -> (i32, i32) {
    %c0_i32 = arith.constant 0 : i32
    %c0_i32_0 = arith.constant 0 : i32
    %c0_i32_1 = arith.constant 0 : i32
    return %c0_i32, %c0_i32_0 : i32, i32
  }
  func.func @transform_3(%arg0: i32, %arg1: i32, %arg2: memref<1xi32, #tpu.memory_space<smem>>) -> (i32, i32) {
    %c0_i32 = arith.constant 0 : i32
    %c0_i32_0 = arith.constant 0 : i32
    %c0_i32_1 = arith.constant 0 : i32
    return %c0_i32, %c0_i32_0 : i32, i32
  }
  func.func @transform_4(%arg0: i32, %arg1: i32, %arg2: memref<1xi32, #tpu.memory_space<smem>>) -> (i32, i32) {
    %c0_i32 = arith.constant 0 : i32
    %c0_i32_0 = arith.constant 0 : i32
    %c0_i32_1 = arith.constant 0 : i32
    return %c0_i32, %c0_i32_0 : i32, i32
  }
  func.func @transform_5(%arg0: i32, %arg1: i32, %arg2: memref<1xi32, #tpu.memory_space<smem>>) -> (i32, i32) {
    %c0_i32 = arith.constant 0 : i32
    %c0_i32_0 = arith.constant 0 : i32
    %c0_i32_1 = arith.constant 0 : i32
    return %c0_i32, %c0_i32_0 : i32, i32
  }
  func.func @transform_6(%arg0: i32, %arg1: i32, %arg2: memref<1xi32, #tpu.memory_space<smem>>) -> (i32, i32) {
    %c0_i32 = arith.constant 0 : i32
    %c0_i32_0 = arith.constant 0 : i32
    %c0_i32_1 = arith.constant 0 : i32
    return %c0_i32, %c0_i32_0 : i32, i32
  }
  func.func @transform_7(%arg0: i32, %arg1: i32, %arg2: memref<1xi32, #tpu.memory_space<smem>>) -> (i32, i32) {
    %c0_i32 = arith.constant 0 : i32
    %c0_i32_0 = arith.constant 0 : i32
    %c0_i32_1 = arith.constant 0 : i32
    return %c0_i32, %c0_i32_0 : i32, i32
  }
  func.func @transform_8(%arg0: i32, %arg1: i32, %arg2: memref<1xi32, #tpu.memory_space<smem>>) -> (i32, i32) {
    %c0_i32 = arith.constant 0 : i32
    %c0_i32_0 = arith.constant 0 : i32
    return %arg0, %c0_i32 : i32, i32
  }
}

</mosaic_0001>

<llo_original>
// kernel: tpu_custom_call.1
$region0: #{tpu_custom_call.1}
  #allocation0 [shape = 'u32[]', space=smem, size = 0x4, offset = 0x4, fixed_abs, tag = 'smem constant byte address 0x4 - core index']
  #allocation1 [shape = 'u32[144,128]{1,0:T(1,128)}', space=vmem, size = 0x12000, scoped, tag = 'internal scratch']
  #allocation2 [shape = 'f32[16,128]{1,0:T(8,128)}', space=vmem, size = 0x2000, scoped, tag = 'scratch operand']
  #allocation3 [shape = 's32[1]{0}', space=sflag, size = 0x4, scoped, tag = 'scoped memory for tpu_custom_call.1']
  #allocation4 [shape = 's32[1]{0:T(128)S(6)}', space=smem, size = 0x200, scoped, tag = 'prefetched SMEM operand 0']
  %s0 = inlined_call_operand.<no memory space> [shape: s32[1], index: 0, kind: input, shape index: {}]
  %s1 = inlined_call_operand.vmem [shape: s32[16,1], index: 1, kind: input, shape index: {}]
  %s2 = inlined_call_operand.hbm [shape: bf16[16,16,128], index: 2, kind: input, shape index: {}]
  %s3 = inlined_call_operand.hbm [shape: bf16[128,384], index: 3, kind: input, shape index: {}]
  %s4 = inlined_call_operand.hbm [shape: bf16[128,384], index: 4, kind: input, shape index: {}]
  %s5 = inlined_call_operand.vmem [shape: f32[1,384], index: 5, kind: input, shape index: {}]
  %s6 = inlined_call_operand.vmem [shape: f32[1,128], index: 6, kind: input, shape index: {}]
  %s7 = inlined_call_operand.hbm [shape: bf16[128,128], index: 7, kind: input, shape index: {}]
  %s8 = inlined_call_operand.vmem [shape: f32[1,128], index: 8, kind: input, shape index: {}]
  %s9 = inlined_call_operand.hbm [shape: f32[16,128], index: 9, kind: output, shape index: {}]
  %s10 = sld [smem:[#allocation0]]
  $region70: #{tpu_custom_call.1} parent=0
    _
  %s12 = ssub.s32 1, %s10
  %s13 = scalar_select 0, %s12, %s10
  %14 = sst [smem:[#allocation4]] %s0
  $region1: #{tpu_custom_call.1} parent=0
    #allocation5 [shape = 'u8[65536]{0}', space=vmem, size = 0x10000, scoped, tag = 'input window, operand 2, single buffered']
    #allocation6 [shape = 's32[1]{0}', space=sflag, size = 0x4, scoped, tag = 'scoped memory for tpu_custom_call.1']
    #allocation7 [shape = 's32[1]{0}', space=sflag, size = 0x4, scoped, tag = 'scoped memory for tpu_custom_call.1']
    #allocation8 [shape = 'u8[98304]{0}', space=vmem, size = 0x18000, scoped, tag = 'input window, operand 3, single buffered']
    #allocation9 [shape = 's32[1]{0}', space=sflag, size = 0x4, scoped, tag = 'scoped memory for tpu_custom_call.1']
    #allocation10 [shape = 'u8[98304]{0}', space=vmem, size = 0x18000, scoped, tag = 'input window, operand 4, single buffered']
    #allocation11 [shape = 'u8[32768]{0}', space=vmem, size = 0x8000, scoped, tag = 'input window, operand 7, single buffered']
    #allocation12 [shape = 's32[1]{0}', space=sflag, size = 0x4, scoped, tag = 'scoped memory for tpu_custom_call.1']
    #allocation13 [shape = 'u8[8192]{0}', space=vmem, size = 0x2000, scoped, tag = 'output window, operand 0, single buffered']
    %15 = vsyncpa [#allocation6], 0
    %16 = vsyncpa [#allocation9], 0
    %17 = vsyncpa [#allocation12], 0
    %18 = vsyncpa [#allocation7], 0
    // Predicated region
    $region2: #{tpu_custom_call.1} parent=1 // pred_check
      _
    $region3: #{tpu_custom_call.1} parent=1 // pred_check_branch
      %20 = sbr.rel (0) target = $region5
    $region4: #{tpu_custom_call.1} parent=1 // pred_region
      _
    $region5: #{tpu_custom_call.1} parent=1 // pred_fallthru
      _
    // Predicated region
    $region6: #{tpu_custom_call.1} parent=1 // pred_check
      _
    $region7: #{tpu_custom_call.1} parent=1 // pred_check_branch
      %22 = sbr.rel (0) target = $region9
    $region8: #{tpu_custom_call.1} parent=1 // pred_region
      %s24 = ssub.s32 2048, 2048
      %25 = vsyncadd [#allocation6], %s24
      %s26 = sshll.u32 [#allocation5], 4
      %s27 = int_to_ptr.vmem [resolvable:$true] %s26
      %32 = dma.hbm_to_vmem [thread:$0]  %s2, 2048, %s27, [#allocation6], 64, 64, 4
    $region9: #{tpu_custom_call.1} parent=1 // pred_fallthru
      _
    // Predicated region
    $region10: #{tpu_custom_call.1} parent=1 // pred_check
      _
    $region11: #{tpu_custom_call.1} parent=1 // pred_check_branch
      %34 = sbr.rel (0) target = $region13
    $region12: #{tpu_custom_call.1} parent=1 // pred_region
      %s36 = ssub.s32 3072, 3072
      %37 = vsyncadd [#allocation9], %s36
      %s38 = sshll.u32 [#allocation8], 4
      %s39 = int_to_ptr.vmem [resolvable:$true] %s38
      %44 = dma.hbm_to_vmem [thread:$0]  %s3, 3072, %s39, [#allocation9], 192, 192, 12
    $region13: #{tpu_custom_call.1} parent=1 // pred_fallthru
      _
    // Predicated region
    $region14: #{tpu_custom_call.1} parent=1 // pred_check
      _
    $region15: #{tpu_custom_call.1} parent=1 // pred_check_branch
      %46 = sbr.rel (0) target = $region17
    $region16: #{tpu_custom_call.1} parent=1 // pred_region
      %s48 = ssub.s32 3072, 3072
      %49 = vsyncadd [#allocation9], %s48
      %s50 = sshll.u32 [#allocation10], 4
      %s51 = int_to_ptr.vmem [resolvable:$true] %s50
      %56 = dma.hbm_to_vmem [thread:$0]  %s4, 3072, %s51, [#allocation9], 192, 192, 12
    $region17: #{tpu_custom_call.1} parent=1 // pred_fallthru
      _
    // Predicated region
    $region18: #{tpu_custom_call.1} parent=1 // pred_check
      _
    $region19: #{tpu_custom_call.1} parent=1 // pred_check_branch
      %58 = sbr.rel (0) target = $region21
    $region20: #{tpu_custom_call.1} parent=1 // pred_region
      _
    $region21: #{tpu_custom_call.1} parent=1 // pred_fallthru
      _
    // Predicated region
    $region22: #{tpu_custom_call.1} parent=1 // pred_check
      _
    $region23: #{tpu_custom_call.1} parent=1 // pred_check_branch
      %60 = sbr.rel (0) target = $region25
    $region24: #{tpu_custom_call.1} parent=1 // pred_region
      _
    $region25: #{tpu_custom_call.1} parent=1 // pred_fallthru
      _
    // Predicated region
    $region26: #{tpu_custom_call.1} parent=1 // pred_check
      _
    $region27: #{tpu_custom_call.1} parent=1 // pred_check_branch
      %62 = sbr.rel (0) target = $region29
    $region28: #{tpu_custom_call.1} parent=1 // pred_region
      %s64 = ssub.s32 1024, 1024
      %65 = vsyncadd [#allocation12], %s64
      %s66 = sshll.u32 [#allocation11], 4
      %s67 = int_to_ptr.vmem [resolvable:$true] %s66
      %72 = dma.hbm_to_vmem [thread:$0]  %s7, 1024, %s67, [#allocation12], 64, 64, 4
    $region29: #{tpu_custom_call.1} parent=1 // pred_fallthru
      _
    // Predicated region
    $region30: #{tpu_custom_call.1} parent=1 // pred_check
      _
    $region31: #{tpu_custom_call.1} parent=1 // pred_check_branch
      %74 = sbr.rel (0) target = $region33
    $region32: #{tpu_custom_call.1} parent=1 // pred_region
      _
    $region33: #{tpu_custom_call.1} parent=1 // pred_fallthru
      _
    // Predicated region
    $region34: #{tpu_custom_call.1} parent=1 // pred_check
      _
    $region35: #{tpu_custom_call.1} parent=1 // pred_check_branch
      %76 = sbr.rel (0) target = $region37
    $region36: #{tpu_custom_call.1} parent=1 // pred_region
      %77 = dma.done [#allocation6], 2048
    $region37: #{tpu_custom_call.1} parent=1 // pred_fallthru
      _
    // Predicated region
    $region38: #{tpu_custom_call.1} parent=1 // pred_check
      _
    $region39: #{tpu_custom_call.1} parent=1 // pred_check_branch
      %79 = sbr.rel (0) target = $region41
    $region40: #{tpu_custom_call.1} parent=1 // pred_region
      %80 = dma.done [#allocation9], 3072
    $region41: #{tpu_custom_call.1} parent=1 // pred_fallthru
      _
    // Predicated region
    $region42: #{tpu_custom_call.1} parent=1 // pred_check
      _
    $region43: #{tpu_custom_call.1} parent=1 // pred_check_branch
      %82 = sbr.rel (0) target = $region45
    $region44: #{tpu_custom_call.1} parent=1 // pred_region
      %83 = dma.done [#allocation9], 3072
    $region45: #{tpu_custom_call.1} parent=1 // pred_fallthru
      _
    // Predicated region
    $region46: #{tpu_custom_call.1} parent=1 // pred_check
      _
    $region47: #{tpu_custom_call.1} parent=1 // pred_check_branch
      %85 = sbr.rel (0) target = $region49
    $region48: #{tpu_custom_call.1} parent=1 // pred_region
      %86 = dma.done [#allocation12], 1024
    $region49: #{tpu_custom_call.1} parent=1 // pred_fallthru
      _
    %p88 = scmp.eq.s32.totalorder 0, 0
    // Predicated region
    $region50: #{tpu_custom_call.1} parent=1 // pred_check
      %p89 = pneg %p88
    $region51: #{tpu_custom_call.1} parent=1 // pred_check_branch
      %91 = sbr.rel (%p89) target = $region53
    $region52: #{tpu_custom_call.1} parent=1 // pred_region
      %92 = vst [vmem:[#allocation2] sm:$0xff] 0.0
      %93 = vst [vmem:[#allocation2 + $0x8] sm:$0xff] 0.0
    $region53: #{tpu_custom_call.1} parent=1 // pred_fallthru
      _
    %s94 = sld [smem:[#allocation4]]
    %p95 = scmp.lt.s32.totalorder 0, %s94
    // Predicated region
    $region54: #{tpu_custom_call.1} parent=1 // pred_check
      %p96 = pneg %p95
    $region55: #{tpu_custom_call.1} parent=1 // pred_check_branch
      %98 = sbr.rel (%p96) target = $region57
    $region56: #{tpu_custom_call.1} parent=1 // pred_region
      %v99 = vld [vmem:[#allocation5] sm:$0xf]
      %v100 = vld [vmem:[#allocation5 + $0x4] sm:$0xf]
      %v101 = vld [vmem:[#allocation5 + $0x8] sm:$0xf]
      %v102 = vld [vmem:[#allocation5 + $0xc] sm:$0xf]
      %v103 = vld [vmem:[#allocation5 + $0x10] sm:$0xf]
      %v104 = vld [vmem:[#allocation5 + $0x14] sm:$0xf]
      %v105 = vld [vmem:[#allocation5 + $0x18] sm:$0xf]
      %v106 = vld [vmem:[#allocation5 + $0x1c] sm:$0xf]
      %v107 = vld [vmem:[#allocation5 + $0x20] sm:$0xf]
      %v108 = vld [vmem:[#allocation5 + $0x24] sm:$0xf]
      %v109 = vld [vmem:[#allocation5 + $0x28] sm:$0xf]
      %v110 = vld [vmem:[#allocation5 + $0x2c] sm:$0xf]
      %v111 = vld [vmem:[#allocation5 + $0x30] sm:$0xf]
      %v112 = vld [vmem:[#allocation5 + $0x34] sm:$0xf]
      %v113 = vld [vmem:[#allocation5 + $0x38] sm:$0xf]
      %v114 = vld [vmem:[#allocation5 + $0x3c] sm:$0xf]
      %v115 = vld [vmem:[#allocation5 + $0x40] sm:$0xf]
      %v116 = vld [vmem:[#allocation5 + $0x44] sm:$0xf]
      %v117 = vld [vmem:[#allocation5 + $0x48] sm:$0xf]
      %v118 = vld [vmem:[#allocation5 + $0x4c] sm:$0xf]
      %v119 = vld [vmem:[#allocation5 + $0x50] sm:$0xf]
      %v120 = vld [vmem:[#allocation5 + $0x54] sm:$0xf]
      %v121 = vld [vmem:[#allocation5 + $0x58] sm:$0xf]
      %v122 = vld [vmem:[#allocation5 + $0x5c] sm:$0xf]
      %v123 = vld [vmem:[#allocation5 + $0x60] sm:$0xf]
      %v124 = vld [vmem:[#allocation5 + $0x64] sm:$0xf]
      %v125 = vld [vmem:[#allocation5 + $0x68] sm:$0xf]
      %v126 = vld [vmem:[#allocation5 + $0x6c] sm:$0xf]
      %v127 = vld [vmem:[#allocation5 + $0x70] sm:$0xf]
      %v128 = vld [vmem:[#allocation5 + $0x74] sm:$0xf]
      %v129 = vld [vmem:[#allocation5 + $0x78] sm:$0xf]
      %v130 = vld [vmem:[#allocation5 + $0x7c] sm:$0xf]
      %v131 = vld [vmem:[#allocation8] sm:$0xff]
      %v132 = vld [vmem:[#allocation8 + $0x8] sm:$0xf]
      %v133 = vld [vmem:[#allocation8 + $0xc] sm:$0xff]
      %v134 = vld [vmem:[#allocation8 + $0x14] sm:$0xf]
      %v135 = vld [vmem:[#allocation8 + $0x18] sm:$0xff]
      %v136 = vld [vmem:[#allocation8 + $0x20] sm:$0xf]
      %v137 = vld [vmem:[#allocation8 + $0x24] sm:$0xff]
      %v138 = vld [vmem:[#allocation8 + $0x2c] sm:$0xf]
      %v139 = vld [vmem:[#allocation8 + $0x30] sm:$0xff]
      %v140 = vld [vmem:[#allocation8 + $0x38] sm:$0xf]
      %v141 = vld [vmem:[#allocation8 + $0x3c] sm:$0xff]
      %v142 = vld [vmem:[#allocation8 + $0x44] sm:$0xf]
      %v143 = vld [vmem:[#allocation8 + $0x48] sm:$0xff]
      %v144 = vld [vmem:[#allocation8 + $0x50] sm:$0xf]
      %v145 = vld [vmem:[#allocation8 + $0x54] sm:$0xff]
      %v146 = vld [vmem:[#allocation8 + $0x5c] sm:$0xf]
      %v147 = vld [vmem:[#allocation8 + $0x60] sm:$0xff]
      %v148 = vld [vmem:[#allocation8 + $0x68] sm:$0xf]
      %v149 = vld [vmem:[#allocation8 + $0x6c] sm:$0xff]
      %v150 = vld [vmem:[#allocation8 + $0x74] sm:$0xf]
      %v151 = vld [vmem:[#allocation8 + $0x78] sm:$0xff]
      %v152 = vld [vmem:[#allocation8 + $0x80] sm:$0xf]
      %v153 = vld [vmem:[#allocation8 + $0x84] sm:$0xff]
      %v154 = vld [vmem:[#allocation8 + $0x8c] sm:$0xf]
      %v155 = vld [vmem:[#allocation8 + $0x90] sm:$0xff]
      %v156 = vld [vmem:[#allocation8 + $0x98] sm:$0xf]
      %v157 = vld [vmem:[#allocation8 + $0x9c] sm:$0xff]
      %v158 = vld [vmem:[#allocation8 + $0xa4] sm:$0xf]
      %v159 = vld [vmem:[#allocation8 + $0xa8] sm:$0xff]
      %v160 = vld [vmem:[#allocation8 + $0xb0] sm:$0xf]
      %v161 = vld [vmem:[#allocation8 + $0xb4] sm:$0xff]
      %v162 = vld [vmem:[#allocation8 + $0xbc] sm:$0xf]
      %v163 = vld [vmem:[%s5] sm:$0x7]
      %v165 = vlaneseq
      %v166 = vshrl.u32 %v165, 7
      %v167 = vsub.s32 0, %v166
      %v168 = vrot.slane %v163, %v167
      %v169 = vlaneseq
      %v170 = vshrl.u32 %v169, 7
      %v171 = vsub.s32 1, %v170
      %v172 = vrot.slane %v163, %v171
      %v173 = vlaneseq
      %v174 = vshrl.u32 %v173, 7
      %v175 = vsub.s32 2, %v174
      %v176 = vrot.slane %v163, %v175
      %v212 = vunpack.c.l.b16 %v99
      %v213 = vunpack.c.l.b16 %v100
      %v214 = vunpack.c.l.b16 %v101
      %v215 = vunpack.c.l.b16 %v102
      %v216 = vunpack.c.l.b16 %v103
      %v217 = vunpack.c.l.b16 %v104
      %v218 = vunpack.c.l.b16 %v105
      %v219 = vunpack.c.l.b16 %v106
      %v220 = vunpack.c.l.b16 %v107
      %v221 = vunpack.c.l.b16 %v108
      %v222 = vunpack.c.l.b16 %v109
      %v223 = vunpack.c.l.b16 %v110
      %v224 = vunpack.c.l.b16 %v111
      %v225 = vunpack.c.l.b16 %v112
      %v226 = vunpack.c.l.b16 %v113
      %v227 = vunpack.c.l.b16 %v114
      %v228 = vunpack.c.l.b16 %v115
      %v229 = vunpack.c.l.b16 %v116
      %v230 = vunpack.c.l.b16 %v117
      %v231 = vunpack.c.l.b16 %v118
      %v232 = vunpack.c.l.b16 %v119
      %v233 = vunpack.c.l.b16 %v120
      %v234 = vunpack.c.l.b16 %v121
      %v235 = vunpack.c.l.b16 %v122
      %v236 = vunpack.c.l.b16 %v123
      %v237 = vunpack.c.l.b16 %v124
      %v238 = vunpack.c.l.b16 %v125
      %v239 = vunpack.c.l.b16 %v126
      %v240 = vunpack.c.l.b16 %v127
      %v241 = vunpack.c.l.b16 %v128
      %v242 = vunpack.c.l.b16 %v129
      %v243 = vunpack.c.l.b16 %v130
      %v244 = vpack.c.b16 %v213, %v212
      %v245 = vpack.c.b16 %v215, %v214
      %v246 = vpack.c.b16 %v217, %v216
      %v247 = vpack.c.b16 %v219, %v218
      %v248 = vpack.c.b16 %v221, %v220
      %v249 = vpack.c.b16 %v223, %v222
      %v250 = vpack.c.b16 %v225, %v224
      %v251 = vpack.c.b16 %v227, %v226
      %v252 = vpack.c.b16 %v229, %v228
      %v253 = vpack.c.b16 %v231, %v230
      %v254 = vpack.c.b16 %v233, %v232
      %v255 = vpack.c.b16 %v235, %v234
      %v256 = vpack.c.b16 %v237, %v236
      %v257 = vpack.c.b16 %v239, %v238
      %v258 = vpack.c.b16 %v241, %v240
      %v259 = vpack.c.b16 %v243, %v242
      %v308 = vunpack.c.l.b16 %v131
      %v309 = vunpack.c.h.b16 %v131
      %v310 = vunpack.c.l.b16 %v132
      %v311 = vunpack.c.l.b16 %v133
      %v312 = vunpack.c.h.b16 %v133
      %v313 = vunpack.c.l.b16 %v134
      %v314 = vunpack.c.l.b16 %v135
      %v315 = vunpack.c.h.b16 %v135
      %v316 = vunpack.c.l.b16 %v136
      %v317 = vunpack.c.l.b16 %v137
      %v318 = vunpack.c.h.b16 %v137
      %v319 = vunpack.c.l.b16 %v138
      %v320 = vunpack.c.l.b16 %v139
      %v321 = vunpack.c.h.b16 %v139
      %v322 = vunpack.c.l.b16 %v140
      %v323 = vunpack.c.l.b16 %v141
      %v324 = vunpack.c.h.b16 %v141
      %v325 = vunpack.c.l.b16 %v142
      %v326 = vunpack.c.l.b16 %v143
      %v327 = vunpack.c.h.b16 %v143
      %v328 = vunpack.c.l.b16 %v144
      %v329 = vunpack.c.l.b16 %v145
      %v330 = vunpack.c.h.b16 %v145
      %v331 = vunpack.c.l.b16 %v146
      %v332 = vunpack.c.l.b16 %v147
      %v333 = vunpack.c.h.b16 %v147
      %v334 = vunpack.c.l.b16 %v148
      %v335 = vunpack.c.l.b16 %v149
      %v336 = vunpack.c.h.b16 %v149
      %v337 = vunpack.c.l.b16 %v150
      %v338 = vunpack.c.l.b16 %v151
      %v339 = vunpack.c.h.b16 %v151
      %v340 = vunpack.c.l.b16 %v152
      %v341 = vunpack.c.l.b16 %v153
      %v342 = vunpack.c.h.b16 %v153
      %v343 = vunpack.c.l.b16 %v154
      %v344 = vunpack.c.l.b16 %v155
      %v345 = vunpack.c.h.b16 %v155
      %v346 = vunpack.c.l.b16 %v156
      %v347 = vunpack.c.l.b16 %v157
      %v348 = vunpack.c.h.b16 %v157
      %v349 = vunpack.c.l.b16 %v158
      %v350 = vunpack.c.l.b16 %v159
      %v351 = vunpack.c.h.b16 %v159
      %v352 = vunpack.c.l.b16 %v160
      %v353 = vunpack.c.l.b16 %v161
      %v354 = vunpack.c.h.b16 %v161
      %v355 = vunpack.c.l.b16 %v162
      %v356 = vpack.c.b16 %v311, %v308
      %v357 = vpack.c.b16 %v312, %v309
      %v358 = vpack.c.b16 %v313, %v310
      %v359 = vpack.c.b16 %v317, %v314
      %v360 = vpack.c.b16 %v318, %v315
      %v361 = vpack.c.b16 %v319, %v316
      %v362 = vpack.c.b16 %v323, %v320
      %v363 = vpack.c.b16 %v324, %v321
      %v364 = vpack.c.b16 %v325, %v322
      %v365 = vpack.c.b16 %v329, %v326
      %v366 = vpack.c.b16 %v330, %v327
      %v367 = vpack.c.b16 %v331, %v328
      %v368 = vpack.c.b16 %v335, %v332
      %v369 = vpack.c.b16 %v336, %v333
      %v370 = vpack.c.b16 %v337, %v334
      %v371 = vpack.c.b16 %v341, %v338
      %v372 = vpack.c.b16 %v342, %v339
      %v373 = vpack.c.b16 %v343, %v340
      %v374 = vpack.c.b16 %v347, %v344
      %v375 = vpack.c.b16 %v348, %v345
      %v376 = vpack.c.b16 %v349, %v346
      %v377 = vpack.c.b16 %v353, %v350
      %v378 = vpack.c.b16 %v354, %v351
      %v379 = vpack.c.b16 %v355, %v352
      %404 = vmatprep.subr.bf16.mxu0 %v357
      %405 = vmatpush1.bf16.msra.mxu0 %v356
      %406 = vmatprep.subr.bf16.mxu0 %v360
      %407 = vmatpush1.bf16.msra.mxu0 %v359
      %408 = vmatprep.subr.bf16.mxu0 %v363
      %409 = vmatpush1.bf16.msra.mxu0 %v362
      %410 = vmatprep.subr.bf16.mxu0 %v366
      %411 = vmatpush1.bf16.msra.mxu0 %v365
      %412 = vmatprep.subr.bf16.mxu0 %v369
      %413 = vmatpush1.bf16.msra.mxu0 %v368
      %414 = vmatprep.subr.bf16.mxu0 %v372
      %415 = vmatpush1.bf16.msra.mxu0 %v371
      %416 = vmatprep.subr.bf16.mxu0 %v375
      %417 = vmatpush1.bf16.msra.mxu0 %v374
      %418 = vmatprep.subr.bf16.mxu0 %v378
      %419 = vmatpush1.bf16.msra.mxu0 %v377
      %420 = vmatprep.subr.bf16.mxu0 0
      %421 = vmatpush1.bf16.msra.mxu0 0
      %422 = vmatprep.subr.bf16.mxu0 0
      %423 = vmatpush1.bf16.msra.mxu0 0
      %424 = vmatprep.subr.bf16.mxu0 0
      %425 = vmatpush1.bf16.msra.mxu0 0
      %426 = vmatprep.subr.bf16.mxu0 0
      %427 = vmatpush1.bf16.msra.mxu0 0
      %428 = vmatprep.subr.bf16.mxu0 0
      %429 = vmatpush1.bf16.msra.mxu0 0
      %430 = vmatprep.subr.bf16.mxu0 0
      %431 = vmatpush1.bf16.msra.mxu0 0
      %432 = vmatprep.subr.bf16.mxu0 0
      %433 = vmatpush1.bf16.msra.mxu0 0
      %434 = vmatprep.subr.bf16.mxu0 0
      %435 = vmatpush1.bf16.msra.mxu0 0
      %436 = vmatprep.mubr.bf16.mxu0 0
      %437 = vmatmul.mubr.bf16.gmra.mrb[0].mxu0 %v244
      %v438 = vpop.f32.mrb[0].mxu0
      %v439 = vadd.f32 %v168, %v438
      %v440 = vpop.f32.mrb[0].mxu0
      %v441 = vadd.f32 %v172, %v440
      %v442 = vpop.f32.mrb[0].mxu0
      %v443 = vadd.f32 %v168, %v442
      %v444 = vpop.f32.mrb[0].mxu0
      %v445 = vadd.f32 %v172, %v444
      %446 = vmatprep.mubr.bf16.mxu0 0
      %447 = vmatmul.mubr.bf16.gmra.mrb[0].mxu0 %v245
      %v448 = vpop.f32.mrb[0].mxu0
      %v449 = vadd.f32 %v168, %v448
      %v450 = vpop.f32.mrb[0].mxu0
      %v451 = vadd.f32 %v172, %v450
      %v452 = vpop.f32.mrb[0].mxu0
      %v453 = vadd.f32 %v168, %v452
      %v454 = vpop.f32.mrb[0].mxu0
      %v455 = vadd.f32 %v172, %v454
      %456 = vmatprep.mubr.bf16.mxu0 0
      %457 = vmatmul.mubr.bf16.gmra.mrb[0].mxu0 %v246
      %v458 = vpop.f32.mrb[0].mxu0
      %v459 = vadd.f32 %v168, %v458
      %v460 = vpop.f32.mrb[0].mxu0
      %v461 = vadd.f32 %v172, %v460
      %v462 = vpop.f32.mrb[0].mxu0
      %v463 = vadd.f32 %v168, %v462
      %v464 = vpop.f32.mrb[0].mxu0
      %v465 = vadd.f32 %v172, %v464
      %466 = vmatprep.mubr.bf16.mxu0 0
      %467 = vmatmul.mubr.bf16.gmra.mrb[0].mxu0 %v247
      %v468 = vpop.f32.mrb[0].mxu0
      %v469 = vadd.f32 %v168, %v468
      %v470 = vpop.f32.mrb[0].mxu0
      %v471 = vadd.f32 %v172, %v470
      %v472 = vpop.f32.mrb[0].mxu0
      %v473 = vadd.f32 %v168, %v472
      %v474 = vpop.f32.mrb[0].mxu0
      %v475 = vadd.f32 %v172, %v474
      %476 = vmatprep.mubr.bf16.mxu0 0
      %477 = vmatmul.mubr.bf16.gmra.mrb[0].mxu0 %v248
      %v478 = vpop.f32.mrb[0].mxu0
      %v479 = vadd.f32 %v168, %v478
      %v480 = vpop.f32.mrb[0].mxu0
      %v481 = vadd.f32 %v172, %v480
      %v482 = vpop.f32.mrb[0].mxu0
      %v483 = vadd.f32 %v168, %v482
      %v484 = vpop.f32.mrb[0].mxu0
      %v485 = vadd.f32 %v172, %v484
      %486 = vmatprep.mubr.bf16.mxu0 0
      %487 = vmatmul.mubr.bf16.gmra.mrb[0].mxu0 %v249
      %v488 = vpop.f32.mrb[0].mxu0
      %v489 = vadd.f32 %v168, %v488
      %v490 = vpop.f32.mrb[0].mxu0
      %v491 = vadd.f32 %v172, %v490
      %v492 = vpop.f32.mrb[0].mxu0
      %v493 = vadd.f32 %v168, %v492
      %v494 = vpop.f32.mrb[0].mxu0
      %v495 = vadd.f32 %v172, %v494
      %496 = vmatprep.mubr.bf16.mxu0 0
      %497 = vmatmul.mubr.bf16.gmra.mrb[0].mxu0 %v250
      %v498 = vpop.f32.mrb[0].mxu0
      %v499 = vadd.f32 %v168, %v498
      %v500 = vpop.f32.mrb[0].mxu0
      %v501 = vadd.f32 %v172, %v500
      %v502 = vpop.f32.mrb[0].mxu0
      %v503 = vadd.f32 %v168, %v502
      %v504 = vpop.f32.mrb[0].mxu0
      %v505 = vadd.f32 %v172, %v504
      %506 = vmatprep.mubr.bf16.mxu0 0
      %507 = vmatmul.mubr.bf16.gmra.mrb[0].mxu0 %v251
      %v508 = vpop.f32.mrb[0].mxu0
      %v509 = vadd.f32 %v168, %v508
      %v510 = vpop.f32.mrb[0].mxu0
      %v511 = vadd.f32 %v172, %v510
      %v512 = vpop.f32.mrb[0].mxu0
      %v513 = vadd.f32 %v168, %v512
      %v514 = vpop.f32.mrb[0].mxu0
      %v515 = vadd.f32 %v172, %v514
      %516 = vmatprep.mubr.bf16.mxu0 0
      %517 = vmatmul.mubr.bf16.gmra.mrb[0].mxu0 %v252
      %v518 = vpop.f32.mrb[0].mxu0
      %v519 = vadd.f32 %v168, %v518
      %v520 = vpop.f32.mrb[0].mxu0
      %v521 = vadd.f32 %v172, %v520
      %v522 = vpop.f32.mrb[0].mxu0
      %v523 = vadd.f32 %v168, %v522
      %v524 = vpop.f32.mrb[0].mxu0
      %v525 = vadd.f32 %v172, %v524
      %526 = vmatprep.mubr.bf16.mxu0 0
      %527 = vmatmul.mubr.bf16.gmra.mrb[0].mxu0 %v253
      %v528 = vpop.f32.mrb[0].mxu0
      %v529 = vadd.f32 %v168, %v528
      %v530 = vpop.f32.mrb[0].mxu0
      %v531 = vadd.f32 %v172, %v530
      %v532 = vpop.f32.mrb[0].mxu0
      %v533 = vadd.f32 %v168, %v532
      %v534 = vpop.f32.mrb[0].mxu0
      %v535 = vadd.f32 %v172, %v534
      %536 = vmatprep.mubr.bf16.mxu0 0
      %537 = vmatmul.mubr.bf16.gmra.mrb[0].mxu0 %v254
      %v538 = vpop.f32.mrb[0].mxu0
      %v539 = vadd.f32 %v168, %v538
      %v540 = vpop.f32.mrb[0].mxu0
      %v541 = vadd.f32 %v172, %v540
      %v542 = vpop.f32.mrb[0].mxu0
      %v543 = vadd.f32 %v168, %v542
      %v544 = vpop.f32.mrb[0].mxu0
      %v545 = vadd.f32 %v172, %v544
      %546 = vmatprep.mubr.bf16.mxu0 0
      %547 = vmatmul.mubr.bf16.gmra.mrb[0].mxu0 %v255
      %v548 = vpop.f32.mrb[0].mxu0
      %v549 = vadd.f32 %v168, %v548
      %v550 = vpop.f32.mrb[0].mxu0
      %v551 = vadd.f32 %v172, %v550
      %v552 = vpop.f32.mrb[0].mxu0
      %v553 = vadd.f32 %v168, %v552
      %v554 = vpop.f32.mrb[0].mxu0
      %v555 = vadd.f32 %v172, %v554
      %556 = vmatprep.mubr.bf16.mxu0 0
      %557 = vmatmul.mubr.bf16.gmra.mrb[0].mxu0 %v256
      %v558 = vpop.f32.mrb[0].mxu0
      %v559 = vadd.f32 %v168, %v558
      %v560 = vpop.f32.mrb[0].mxu0
      %v561 = vadd.f32 %v172, %v560
      %v562 = vpop.f32.mrb[0].mxu0
      %v563 = vadd.f32 %v168, %v562
      %v564 = vpop.f32.mrb[0].mxu0
      %v565 = vadd.f32 %v172, %v564
      %566 = vmatprep.mubr.bf16.mxu0 0
      %567 = vmatmul.mubr.bf16.gmra.mrb[0].mxu0 %v257
      %v568 = vpop.f32.mrb[0].mxu0
      %v569 = vadd.f32 %v168, %v568
      %v570 = vpop.f32.mrb[0].mxu0
      %v571 = vadd.f32 %v172, %v570
      %v572 = vpop.f32.mrb[0].mxu0
      %v573 = vadd.f32 %v168, %v572
      %v574 = vpop.f32.mrb[0].mxu0
      %v575 = vadd.f32 %v172, %v574
      %576 = vmatprep.mubr.bf16.mxu0 0
      %577 = vmatmul.mubr.bf16.gmra.mrb[0].mxu0 %v258
      %v578 = vpop.f32.mrb[0].mxu0
      %v579 = vadd.f32 %v168, %v578
      %v580 = vpop.f32.mrb[0].mxu0
      %v581 = vadd.f32 %v172, %v580
      %v582 = vpop.f32.mrb[0].mxu0
      %v583 = vadd.f32 %v168, %v582
      %v584 = vpop.f32.mrb[0].mxu0
      %v585 = vadd.f32 %v172, %v584
      %586 = vmatprep.mubr.bf16.mxu0 0
      %587 = vmatmul.mubr.bf16.gmra.mrb[0].mxu0 %v259
      %v588 = vpop.f32.mrb[0].mxu0
      %v589 = vadd.f32 %v168, %v588
      %v590 = vpop.f32.mrb[0].mxu0
      %v591 = vadd.f32 %v172, %v590
      %v592 = vpop.f32.mrb[0].mxu0
      %v593 = vadd.f32 %v168, %v592
      %v594 = vpop.f32.mrb[0].mxu0
      %v595 = vadd.f32 %v172, %v594
      %596 = vdwg.mxu0
      %597 = vmatprep.subr.bf16.mxu0 0
      %598 = vmatpush1.bf16.msra.mxu0 %v358
      %599 = vmatprep.subr.bf16.mxu0 0
      %600 = vmatpush1.bf16.msra.mxu0 %v361
      %601 = vmatprep.subr.bf16.mxu0 0
      %602 = vmatpush1.bf16.msra.mxu0 %v364
      %603 = vmatprep.subr.bf16.mxu0 0
      %604 = vmatpush1.bf16.msra.mxu0 %v367
      %605 = vmatprep.subr.bf16.mxu0 0
      %606 = vmatpush1.bf16.msra.mxu0 %v370
      %607 = vmatprep.subr.bf16.mxu0 0
      %608 = vmatpush1.bf16.msra.mxu0 %v373
      %609 = vmatprep.subr.bf16.mxu0 0
      %610 = vmatpush1.bf16.msra.mxu0 %v376
      %611 = vmatprep.subr.bf16.mxu0 0
      %612 = vmatpush1.bf16.msra.mxu0 %v379
      %613 = vmatprep.subr.bf16.mxu0 0
      %614 = vmatpush1.bf16.msra.mxu0 0
      %615 = vmatprep.subr.bf16.mxu0 0
      %616 = vmatpush1.bf16.msra.mxu0 0
      %617 = vmatprep.subr.bf16.mxu0 0
      %618 = vmatpush1.bf16.msra.mxu0 0
      %619 = vmatprep.subr.bf16.mxu0 0
      %620 = vmatpush1.bf16.msra.mxu0 0
      %621 = vmatprep.subr.bf16.mxu0 0
      %622 = vmatpush1.bf16.msra.mxu0 0
      %623 = vmatprep.subr.bf16.mxu0 0
      %624 = vmatpush1.bf16.msra.mxu0 0
      %625 = vmatprep.subr.bf16.mxu0 0
      %626 = vmatpush1.bf16.msra.mxu0 0
      %627 = vmatprep.subr.bf16.mxu0 0
      %628 = vmatpush1.bf16.msra.mxu0 0
      %629 = vmatprep.mubr.bf16.mxu0 0
      %630 = vmatmul.mubr.bf16.gmra.mrb[0].mxu0 %v244
      %v631 = vpop.f32.mrb[0].mxu0
      %v632 = vadd.f32 %v176, %v631
      %v633 = vpop.f32.mrb[0].mxu0
      %v634 = vpop.f32.mrb[0].mxu0
      %v635 = vadd.f32 %v176, %v634
      %v636 = vpop.f32.mrb[0].mxu0
      %637 = vmatprep.mubr.bf16.mxu0 0
      %638 = vmatmul.mubr.bf16.gmra.mrb[0].mxu0 %v245
      %v639 = vpop.f32.mrb[0].mxu0
      %v640 = vadd.f32 %v176, %v639
      %v641 = vpop.f32.mrb[0].mxu0
      %v642 = vpop.f32.mrb[0].mxu0
      %v643 = vadd.f32 %v176, %v642
      %v644 = vpop.f32.mrb[0].mxu0
      %645 = vmatprep.mubr.bf16.mxu0 0
      %646 = vmatmul.mubr.bf16.gmra.mrb[0].mxu0 %v246
      %v647 = vpop.f32.mrb[0].mxu0
      %v648 = vadd.f32 %v176, %v647
      %v649 = vpop.f32.mrb[0].mxu0
      %v650 = vpop.f32.mrb[0].mxu0
      %v651 = vadd.f32 %v176, %v650
      %v652 = vpop.f32.mrb[0].mxu0
      %653 = vmatprep.mubr.bf16.mxu0 0
      %654 = vmatmul.mubr.bf16.gmra.mrb[0].mxu0 %v247
      %v655 = vpop.f32.mrb[0].mxu0
      %v656 = vadd.f32 %v176, %v655
      %v657 = vpop.f32.mrb[0].mxu0
      %v658 = vpop.f32.mrb[0].mxu0
      %v659 = vadd.f32 %v176, %v658
      %v660 = vpop.f32.mrb[0].mxu0
      %661 = vmatprep.mubr.bf16.mxu0 0
      %662 = vmatmul.mubr.bf16.gmra.mrb[0].mxu0 %v248
      %v663 = vpop.f32.mrb[0].mxu0
      %v664 = vadd.f32 %v176, %v663
      %v665 = vpop.f32.mrb[0].mxu0
      %v666 = vpop.f32.mrb[0].mxu0
      %v667 = vadd.f32 %v176, %v666
      %v668 = vpop.f32.mrb[0].mxu0
      %669 = vmatprep.mubr.bf16.mxu0 0
      %670 = vmatmul.mubr.bf16.gmra.mrb[0].mxu0 %v249
      %v671 = vpop.f32.mrb[0].mxu0
      %v672 = vadd.f32 %v176, %v671
      %v673 = vpop.f32.mrb[0].mxu0
      %v674 = vpop.f32.mrb[0].mxu0
      %v675 = vadd.f32 %v176, %v674
      %v676 = vpop.f32.mrb[0].mxu0
      %677 = vmatprep.mubr.bf16.mxu0 0
      %678 = vmatmul.mubr.bf16.gmra.mrb[0].mxu0 %v250
      %v679 = vpop.f32.mrb[0].mxu0
      %v680 = vadd.f32 %v176, %v679
      %v681 = vpop.f32.mrb[0].mxu0
      %v682 = vpop.f32.mrb[0].mxu0
      %v683 = vadd.f32 %v176, %v682
      %v684 = vpop.f32.mrb[0].mxu0
      %685 = vmatprep.mubr.bf16.mxu0 0
      %686 = vmatmul.mubr.bf16.gmra.mrb[0].mxu0 %v251
      %v687 = vpop.f32.mrb[0].mxu0
      %v688 = vadd.f32 %v176, %v687
      %v689 = vpop.f32.mrb[0].mxu0
      %v690 = vpop.f32.mrb[0].mxu0
      %v691 = vadd.f32 %v176, %v690
      %v692 = vpop.f32.mrb[0].mxu0
      %693 = vmatprep.mubr.bf16.mxu0 0
      %694 = vmatmul.mubr.bf16.gmra.mrb[0].mxu0 %v252
      %v695 = vpop.f32.mrb[0].mxu0
      %v696 = vadd.f32 %v176, %v695
      %v697 = vpop.f32.mrb[0].mxu0
      %v698 = vpop.f32.mrb[0].mxu0
      %v699 = vadd.f32 %v176, %v698
      %v700 = vpop.f32.mrb[0].mxu0
      %701 = vmatprep.mubr.bf16.mxu0 0
      %702 = vmatmul.mubr.bf16.gmra.mrb[0].mxu0 %v253
      %v703 = vpop.f32.mrb[0].mxu0
      %v704 = vadd.f32 %v176, %v703
      %v705 = vpop.f32.mrb[0].mxu0
      %v706 = vpop.f32.mrb[0].mxu0
      %v707 = vadd.f32 %v176, %v706
      %v708 = vpop.f32.mrb[0].mxu0
      %709 = vmatprep.mubr.bf16.mxu0 0
      %710 = vmatmul.mubr.bf16.gmra.mrb[0].mxu0 %v254
      %v711 = vpop.f32.mrb[0].mxu0
      %v712 = vadd.f32 %v176, %v711
      %v713 = vpop.f32.mrb[0].mxu0
      %v714 = vpop.f32.mrb[0].mxu0
      %v715 = vadd.f32 %v176, %v714
      %v716 = vpop.f32.mrb[0].mxu0
      %717 = vmatprep.mubr.bf16.mxu0 0
      %718 = vmatmul.mubr.bf16.gmra.mrb[0].mxu0 %v255
      %v719 = vpop.f32.mrb[0].mxu0
      %v720 = vadd.f32 %v176, %v719
      %v721 = vpop.f32.mrb[0].mxu0
      %v722 = vpop.f32.mrb[0].mxu0
      %v723 = vadd.f32 %v176, %v722
      %v724 = vpop.f32.mrb[0].mxu0
      %725 = vmatprep.mubr.bf16.mxu0 0
      %726 = vmatmul.mubr.bf16.gmra.mrb[0].mxu0 %v256
      %v727 = vpop.f32.mrb[0].mxu0
      %v728 = vadd.f32 %v176, %v727
      %v729 = vpop.f32.mrb[0].mxu0
      %v730 = vpop.f32.mrb[0].mxu0
      %v731 = vadd.f32 %v176, %v730
      %v732 = vpop.f32.mrb[0].mxu0
      %733 = vmatprep.mubr.bf16.mxu0 0
      %734 = vmatmul.mubr.bf16.gmra.mrb[0].mxu0 %v257
      %v735 = vpop.f32.mrb[0].mxu0
      %v736 = vadd.f32 %v176, %v735
      %v737 = vpop.f32.mrb[0].mxu0
      %v738 = vpop.f32.mrb[0].mxu0
      %v739 = vadd.f32 %v176, %v738
      %v740 = vpop.f32.mrb[0].mxu0
      %741 = vmatprep.mubr.bf16.mxu0 0
      %742 = vmatmul.mubr.bf16.gmra.mrb[0].mxu0 %v258
      %v743 = vpop.f32.mrb[0].mxu0
      %v744 = vadd.f32 %v176, %v743
      %v745 = vpop.f32.mrb[0].mxu0
      %v746 = vpop.f32.mrb[0].mxu0
      %v747 = vadd.f32 %v176, %v746
      %v748 = vpop.f32.mrb[0].mxu0
      %749 = vmatprep.mubr.bf16.mxu0 0
      %750 = vmatmul.mubr.bf16.gmra.mrb[0].mxu0 %v259
      %v751 = vpop.f32.mrb[0].mxu0
      %v752 = vadd.f32 %v176, %v751
      %v753 = vpop.f32.mrb[0].mxu0
      %v754 = vpop.f32.mrb[0].mxu0
      %v755 = vadd.f32 %v176, %v754
      %v756 = vpop.f32.mrb[0].mxu0
      %757 = vdwg.mxu0
      %v758 = vld [vmem:[#allocation10] sm:$0xff]
      %v759 = vld [vmem:[#allocation10 + $0x8] sm:$0xf]
      %v760 = vld [vmem:[#allocation10 + $0xc] sm:$0xff]
      %v761 = vld [vmem:[#allocation10 + $0x14] sm:$0xf]
      %v762 = vld [vmem:[#allocation10 + $0x18] sm:$0xff]
      %v763 = vld [vmem:[#allocation10 + $0x20] sm:$0xf]
      %v764 = vld [vmem:[#allocation10 + $0x24] sm:$0xff]
      %v765 = vld [vmem:[#allocation10 + $0x2c] sm:$0xf]
      %v766 = vld [vmem:[#allocation10 + $0x30] sm:$0xff]
      %v767 = vld [vmem:[#allocation10 + $0x38] sm:$0xf]
      %v768 = vld [vmem:[#allocation10 + $0x3c] sm:$0xff]
      %v769 = vld [vmem:[#allocation10 + $0x44] sm:$0xf]
      %v770 = vld [vmem:[#allocation10 + $0x48] sm:$0xff]
      %v771 = vld [vmem:[#allocation10 + $0x50] sm:$0xf]
      %v772 = vld [vmem:[#allocation10 + $0x54] sm:$0xff]
      %v773 = vld [vmem:[#allocation10 + $0x5c] sm:$0xf]
      %v774 = vld [vmem:[#allocation10 + $0x60] sm:$0xff]
      %v775 = vld [vmem:[#allocation10 + $0x68] sm:$0xf]
      %v776 = vld [vmem:[#allocation10 + $0x6c] sm:$0xff]
      %v777 = vld [vmem:[#allocation10 + $0x74] sm:$0xf]
      %v778 = vld [vmem:[#allocation10 + $0x78] sm:$0xff]
      %v779 = vld [vmem:[#allocation10 + $0x80] sm:$0xf]
      %v780 = vld [vmem:[#allocation10 + $0x84] sm:$0xff]
      %v781 = vld [vmem:[#allocation10 + $0x8c] sm:$0xf]
      %v782 = vld [vmem:[#allocation10 + $0x90] sm:$0xff]
      %v783 = vld [vmem:[#allocation10 + $0x98] sm:$0xf]
      %v784 = vld [vmem:[#allocation10 + $0x9c] sm:$0xff]
      %v785 = vld [vmem:[#allocation10 + $0xa4] sm:$0xf]
      %v786 = vld [vmem:[#allocation10 + $0xa8] sm:$0xff]
      %v787 = vld [vmem:[#allocation10 + $0xb0] sm:$0xf]
      %v788 = vld [vmem:[#allocation10 + $0xb4] sm:$0xff]
      %v789 = vld [vmem:[#allocation10 + $0xbc] sm:$0xf]
      %v790 = vld [vmem:[%s6] sm:$0x1]
      %v791 = vld [vmem:[%s1] sm:$0xff]
      %v792 = vld [vmem:[%s1 + $0x8] sm:$0xff]
      %v793 = vld [vmem:[#allocation2] sm:$0xff]
      %v794 = vld [vmem:[#allocation2 + $0x8] sm:$0xff]
      %s795 = smul.u32 0, 16
      %v796 = vpack.c.bf16 %v794, %v793
      %v829 = vunpack.c.l.b16 %v758
      %v830 = vunpack.c.h.b16 %v758
      %v831 = vunpack.c.l.b16 %v759
      %v832 = vunpack.c.l.b16 %v760
      %v833 = vunpack.c.h.b16 %v760
      %v834 = vunpack.c.l.b16 %v761
      %v835 = vunpack.c.l.b16 %v762
      %v836 = vunpack.c.h.b16 %v762
      %v837 = vunpack.c.l.b16 %v763
      %v838 = vunpack.c.l.b16 %v764
      %v839 = vunpack.c.h.b16 %v764
      %v840 = vunpack.c.l.b16 %v765
      %v841 = vunpack.c.l.b16 %v766
      %v842 = vunpack.c.h.b16 %v766
      %v843 = vunpack.c.l.b16 %v767
      %v844 = vunpack.c.l.b16 %v768
      %v845 = vunpack.c.h.b16 %v768
      %v846 = vunpack.c.l.b16 %v769
      %v847 = vunpack.c.l.b16 %v770
      %v848 = vunpack.c.h.b16 %v770
      %v849 = vunpack.c.l.b16 %v771
      %v850 = vunpack.c.l.b16 %v772
      %v851 = vunpack.c.h.b16 %v772
      %v852 = vunpack.c.l.b16 %v773
      %v853 = vunpack.c.l.b16 %v774
      %v854 = vunpack.c.h.b16 %v774
      %v855 = vunpack.c.l.b16 %v775
      %v856 = vunpack.c.l.b16 %v776
      %v857 = vunpack.c.h.b16 %v776
      %v858 = vunpack.c.l.b16 %v777
      %v859 = vunpack.c.l.b16 %v778
      %v860 = vunpack.c.h.b16 %v778
      %v861 = vunpack.c.l.b16 %v779
      %v862 = vunpack.c.l.b16 %v780
      %v863 = vunpack.c.h.b16 %v780
      %v864 = vunpack.c.l.b16 %v781
      %v865 = vunpack.c.l.b16 %v782
      %v866 = vunpack.c.h.b16 %v782
      %v867 = vunpack.c.l.b16 %v783
      %v868 = vunpack.c.l.b16 %v784
      %v869 = vunpack.c.h.b16 %v784
      %v870 = vunpack.c.l.b16 %v785
      %v871 = vunpack.c.l.b16 %v786
      %v872 = vunpack.c.h.b16 %v786
      %v873 = vunpack.c.l.b16 %v787
      %v874 = vunpack.c.l.b16 %v788
      %v875 = vunpack.c.h.b16 %v788
      %v876 = vunpack.c.l.b16 %v789
      %v877 = vpack.c.b16 %v832, %v829
      %v878 = vpack.c.b16 %v833, %v830
      %v879 = vpack.c.b16 %v834, %v831
      %v880 = vpack.c.b16 %v838, %v835
      %v881 = vpack.c.b16 %v839, %v836
      %v882 = vpack.c.b16 %v840, %v837
      %v883 = vpack.c.b16 %v844, %v841
      %v884 = vpack.c.b16 %v845, %v842
      %v885 = vpack.c.b16 %v846, %v843
      %v886 = vpack.c.b16 %v850, %v847
      %v887 = vpack.c.b16 %v851, %v848
      %v888 = vpack.c.b16 %v852, %v849
      %v889 = vpack.c.b16 %v856, %v853
      %v890 = vpack.c.b16 %v857, %v854
      %v891 = vpack.c.b16 %v858, %v855
      %v892 = vpack.c.b16 %v862, %v859
      %v893 = vpack.c.b16 %v863, %v860
      %v894 = vpack.c.b16 %v864, %v861
      %v895 = vpack.c.b16 %v868, %v865
      %v896 = vpack.c.b16 %v869, %v866
      %v897 = vpack.c.b16 %v870, %v867
      %v898 = vpack.c.b16 %v874, %v871
      %v899 = vpack.c.b16 %v875, %v872
      %v900 = vpack.c.b16 %v876, %v873
      %925 = vmatprep.subr.bf16.mxu0 %v878
      %926 = vmatpush1.bf16.msra.mxu0 %v877
      %927 = vmatprep.subr.bf16.mxu0 %v881
      %928 = vmatpush1.bf16.msra.mxu0 %v880
      %929 = vmatprep.subr.bf16.mxu0 %v884
      %930 = vmatpush1.bf16.msra.mxu0 %v883
      %931 = vmatprep.subr.bf16.mxu0 %v887
      %932 = vmatpush1.bf16.msra.mxu0 %v886
      %933 = vmatprep.subr.bf16.mxu0 %v890
      %934 = vmatpush1.bf16.msra.mxu0 %v889
      %935 = vmatprep.subr.bf16.mxu0 %v893
      %936 = vmatpush1.bf16.msra.mxu0 %v892
      %937 = vmatprep.subr.bf16.mxu0 %v896
      %938 = vmatpush1.bf16.msra.mxu0 %v895
      %939 = vmatprep.subr.bf16.mxu0 %v899
      %940 = vmatpush1.bf16.msra.mxu0 %v898
      %941 = vmatprep.subr.bf16.mxu0 0
      %942 = vmatpush1.bf16.msra.mxu0 0
      %943 = vmatprep.subr.bf16.mxu0 0
      %944 = vmatpush1.bf16.msra.mxu0 0
      %945 = vmatprep.subr.bf16.mxu0 0
      %946 = vmatpush1.bf16.msra.mxu0 0
      %947 = vmatprep.subr.bf16.mxu0 0
      %948 = vmatpush1.bf16.msra.mxu0 0
      %949 = vmatprep.subr.bf16.mxu0 0
      %950 = vmatpush1.bf16.msra.mxu0 0
      %951 = vmatprep.subr.bf16.mxu0 0
      %952 = vmatpush1.bf16.msra.mxu0 0
      %953 = vmatprep.subr.bf16.mxu0 0
      %954 = vmatpush1.bf16.msra.mxu0 0
      %955 = vmatprep.subr.bf16.mxu0 0
      %956 = vmatpush1.bf16.msra.mxu0 0
      %957 = vmatprep.mubr.bf16.mxu0 0
      %958 = vmatmul.mubr.bf16.gmra.mrb[0].mxu0 %v796
      %v959 = vpop.f32.mrb[0].mxu0
      %v960 = vadd.f32 0.0, %v959
      %v961 = vpop.f32.mrb[0].mxu0
      %v962 = vadd.f32 0.0, %v961
      %v963 = vpop.f32.mrb[0].mxu0
      %v964 = vadd.f32 0.0, %v963
      %v965 = vpop.f32.mrb[0].mxu0
      %v966 = vadd.f32 0.0, %v965
      %967 = vdwg.mxu0
      %968 = vmatprep.subr.bf16.mxu0 0
      %969 = vmatpush1.bf16.msra.mxu0 %v879
      %970 = vmatprep.subr.bf16.mxu0 0
      %971 = vmatpush1.bf16.msra.mxu0 %v882
      %972 = vmatprep.subr.bf16.mxu0 0
      %973 = vmatpush1.bf16.msra.mxu0 %v885
      %974 = vmatprep.subr.bf16.mxu0 0
      %975 = vmatpush1.bf16.msra.mxu0 %v888
      %976 = vmatprep.subr.bf16.mxu0 0
      %977 = vmatpush1.bf16.msra.mxu0 %v891
      %978 = vmatprep.subr.bf16.mxu0 0
      %979 = vmatpush1.bf16.msra.mxu0 %v894
      %980 = vmatprep.subr.bf16.mxu0 0
      %981 = vmatpush1.bf16.msra.mxu0 %v897
      %982 = vmatprep.subr.bf16.mxu0 0
      %983 = vmatpush1.bf16.msra.mxu0 %v900
      %984 = vmatprep.subr.bf16.mxu0 0
      %985 = vmatpush1.bf16.msra.mxu0 0
      %986 = vmatprep.subr.bf16.mxu0 0
      %987 = vmatpush1.bf16.msra.mxu0 0
      %988 = vmatprep.subr.bf16.mxu0 0
      %989 = vmatpush1.bf16.msra.mxu0 0
      %990 = vmatprep.subr.bf16.mxu0 0
      %991 = vmatpush1.bf16.msra.mxu0 0
      %992 = vmatprep.subr.bf16.mxu0 0
      %993 = vmatpush1.bf16.msra.mxu0 0
      %994 = vmatprep.subr.bf16.mxu0 0
      %995 = vmatpush1.bf16.msra.mxu0 0
      %996 = vmatprep.subr.bf16.mxu0 0
      %997 = vmatpush1.bf16.msra.mxu0 0
      %998 = vmatprep.subr.bf16.mxu0 0
      %999 = vmatpush1.bf16.msra.mxu0 0
      %1000 = vmatprep.mubr.bf16.mxu0 0
      %1001 = vmatmul.mubr.bf16.gmra.mrb[0].mxu0 %v796
      %v1002 = vpop.f32.mrb[0].mxu0
      %v1003 = vadd.f32 0.0, %v1002
      %v1004 = vpop.f32.mrb[0].mxu0
      %v1005 = vpop.f32.mrb[0].mxu0
      %v1006 = vadd.f32 0.0, %v1005
      %v1007 = vpop.f32.mrb[0].mxu0
      %1008 = vdwg.mxu0
      %v1009 = vadd.f32 %v439, %v960
      %v1010 = vadd.f32 %v443, %v964
      %v1011 = vxor.u32 %v1009, 2147483648
      %v1012 = vxor.u32 %v1010, 2147483648
      %v1013 = vmul.f32 %v1011, 1.442695
      %v1014 = vpow.pop %v1013
      %v1015 = vmul.f32 %v1012, 1.442695
      %v1016 = vpow.pop %v1015
      %v1017 = vadd.f32 %v1014, 1.0
      %v1018 = vadd.f32 %v1016, 1.0
      %v1019 = vrcp.pop %v1017
      %v1020 = vmul.f32 1.0, %v1019
      %v1021 = vrcp.pop %v1018
      %v1022 = vmul.f32 1.0, %v1021
      %v1023 = vadd.f32 %v441, %v962
      %v1024 = vadd.f32 %v445, %v966
      %v1025 = vxor.u32 %v1023, 2147483648
      %v1026 = vxor.u32 %v1024, 2147483648
      %v1027 = vmul.f32 %v1025, 1.442695
      %v1028 = vpow.pop %v1027
      %v1029 = vmul.f32 %v1026, 1.442695
      %v1030 = vpow.pop %v1029
      %v1031 = vadd.f32 %v1028, 1.0
      %v1032 = vadd.f32 %v1030, 1.0
      %v1033 = vrcp.pop %v1031
      %v1034 = vmul.f32 1.0, %v1033
      %v1035 = vrcp.pop %v1032
      %v1036 = vmul.f32 1.0, %v1035
      %v1038 = vlaneseq
      %v1039 = vshrl.u32 %v1038, 7
      %v1040 = vsub.s32 0, %v1039
      %v1041 = vrot.slane %v790, %v1040
      %v1043 = vadd.f32 %v1003, %v1041
      %v1044 = vadd.f32 %v1006, %v1041
      %v1045 = vmul.f32 %v1020, %v1043
      %v1046 = vmul.f32 %v1022, %v1044
      %v1047 = vadd.f32 %v632, %v1045
      %v1048 = vadd.f32 %v635, %v1046
      %v1049 = vtanh.pop %v1047
      %v1050 = vtanh.pop %v1048
      %v1051 = vsub.f32 1.0, %v1034
      %v1052 = vsub.f32 1.0, %v1036
      %v1053 = vmul.f32 %v1051, %v1049
      %v1054 = vmul.f32 %v1052, %v1050
      %v1055 = vmul.f32 %v1034, %v793
      %v1056 = vmul.f32 %v1036, %v794
      %v1057 = vadd.f32 %v1053, %v1055
      %v1058 = vadd.f32 %v1054, %v1056
      %v1059 = vstv %s795
      %vm1060 = vcmp.lt.s32.totalorder %v1059, %v791
      %vm1061 = vcmp.lt.s32.totalorder %v1059, %v792
      %v1062 = vsel %vm1060, 1, 0
      %v1063 = vsel %vm1061, 1, 0
      %1064 = vset.pattern.permute.xlu0 0
      %1065 = vperm.xlu0 %1064, %v1062
      %v1066 = vpop.permute.xlu0 %1065
      %1067 = vset.pattern.permute.xlu0 0
      %1068 = vperm.xlu0 %1067, %v1063
      %v1069 = vpop.permute.xlu0 %1068
      %vm1070 = vcmp.eq.s32.totalorder %v1066, 1
      %vm1071 = vcmp.eq.s32.totalorder %v1069, 1
      %v1072 = vsel %vm1070, %v1057, %v793
      %v1073 = vsel %vm1071, %v1058, %v794
      %v1074 = vpack.c.bf16 %v1073, %v1072
      %1075 = vmatprep.subr.bf16.mxu0 %v878
      %1076 = vmatpush1.bf16.msra.mxu0 %v877
      %1077 = vmatprep.subr.bf16.mxu0 %v881
      %1078 = vmatpush1.bf16.msra.mxu0 %v880
      %1079 = vmatprep.subr.bf16.mxu0 %v884
      %1080 = vmatpush1.bf16.msra.mxu0 %v883
      %1081 = vmatprep.subr.bf16.mxu0 %v887
      %1082 = vmatpush1.bf16.msra.mxu0 %v886
      %1083 = vmatprep.subr.bf16.mxu0 %v890
      %1084 = vmatpush1.bf16.msra.mxu0 %v889
      %1085 = vmatprep.subr.bf16.mxu0 %v893
      %1086 = vmatpush1.bf16.msra.mxu0 %v892
      %1087 = vmatprep.subr.bf16.mxu0 %v896
      %1088 = vmatpush1.bf16.msra.mxu0 %v895
      %1089 = vmatprep.subr.bf16.mxu0 %v899
      %1090 = vmatpush1.bf16.msra.mxu0 %v898
      %1091 = vmatprep.subr.bf16.mxu0 0
      %1092 = vmatpush1.bf16.msra.mxu0 0
      %1093 = vmatprep.subr.bf16.mxu0 0
      %1094 = vmatpush1.bf16.msra.mxu0 0
      %1095 = vmatprep.subr.bf16.mxu0 0
      %1096 = vmatpush1.bf16.msra.mxu0 0
      %1097 = vmatprep.subr.bf16.mxu0 0
      %1098 = vmatpush1.bf16.msra.mxu0 0
      %1099 = vmatprep.subr.bf16.mxu0 0
      %1100 = vmatpush1.bf16.msra.mxu0 0
      %1101 = vmatprep.subr.bf16.mxu0 0
      %1102 = vmatpush1.bf16.msra.mxu0 0
      %1103 = vmatprep.subr.bf16.mxu0 0
      %1104 = vmatpush1.bf16.msra.mxu0 0
      %1105 = vmatprep.subr.bf16.mxu0 0
      %1106 = vmatpush1.bf16.msra.mxu0 0
      %1107 = vmatprep.mubr.bf16.mxu0 0
      %1108 = vmatmul.mubr.bf16.gmra.mrb[0].mxu0 %v1074
      %v1109 = vpop.f32.mrb[0].mxu0
      %v1110 = vadd.f32 0.0, %v1109
      %v1111 = vpop.f32.mrb[0].mxu0
      %v1112 = vadd.f32 0.0, %v1111
      %v1113 = vpop.f32.mrb[0].mxu0
      %v1114 = vadd.f32 0.0, %v1113
      %v1115 = vpop.f32.mrb[0].mxu0
      %v1116 = vadd.f32 0.0, %v1115
      %1117 = vdwg.mxu0
      %1118 = vmatprep.subr.bf16.mxu0 0
      %1119 = vmatpush1.bf16.msra.mxu0 %v879
      %1120 = vmatprep.subr.bf16.mxu0 0
      %1121 = vmatpush1.bf16.msra.mxu0 %v882
      %1122 = vmatprep.subr.bf16.mxu0 0
      %1123 = vmatpush1.bf16.msra.mxu0 %v885
      %1124 = vmatprep.subr.bf16.mxu0 0
      %1125 = vmatpush1.bf16.msra.mxu0 %v888
      %1126 = vmatprep.subr.bf16.mxu0 0
      %1127 = vmatpush1.bf16.msra.mxu0 %v891
      %1128 = vmatprep.subr.bf16.mxu0 0
      %1129 = vmatpush1.bf16.msra.mxu0 %v894
      %1130 = vmatprep.subr.bf16.mxu0 0
      %1131 = vmatpush1.bf16.msra.mxu0 %v897
      %1132 = vmatprep.subr.bf16.mxu0 0
      %1133 = vmatpush1.bf16.msra.mxu0 %v900
      %1134 = vmatprep.subr.bf16.mxu0 0
      %1135 = vmatpush1.bf16.msra.mxu0 0
      %1136 = vmatprep.subr.bf16.mxu0 0
      %1137 = vmatpush1.bf16.msra.mxu0 0
      %1138 = vmatprep.subr.bf16.mxu0 0
      %1139 = vmatpush1.bf16.msra.mxu0 0
      %1140 = vmatprep.subr.bf16.mxu0 0
      %1141 = vmatpush1.bf16.msra.mxu0 0
      %1142 = vmatprep.subr.bf16.mxu0 0
      %1143 = vmatpush1.bf16.msra.mxu0 0
      %1144 = vmatprep.subr.bf16.mxu0 0
      %1145 = vmatpush1.bf16.msra.mxu0 0
      %1146 = vmatprep.subr.bf16.mxu0 0
      %1147 = vmatpush1.bf16.msra.mxu0 0
      %1148 = vmatprep.subr.bf16.mxu0 0
      %1149 = vmatpush1.bf16.msra.mxu0 0
      %1150 = vmatprep.mubr.bf16.mxu0 0
      %1151 = vmatmul.mubr.bf16.gmra.mrb[0].mxu0 %v1074
      %v1152 = vpop.f32.mrb[0].mxu0
      %v1153 = vadd.f32 0.0, %v1152
      %v1154 = vpop.f32.mrb[0].mxu0
      %v1155 = vpop.f32.mrb[0].mxu0
      %v1156 = vadd.f32 0.0, %v1155
      %v1157 = vpop.f32.mrb[0].mxu0
      %1158 = vdwg.mxu0
      %v1159 = vadd.f32 %v449, %v1110
      %v1160 = vadd.f32 %v453, %v1114
      %v1161 = vxor.u32 %v1159, 2147483648
      %v1162 = vxor.u32 %v1160, 2147483648
      %v1163 = vmul.f32 %v1161, 1.442695
      %v1164 = vpow.pop %v1163
      %v1165 = vmul.f32 %v1162, 1.442695
      %v1166 = vpow.pop %v1165
      %v1167 = vadd.f32 %v1164, 1.0
      %v1168 = vadd.f32 %v1166, 1.0
      %v1169 = vrcp.pop %v1167
      %v1170 = vmul.f32 1.0, %v1169
      %v1171 = vrcp.pop %v1168
      %v1172 = vmul.f32 1.0, %v1171
      %v1173 = vadd.f32 %v451, %v1112
      %v1174 = vadd.f32 %v455, %v1116
      %v1175 = vxor.u32 %v1173, 2147483648
      %v1176 = vxor.u32 %v1174, 2147483648
      %v1177 = vmul.f32 %v1175, 1.442695
      %v1178 = vpow.pop %v1177
      %v1179 = vmul.f32 %v1176, 1.442695
      %v1180 = vpow.pop %v1179
      %v1181 = vadd.f32 %v1178, 1.0
      %v1182 = vadd.f32 %v1180, 1.0
      %v1183 = vrcp.pop %v1181
      %v1184 = vmul.f32 1.0, %v1183
      %v1185 = vrcp.pop %v1182
      %v1186 = vmul.f32 1.0, %v1185
      %v1187 = vadd.f32 %v1153, %v1041
      %v1188 = vadd.f32 %v1156, %v1041
      %v1189 = vmul.f32 %v1170, %v1187
      %v1190 = vmul.f32 %v1172, %v1188
      %v1191 = vadd.f32 %v640, %v1189
      %v1192 = vadd.f32 %v643, %v1190
      %v1193 = vtanh.pop %v1191
      %v1194 = vtanh.pop %v1192
      %v1195 = vsub.f32 1.0, %v1184
      %v1196 = vsub.f32 1.0, %v1186
      %v1197 = vmul.f32 %v1195, %v1193
      %v1198 = vmul.f32 %v1196, %v1194
      %v1199 = vmul.f32 %v1184, %v1072
      %v1200 = vmul.f32 %v1186, %v1073
      %v1201 = vadd.f32 %v1197, %v1199
      %v1202 = vadd.f32 %v1198, %v1200
      %s1203 = sadd.s32 %s795, 1
      %v1204 = vstv %s1203
      %vm1205 = vcmp.lt.s32.totalorder %v1204, %v791
      %vm1206 = vcmp.lt.s32.totalorder %v1204, %v792
      %v1207 = vsel %vm1205, 1, 0
      %v1208 = vsel %vm1206, 1, 0
      %1209 = vset.pattern.permute.xlu0 0
      %1210 = vperm.xlu0 %1209, %v1207
      %v1211 = vpop.permute.xlu0 %1210
      %1212 = vset.pattern.permute.xlu0 0
      %1213 = vperm.xlu0 %1212, %v1208
      %v1214 = vpop.permute.xlu0 %1213
      %vm1215 = vcmp.eq.s32.totalorder %v1211, 1
      %vm1216 = vcmp.eq.s32.totalorder %v1214, 1
      %v1217 = vsel %vm1215, %v1201, %v1072
      %v1218 = vsel %vm1216, %v1202, %v1073
      %v1219 = vpack.c.bf16 %v1218, %v1217
      %1220 = vmatprep.subr.bf16.mxu0 %v878
      %1221 = vmatpush1.bf16.msra.mxu0 %v877
      %1222 = vmatprep.subr.bf16.mxu0 %v881
      %1223 = vmatpush1.bf16.msra.mxu0 %v880
      %1224 = vmatprep.subr.bf16.mxu0 %v884
      %1225 = vmatpush1.bf16.msra.mxu0 %v883
      %1226 = vmatprep.subr.bf16.mxu0 %v887
      %1227 = vmatpush1.bf16.msra.mxu0 %v886
      %1228 = vmatprep.subr.bf16.mxu0 %v890
      %1229 = vmatpush1.bf16.msra.mxu0 %v889
      %1230 = vmatprep.subr.bf16.mxu0 %v893
      %1231 = vmatpush1.bf16.msra.mxu0 %v892
      %1232 = vmatprep.subr.bf16.mxu0 %v896
      %1233 = vmatpush1.bf16.msra.mxu0 %v895
      %1234 = vmatprep.subr.bf16.mxu0 %v899
      %1235 = vmatpush1.bf16.msra.mxu0 %v898
      %1236 = vmatprep.subr.bf16.mxu0 0
      %1237 = vmatpush1.bf16.msra.mxu0 0
      %1238 = vmatprep.subr.bf16.mxu0 0
      %1239 = vmatpush1.bf16.msra.mxu0 0
      %1240 = vmatprep.subr.bf16.mxu0 0
      %1241 = vmatpush1.bf16.msra.mxu0 0
      %1242 = vmatprep.subr.bf16.mxu0 0
      %1243 = vmatpush1.bf16.msra.mxu0 0
      %1244 = vmatprep.subr.bf16.mxu0 0
      %1245 = vmatpush1.bf16.msra.mxu0 0
      %1246 = vmatprep.subr.bf16.mxu0 0
      %1247 = vmatpush1.bf16.msra.mxu0 0
      %1248 = vmatprep.subr.bf16.mxu0 0
      %1249 = vmatpush1.bf16.msra.mxu0 0
      %1250 = vmatprep.subr.bf16.mxu0 0
      %1251 = vmatpush1.bf16.msra.mxu0 0
      %1252 = vmatprep.mubr.bf16.mxu0 0
      %1253 = vmatmul.mubr.bf16.gmra.mrb[0].mxu0 %v1219
      %v1254 = vpop.f32.mrb[0].mxu0
      %v1255 = vadd.f32 0.0, %v1254
      %v1256 = vpop.f32.mrb[0].mxu0
      %v1257 = vadd.f32 0.0, %v1256
      %v1258 = vpop.f32.mrb[0].mxu0
      %v1259 = vadd.f32 0.0, %v1258
      %v1260 = vpop.f32.mrb[0].mxu0
      %v1261 = vadd.f32 0.0, %v1260
      %1262 = vdwg.mxu0
      %1263 = vmatprep.subr.bf16.mxu0 0
      %1264 = vmatpush1.bf16.msra.mxu0 %v879
      %1265 = vmatprep.subr.bf16.mxu0 0
      %1266 = vmatpush1.bf16.msra.mxu0 %v882
      %1267 = vmatprep.subr.bf16.mxu0 0
      %1268 = vmatpush1.bf16.msra.mxu0 %v885
      %1269 = vmatprep.subr.bf16.mxu0 0
      %1270 = vmatpush1.bf16.msra.mxu0 %v888
      %1271 = vmatprep.subr.bf16.mxu0 0
      %1272 = vmatpush1.bf16.msra.mxu0 %v891
      %1273 = vmatprep.subr.bf16.mxu0 0
      %1274 = vmatpush1.bf16.msra.mxu0 %v894
      %1275 = vmatprep.subr.bf16.mxu0 0
      %1276 = vmatpush1.bf16.msra.mxu0 %v897
      %1277 = vmatprep.subr.bf16.mxu0 0
      %1278 = vmatpush1.bf16.msra.mxu0 %v900
      %1279 = vmatprep.subr.bf16.mxu0 0
      %1280 = vmatpush1.bf16.msra.mxu0 0
      %1281 = vmatprep.subr.bf16.mxu0 0
      %1282 = vmatpush1.bf16.msra.mxu0 0
      %1283 = vmatprep.subr.bf16.mxu0 0
      %1284 = vmatpush1.bf16.msra.mxu0 0
      %1285 = vmatprep.subr.bf16.mxu0 0
      %1286 = vmatpush1.bf16.msra.mxu0 0
      %1287 = vmatprep.subr.bf16.mxu0 0
      %1288 = vmatpush1.bf16.msra.mxu0 0
      %1289 = vmatprep.subr.bf16.mxu0 0
      %1290 = vmatpush1.bf16.msra.mxu0 0
      %1291 = vmatprep.subr.bf16.mxu0 0
      %1292 = vmatpush1.bf16.msra.mxu0 0
      %1293 = vmatprep.subr.bf16.mxu0 0
      %1294 = vmatpush1.bf16.msra.mxu0 0
      %1295 = vmatprep.mubr.bf16.mxu0 0
      %1296 = vmatmul.mubr.bf16.gmra.mrb[0].mxu0 %v1219
      %v1297 = vpop.f32.mrb[0].mxu0
      %v1298 = vadd.f32 0.0, %v1297
      %v1299 = vpop.f32.mrb[0].mxu0
      %v1300 = vpop.f32.mrb[0].mxu0
      %v1301 = vadd.f32 0.0, %v1300
      %v1302 = vpop.f32.mrb[0].mxu0
      %1303 = vdwg.mxu0
      %v1304 = vadd.f32 %v459, %v1255
      %v1305 = vadd.f32 %v463, %v1259
      %v1306 = vxor.u32 %v1304, 2147483648
      %v1307 = vxor.u32 %v1305, 2147483648
      %v1308 = vmul.f32 %v1306, 1.442695
      %v1309 = vpow.pop %v1308
      %v1310 = vmul.f32 %v1307, 1.442695
      %v1311 = vpow.pop %v1310
      %v1312 = vadd.f32 %v1309, 1.0
      %v1313 = vadd.f32 %v1311, 1.0
      %v1314 = vrcp.pop %v1312
      %v1315 = vmul.f32 1.0, %v1314
      %v1316 = vrcp.pop %v1313
      %v1317 = vmul.f32 1.0, %v1316
      %v1318 = vadd.f32 %v461, %v1257
      %v1319 = vadd.f32 %v465, %v1261
      %v1320 = vxor.u32 %v1318, 2147483648
      %v1321 = vxor.u32 %v1319, 2147483648
      %v1322 = vmul.f32 %v1320, 1.442695
      %v1323 = vpow.pop %v1322
      %v1324 = vmul.f32 %v1321, 1.442695
      %v1325 = vpow.pop %v1324
      %v1326 = vadd.f32 %v1323, 1.0
      %v1327 = vadd.f32 %v1325, 1.0
      %v1328 = vrcp.pop %v1326
      %v1329 = vmul.f32 1.0, %v1328
      %v1330 = vrcp.pop %v1327
      %v1331 = vmul.f32 1.0, %v1330
      %v1332 = vadd.f32 %v1298, %v1041
      %v1333 = vadd.f32 %v1301, %v1041
      %v1334 = vmul.f32 %v1315, %v1332
      %v1335 = vmul.f32 %v1317, %v1333
      %v1336 = vadd.f32 %v648, %v1334
      %v1337 = vadd.f32 %v651, %v1335
      %v1338 = vtanh.pop %v1336
      %v1339 = vtanh.pop %v1337
      %v1340 = vsub.f32 1.0, %v1329
      %v1341 = vsub.f32 1.0, %v1331
      %v1342 = vmul.f32 %v1340, %v1338
      %v1343 = vmul.f32 %v1341, %v1339
      %v1344 = vmul.f32 %v1329, %v1217
      %v1345 = vmul.f32 %v1331, %v1218
      %v1346 = vadd.f32 %v1342, %v1344
      %v1347 = vadd.f32 %v1343, %v1345
      %s1348 = sadd.s32 %s795, 2
      %v1349 = vstv %s1348
      %vm1350 = vcmp.lt.s32.totalorder %v1349, %v791
      %vm1351 = vcmp.lt.s32.totalorder %v1349, %v792
      %v1352 = vsel %vm1350, 1, 0
      %v1353 = vsel %vm1351, 1, 0
      %1354 = vset.pattern.permute.xlu0 0
      %1355 = vperm.xlu0 %1354, %v1352
      %v1356 = vpop.permute.xlu0 %1355
      %1357 = vset.pattern.permute.xlu0 0
      %1358 = vperm.xlu0 %1357, %v1353
      %v1359 = vpop.permute.xlu0 %1358
      %vm1360 = vcmp.eq.s32.totalorder %v1356, 1
      %vm1361 = vcmp.eq.s32.totalorder %v1359, 1
      %v1362 = vsel %vm1360, %v1346, %v1217
      %v1363 = vsel %vm1361, %v1347, %v1218
      %v1364 = vpack.c.bf16 %v1363, %v1362
      %1365 = vmatprep.subr.bf16.mxu0 %v878
      %1366 = vmatpush1.bf16.msra.mxu0 %v877
      %1367 = vmatprep.subr.bf16.mxu0 %v881
      %1368 = vmatpush1.bf16.msra.mxu0 %v880
      %1369 = vmatprep.subr.bf16.mxu0 %v884
      %1370 = vmatpush1.bf16.msra.mxu0 %v883
      %1371 = vmatprep.subr.bf16.mxu0 %v887
      %1372 = vmatpush1.bf16.msra.mxu0 %v886
      %1373 = vmatprep.subr.bf16.mxu0 %v890
      %1374 = vmatpush1.bf16.msra.mxu0 %v889
      %1375 = vmatprep.subr.bf16.mxu0 %v893
      %1376 = vmatpush1.bf16.msra.mxu0 %v892
      %1377 = vmatprep.subr.bf16.mxu0 %v896
      %1378 = vmatpush1.bf16.msra.mxu0 %v895
      %1379 = vmatprep.subr.bf16.mxu0 %v899
      %1380 = vmatpush1.bf16.msra.mxu0 %v898
      %1381 = vmatprep.subr.bf16.mxu0 0
      %1382 = vmatpush1.bf16.msra.mxu0 0
      %1383 = vmatprep.subr.bf16.mxu0 0
      %1384 = vmatpush1.bf16.msra.mxu0 0
      %1385 = vmatprep.subr.bf16.mxu0 0
      %1386 = vmatpush1.bf16.msra.mxu0 0
      %1387 = vmatprep.subr.bf16.mxu0 0
      %1388 = vmatpush1.bf16.msra.mxu0 0
      %1389 = vmatprep.subr.bf16.mxu0 0
      %1390 = vmatpush1.bf16.msra.mxu0 0
      %1391 = vmatprep.subr.bf16.mxu0 0
      %1392 = vmatpush1.bf16.msra.mxu0 0
      %1393 = vmatprep.subr.bf16.mxu0 0
      %1394 = vmatpush1.bf16.msra.mxu0 0
      %1395 = vmatprep.subr.bf16.mxu0 0
      %1396 = vmatpush1.bf16.msra.mxu0 0
      %1397 = vmatprep.mubr.bf16.mxu0 0
      %1398 = vmatmul.mubr.bf16.gmra.mrb[0].mxu0 %v1364
      %v1399 = vpop.f32.mrb[0].mxu0
      %v1400 = vadd.f32 0.0, %v1399
      %v1401 = vpop.f32.mrb[0].mxu0
      %v1402 = vadd.f32 0.0, %v1401
      %v1403 = vpop.f32.mrb[0].mxu0
      %v1404 = vadd.f32 0.0, %v1403
      %v1405 = vpop.f32.mrb[0].mxu0
      %v1406 = vadd.f32 0.0, %v1405
      %1407 = vdwg.mxu0
      %1408 = vmatprep.subr.bf16.mxu0 0
      %1409 = vmatpush1.bf16.msra.mxu0 %v879
      %1410 = vmatprep.subr.bf16.mxu0 0
      %1411 = vmatpush1.bf16.msra.mxu0 %v882
      %1412 = vmatprep.subr.bf16.mxu0 0
      %1413 = vmatpush1.bf16.msra.mxu0 %v885
      %1414 = vmatprep.subr.bf16.mxu0 0
      %1415 = vmatpush1.bf16.msra.mxu0 %v888
      %1416 = vmatprep.subr.bf16.mxu0 0
      %1417 = vmatpush1.bf16.msra.mxu0 %v891
      %1418 = vmatprep.subr.bf16.mxu0 0
      %1419 = vmatpush1.bf16.msra.mxu0 %v894
      %1420 = vmatprep.subr.bf16.mxu0 0
      %1421 = vmatpush1.bf16.msra.mxu0 %v897
      %1422 = vmatprep.subr.bf16.mxu0 0
      %1423 = vmatpush1.bf16.msra.mxu0 %v900
      %1424 = vmatprep.subr.bf16.mxu0 0
      %1425 = vmatpush1.bf16.msra.mxu0 0
      %1426 = vmatprep.subr.bf16.mxu0 0
      %1427 = vmatpush1.bf16.msra.mxu0 0
      %1428 = vmatprep.subr.bf16.mxu0 0
      %1429 = vmatpush1.bf16.msra.mxu0 0
      %1430 = vmatprep.subr.bf16.mxu0 0
      %1431 = vmatpush1.bf16.msra.mxu0 0
      %1432 = vmatprep.subr.bf16.mxu0 0
      %1433 = vmatpush1.bf16.msra.mxu0 0
      %1434 = vmatprep.subr.bf16.mxu0 0
      %1435 = vmatpush1.bf16.msra.mxu0 0
      %1436 = vmatprep.subr.bf16.mxu0 0
      %1437 = vmatpush1.bf16.msra.mxu0 0
      %1438 = vmatprep.subr.bf16.mxu0 0
      %1439 = vmatpush1.bf16.msra.mxu0 0
      %1440 = vmatprep.mubr.bf16.mxu0 0
      %1441 = vmatmul.mubr.bf16.gmra.mrb[0].mxu0 %v1364
      %v1442 = vpop.f32.mrb[0].mxu0
      %v1443 = vadd.f32 0.0, %v1442
      %v1444 = vpop.f32.mrb[0].mxu0
      %v1445 = vpop.f32.mrb[0].mxu0
      %v1446 = vadd.f32 0.0, %v1445
      %v1447 = vpop.f32.mrb[0].mxu0
      %1448 = vdwg.mxu0
      %v1449 = vadd.f32 %v469, %v1400
      %v1450 = vadd.f32 %v473, %v1404
      %v1451 = vxor.u32 %v1449, 2147483648
      %v1452 = vxor.u32 %v1450, 2147483648
      %v1453 = vmul.f32 %v1451, 1.442695
      %v1454 = vpow.pop %v1453
      %v1455 = vmul.f32 %v1452, 1.442695
      %v1456 = vpow.pop %v1455
      %v1457 = vadd.f32 %v1454, 1.0
      %v1458 = vadd.f32 %v1456, 1.0
      %v1459 = vrcp.pop %v1457
      %v1460 = vmul.f32 1.0, %v1459
      %v1461 = vrcp.pop %v1458
      %v1462 = vmul.f32 1.0, %v1461
      %v1463 = vadd.f32 %v471, %v1402
      %v1464 = vadd.f32 %v475, %v1406
      %v1465 = vxor.u32 %v1463, 2147483648
      %v1466 = vxor.u32 %v1464, 2147483648
      %v1467 = vmul.f32 %v1465, 1.442695
      %v1468 = vpow.pop %v1467
      %v1469 = vmul.f32 %v1466, 1.442695
      %v1470 = vpow.pop %v1469
      %v1471 = vadd.f32 %v1468, 1.0
      %v1472 = vadd.f32 %v1470, 1.0
      %v1473 = vrcp.pop %v1471
      %v1474 = vmul.f32 1.0, %v1473
      %v1475 = vrcp.pop %v1472
      %v1476 = vmul.f32 1.0, %v1475
      %v1477 = vadd.f32 %v1443, %v1041
      %v1478 = vadd.f32 %v1446, %v1041
      %v1479 = vmul.f32 %v1460, %v1477
      %v1480 = vmul.f32 %v1462, %v1478
      %v1481 = vadd.f32 %v656, %v1479
      %v1482 = vadd.f32 %v659, %v1480
      %v1483 = vtanh.pop %v1481
      %v1484 = vtanh.pop %v1482
      %v1485 = vsub.f32 1.0, %v1474
      %v1486 = vsub.f32 1.0, %v1476
      %v1487 = vmul.f32 %v1485, %v1483
      %v1488 = vmul.f32 %v1486, %v1484
      %v1489 = vmul.f32 %v1474, %v1362
      %v1490 = vmul.f32 %v1476, %v1363
      %v1491 = vadd.f32 %v1487, %v1489
      %v1492 = vadd.f32 %v1488, %v1490
      %s1493 = sadd.s32 %s795, 3
      %v1494 = vstv %s1493
      %vm1495 = vcmp.lt.s32.totalorder %v1494, %v791
      %vm1496 = vcmp.lt.s32.totalorder %v1494, %v792
      %v1497 = vsel %vm1495, 1, 0
      %v1498 = vsel %vm1496, 1, 0
      %1499 = vset.pattern.permute.xlu0 0
      %1500 = vperm.xlu0 %1499, %v1497
      %v1501 = vpop.permute.xlu0 %1500
      %1502 = vset.pattern.permute.xlu0 0
      %1503 = vperm.xlu0 %1502, %v1498
      %v1504 = vpop.permute.xlu0 %1503
      %vm1505 = vcmp.eq.s32.totalorder %v1501, 1
      %vm1506 = vcmp.eq.s32.totalorder %v1504, 1
      %v1507 = vsel %vm1505, %v1491, %v1362
      %v1508 = vsel %vm1506, %v1492, %v1363
      %v1509 = vpack.c.bf16 %v1508, %v1507
      %1510 = vmatprep.subr.bf16.mxu0 %v878
      %1511 = vmatpush1.bf16.msra.mxu0 %v877
      %1512 = vmatprep.subr.bf16.mxu0 %v881
      %1513 = vmatpush1.bf16.msra.mxu0 %v880
      %1514 = vmatprep.subr.bf16.mxu0 %v884
      %1515 = vmatpush1.bf16.msra.mxu0 %v883
      %1516 = vmatprep.subr.bf16.mxu0 %v887
      %1517 = vmatpush1.bf16.msra.mxu0 %v886
      %1518 = vmatprep.subr.bf16.mxu0 %v890
      %1519 = vmatpush1.bf16.msra.mxu0 %v889
      %1520 = vmatprep.subr.bf16.mxu0 %v893
      %1521 = vmatpush1.bf16.msra.mxu0 %v892
      %1522 = vmatprep.subr.bf16.mxu0 %v896
      %1523 = vmatpush1.bf16.msra.mxu0 %v895
      %1524 = vmatprep.subr.bf16.mxu0 %v899
      %1525 = vmatpush1.bf16.msra.mxu0 %v898
      %1526 = vmatprep.subr.bf16.mxu0 0
      %1527 = vmatpush1.bf16.msra.mxu0 0
      %1528 = vmatprep.subr.bf16.mxu0 0
      %1529 = vmatpush1.bf16.msra.mxu0 0
      %1530 = vmatprep.subr.bf16.mxu0 0
      %1531 = vmatpush1.bf16.msra.mxu0 0
      %1532 = vmatprep.subr.bf16.mxu0 0
      %1533 = vmatpush1.bf16.msra.mxu0 0
      %1534 = vmatprep.subr.bf16.mxu0 0
      %1535 = vmatpush1.bf16.msra.mxu0 0
      %1536 = vmatprep.subr.bf16.mxu0 0
      %1537 = vmatpush1.bf16.msra.mxu0 0
      %1538 = vmatprep.subr.bf16.mxu0 0
      %1539 = vmatpush1.bf16.msra.mxu0 0
      %1540 = vmatprep.subr.bf16.mxu0 0
      %1541 = vmatpush1.bf16.msra.mxu0 0
      %1542 = vmatprep.mubr.bf16.mxu0 0
      %1543 = vmatmul.mubr.bf16.gmra.mrb[0].mxu0 %v1509
      %v1544 = vpop.f32.mrb[0].mxu0
      %v1545 = vadd.f32 0.0, %v1544
      %v1546 = vpop.f32.mrb[0].mxu0
      %v1547 = vadd.f32 0.0, %v1546
      %v1548 = vpop.f32.mrb[0].mxu0
      %v1549 = vadd.f32 0.0, %v1548
      %v1550 = vpop.f32.mrb[0].mxu0
      %v1551 = vadd.f32 0.0, %v1550
      %1552 = vdwg.mxu0
      %1553 = vmatprep.subr.bf16.mxu0 0
      %1554 = vmatpush1.bf16.msra.mxu0 %v879
      %1555 = vmatprep.subr.bf16.mxu0 0
      %1556 = vmatpush1.bf16.msra.mxu0 %v882
      %1557 = vmatprep.subr.bf16.mxu0 0
      %1558 = vmatpush1.bf16.msra.mxu0 %v885
      %1559 = vmatprep.subr.bf16.mxu0 0
      %1560 = vmatpush1.bf16.msra.mxu0 %v888
      %1561 = vmatprep.subr.bf16.mxu0 0
      %1562 = vmatpush1.bf16.msra.mxu0 %v891
      %1563 = vmatprep.subr.bf16.mxu0 0
      %1564 = vmatpush1.bf16.msra.mxu0 %v894
      %1565 = vmatprep.subr.bf16.mxu0 0
      %1566 = vmatpush1.bf16.msra.mxu0 %v897
      %1567 = vmatprep.subr.bf16.mxu0 0
      %1568 = vmatpush1.bf16.msra.mxu0 %v900
      %1569 = vmatprep.subr.bf16.mxu0 0
      %1570 = vmatpush1.bf16.msra.mxu0 0
      %1571 = vmatprep.subr.bf16.mxu0 0
      %1572 = vmatpush1.bf16.msra.mxu0 0
      %1573 = vmatprep.subr.bf16.mxu0 0
      %1574 = vmatpush1.bf16.msra.mxu0 0
      %1575 = vmatprep.subr.bf16.mxu0 0
      %1576 = vmatpush1.bf16.msra.mxu0 0
      %1577 = vmatprep.subr.bf16.mxu0 0
      %1578 = vmatpush1.bf16.msra.mxu0 0
      %1579 = vmatprep.subr.bf16.mxu0 0
      %1580 = vmatpush1.bf16.msra.mxu0 0
      %1581 = vmatprep.subr.bf16.mxu0 0
      %1582 = vmatpush1.bf16.msra.mxu0 0
      %1583 = vmatprep.subr.bf16.mxu0 0
      %1584 = vmatpush1.bf16.msra.mxu0 0
      %1585 = vmatprep.mubr.bf16.mxu0 0
      %1586 = vmatmul.mubr.bf16.gmra.mrb[0].mxu0 %v1509
      %v1587 = vpop.f32.mrb[0].mxu0
      %v1588 = vadd.f32 0.0, %v1587
      %v1589 = vpop.f32.mrb[0].mxu0
      %v1590 = vpop.f32.mrb[0].mxu0
      %v1591 = vadd.f32 0.0, %v1590
      %v1592 = vpop.f32.mrb[0].mxu0
      %1593 = vdwg.mxu0
      %v1594 = vadd.f32 %v479, %v1545
      %v1595 = vadd.f32 %v483, %v1549
      %v1596 = vxor.u32 %v1594, 2147483648
      %v1597 = vxor.u32 %v1595, 2147483648
      %v1598 = vmul.f32 %v1596, 1.442695
      %v1599 = vpow.pop %v1598
      %v1600 = vmul.f32 %v1597, 1.442695
      %v1601 = vpow.pop %v1600
      %v1602 = vadd.f32 %v1599, 1.0
      %v1603 = vadd.f32 %v1601, 1.0
      %v1604 = vrcp.pop %v1602
      %v1605 = vmul.f32 1.0, %v1604
      %v1606 = vrcp.pop %v1603
      %v1607 = vmul.f32 1.0, %v1606
      %v1608 = vadd.f32 %v481, %v1547
      %v1609 = vadd.f32 %v485, %v1551
      %v1610 = vxor.u32 %v1608, 2147483648
      %v1611 = vxor.u32 %v1609, 2147483648
      %v1612 = vmul.f32 %v1610, 1.442695
      %v1613 = vpow.pop %v1612
      %v1614 = vmul.f32 %v1611, 1.442695
      %v1615 = vpow.pop %v1614
      %v1616 = vadd.f32 %v1613, 1.0
      %v1617 = vadd.f32 %v1615, 1.0
      %v1618 = vrcp.pop %v1616
      %v1619 = vmul.f32 1.0, %v1618
      %v1620 = vrcp.pop %v1617
      %v1621 = vmul.f32 1.0, %v1620
      %v1622 = vadd.f32 %v1588, %v1041
      %v1623 = vadd.f32 %v1591, %v1041
      %v1624 = vmul.f32 %v1605, %v1622
      %v1625 = vmul.f32 %v1607, %v1623
      %v1626 = vadd.f32 %v664, %v1624
      %v1627 = vadd.f32 %v667, %v1625
      %v1628 = vtanh.pop %v1626
      %v1629 = vtanh.pop %v1627
      %v1630 = vsub.f32 1.0, %v1619
      %v1631 = vsub.f32 1.0, %v1621
      %v1632 = vmul.f32 %v1630, %v1628
      %v1633 = vmul.f32 %v1631, %v1629
      %v1634 = vmul.f32 %v1619, %v1507
      %v1635 = vmul.f32 %v1621, %v1508
      %v1636 = vadd.f32 %v1632, %v1634
      %v1637 = vadd.f32 %v1633, %v1635
      %s1638 = sadd.s32 %s795, 4
      %v1639 = vstv %s1638
      %vm1640 = vcmp.lt.s32.totalorder %v1639, %v791
      %vm1641 = vcmp.lt.s32.totalorder %v1639, %v792
      %v1642 = vsel %vm1640, 1, 0
      %v1643 = vsel %vm1641, 1, 0
      %1644 = vset.pattern.permute.xlu0 0
      %1645 = vperm.xlu0 %1644, %v1642
      %v1646 = vpop.permute.xlu0 %1645
      %1647 = vset.pattern.permute.xlu0 0
      %1648 = vperm.xlu0 %1647, %v1643
      %v1649 = vpop.permute.xlu0 %1648
      %vm1650 = vcmp.eq.s32.totalorder %v1646, 1
      %vm1651 = vcmp.eq.s32.totalorder %v1649, 1
      %v1652 = vsel %vm1650, %v1636, %v1507
      %v1653 = vsel %vm1651, %v1637, %v1508
      %v1654 = vpack.c.bf16 %v1653, %v1652
      %1655 = vmatprep.subr.bf16.mxu0 %v878
      %1656 = vmatpush1.bf16.msra.mxu0 %v877
      %1657 = vmatprep.subr.bf16.mxu0 %v881
      %1658 = vmatpush1.bf16.msra.mxu0 %v880
      %1659 = vmatprep.subr.bf16.mxu0 %v884
      %1660 = vmatpush1.bf16.msra.mxu0 %v883
      %1661 = vmatprep.subr.bf16.mxu0 %v887
      %1662 = vmatpush1.bf16.msra.mxu0 %v886
      %1663 = vmatprep.subr.bf16.mxu0 %v890
      %1664 = vmatpush1.bf16.msra.mxu0 %v889
      %1665 = vmatprep.subr.bf16.mxu0 %v893
      %1666 = vmatpush1.bf16.msra.mxu0 %v892
      %1667 = vmatprep.subr.bf16.mxu0 %v896
      %1668 = vmatpush1.bf16.msra.mxu0 %v895
      %1669 = vmatprep.subr.bf16.mxu0 %v899
      %1670 = vmatpush1.bf16.msra.mxu0 %v898
      %1671 = vmatprep.subr.bf16.mxu0 0
      %1672 = vmatpush1.bf16.msra.mxu0 0
      %1673 = vmatprep.subr.bf16.mxu0 0
      %1674 = vmatpush1.bf16.msra.mxu0 0
      %1675 = vmatprep.subr.bf16.mxu0 0
      %1676 = vmatpush1.bf16.msra.mxu0 0
      %1677 = vmatprep.subr.bf16.mxu0 0
      %1678 = vmatpush1.bf16.msra.mxu0 0
      %1679 = vmatprep.subr.bf16.mxu0 0
      %1680 = vmatpush1.bf16.msra.mxu0 0
      %1681 = vmatprep.subr.bf16.mxu0 0
      %1682 = vmatpush1.bf16.msra.mxu0 0
      %1683 = vmatprep.subr.bf16.mxu0 0
      %1684 = vmatpush1.bf16.msra.mxu0 0
      %1685 = vmatprep.subr.bf16.mxu0 0
      %1686 = vmatpush1.bf16.msra.mxu0 0
      %1687 = vmatprep.mubr.bf16.mxu0 0
      %1688 = vmatmul.mubr.bf16.gmra.mrb[0].mxu0 %v1654
      %v1689 = vpop.f32.mrb[0].mxu0
      %v1690 = vadd.f32 0.0, %v1689
      %v1691 = vpop.f32.mrb[0].mxu0
      %v1692 = vadd.f32 0.0, %v1691
      %v1693 = vpop.f32.mrb[0].mxu0
      %v1694 = vadd.f32 0.0, %v1693
      %v1695 = vpop.f32.mrb[0].mxu0
      %v1696 = vadd.f32 0.0, %v1695
      %1697 = vdwg.mxu0
      %1698 = vmatprep.subr.bf16.mxu0 0
      %1699 = vmatpush1.bf16.msra.mxu0 %v879
      %1700 = vmatprep.subr.bf16.mxu0 0
      %1701 = vmatpush1.bf16.msra.mxu0 %v882
      %1702 = vmatprep.subr.bf16.mxu0 0
      %1703 = vmatpush1.bf16.msra.mxu0 %v885
      %1704 = vmatprep.subr.bf16.mxu0 0
      %1705 = vmatpush1.bf16.msra.mxu0 %v888
      %1706 = vmatprep.subr.bf16.mxu0 0
      %1707 = vmatpush1.bf16.msra.mxu0 %v891
      %1708 = vmatprep.subr.bf16.mxu0 0
      %1709 = vmatpush1.bf16.msra.mxu0 %v894
      %1710 = vmatprep.subr.bf16.mxu0 0
      %1711 = vmatpush1.bf16.msra.mxu0 %v897
      %1712 = vmatprep.subr.bf16.mxu0 0
      %1713 = vmatpush1.bf16.msra.mxu0 %v900
      %1714 = vmatprep.subr.bf16.mxu0 0
      %1715 = vmatpush1.bf16.msra.mxu0 0
      %1716 = vmatprep.subr.bf16.mxu0 0
      %1717 = vmatpush1.bf16.msra.mxu0 0
      %1718 = vmatprep.subr.bf16.mxu0 0
      %1719 = vmatpush1.bf16.msra.mxu0 0
      %1720 = vmatprep.subr.bf16.mxu0 0
      %1721 = vmatpush1.bf16.msra.mxu0 0
      %1722 = vmatprep.subr.bf16.mxu0 0
      %1723 = vmatpush1.bf16.msra.mxu0 0
      %1724 = vmatprep.subr.bf16.mxu0 0
      %1725 = vmatpush1.bf16.msra.mxu0 0
      %1726 = vmatprep.subr.bf16.mxu0 0
      %1727 = vmatpush1.bf16.msra.mxu0 0
      %1728 = vmatprep.subr.bf16.mxu0 0
      %1729 = vmatpush1.bf16.msra.mxu0 0
      %1730 = vmatprep.mubr.bf16.mxu0 0
      %1731 = vmatmul.mubr.bf16.gmra.mrb[0].mxu0 %v1654
      %v1732 = vpop.f32.mrb[0].mxu0
      %v1733 = vadd.f32 0.0, %v1732
      %v1734 = vpop.f32.mrb[0].mxu0
      %v1735 = vpop.f32.mrb[0].mxu0
      %v1736 = vadd.f32 0.0, %v1735
      %v1737 = vpop.f32.mrb[0].mxu0
      %1738 = vdwg.mxu0
      %v1739 = vadd.f32 %v489, %v1690
      %v1740 = vadd.f32 %v493, %v1694
      %v1741 = vxor.u32 %v1739, 2147483648
      %v1742 = vxor.u32 %v1740, 2147483648
      %v1743 = vmul.f32 %v1741, 1.442695
      %v1744 = vpow.pop %v1743
      %v1745 = vmul.f32 %v1742, 1.442695
      %v1746 = vpow.pop %v1745
      %v1747 = vadd.f32 %v1744, 1.0
      %v1748 = vadd.f32 %v1746, 1.0
      %v1749 = vrcp.pop %v1747
      %v1750 = vmul.f32 1.0, %v1749
      %v1751 = vrcp.pop %v1748
      %v1752 = vmul.f32 1.0, %v1751
      %v1753 = vadd.f32 %v491, %v1692
      %v1754 = vadd.f32 %v495, %v1696
      %v1755 = vxor.u32 %v1753, 2147483648
      %v1756 = vxor.u32 %v1754, 2147483648
      %v1757 = vmul.f32 %v1755, 1.442695
      %v1758 = vpow.pop %v1757
      %v1759 = vmul.f32 %v1756, 1.442695
      %v1760 = vpow.pop %v1759
      %v1761 = vadd.f32 %v1758, 1.0
      %v1762 = vadd.f32 %v1760, 1.0
      %v1763 = vrcp.pop %v1761
      %v1764 = vmul.f32 1.0, %v1763
      %v1765 = vrcp.pop %v1762
      %v1766 = vmul.f32 1.0, %v1765
      %v1767 = vadd.f32 %v1733, %v1041
      %v1768 = vadd.f32 %v1736, %v1041
      %v1769 = vmul.f32 %v1750, %v1767
      %v1770 = vmul.f32 %v1752, %v1768
      %v1771 = vadd.f32 %v672, %v1769
      %v1772 = vadd.f32 %v675, %v1770
      %v1773 = vtanh.pop %v1771
      %v1774 = vtanh.pop %v1772
      %v1775 = vsub.f32 1.0, %v1764
      %v1776 = vsub.f32 1.0, %v1766
      %v1777 = vmul.f32 %v1775, %v1773
      %v1778 = vmul.f32 %v1776, %v1774
      %v1779 = vmul.f32 %v1764, %v1652
      %v1780 = vmul.f32 %v1766, %v1653
      %v1781 = vadd.f32 %v1777, %v1779
      %v1782 = vadd.f32 %v1778, %v1780
      %s1783 = sadd.s32 %s795, 5
      %v1784 = vstv %s1783
      %vm1785 = vcmp.lt.s32.totalorder %v1784, %v791
      %vm1786 = vcmp.lt.s32.totalorder %v1784, %v792
      %v1787 = vsel %vm1785, 1, 0
      %v1788 = vsel %vm1786, 1, 0
      %1789 = vset.pattern.permute.xlu0 0
      %1790 = vperm.xlu0 %1789, %v1787
      %v1791 = vpop.permute.xlu0 %1790
      %1792 = vset.pattern.permute.xlu0 0
      %1793 = vperm.xlu0 %1792, %v1788
      %v1794 = vpop.permute.xlu0 %1793
      %vm1795 = vcmp.eq.s32.totalorder %v1791, 1
      %vm1796 = vcmp.eq.s32.totalorder %v1794, 1
      %v1797 = vsel %vm1795, %v1781, %v1652
      %v1798 = vsel %vm1796, %v1782, %v1653
      %v1799 = vpack.c.bf16 %v1798, %v1797
      %1800 = vmatprep.subr.bf16.mxu0 %v878
      %1801 = vmatpush1.bf16.msra.mxu0 %v877
      %1802 = vmatprep.subr.bf16.mxu0 %v881
      %1803 = vmatpush1.bf16.msra.mxu0 %v880
      %1804 = vmatprep.subr.bf16.mxu0 %v884
      %1805 = vmatpush1.bf16.msra.mxu0 %v883
      %1806 = vmatprep.subr.bf16.mxu0 %v887
      %1807 = vmatpush1.bf16.msra.mxu0 %v886
      %1808 = vmatprep.subr.bf16.mxu0 %v890
      %1809 = vmatpush1.bf16.msra.mxu0 %v889
      %1810 = vmatprep.subr.bf16.mxu0 %v893
      %1811 = vmatpush1.bf16.msra.mxu0 %v892
      %1812 = vmatprep.subr.bf16.mxu0 %v896
      %1813 = vmatpush1.bf16.msra.mxu0 %v895
      %1814 = vmatprep.subr.bf16.mxu0 %v899
      %1815 = vmatpush1.bf16.msra.mxu0 %v898
      %1816 = vmatprep.subr.bf16.mxu0 0
      %1817 = vmatpush1.bf16.msra.mxu0 0
      %1818 = vmatprep.subr.bf16.mxu0 0
      %1819 = vmatpush1.bf16.msra.mxu0 0
      %1820 = vmatprep.subr.bf16.mxu0 0
      %1821 = vmatpush1.bf16.msra.mxu0 0
      %1822 = vmatprep.subr.bf16.mxu0 0
      %1823 = vmatpush1.bf16.msra.mxu0 0
      %1824 = vmatprep.subr.bf16.mxu0 0
      %1825 = vmatpush1.bf16.msra.mxu0 0
      %1826 = vmatprep.subr.bf16.mxu0 0
      %1827 = vmatpush1.bf16.msra.mxu0 0
      %1828 = vmatprep.subr.bf16.mxu0 0
      %1829 = vmatpush1.bf16.msra.mxu0 0
      %1830 = vmatprep.subr.bf16.mxu0 0
      %1831 = vmatpush1.bf16.msra.mxu0 0
      %1832 = vmatprep.mubr.bf16.mxu0 0
      %1833 = vmatmul.mubr.bf16.gmra.mrb[0].mxu0 %v1799
      %v1834 = vpop.f32.mrb[0].mxu0
      %v1835 = vadd.f32 0.0, %v1834
      %v1836 = vpop.f32.mrb[0].mxu0
      %v1837 = vadd.f32 0.0, %v1836
      %v1838 = vpop.f32.mrb[0].mxu0
      %v1839 = vadd.f32 0.0, %v1838
      %v1840 = vpop.f32.mrb[0].mxu0
      %v1841 = vadd.f32 0.0, %v1840
      %1842 = vdwg.mxu0
      %1843 = vmatprep.subr.bf16.mxu0 0
      %1844 = vmatpush1.bf16.msra.mxu0 %v879
      %1845 = vmatprep.subr.bf16.mxu0 0
      %1846 = vmatpush1.bf16.msra.mxu0 %v882
      %1847 = vmatprep.subr.bf16.mxu0 0
      %1848 = vmatpush1.bf16.msra.mxu0 %v885
      %1849 = vmatprep.subr.bf16.mxu0 0
      %1850 = vmatpush1.bf16.msra.mxu0 %v888
      %1851 = vmatprep.subr.bf16.mxu0 0
      %1852 = vmatpush1.bf16.msra.mxu0 %v891
      %1853 = vmatprep.subr.bf16.mxu0 0
      %1854 = vmatpush1.bf16.msra.mxu0 %v894
      %1855 = vmatprep.subr.bf16.mxu0 0
      %1856 = vmatpush1.bf16.msra.mxu0 %v897
      %1857 = vmatprep.subr.bf16.mxu0 0
      %1858 = vmatpush1.bf16.msra.mxu0 %v900
      %1859 = vmatprep.subr.bf16.mxu0 0
      %1860 = vmatpush1.bf16.msra.mxu0 0
      %1861 = vmatprep.subr.bf16.mxu0 0
      %1862 = vmatpush1.bf16.msra.mxu0 0
      %1863 = vmatprep.subr.bf16.mxu0 0
      %1864 = vmatpush1.bf16.msra.mxu0 0
      %1865 = vmatprep.subr.bf16.mxu0 0
      %1866 = vmatpush1.bf16.msra.mxu0 0
      %1867 = vmatprep.subr.bf16.mxu0 0
      %1868 = vmatpush1.bf16.msra.mxu0 0
      %1869 = vmatprep.subr.bf16.mxu0 0
      %1870 = vmatpush1.bf16.msra.mxu0 0
      %1871 = vmatprep.subr.bf16.mxu0 0
      %1872 = vmatpush1.bf16.msra.mxu0 0
      %1873 = vmatprep.subr.bf16.mxu0 0
      %1874 = vmatpush1.bf16.msra.mxu0 0
      %1875 = vmatprep.mubr.bf16.mxu0 0
      %1876 = vmatmul.mubr.bf16.gmra.mrb[0].mxu0 %v1799
      %v1877 = vpop.f32.mrb[0].mxu0
      %v1878 = vadd.f32 0.0, %v1877
      %v1879 = vpop.f32.mrb[0].mxu0
      %v1880 = vpop.f32.mrb[0].mxu0
      %v1881 = vadd.f32 0.0, %v1880
      %v1882 = vpop.f32.mrb[0].mxu0
      %1883 = vdwg.mxu0
      %v1884 = vadd.f32 %v499, %v1835
      %v1885 = vadd.f32 %v503, %v1839
      %v1886 = vxor.u32 %v1884, 2147483648
      %v1887 = vxor.u32 %v1885, 2147483648
      %v1888 = vmul.f32 %v1886, 1.442695
      %v1889 = vpow.pop %v1888
      %v1890 = vmul.f32 %v1887, 1.442695
      %v1891 = vpow.pop %v1890
      %v1892 = vadd.f32 %v1889, 1.0
      %v1893 = vadd.f32 %v1891, 1.0
      %v1894 = vrcp.pop %v1892
      %v1895 = vmul.f32 1.0, %v1894
      %v1896 = vrcp.pop %v1893
      %v1897 = vmul.f32 1.0, %v1896
      %v1898 = vadd.f32 %v501, %v1837
      %v1899 = vadd.f32 %v505, %v1841
      %v1900 = vxor.u32 %v1898, 2147483648
      %v1901 = vxor.u32 %v1899, 2147483648
      %v1902 = vmul.f32 %v1900, 1.442695
      %v1903 = vpow.pop %v1902
      %v1904 = vmul.f32 %v1901, 1.442695
      %v1905 = vpow.pop %v1904
      %v1906 = vadd.f32 %v1903, 1.0
      %v1907 = vadd.f32 %v1905, 1.0
      %v1908 = vrcp.pop %v1906
      %v1909 = vmul.f32 1.0, %v1908
      %v1910 = vrcp.pop %v1907
      %v1911 = vmul.f32 1.0, %v1910
      %v1912 = vadd.f32 %v1878, %v1041
      %v1913 = vadd.f32 %v1881, %v1041
      %v1914 = vmul.f32 %v1895, %v1912
      %v1915 = vmul.f32 %v1897, %v1913
      %v1916 = vadd.f32 %v680, %v1914
      %v1917 = vadd.f32 %v683, %v1915
      %v1918 = vtanh.pop %v1916
      %v1919 = vtanh.pop %v1917
      %v1920 = vsub.f32 1.0, %v1909
      %v1921 = vsub.f32 1.0, %v1911
      %v1922 = vmul.f32 %v1920, %v1918
      %v1923 = vmul.f32 %v1921, %v1919
      %v1924 = vmul.f32 %v1909, %v1797
      %v1925 = vmul.f32 %v1911, %v1798
      %v1926 = vadd.f32 %v1922, %v1924
      %v1927 = vadd.f32 %v1923, %v1925
      %s1928 = sadd.s32 %s795, 6
      %v1929 = vstv %s1928
      %vm1930 = vcmp.lt.s32.totalorder %v1929, %v791
      %vm1931 = vcmp.lt.s32.totalorder %v1929, %v792
      %v1932 = vsel %vm1930, 1, 0
      %v1933 = vsel %vm1931, 1, 0
      %1934 = vset.pattern.permute.xlu0 0
      %1935 = vperm.xlu0 %1934, %v1932
      %v1936 = vpop.permute.xlu0 %1935
      %1937 = vset.pattern.permute.xlu0 0
      %1938 = vperm.xlu0 %1937, %v1933
      %v1939 = vpop.permute.xlu0 %1938
      %vm1940 = vcmp.eq.s32.totalorder %v1936, 1
      %vm1941 = vcmp.eq.s32.totalorder %v1939, 1
      %v1942 = vsel %vm1940, %v1926, %v1797
      %v1943 = vsel %vm1941, %v1927, %v1798
      %v1944 = vpack.c.bf16 %v1943, %v1942
      %1945 = vmatprep.subr.bf16.mxu0 %v878
      %1946 = vmatpush1.bf16.msra.mxu0 %v877
      %1947 = vmatprep.subr.bf16.mxu0 %v881
      %1948 = vmatpush1.bf16.msra.mxu0 %v880
      %1949 = vmatprep.subr.bf16.mxu0 %v884
      %1950 = vmatpush1.bf16.msra.mxu0 %v883
      %1951 = vmatprep.subr.bf16.mxu0 %v887
      %1952 = vmatpush1.bf16.msra.mxu0 %v886
      %1953 = vmatprep.subr.bf16.mxu0 %v890
      %1954 = vmatpush1.bf16.msra.mxu0 %v889
      %1955 = vmatprep.subr.bf16.mxu0 %v893
      %1956 = vmatpush1.bf16.msra.mxu0 %v892
      %1957 = vmatprep.subr.bf16.mxu0 %v896
      %1958 = vmatpush1.bf16.msra.mxu0 %v895
      %1959 = vmatprep.subr.bf16.mxu0 %v899
      %1960 = vmatpush1.bf16.msra.mxu0 %v898
      %1961 = vmatprep.subr.bf16.mxu0 0
      %1962 = vmatpush1.bf16.msra.mxu0 0
      %1963 = vmatprep.subr.bf16.mxu0 0
      %1964 = vmatpush1.bf16.msra.mxu0 0
      %1965 = vmatprep.subr.bf16.mxu0 0
      %1966 = vmatpush1.bf16.msra.mxu0 0
      %1967 = vmatprep.subr.bf16.mxu0 0
      %1968 = vmatpush1.bf16.msra.mxu0 0
      %1969 = vmatprep.subr.bf16.mxu0 0
      %1970 = vmatpush1.bf16.msra.mxu0 0
      %1971 = vmatprep.subr.bf16.mxu0 0
      %1972 = vmatpush1.bf16.msra.mxu0 0
      %1973 = vmatprep.subr.bf16.mxu0 0
      %1974 = vmatpush1.bf16.msra.mxu0 0
      %1975 = vmatprep.subr.bf16.mxu0 0
      %1976 = vmatpush1.bf16.msra.mxu0 0
      %1977 = vmatprep.mubr.bf16.mxu0 0
      %1978 = vmatmul.mubr.bf16.gmra.mrb[0].mxu0 %v1944
      %v1979 = vpop.f32.mrb[0].mxu0
      %v1980 = vadd.f32 0.0, %v1979
      %v1981 = vpop.f32.mrb[0].mxu0
      %v1982 = vadd.f32 0.0, %v1981
      %v1983 = vpop.f32.mrb[0].mxu0
      %v1984 = vadd.f32 0.0, %v1983
      %v1985 = vpop.f32.mrb[0].mxu0
      %v1986 = vadd.f32 0.0, %v1985
      %1987 = vdwg.mxu0
      %1988 = vmatprep.subr.bf16.mxu0 0
      %1989 = vmatpush1.bf16.msra.mxu0 %v879
      %1990 = vmatprep.subr.bf16.mxu0 0
      %1991 = vmatpush1.bf16.msra.mxu0 %v882
      %1992 = vmatprep.subr.bf16.mxu0 0
      %1993 = vmatpush1.bf16.msra.mxu0 %v885
      %1994 = vmatprep.subr.bf16.mxu0 0
      %1995 = vmatpush1.bf16.msra.mxu0 %v888
      %1996 = vmatprep.subr.bf16.mxu0 0
      %1997 = vmatpush1.bf16.msra.mxu0 %v891
      %1998 = vmatprep.subr.bf16.mxu0 0
      %1999 = vmatpush1.bf16.msra.mxu0 %v894
      %2000 = vmatprep.subr.bf16.mxu0 0
      %2001 = vmatpush1.bf16.msra.mxu0 %v897
      %2002 = vmatprep.subr.bf16.mxu0 0
      %2003 = vmatpush1.bf16.msra.mxu0 %v900
      %2004 = vmatprep.subr.bf16.mxu0 0
      %2005 = vmatpush1.bf16.msra.mxu0 0
      %2006 = vmatprep.subr.bf16.mxu0 0
      %2007 = vmatpush1.bf16.msra.mxu0 0
      %2008 = vmatprep.subr.bf16.mxu0 0
      %2009 = vmatpush1.bf16.msra.mxu0 0
      %2010 = vmatprep.subr.bf16.mxu0 0
      %2011 = vmatpush1.bf16.msra.mxu0 0
      %2012 = vmatprep.subr.bf16.mxu0 0
      %2013 = vmatpush1.bf16.msra.mxu0 0
      %2014 = vmatprep.subr.bf16.mxu0 0
      %2015 = vmatpush1.bf16.msra.mxu0 0
      %2016 = vmatprep.subr.bf16.mxu0 0
      %2017 = vmatpush1.bf16.msra.mxu0 0
      %2018 = vmatprep.subr.bf16.mxu0 0
      %2019 = vmatpush1.bf16.msra.mxu0 0
      %2020 = vmatprep.mubr.bf16.mxu0 0
      %2021 = vmatmul.mubr.bf16.gmra.mrb[0].mxu0 %v1944
      %v2022 = vpop.f32.mrb[0].mxu0
      %v2023 = vadd.f32 0.0, %v2022
      %v2024 = vpop.f32.mrb[0].mxu0
      %v2025 = vpop.f32.mrb[0].mxu0
      %v2026 = vadd.f32 0.0, %v2025
      %v2027 = vpop.f32.mrb[0].mxu0
      %2028 = vdwg.mxu0
      %v2029 = vadd.f32 %v509, %v1980
      %v2030 = vadd.f32 %v513, %v1984
      %v2031 = vxor.u32 %v2029, 2147483648
      %v2032 = vxor.u32 %v2030, 2147483648
      %v2033 = vmul.f32 %v2031, 1.442695
      %v2034 = vpow.pop %v2033
      %v2035 = vmul.f32 %v2032, 1.442695
      %v2036 = vpow.pop %v2035
      %v2037 = vadd.f32 %v2034, 1.0
      %v2038 = vadd.f32 %v2036, 1.0
      %v2039 = vrcp.pop %v2037
      %v2040 = vmul.f32 1.0, %v2039
      %v2041 = vrcp.pop %v2038
      %v2042 = vmul.f32 1.0, %v2041
      %v2043 = vadd.f32 %v511, %v1982
      %v2044 = vadd.f32 %v515, %v1986
      %v2045 = vxor.u32 %v2043, 2147483648
      %v2046 = vxor.u32 %v2044, 2147483648
      %v2047 = vmul.f32 %v2045, 1.442695
      %v2048 = vpow.pop %v2047
      %v2049 = vmul.f32 %v2046, 1.442695
      %v2050 = vpow.pop %v2049
      %v2051 = vadd.f32 %v2048, 1.0
      %v2052 = vadd.f32 %v2050, 1.0
      %v2053 = vrcp.pop %v2051
      %v2054 = vmul.f32 1.0, %v2053
      %v2055 = vrcp.pop %v2052
      %v2056 = vmul.f32 1.0, %v2055
      %v2057 = vadd.f32 %v2023, %v1041
      %v2058 = vadd.f32 %v2026, %v1041
      %v2059 = vmul.f32 %v2040, %v2057
      %v2060 = vmul.f32 %v2042, %v2058
      %v2061 = vadd.f32 %v688, %v2059
      %v2062 = vadd.f32 %v691, %v2060
      %v2063 = vtanh.pop %v2061
      %v2064 = vtanh.pop %v2062
      %v2065 = vsub.f32 1.0, %v2054
      %v2066 = vsub.f32 1.0, %v2056
      %v2067 = vmul.f32 %v2065, %v2063
      %v2068 = vmul.f32 %v2066, %v2064
      %v2069 = vmul.f32 %v2054, %v1942
      %v2070 = vmul.f32 %v2056, %v1943
      %v2071 = vadd.f32 %v2067, %v2069
      %v2072 = vadd.f32 %v2068, %v2070
      %s2073 = sadd.s32 %s795, 7
      %v2074 = vstv %s2073
      %vm2075 = vcmp.lt.s32.totalorder %v2074, %v791
      %vm2076 = vcmp.lt.s32.totalorder %v2074, %v792
      %v2077 = vsel %vm2075, 1, 0
      %v2078 = vsel %vm2076, 1, 0
      %2079 = vset.pattern.permute.xlu0 0
      %2080 = vperm.xlu0 %2079, %v2077
      %v2081 = vpop.permute.xlu0 %2080
      %2082 = vset.pattern.permute.xlu0 0
      %2083 = vperm.xlu0 %2082, %v2078
      %v2084 = vpop.permute.xlu0 %2083
      %vm2085 = vcmp.eq.s32.totalorder %v2081, 1
      %vm2086 = vcmp.eq.s32.totalorder %v2084, 1
      %v2087 = vsel %vm2085, %v2071, %v1942
      %v2088 = vsel %vm2086, %v2072, %v1943
      %v2089 = vpack.c.bf16 %v2088, %v2087
      %2090 = vmatprep.subr.bf16.mxu0 %v878
      %2091 = vmatpush1.bf16.msra.mxu0 %v877
      %2092 = vmatprep.subr.bf16.mxu0 %v881
      %2093 = vmatpush1.bf16.msra.mxu0 %v880
      %2094 = vmatprep.subr.bf16.mxu0 %v884
      %2095 = vmatpush1.bf16.msra.mxu0 %v883
      %2096 = vmatprep.subr.bf16.mxu0 %v887
      %2097 = vmatpush1.bf16.msra.mxu0 %v886
      %2098 = vmatprep.subr.bf16.mxu0 %v890
      %2099 = vmatpush1.bf16.msra.mxu0 %v889
      %2100 = vmatprep.subr.bf16.mxu0 %v893
      %2101 = vmatpush1.bf16.msra.mxu0 %v892
      %2102 = vmatprep.subr.bf16.mxu0 %v896
      %2103 = vmatpush1.bf16.msra.mxu0 %v895
      %2104 = vmatprep.subr.bf16.mxu0 %v899
      %2105 = vmatpush1.bf16.msra.mxu0 %v898
      %2106 = vmatprep.subr.bf16.mxu0 0
      %2107 = vmatpush1.bf16.msra.mxu0 0
      %2108 = vmatprep.subr.bf16.mxu0 0
      %2109 = vmatpush1.bf16.msra.mxu0 0
      %2110 = vmatprep.subr.bf16.mxu0 0
      %2111 = vmatpush1.bf16.msra.mxu0 0
      %2112 = vmatprep.subr.bf16.mxu0 0
      %2113 = vmatpush1.bf16.msra.mxu0 0
      %2114 = vmatprep.subr.bf16.mxu0 0
      %2115 = vmatpush1.bf16.msra.mxu0 0
      %2116 = vmatprep.subr.bf16.mxu0 0
      %2117 = vmatpush1.bf16.msra.mxu0 0
      %2118 = vmatprep.subr.bf16.mxu0 0
      %2119 = vmatpush1.bf16.msra.mxu0 0
      %2120 = vmatprep.subr.bf16.mxu0 0
      %2121 = vmatpush1.bf16.msra.mxu0 0
      %2122 = vmatprep.mubr.bf16.mxu0 0
      %2123 = vmatmul.mubr.bf16.gmra.mrb[0].mxu0 %v2089
      %v2124 = vpop.f32.mrb[0].mxu0
      %v2125 = vadd.f32 0.0, %v2124
      %v2126 = vpop.f32.mrb[0].mxu0
      %v2127 = vadd.f32 0.0, %v2126
      %v2128 = vpop.f32.mrb[0].mxu0
      %v2129 = vadd.f32 0.0, %v2128
      %v2130 = vpop.f32.mrb[0].mxu0
      %v2131 = vadd.f32 0.0, %v2130
      %2132 = vdwg.mxu0
      %2133 = vmatprep.subr.bf16.mxu0 0
      %2134 = vmatpush1.bf16.msra.mxu0 %v879
      %2135 = vmatprep.subr.bf16.mxu0 0
      %2136 = vmatpush1.bf16.msra.mxu0 %v882
      %2137 = vmatprep.subr.bf16.mxu0 0
      %2138 = vmatpush1.bf16.msra.mxu0 %v885
      %2139 = vmatprep.subr.bf16.mxu0 0
      %2140 = vmatpush1.bf16.msra.mxu0 %v888
      %2141 = vmatprep.subr.bf16.mxu0 0
      %2142 = vmatpush1.bf16.msra.mxu0 %v891
      %2143 = vmatprep.subr.bf16.mxu0 0
      %2144 = vmatpush1.bf16.msra.mxu0 %v894
      %2145 = vmatprep.subr.bf16.mxu0 0
      %2146 = vmatpush1.bf16.msra.mxu0 %v897
      %2147 = vmatprep.subr.bf16.mxu0 0
      %2148 = vmatpush1.bf16.msra.mxu0 %v900
      %2149 = vmatprep.subr.bf16.mxu0 0
      %2150 = vmatpush1.bf16.msra.mxu0 0
      %2151 = vmatprep.subr.bf16.mxu0 0
      %2152 = vmatpush1.bf16.msra.mxu0 0
      %2153 = vmatprep.subr.bf16.mxu0 0
      %2154 = vmatpush1.bf16.msra.mxu0 0
      %2155 = vmatprep.subr.bf16.mxu0 0
      %2156 = vmatpush1.bf16.msra.mxu0 0
      %2157 = vmatprep.subr.bf16.mxu0 0
      %2158 = vmatpush1.bf16.msra.mxu0 0
      %2159 = vmatprep.subr.bf16.mxu0 0
      %2160 = vmatpush1.bf16.msra.mxu0 0
      %2161 = vmatprep.subr.bf16.mxu0 0
      %2162 = vmatpush1.bf16.msra.mxu0 0
      %2163 = vmatprep.subr.bf16.mxu0 0
      %2164 = vmatpush1.bf16.msra.mxu0 0
      %2165 = vmatprep.mubr.bf16.mxu0 0
      %2166 = vmatmul.mubr.bf16.gmra.mrb[0].mxu0 %v2089
      %v2167 = vpop.f32.mrb[0].mxu0
      %v2168 = vadd.f32 0.0, %v2167
      %v2169 = vpop.f32.mrb[0].mxu0
      %v2170 = vpop.f32.mrb[0].mxu0
      %v2171 = vadd.f32 0.0, %v2170
      %v2172 = vpop.f32.mrb[0].mxu0
      %2173 = vdwg.mxu0
      %v2174 = vadd.f32 %v519, %v2125
      %v2175 = vadd.f32 %v523, %v2129
      %v2176 = vxor.u32 %v2174, 2147483648
      %v2177 = vxor.u32 %v2175, 2147483648
      %v2178 = vmul.f32 %v2176, 1.442695
      %v2179 = vpow.pop %v2178
      %v2180 = vmul.f32 %v2177, 1.442695
      %v2181 = vpow.pop %v2180
      %v2182 = vadd.f32 %v2179, 1.0
      %v2183 = vadd.f32 %v2181, 1.0
      %v2184 = vrcp.pop %v2182
      %v2185 = vmul.f32 1.0, %v2184
      %v2186 = vrcp.pop %v2183
      %v2187 = vmul.f32 1.0, %v2186
      %v2188 = vadd.f32 %v521, %v2127
      %v2189 = vadd.f32 %v525, %v2131
      %v2190 = vxor.u32 %v2188, 2147483648
      %v2191 = vxor.u32 %v2189, 2147483648
      %v2192 = vmul.f32 %v2190, 1.442695
      %v2193 = vpow.pop %v2192
      %v2194 = vmul.f32 %v2191, 1.442695
      %v2195 = vpow.pop %v2194
      %v2196 = vadd.f32 %v2193, 1.0
      %v2197 = vadd.f32 %v2195, 1.0
      %v2198 = vrcp.pop %v2196
      %v2199 = vmul.f32 1.0, %v2198
      %v2200 = vrcp.pop %v2197
      %v2201 = vmul.f32 1.0, %v2200
      %v2202 = vadd.f32 %v2168, %v1041
      %v2203 = vadd.f32 %v2171, %v1041
      %v2204 = vmul.f32 %v2185, %v2202
      %v2205 = vmul.f32 %v2187, %v2203
      %v2206 = vadd.f32 %v696, %v2204
      %v2207 = vadd.f32 %v699, %v2205
      %v2208 = vtanh.pop %v2206
      %v2209 = vtanh.pop %v2207
      %v2210 = vsub.f32 1.0, %v2199
      %v2211 = vsub.f32 1.0, %v2201
      %v2212 = vmul.f32 %v2210, %v2208
      %v2213 = vmul.f32 %v2211, %v2209
      %v2214 = vmul.f32 %v2199, %v2087
      %v2215 = vmul.f32 %v2201, %v2088
      %v2216 = vadd.f32 %v2212, %v2214
      %v2217 = vadd.f32 %v2213, %v2215
      %s2218 = sadd.s32 %s795, 8
      %v2219 = vstv %s2218
      %vm2220 = vcmp.lt.s32.totalorder %v2219, %v791
      %vm2221 = vcmp.lt.s32.totalorder %v2219, %v792
      %v2222 = vsel %vm2220, 1, 0
      %v2223 = vsel %vm2221, 1, 0
      %2224 = vset.pattern.permute.xlu0 0
      %2225 = vperm.xlu0 %2224, %v2222
      %v2226 = vpop.permute.xlu0 %2225
      %2227 = vset.pattern.permute.xlu0 0
      %2228 = vperm.xlu0 %2227, %v2223
      %v2229 = vpop.permute.xlu0 %2228
      %vm2230 = vcmp.eq.s32.totalorder %v2226, 1
      %vm2231 = vcmp.eq.s32.totalorder %v2229, 1
      %v2232 = vsel %vm2230, %v2216, %v2087
      %v2233 = vsel %vm2231, %v2217, %v2088
      %v2234 = vpack.c.bf16 %v2233, %v2232
      %2235 = vmatprep.subr.bf16.mxu0 %v878
      %2236 = vmatpush1.bf16.msra.mxu0 %v877
      %2237 = vmatprep.subr.bf16.mxu0 %v881
      %2238 = vmatpush1.bf16.msra.mxu0 %v880
      %2239 = vmatprep.subr.bf16.mxu0 %v884
      %2240 = vmatpush1.bf16.msra.mxu0 %v883
      %2241 = vmatprep.subr.bf16.mxu0 %v887
      %2242 = vmatpush1.bf16.msra.mxu0 %v886
      %2243 = vmatprep.subr.bf16.mxu0 %v890
      %2244 = vmatpush1.bf16.msra.mxu0 %v889
      %2245 = vmatprep.subr.bf16.mxu0 %v893
      %2246 = vmatpush1.bf16.msra.mxu0 %v892
      %2247 = vmatprep.subr.bf16.mxu0 %v896
      %2248 = vmatpush1.bf16.msra.mxu0 %v895
      %2249 = vmatprep.subr.bf16.mxu0 %v899
      %2250 = vmatpush1.bf16.msra.mxu0 %v898
      %2251 = vmatprep.subr.bf16.mxu0 0
      %2252 = vmatpush1.bf16.msra.mxu0 0
      %2253 = vmatprep.subr.bf16.mxu0 0
      %2254 = vmatpush1.bf16.msra.mxu0 0
      %2255 = vmatprep.subr.bf16.mxu0 0
      %2256 = vmatpush1.bf16.msra.mxu0 0
      %2257 = vmatprep.subr.bf16.mxu0 0
      %2258 = vmatpush1.bf16.msra.mxu0 0
      %2259 = vmatprep.subr.bf16.mxu0 0
      %2260 = vmatpush1.bf16.msra.mxu0 0
      %2261 = vmatprep.subr.bf16.mxu0 0
      %2262 = vmatpush1.bf16.msra.mxu0 0
      %2263 = vmatprep.subr.bf16.mxu0 0
      %2264 = vmatpush1.bf16.msra.mxu0 0
      %2265 = vmatprep.subr.bf16.mxu0 0
      %2266 = vmatpush1.bf16.msra.mxu0 0
      %2267 = vmatprep.mubr.bf16.mxu0 0
      %2268 = vmatmul.mubr.bf16.gmra.mrb[0].mxu0 %v2234
      %v2269 = vpop.f32.mrb[0].mxu0
      %v2270 = vadd.f32 0.0, %v2269
      %v2271 = vpop.f32.mrb[0].mxu0
      %v2272 = vadd.f32 0.0, %v2271
      %v2273 = vpop.f32.mrb[0].mxu0
      %v2274 = vadd.f32 0.0, %v2273
      %v2275 = vpop.f32.mrb[0].mxu0
      %v2276 = vadd.f32 0.0, %v2275
      %2277 = vdwg.mxu0
      %2278 = vmatprep.subr.bf16.mxu0 0
      %2279 = vmatpush1.bf16.msra.mxu0 %v879
      %2280 = vmatprep.subr.bf16.mxu0 0
      %2281 = vmatpush1.bf16.msra.mxu0 %v882
      %2282 = vmatprep.subr.bf16.mxu0 0
      %2283 = vmatpush1.bf16.msra.mxu0 %v885
      %2284 = vmatprep.subr.bf16.mxu0 0
      %2285 = vmatpush1.bf16.msra.mxu0 %v888
      %2286 = vmatprep.subr.bf16.mxu0 0
      %2287 = vmatpush1.bf16.msra.mxu0 %v891
      %2288 = vmatprep.subr.bf16.mxu0 0
      %2289 = vmatpush1.bf16.msra.mxu0 %v894
      %2290 = vmatprep.subr.bf16.mxu0 0
      %2291 = vmatpush1.bf16.msra.mxu0 %v897
      %2292 = vmatprep.subr.bf16.mxu0 0
      %2293 = vmatpush1.bf16.msra.mxu0 %v900
      %2294 = vmatprep.subr.bf16.mxu0 0
      %2295 = vmatpush1.bf16.msra.mxu0 0
      %2296 = vmatprep.subr.bf16.mxu0 0
      %2297 = vmatpush1.bf16.msra.mxu0 0
      %2298 = vmatprep.subr.bf16.mxu0 0
      %2299 = vmatpush1.bf16.msra.mxu0 0
      %2300 = vmatprep.subr.bf16.mxu0 0
      %2301 = vmatpush1.bf16.msra.mxu0 0
      %2302 = vmatprep.subr.bf16.mxu0 0
      %2303 = vmatpush1.bf16.msra.mxu0 0
      %2304 = vmatprep.subr.bf16.mxu0 0
      %2305 = vmatpush1.bf16.msra.mxu0 0
      %2306 = vmatprep.subr.bf16.mxu0 0
      %2307 = vmatpush1.bf16.msra.mxu0 0
      %2308 = vmatprep.subr.bf16.mxu0 0
      %2309 = vmatpush1.bf16.msra.mxu0 0
      %2310 = vmatprep.mubr.bf16.mxu0 0
      %2311 = vmatmul.mubr.bf16.gmra.mrb[0].mxu0 %v2234
      %v2312 = vpop.f32.mrb[0].mxu0
      %v2313 = vadd.f32 0.0, %v2312
      %v2314 = vpop.f32.mrb[0].mxu0
      %v2315 = vpop.f32.mrb[0].mxu0
      %v2316 = vadd.f32 0.0, %v2315
      %v2317 = vpop.f32.mrb[0].mxu0
      %2318 = vdwg.mxu0
      %v2319 = vadd.f32 %v529, %v2270
      %v2320 = vadd.f32 %v533, %v2274
      %v2321 = vxor.u32 %v2319, 2147483648
      %v2322 = vxor.u32 %v2320, 2147483648
      %v2323 = vmul.f32 %v2321, 1.442695
      %v2324 = vpow.pop %v2323
      %v2325 = vmul.f32 %v2322, 1.442695
      %v2326 = vpow.pop %v2325
      %v2327 = vadd.f32 %v2324, 1.0
      %v2328 = vadd.f32 %v2326, 1.0
      %v2329 = vrcp.pop %v2327
      %v2330 = vmul.f32 1.0, %v2329
      %v2331 = vrcp.pop %v2328
      %v2332 = vmul.f32 1.0, %v2331
      %v2333 = vadd.f32 %v531, %v2272
      %v2334 = vadd.f32 %v535, %v2276
      %v2335 = vxor.u32 %v2333, 2147483648
      %v2336 = vxor.u32 %v2334, 2147483648
      %v2337 = vmul.f32 %v2335, 1.442695
      %v2338 = vpow.pop %v2337
      %v2339 = vmul.f32 %v2336, 1.442695
      %v2340 = vpow.pop %v2339
      %v2341 = vadd.f32 %v2338, 1.0
      %v2342 = vadd.f32 %v2340, 1.0
      %v2343 = vrcp.pop %v2341
      %v2344 = vmul.f32 1.0, %v2343
      %v2345 = vrcp.pop %v2342
      %v2346 = vmul.f32 1.0, %v2345
      %v2347 = vadd.f32 %v2313, %v1041
      %v2348 = vadd.f32 %v2316, %v1041
      %v2349 = vmul.f32 %v2330, %v2347
      %v2350 = vmul.f32 %v2332, %v2348
      %v2351 = vadd.f32 %v704, %v2349
      %v2352 = vadd.f32 %v707, %v2350
      %v2353 = vtanh.pop %v2351
      %v2354 = vtanh.pop %v2352
      %v2355 = vsub.f32 1.0, %v2344
      %v2356 = vsub.f32 1.0, %v2346
      %v2357 = vmul.f32 %v2355, %v2353
      %v2358 = vmul.f32 %v2356, %v2354
      %v2359 = vmul.f32 %v2344, %v2232
      %v2360 = vmul.f32 %v2346, %v2233
      %v2361 = vadd.f32 %v2357, %v2359
      %v2362 = vadd.f32 %v2358, %v2360
      %s2363 = sadd.s32 %s795, 9
      %v2364 = vstv %s2363
      %vm2365 = vcmp.lt.s32.totalorder %v2364, %v791
      %vm2366 = vcmp.lt.s32.totalorder %v2364, %v792
      %v2367 = vsel %vm2365, 1, 0
      %v2368 = vsel %vm2366, 1, 0
      %2369 = vset.pattern.permute.xlu0 0
      %2370 = vperm.xlu0 %2369, %v2367
      %v2371 = vpop.permute.xlu0 %2370
      %2372 = vset.pattern.permute.xlu0 0
      %2373 = vperm.xlu0 %2372, %v2368
      %v2374 = vpop.permute.xlu0 %2373
      %vm2375 = vcmp.eq.s32.totalorder %v2371, 1
      %vm2376 = vcmp.eq.s32.totalorder %v2374, 1
      %v2377 = vsel %vm2375, %v2361, %v2232
      %v2378 = vsel %vm2376, %v2362, %v2233
      %v2379 = vpack.c.bf16 %v2378, %v2377
      %2380 = vmatprep.subr.bf16.mxu0 %v878
      %2381 = vmatpush1.bf16.msra.mxu0 %v877
      %2382 = vmatprep.subr.bf16.mxu0 %v881
      %2383 = vmatpush1.bf16.msra.mxu0 %v880
      %2384 = vmatprep.subr.bf16.mxu0 %v884
      %2385 = vmatpush1.bf16.msra.mxu0 %v883
      %2386 = vmatprep.subr.bf16.mxu0 %v887
      %2387 = vmatpush1.bf16.msra.mxu0 %v886
      %2388 = vmatprep.subr.bf16.mxu0 %v890
      %2389 = vmatpush1.bf16.msra.mxu0 %v889
      %2390 = vmatprep.subr.bf16.mxu0 %v893
      %2391 = vmatpush1.bf16.msra.mxu0 %v892
      %2392 = vmatprep.subr.bf16.mxu0 %v896
      %2393 = vmatpush1.bf16.msra.mxu0 %v895
      %2394 = vmatprep.subr.bf16.mxu0 %v899
      %2395 = vmatpush1.bf16.msra.mxu0 %v898
      %2396 = vmatprep.subr.bf16.mxu0 0
      %2397 = vmatpush1.bf16.msra.mxu0 0
      %2398 = vmatprep.subr.bf16.mxu0 0
      %2399 = vmatpush1.bf16.msra.mxu0 0
      %2400 = vmatprep.subr.bf16.mxu0 0
      %2401 = vmatpush1.bf16.msra.mxu0 0
      %2402 = vmatprep.subr.bf16.mxu0 0
      %2403 = vmatpush1.bf16.msra.mxu0 0
      %2404 = vmatprep.subr.bf16.mxu0 0
      %2405 = vmatpush1.bf16.msra.mxu0 0
      %2406 = vmatprep.subr.bf16.mxu0 0
      %2407 = vmatpush1.bf16.msra.mxu0 0
      %2408 = vmatprep.subr.bf16.mxu0 0
      %2409 = vmatpush1.bf16.msra.mxu0 0
      %2410 = vmatprep.subr.bf16.mxu0 0
      %2411 = vmatpush1.bf16.msra.mxu0 0
      %2412 = vmatprep.mubr.bf16.mxu0 0
      %2413 = vmatmul.mubr.bf16.gmra.mrb[0].mxu0 %v2379
      %v2414 = vpop.f32.mrb[0].mxu0
      %v2415 = vadd.f32 0.0, %v2414
      %v2416 = vpop.f32.mrb[0].mxu0
      %v2417 = vadd.f32 0.0, %v2416
      %v2418 = vpop.f32.mrb[0].mxu0
      %v2419 = vadd.f32 0.0, %v2418
      %v2420 = vpop.f32.mrb[0].mxu0
      %v2421 = vadd.f32 0.0, %v2420
      %2422 = vdwg.mxu0
      %2423 = vmatprep.subr.bf16.mxu0 0
      %2424 = vmatpush1.bf16.msra.mxu0 %v879
      %2425 = vmatprep.subr.bf16.mxu0 0
      %2426 = vmatpush1.bf16.msra.mxu0 %v882
      %2427 = vmatprep.subr.bf16.mxu0 0
      %2428 = vmatpush1.bf16.msra.mxu0 %v885
      %2429 = vmatprep.subr.bf16.mxu0 0
      %2430 = vmatpush1.bf16.msra.mxu0 %v888
      %2431 = vmatprep.subr.bf16.mxu0 0
      %2432 = vmatpush1.bf16.msra.mxu0 %v891
      %2433 = vmatprep.subr.bf16.mxu0 0
      %2434 = vmatpush1.bf16.msra.mxu0 %v894
      %2435 = vmatprep.subr.bf16.mxu0 0
      %2436 = vmatpush1.bf16.msra.mxu0 %v897
      %2437 = vmatprep.subr.bf16.mxu0 0
      %2438 = vmatpush1.bf16.msra.mxu0 %v900
      %2439 = vmatprep.subr.bf16.mxu0 0
      %2440 = vmatpush1.bf16.msra.mxu0 0
      %2441 = vmatprep.subr.bf16.mxu0 0
      %2442 = vmatpush1.bf16.msra.mxu0 0
      %2443 = vmatprep.subr.bf16.mxu0 0
      %2444 = vmatpush1.bf16.msra.mxu0 0
      %2445 = vmatprep.subr.bf16.mxu0 0
      %2446 = vmatpush1.bf16.msra.mxu0 0
      %2447 = vmatprep.subr.bf16.mxu0 0
      %2448 = vmatpush1.bf16.msra.mxu0 0
      %2449 = vmatprep.subr.bf16.mxu0 0
      %2450 = vmatpush1.bf16.msra.mxu0 0
      %2451 = vmatprep.subr.bf16.mxu0 0
      %2452 = vmatpush1.bf16.msra.mxu0 0
      %2453 = vmatprep.subr.bf16.mxu0 0
      %2454 = vmatpush1.bf16.msra.mxu0 0
      %2455 = vmatprep.mubr.bf16.mxu0 0
      %2456 = vmatmul.mubr.bf16.gmra.mrb[0].mxu0 %v2379
      %v2457 = vpop.f32.mrb[0].mxu0
      %v2458 = vadd.f32 0.0, %v2457
      %v2459 = vpop.f32.mrb[0].mxu0
      %v2460 = vpop.f32.mrb[0].mxu0
      %v2461 = vadd.f32 0.0, %v2460
      %v2462 = vpop.f32.mrb[0].mxu0
      %2463 = vdwg.mxu0
      %v2464 = vadd.f32 %v539, %v2415
      %v2465 = vadd.f32 %v543, %v2419
      %v2466 = vxor.u32 %v2464, 2147483648
      %v2467 = vxor.u32 %v2465, 2147483648
      %v2468 = vmul.f32 %v2466, 1.442695
      %v2469 = vpow.pop %v2468
      %v2470 = vmul.f32 %v2467, 1.442695
      %v2471 = vpow.pop %v2470
      %v2472 = vadd.f32 %v2469, 1.0
      %v2473 = vadd.f32 %v2471, 1.0
      %v2474 = vrcp.pop %v2472
      %v2475 = vmul.f32 1.0, %v2474
      %v2476 = vrcp.pop %v2473
      %v2477 = vmul.f32 1.0, %v2476
      %v2478 = vadd.f32 %v541, %v2417
      %v2479 = vadd.f32 %v545, %v2421
      %v2480 = vxor.u32 %v2478, 2147483648
      %v2481 = vxor.u32 %v2479, 2147483648
      %v2482 = vmul.f32 %v2480, 1.442695
      %v2483 = vpow.pop %v2482
      %v2484 = vmul.f32 %v2481, 1.442695
      %v2485 = vpow.pop %v2484
      %v2486 = vadd.f32 %v2483, 1.0
      %v2487 = vadd.f32 %v2485, 1.0
      %v2488 = vrcp.pop %v2486
      %v2489 = vmul.f32 1.0, %v2488
      %v2490 = vrcp.pop %v2487
      %v2491 = vmul.f32 1.0, %v2490
      %v2492 = vadd.f32 %v2458, %v1041
      %v2493 = vadd.f32 %v2461, %v1041
      %v2494 = vmul.f32 %v2475, %v2492
      %v2495 = vmul.f32 %v2477, %v2493
      %v2496 = vadd.f32 %v712, %v2494
      %v2497 = vadd.f32 %v715, %v2495
      %v2498 = vtanh.pop %v2496
      %v2499 = vtanh.pop %v2497
      %v2500 = vsub.f32 1.0, %v2489
      %v2501 = vsub.f32 1.0, %v2491
      %v2502 = vmul.f32 %v2500, %v2498
      %v2503 = vmul.f32 %v2501, %v2499
      %v2504 = vmul.f32 %v2489, %v2377
      %v2505 = vmul.f32 %v2491, %v2378
      %v2506 = vadd.f32 %v2502, %v2504
      %v2507 = vadd.f32 %v2503, %v2505
      %s2508 = sadd.s32 %s795, 10
      %v2509 = vstv %s2508
      %vm2510 = vcmp.lt.s32.totalorder %v2509, %v791
      %vm2511 = vcmp.lt.s32.totalorder %v2509, %v792
      %v2512 = vsel %vm2510, 1, 0
      %v2513 = vsel %vm2511, 1, 0
      %2514 = vset.pattern.permute.xlu0 0
      %2515 = vperm.xlu0 %2514, %v2512
      %v2516 = vpop.permute.xlu0 %2515
      %2517 = vset.pattern.permute.xlu0 0
      %2518 = vperm.xlu0 %2517, %v2513
      %v2519 = vpop.permute.xlu0 %2518
      %vm2520 = vcmp.eq.s32.totalorder %v2516, 1
      %vm2521 = vcmp.eq.s32.totalorder %v2519, 1
      %v2522 = vsel %vm2520, %v2506, %v2377
      %v2523 = vsel %vm2521, %v2507, %v2378
      %v2524 = vpack.c.bf16 %v2523, %v2522
      %2525 = vmatprep.subr.bf16.mxu0 %v878
      %2526 = vmatpush1.bf16.msra.mxu0 %v877
      %2527 = vmatprep.subr.bf16.mxu0 %v881
      %2528 = vmatpush1.bf16.msra.mxu0 %v880
      %2529 = vmatprep.subr.bf16.mxu0 %v884
      %2530 = vmatpush1.bf16.msra.mxu0 %v883
      %2531 = vmatprep.subr.bf16.mxu0 %v887
      %2532 = vmatpush1.bf16.msra.mxu0 %v886
      %2533 = vmatprep.subr.bf16.mxu0 %v890
      %2534 = vmatpush1.bf16.msra.mxu0 %v889
      %2535 = vmatprep.subr.bf16.mxu0 %v893
      %2536 = vmatpush1.bf16.msra.mxu0 %v892
      %2537 = vmatprep.subr.bf16.mxu0 %v896
      %2538 = vmatpush1.bf16.msra.mxu0 %v895
      %2539 = vmatprep.subr.bf16.mxu0 %v899
      %2540 = vmatpush1.bf16.msra.mxu0 %v898
      %2541 = vmatprep.subr.bf16.mxu0 0
      %2542 = vmatpush1.bf16.msra.mxu0 0
      %2543 = vmatprep.subr.bf16.mxu0 0
      %2544 = vmatpush1.bf16.msra.mxu0 0
      %2545 = vmatprep.subr.bf16.mxu0 0
      %2546 = vmatpush1.bf16.msra.mxu0 0
      %2547 = vmatprep.subr.bf16.mxu0 0
      %2548 = vmatpush1.bf16.msra.mxu0 0
      %2549 = vmatprep.subr.bf16.mxu0 0
      %2550 = vmatpush1.bf16.msra.mxu0 0
      %2551 = vmatprep.subr.bf16.mxu0 0
      %2552 = vmatpush1.bf16.msra.mxu0 0
      %2553 = vmatprep.subr.bf16.mxu0 0
      %2554 = vmatpush1.bf16.msra.mxu0 0
      %2555 = vmatprep.subr.bf16.mxu0 0
      %2556 = vmatpush1.bf16.msra.mxu0 0
      %2557 = vmatprep.mubr.bf16.mxu0 0
      %2558 = vmatmul.mubr.bf16.gmra.mrb[0].mxu0 %v2524
      %v2559 = vpop.f32.mrb[0].mxu0
      %v2560 = vadd.f32 0.0, %v2559
      %v2561 = vpop.f32.mrb[0].mxu0
      %v2562 = vadd.f32 0.0, %v2561
      %v2563 = vpop.f32.mrb[0].mxu0
      %v2564 = vadd.f32 0.0, %v2563
      %v2565 = vpop.f32.mrb[0].mxu0
      %v2566 = vadd.f32 0.0, %v2565
      %2567 = vdwg.mxu0
      %2568 = vmatprep.subr.bf16.mxu0 0
      %2569 = vmatpush1.bf16.msra.mxu0 %v879
      %2570 = vmatprep.subr.bf16.mxu0 0
      %2571 = vmatpush1.bf16.msra.mxu0 %v882
      %2572 = vmatprep.subr.bf16.mxu0 0
      %2573 = vmatpush1.bf16.msra.mxu0 %v885
      %2574 = vmatprep.subr.bf16.mxu0 0
      %2575 = vmatpush1.bf16.msra.mxu0 %v888
      %2576 = vmatprep.subr.bf16.mxu0 0
      %2577 = vmatpush1.bf16.msra.mxu0 %v891
      %2578 = vmatprep.subr.bf16.mxu0 0
      %2579 = vmatpush1.bf16.msra.mxu0 %v894
      %2580 = vmatprep.subr.bf16.mxu0 0
      %2581 = vmatpush1.bf16.msra.mxu0 %v897
      %2582 = vmatprep.subr.bf16.mxu0 0
      %2583 = vmatpush1.bf16.msra.mxu0 %v900
      %2584 = vmatprep.subr.bf16.mxu0 0
      %2585 = vmatpush1.bf16.msra.mxu0 0
      %2586 = vmatprep.subr.bf16.mxu0 0
      %2587 = vmatpush1.bf16.msra.mxu0 0
      %2588 = vmatprep.subr.bf16.mxu0 0
      %2589 = vmatpush1.bf16.msra.mxu0 0
      %2590 = vmatprep.subr.bf16.mxu0 0
      %2591 = vmatpush1.bf16.msra.mxu0 0
      %2592 = vmatprep.subr.bf16.mxu0 0
      %2593 = vmatpush1.bf16.msra.mxu0 0
      %2594 = vmatprep.subr.bf16.mxu0 0
      %2595 = vmatpush1.bf16.msra.mxu0 0
      %2596 = vmatprep.subr.bf16.mxu0 0
      %2597 = vmatpush1.bf16.msra.mxu0 0
      %2598 = vmatprep.subr.bf16.mxu0 0
      %2599 = vmatpush1.bf16.msra.mxu0 0
      %2600 = vmatprep.mubr.bf16.mxu0 0
      %2601 = vmatmul.mubr.bf16.gmra.mrb[0].mxu0 %v2524
      %v2602 = vpop.f32.mrb[0].mxu0
      %v2603 = vadd.f32 0.0, %v2602
      %v2604 = vpop.f32.mrb[0].mxu0
      %v2605 = vpop.f32.mrb[0].mxu0
      %v2606 = vadd.f32 0.0, %v2605
      %v2607 = vpop.f32.mrb[0].mxu0
      %2608 = vdwg.mxu0
      %v2609 = vadd.f32 %v549, %v2560
      %v2610 = vadd.f32 %v553, %v2564
      %v2611 = vxor.u32 %v2609, 2147483648
      %v2612 = vxor.u32 %v2610, 2147483648
      %v2613 = vmul.f32 %v2611, 1.442695
      %v2614 = vpow.pop %v2613
      %v2615 = vmul.f32 %v2612, 1.442695
      %v2616 = vpow.pop %v2615
      %v2617 = vadd.f32 %v2614, 1.0
      %v2618 = vadd.f32 %v2616, 1.0
      %v2619 = vrcp.pop %v2617
      %v2620 = vmul.f32 1.0, %v2619
      %v2621 = vrcp.pop %v2618
      %v2622 = vmul.f32 1.0, %v2621
      %v2623 = vadd.f32 %v551, %v2562
      %v2624 = vadd.f32 %v555, %v2566
      %v2625 = vxor.u32 %v2623, 2147483648
      %v2626 = vxor.u32 %v2624, 2147483648
      %v2627 = vmul.f32 %v2625, 1.442695
      %v2628 = vpow.pop %v2627
      %v2629 = vmul.f32 %v2626, 1.442695
      %v2630 = vpow.pop %v2629
      %v2631 = vadd.f32 %v2628, 1.0
      %v2632 = vadd.f32 %v2630, 1.0
      %v2633 = vrcp.pop %v2631
      %v2634 = vmul.f32 1.0, %v2633
      %v2635 = vrcp.pop %v2632
      %v2636 = vmul.f32 1.0, %v2635
      %v2637 = vadd.f32 %v2603, %v1041
      %v2638 = vadd.f32 %v2606, %v1041
      %v2639 = vmul.f32 %v2620, %v2637
      %v2640 = vmul.f32 %v2622, %v2638
      %v2641 = vadd.f32 %v720, %v2639
      %v2642 = vadd.f32 %v723, %v2640
      %v2643 = vtanh.pop %v2641
      %v2644 = vtanh.pop %v2642
      %v2645 = vsub.f32 1.0, %v2634
      %v2646 = vsub.f32 1.0, %v2636
      %v2647 = vmul.f32 %v2645, %v2643
      %v2648 = vmul.f32 %v2646, %v2644
      %v2649 = vmul.f32 %v2634, %v2522
      %v2650 = vmul.f32 %v2636, %v2523
      %v2651 = vadd.f32 %v2647, %v2649
      %v2652 = vadd.f32 %v2648, %v2650
      %s2653 = sadd.s32 %s795, 11
      %v2654 = vstv %s2653
      %vm2655 = vcmp.lt.s32.totalorder %v2654, %v791
      %vm2656 = vcmp.lt.s32.totalorder %v2654, %v792
      %v2657 = vsel %vm2655, 1, 0
      %v2658 = vsel %vm2656, 1, 0
      %2659 = vset.pattern.permute.xlu0 0
      %2660 = vperm.xlu0 %2659, %v2657
      %v2661 = vpop.permute.xlu0 %2660
      %2662 = vset.pattern.permute.xlu0 0
      %2663 = vperm.xlu0 %2662, %v2658
      %v2664 = vpop.permute.xlu0 %2663
      %vm2665 = vcmp.eq.s32.totalorder %v2661, 1
      %vm2666 = vcmp.eq.s32.totalorder %v2664, 1
      %v2667 = vsel %vm2665, %v2651, %v2522
      %v2668 = vsel %vm2666, %v2652, %v2523
      %v2669 = vpack.c.bf16 %v2668, %v2667
      %2670 = vmatprep.subr.bf16.mxu0 %v878
      %2671 = vmatpush1.bf16.msra.mxu0 %v877
      %2672 = vmatprep.subr.bf16.mxu0 %v881
      %2673 = vmatpush1.bf16.msra.mxu0 %v880
      %2674 = vmatprep.subr.bf16.mxu0 %v884
      %2675 = vmatpush1.bf16.msra.mxu0 %v883
      %2676 = vmatprep.subr.bf16.mxu0 %v887
      %2677 = vmatpush1.bf16.msra.mxu0 %v886
      %2678 = vmatprep.subr.bf16.mxu0 %v890
      %2679 = vmatpush1.bf16.msra.mxu0 %v889
      %2680 = vmatprep.subr.bf16.mxu0 %v893
      %2681 = vmatpush1.bf16.msra.mxu0 %v892
      %2682 = vmatprep.subr.bf16.mxu0 %v896
      %2683 = vmatpush1.bf16.msra.mxu0 %v895
      %2684 = vmatprep.subr.bf16.mxu0 %v899
      %2685 = vmatpush1.bf16.msra.mxu0 %v898
      %2686 = vmatprep.subr.bf16.mxu0 0
      %2687 = vmatpush1.bf16.msra.mxu0 0
      %2688 = vmatprep.subr.bf16.mxu0 0
      %2689 = vmatpush1.bf16.msra.mxu0 0
      %2690 = vmatprep.subr.bf16.mxu0 0
      %2691 = vmatpush1.bf16.msra.mxu0 0
      %2692 = vmatprep.subr.bf16.mxu0 0
      %2693 = vmatpush1.bf16.msra.mxu0 0
      %2694 = vmatprep.subr.bf16.mxu0 0
      %2695 = vmatpush1.bf16.msra.mxu0 0
      %2696 = vmatprep.subr.bf16.mxu0 0
      %2697 = vmatpush1.bf16.msra.mxu0 0
      %2698 = vmatprep.subr.bf16.mxu0 0
      %2699 = vmatpush1.bf16.msra.mxu0 0
      %2700 = vmatprep.subr.bf16.mxu0 0
      %2701 = vmatpush1.bf16.msra.mxu0 0
      %2702 = vmatprep.mubr.bf16.mxu0 0
      %2703 = vmatmul.mubr.bf16.gmra.mrb[0].mxu0 %v2669
      %v2704 = vpop.f32.mrb[0].mxu0
      %v2705 = vadd.f32 0.0, %v2704
      %v2706 = vpop.f32.mrb[0].mxu0
      %v2707 = vadd.f32 0.0, %v2706
      %v2708 = vpop.f32.mrb[0].mxu0
      %v2709 = vadd.f32 0.0, %v2708
      %v2710 = vpop.f32.mrb[0].mxu0
      %v2711 = vadd.f32 0.0, %v2710
      %2712 = vdwg.mxu0
      %2713 = vmatprep.subr.bf16.mxu0 0
      %2714 = vmatpush1.bf16.msra.mxu0 %v879
      %2715 = vmatprep.subr.bf16.mxu0 0
      %2716 = vmatpush1.bf16.msra.mxu0 %v882
      %2717 = vmatprep.subr.bf16.mxu0 0
      %2718 = vmatpush1.bf16.msra.mxu0 %v885
      %2719 = vmatprep.subr.bf16.mxu0 0
      %2720 = vmatpush1.bf16.msra.mxu0 %v888
      %2721 = vmatprep.subr.bf16.mxu0 0
      %2722 = vmatpush1.bf16.msra.mxu0 %v891
      %2723 = vmatprep.subr.bf16.mxu0 0
      %2724 = vmatpush1.bf16.msra.mxu0 %v894
      %2725 = vmatprep.subr.bf16.mxu0 0
      %2726 = vmatpush1.bf16.msra.mxu0 %v897
      %2727 = vmatprep.subr.bf16.mxu0 0
      %2728 = vmatpush1.bf16.msra.mxu0 %v900
      %2729 = vmatprep.subr.bf16.mxu0 0
      %2730 = vmatpush1.bf16.msra.mxu0 0
      %2731 = vmatprep.subr.bf16.mxu0 0
      %2732 = vmatpush1.bf16.msra.mxu0 0
      %2733 = vmatprep.subr.bf16.mxu0 0
      %2734 = vmatpush1.bf16.msra.mxu0 0
      %2735 = vmatprep.subr.bf16.mxu0 0
      %2736 = vmatpush1.bf16.msra.mxu0 0
      %2737 = vmatprep.subr.bf16.mxu0 0
      %2738 = vmatpush1.bf16.msra.mxu0 0
      %2739 = vmatprep.subr.bf16.mxu0 0
      %2740 = vmatpush1.bf16.msra.mxu0 0
      %2741 = vmatprep.subr.bf16.mxu0 0
      %2742 = vmatpush1.bf16.msra.mxu0 0
      %2743 = vmatprep.subr.bf16.mxu0 0
      %2744 = vmatpush1.bf16.msra.mxu0 0
      %2745 = vmatprep.mubr.bf16.mxu0 0
      %2746 = vmatmul.mubr.bf16.gmra.mrb[0].mxu0 %v2669
      %v2747 = vpop.f32.mrb[0].mxu0
      %v2748 = vadd.f32 0.0, %v2747
      %v2749 = vpop.f32.mrb[0].mxu0
      %v2750 = vpop.f32.mrb[0].mxu0
      %v2751 = vadd.f32 0.0, %v2750
      %v2752 = vpop.f32.mrb[0].mxu0
      %2753 = vdwg.mxu0
      %v2754 = vadd.f32 %v559, %v2705
      %v2755 = vadd.f32 %v563, %v2709
      %v2756 = vxor.u32 %v2754, 2147483648
      %v2757 = vxor.u32 %v2755, 2147483648
      %v2758 = vmul.f32 %v2756, 1.442695
      %v2759 = vpow.pop %v2758
      %v2760 = vmul.f32 %v2757, 1.442695
      %v2761 = vpow.pop %v2760
      %v2762 = vadd.f32 %v2759, 1.0
      %v2763 = vadd.f32 %v2761, 1.0
      %v2764 = vrcp.pop %v2762
      %v2765 = vmul.f32 1.0, %v2764
      %v2766 = vrcp.pop %v2763
      %v2767 = vmul.f32 1.0, %v2766
      %v2768 = vadd.f32 %v561, %v2707
      %v2769 = vadd.f32 %v565, %v2711
      %v2770 = vxor.u32 %v2768, 2147483648
      %v2771 = vxor.u32 %v2769, 2147483648
      %v2772 = vmul.f32 %v2770, 1.442695
      %v2773 = vpow.pop %v2772
      %v2774 = vmul.f32 %v2771, 1.442695
      %v2775 = vpow.pop %v2774
      %v2776 = vadd.f32 %v2773, 1.0
      %v2777 = vadd.f32 %v2775, 1.0
      %v2778 = vrcp.pop %v2776
      %v2779 = vmul.f32 1.0, %v2778
      %v2780 = vrcp.pop %v2777
      %v2781 = vmul.f32 1.0, %v2780
      %v2782 = vadd.f32 %v2748, %v1041
      %v2783 = vadd.f32 %v2751, %v1041
      %v2784 = vmul.f32 %v2765, %v2782
      %v2785 = vmul.f32 %v2767, %v2783
      %v2786 = vadd.f32 %v728, %v2784
      %v2787 = vadd.f32 %v731, %v2785
      %v2788 = vtanh.pop %v2786
      %v2789 = vtanh.pop %v2787
      %v2790 = vsub.f32 1.0, %v2779
      %v2791 = vsub.f32 1.0, %v2781
      %v2792 = vmul.f32 %v2790, %v2788
      %v2793 = vmul.f32 %v2791, %v2789
      %v2794 = vmul.f32 %v2779, %v2667
      %v2795 = vmul.f32 %v2781, %v2668
      %v2796 = vadd.f32 %v2792, %v2794
      %v2797 = vadd.f32 %v2793, %v2795
      %s2798 = sadd.s32 %s795, 12
      %v2799 = vstv %s2798
      %vm2800 = vcmp.lt.s32.totalorder %v2799, %v791
      %vm2801 = vcmp.lt.s32.totalorder %v2799, %v792
      %v2802 = vsel %vm2800, 1, 0
      %v2803 = vsel %vm2801, 1, 0
      %2804 = vset.pattern.permute.xlu0 0
      %2805 = vperm.xlu0 %2804, %v2802
      %v2806 = vpop.permute.xlu0 %2805
      %2807 = vset.pattern.permute.xlu0 0
      %2808 = vperm.xlu0 %2807, %v2803
      %v2809 = vpop.permute.xlu0 %2808
      %vm2810 = vcmp.eq.s32.totalorder %v2806, 1
      %vm2811 = vcmp.eq.s32.totalorder %v2809, 1
      %v2812 = vsel %vm2810, %v2796, %v2667
      %v2813 = vsel %vm2811, %v2797, %v2668
      %v2814 = vpack.c.bf16 %v2813, %v2812
      %2815 = vmatprep.subr.bf16.mxu0 %v878
      %2816 = vmatpush1.bf16.msra.mxu0 %v877
      %2817 = vmatprep.subr.bf16.mxu0 %v881
      %2818 = vmatpush1.bf16.msra.mxu0 %v880
      %2819 = vmatprep.subr.bf16.mxu0 %v884
      %2820 = vmatpush1.bf16.msra.mxu0 %v883
      %2821 = vmatprep.subr.bf16.mxu0 %v887
      %2822 = vmatpush1.bf16.msra.mxu0 %v886
      %2823 = vmatprep.subr.bf16.mxu0 %v890
      %2824 = vmatpush1.bf16.msra.mxu0 %v889
      %2825 = vmatprep.subr.bf16.mxu0 %v893
      %2826 = vmatpush1.bf16.msra.mxu0 %v892
      %2827 = vmatprep.subr.bf16.mxu0 %v896
      %2828 = vmatpush1.bf16.msra.mxu0 %v895
      %2829 = vmatprep.subr.bf16.mxu0 %v899
      %2830 = vmatpush1.bf16.msra.mxu0 %v898
      %2831 = vmatprep.subr.bf16.mxu0 0
      %2832 = vmatpush1.bf16.msra.mxu0 0
      %2833 = vmatprep.subr.bf16.mxu0 0
      %2834 = vmatpush1.bf16.msra.mxu0 0
      %2835 = vmatprep.subr.bf16.mxu0 0
      %2836 = vmatpush1.bf16.msra.mxu0 0
      %2837 = vmatprep.subr.bf16.mxu0 0
      %2838 = vmatpush1.bf16.msra.mxu0 0
      %2839 = vmatprep.subr.bf16.mxu0 0
      %2840 = vmatpush1.bf16.msra.mxu0 0
      %2841 = vmatprep.subr.bf16.mxu0 0
      %2842 = vmatpush1.bf16.msra.mxu0 0
      %2843 = vmatprep.subr.bf16.mxu0 0
      %2844 = vmatpush1.bf16.msra.mxu0 0
      %2845 = vmatprep.subr.bf16.mxu0 0
      %2846 = vmatpush1.bf16.msra.mxu0 0
      %2847 = vmatprep.mubr.bf16.mxu0 0
      %2848 = vmatmul.mubr.bf16.gmra.mrb[0].mxu0 %v2814
      %v2849 = vpop.f32.mrb[0].mxu0
      %v2850 = vadd.f32 0.0, %v2849
      %v2851 = vpop.f32.mrb[0].mxu0
      %v2852 = vadd.f32 0.0, %v2851
      %v2853 = vpop.f32.mrb[0].mxu0
      %v2854 = vadd.f32 0.0, %v2853
      %v2855 = vpop.f32.mrb[0].mxu0
      %v2856 = vadd.f32 0.0, %v2855
      %2857 = vdwg.mxu0
      %2858 = vmatprep.subr.bf16.mxu0 0
      %2859 = vmatpush1.bf16.msra.mxu0 %v879
      %2860 = vmatprep.subr.bf16.mxu0 0
      %2861 = vmatpush1.bf16.msra.mxu0 %v882
      %2862 = vmatprep.subr.bf16.mxu0 0
      %2863 = vmatpush1.bf16.msra.mxu0 %v885
      %2864 = vmatprep.subr.bf16.mxu0 0
      %2865 = vmatpush1.bf16.msra.mxu0 %v888
      %2866 = vmatprep.subr.bf16.mxu0 0
      %2867 = vmatpush1.bf16.msra.mxu0 %v891
      %2868 = vmatprep.subr.bf16.mxu0 0
      %2869 = vmatpush1.bf16.msra.mxu0 %v894
      %2870 = vmatprep.subr.bf16.mxu0 0
      %2871 = vmatpush1.bf16.msra.mxu0 %v897
      %2872 = vmatprep.subr.bf16.mxu0 0
      %2873 = vmatpush1.bf16.msra.mxu0 %v900
      %2874 = vmatprep.subr.bf16.mxu0 0
      %2875 = vmatpush1.bf16.msra.mxu0 0
      %2876 = vmatprep.subr.bf16.mxu0 0
      %2877 = vmatpush1.bf16.msra.mxu0 0
      %2878 = vmatprep.subr.bf16.mxu0 0
      %2879 = vmatpush1.bf16.msra.mxu0 0
      %2880 = vmatprep.subr.bf16.mxu0 0
      %2881 = vmatpush1.bf16.msra.mxu0 0
      %2882 = vmatprep.subr.bf16.mxu0 0
      %2883 = vmatpush1.bf16.msra.mxu0 0
      %2884 = vmatprep.subr.bf16.mxu0 0
      %2885 = vmatpush1.bf16.msra.mxu0 0
      %2886 = vmatprep.subr.bf16.mxu0 0
      %2887 = vmatpush1.bf16.msra.mxu0 0
      %2888 = vmatprep.subr.bf16.mxu0 0
      %2889 = vmatpush1.bf16.msra.mxu0 0
      %2890 = vmatprep.mubr.bf16.mxu0 0
      %2891 = vmatmul.mubr.bf16.gmra.mrb[0].mxu0 %v2814
      %v2892 = vpop.f32.mrb[0].mxu0
      %v2893 = vadd.f32 0.0, %v2892
      %v2894 = vpop.f32.mrb[0].mxu0
      %v2895 = vpop.f32.mrb[0].mxu0
      %v2896 = vadd.f32 0.0, %v2895
      %v2897 = vpop.f32.mrb[0].mxu0
      %2898 = vdwg.mxu0
      %v2899 = vadd.f32 %v569, %v2850
      %v2900 = vadd.f32 %v573, %v2854
      %v2901 = vxor.u32 %v2899, 2147483648
      %v2902 = vxor.u32 %v2900, 2147483648
      %v2903 = vmul.f32 %v2901, 1.442695
      %v2904 = vpow.pop %v2903
      %v2905 = vmul.f32 %v2902, 1.442695
      %v2906 = vpow.pop %v2905
      %v2907 = vadd.f32 %v2904, 1.0
      %v2908 = vadd.f32 %v2906, 1.0
      %v2909 = vrcp.pop %v2907
      %v2910 = vmul.f32 1.0, %v2909
      %v2911 = vrcp.pop %v2908
      %v2912 = vmul.f32 1.0, %v2911
      %v2913 = vadd.f32 %v571, %v2852
      %v2914 = vadd.f32 %v575, %v2856
      %v2915 = vxor.u32 %v2913, 2147483648
      %v2916 = vxor.u32 %v2914, 2147483648
      %v2917 = vmul.f32 %v2915, 1.442695
      %v2918 = vpow.pop %v2917
      %v2919 = vmul.f32 %v2916, 1.442695
      %v2920 = vpow.pop %v2919
      %v2921 = vadd.f32 %v2918, 1.0
      %v2922 = vadd.f32 %v2920, 1.0
      %v2923 = vrcp.pop %v2921
      %v2924 = vmul.f32 1.0, %v2923
      %v2925 = vrcp.pop %v2922
      %v2926 = vmul.f32 1.0, %v2925
      %v2927 = vadd.f32 %v2893, %v1041
      %v2928 = vadd.f32 %v2896, %v1041
      %v2929 = vmul.f32 %v2910, %v2927
      %v2930 = vmul.f32 %v2912, %v2928
      %v2931 = vadd.f32 %v736, %v2929
      %v2932 = vadd.f32 %v739, %v2930
      %v2933 = vtanh.pop %v2931
      %v2934 = vtanh.pop %v2932
      %v2935 = vsub.f32 1.0, %v2924
      %v2936 = vsub.f32 1.0, %v2926
      %v2937 = vmul.f32 %v2935, %v2933
      %v2938 = vmul.f32 %v2936, %v2934
      %v2939 = vmul.f32 %v2924, %v2812
      %v2940 = vmul.f32 %v2926, %v2813
      %v2941 = vadd.f32 %v2937, %v2939
      %v2942 = vadd.f32 %v2938, %v2940
      %s2943 = sadd.s32 %s795, 13
      %v2944 = vstv %s2943
      %vm2945 = vcmp.lt.s32.totalorder %v2944, %v791
      %vm2946 = vcmp.lt.s32.totalorder %v2944, %v792
      %v2947 = vsel %vm2945, 1, 0
      %v2948 = vsel %vm2946, 1, 0
      %2949 = vset.pattern.permute.xlu0 0
      %2950 = vperm.xlu0 %2949, %v2947
      %v2951 = vpop.permute.xlu0 %2950
      %2952 = vset.pattern.permute.xlu0 0
      %2953 = vperm.xlu0 %2952, %v2948
      %v2954 = vpop.permute.xlu0 %2953
      %vm2955 = vcmp.eq.s32.totalorder %v2951, 1
      %vm2956 = vcmp.eq.s32.totalorder %v2954, 1
      %v2957 = vsel %vm2955, %v2941, %v2812
      %v2958 = vsel %vm2956, %v2942, %v2813
      %v2959 = vpack.c.bf16 %v2958, %v2957
      %2960 = vmatprep.subr.bf16.mxu0 %v878
      %2961 = vmatpush1.bf16.msra.mxu0 %v877
      %2962 = vmatprep.subr.bf16.mxu0 %v881
      %2963 = vmatpush1.bf16.msra.mxu0 %v880
      %2964 = vmatprep.subr.bf16.mxu0 %v884
      %2965 = vmatpush1.bf16.msra.mxu0 %v883
      %2966 = vmatprep.subr.bf16.mxu0 %v887
      %2967 = vmatpush1.bf16.msra.mxu0 %v886
      %2968 = vmatprep.subr.bf16.mxu0 %v890
      %2969 = vmatpush1.bf16.msra.mxu0 %v889
      %2970 = vmatprep.subr.bf16.mxu0 %v893
      %2971 = vmatpush1.bf16.msra.mxu0 %v892
      %2972 = vmatprep.subr.bf16.mxu0 %v896
      %2973 = vmatpush1.bf16.msra.mxu0 %v895
      %2974 = vmatprep.subr.bf16.mxu0 %v899
      %2975 = vmatpush1.bf16.msra.mxu0 %v898
      %2976 = vmatprep.subr.bf16.mxu0 0
      %2977 = vmatpush1.bf16.msra.mxu0 0
      %2978 = vmatprep.subr.bf16.mxu0 0
      %2979 = vmatpush1.bf16.msra.mxu0 0
      %2980 = vmatprep.subr.bf16.mxu0 0
      %2981 = vmatpush1.bf16.msra.mxu0 0
      %2982 = vmatprep.subr.bf16.mxu0 0
      %2983 = vmatpush1.bf16.msra.mxu0 0
      %2984 = vmatprep.subr.bf16.mxu0 0
      %2985 = vmatpush1.bf16.msra.mxu0 0
      %2986 = vmatprep.subr.bf16.mxu0 0
      %2987 = vmatpush1.bf16.msra.mxu0 0
      %2988 = vmatprep.subr.bf16.mxu0 0
      %2989 = vmatpush1.bf16.msra.mxu0 0
      %2990 = vmatprep.subr.bf16.mxu0 0
      %2991 = vmatpush1.bf16.msra.mxu0 0
      %2992 = vmatprep.mubr.bf16.mxu0 0
      %2993 = vmatmul.mubr.bf16.gmra.mrb[0].mxu0 %v2959
      %v2994 = vpop.f32.mrb[0].mxu0
      %v2995 = vadd.f32 0.0, %v2994
      %v2996 = vpop.f32.mrb[0].mxu0
      %v2997 = vadd.f32 0.0, %v2996
      %v2998 = vpop.f32.mrb[0].mxu0
      %v2999 = vadd.f32 0.0, %v2998
      %v3000 = vpop.f32.mrb[0].mxu0
      %v3001 = vadd.f32 0.0, %v3000
      %3002 = vdwg.mxu0
      %3003 = vmatprep.subr.bf16.mxu0 0
      %3004 = vmatpush1.bf16.msra.mxu0 %v879
      %3005 = vmatprep.subr.bf16.mxu0 0
      %3006 = vmatpush1.bf16.msra.mxu0 %v882
      %3007 = vmatprep.subr.bf16.mxu0 0
      %3008 = vmatpush1.bf16.msra.mxu0 %v885
      %3009 = vmatprep.subr.bf16.mxu0 0
      %3010 = vmatpush1.bf16.msra.mxu0 %v888
      %3011 = vmatprep.subr.bf16.mxu0 0
      %3012 = vmatpush1.bf16.msra.mxu0 %v891
      %3013 = vmatprep.subr.bf16.mxu0 0
      %3014 = vmatpush1.bf16.msra.mxu0 %v894
      %3015 = vmatprep.subr.bf16.mxu0 0
      %3016 = vmatpush1.bf16.msra.mxu0 %v897
      %3017 = vmatprep.subr.bf16.mxu0 0
      %3018 = vmatpush1.bf16.msra.mxu0 %v900
      %3019 = vmatprep.subr.bf16.mxu0 0
      %3020 = vmatpush1.bf16.msra.mxu0 0
      %3021 = vmatprep.subr.bf16.mxu0 0
      %3022 = vmatpush1.bf16.msra.mxu0 0
      %3023 = vmatprep.subr.bf16.mxu0 0
      %3024 = vmatpush1.bf16.msra.mxu0 0
      %3025 = vmatprep.subr.bf16.mxu0 0
      %3026 = vmatpush1.bf16.msra.mxu0 0
      %3027 = vmatprep.subr.bf16.mxu0 0
      %3028 = vmatpush1.bf16.msra.mxu0 0
      %3029 = vmatprep.subr.bf16.mxu0 0
      %3030 = vmatpush1.bf16.msra.mxu0 0
      %3031 = vmatprep.subr.bf16.mxu0 0
      %3032 = vmatpush1.bf16.msra.mxu0 0
      %3033 = vmatprep.subr.bf16.mxu0 0
      %3034 = vmatpush1.bf16.msra.mxu0 0
      %3035 = vmatprep.mubr.bf16.mxu0 0
      %3036 = vmatmul.mubr.bf16.gmra.mrb[0].mxu0 %v2959
      %v3037 = vpop.f32.mrb[0].mxu0
      %v3038 = vadd.f32 0.0, %v3037
      %v3039 = vpop.f32.mrb[0].mxu0
      %v3040 = vpop.f32.mrb[0].mxu0
      %v3041 = vadd.f32 0.0, %v3040
      %v3042 = vpop.f32.mrb[0].mxu0
      %3043 = vdwg.mxu0
      %v3044 = vadd.f32 %v579, %v2995
      %v3045 = vadd.f32 %v583, %v2999
      %v3046 = vxor.u32 %v3044, 2147483648
      %v3047 = vxor.u32 %v3045, 2147483648
      %v3048 = vmul.f32 %v3046, 1.442695
      %v3049 = vpow.pop %v3048
      %v3050 = vmul.f32 %v3047, 1.442695
      %v3051 = vpow.pop %v3050
      %v3052 = vadd.f32 %v3049, 1.0
      %v3053 = vadd.f32 %v3051, 1.0
      %v3054 = vrcp.pop %v3052
      %v3055 = vmul.f32 1.0, %v3054
      %v3056 = vrcp.pop %v3053
      %v3057 = vmul.f32 1.0, %v3056
      %v3058 = vadd.f32 %v581, %v2997
      %v3059 = vadd.f32 %v585, %v3001
      %v3060 = vxor.u32 %v3058, 2147483648
      %v3061 = vxor.u32 %v3059, 2147483648
      %v3062 = vmul.f32 %v3060, 1.442695
      %v3063 = vpow.pop %v3062
      %v3064 = vmul.f32 %v3061, 1.442695
      %v3065 = vpow.pop %v3064
      %v3066 = vadd.f32 %v3063, 1.0
      %v3067 = vadd.f32 %v3065, 1.0
      %v3068 = vrcp.pop %v3066
      %v3069 = vmul.f32 1.0, %v3068
      %v3070 = vrcp.pop %v3067
      %v3071 = vmul.f32 1.0, %v3070
      %v3072 = vadd.f32 %v3038, %v1041
      %v3073 = vadd.f32 %v3041, %v1041
      %v3074 = vmul.f32 %v3055, %v3072
      %v3075 = vmul.f32 %v3057, %v3073
      %v3076 = vadd.f32 %v744, %v3074
      %v3077 = vadd.f32 %v747, %v3075
      %v3078 = vtanh.pop %v3076
      %v3079 = vtanh.pop %v3077
      %v3080 = vsub.f32 1.0, %v3069
      %v3081 = vsub.f32 1.0, %v3071
      %v3082 = vmul.f32 %v3080, %v3078
      %v3083 = vmul.f32 %v3081, %v3079
      %v3084 = vmul.f32 %v3069, %v2957
      %v3085 = vmul.f32 %v3071, %v2958
      %v3086 = vadd.f32 %v3082, %v3084
      %v3087 = vadd.f32 %v3083, %v3085
      %s3088 = sadd.s32 %s795, 14
      %v3089 = vstv %s3088
      %vm3090 = vcmp.lt.s32.totalorder %v3089, %v791
      %vm3091 = vcmp.lt.s32.totalorder %v3089, %v792
      %v3092 = vsel %vm3090, 1, 0
      %v3093 = vsel %vm3091, 1, 0
      %3094 = vset.pattern.permute.xlu0 0
      %3095 = vperm.xlu0 %3094, %v3092
      %v3096 = vpop.permute.xlu0 %3095
      %3097 = vset.pattern.permute.xlu0 0
      %3098 = vperm.xlu0 %3097, %v3093
      %v3099 = vpop.permute.xlu0 %3098
      %vm3100 = vcmp.eq.s32.totalorder %v3096, 1
      %vm3101 = vcmp.eq.s32.totalorder %v3099, 1
      %v3102 = vsel %vm3100, %v3086, %v2957
      %v3103 = vsel %vm3101, %v3087, %v2958
      %v3104 = vpack.c.bf16 %v3103, %v3102
      %3105 = vmatprep.subr.bf16.mxu0 %v878
      %3106 = vmatpush1.bf16.msra.mxu0 %v877
      %3107 = vmatprep.subr.bf16.mxu0 %v881
      %3108 = vmatpush1.bf16.msra.mxu0 %v880
      %3109 = vmatprep.subr.bf16.mxu0 %v884
      %3110 = vmatpush1.bf16.msra.mxu0 %v883
      %3111 = vmatprep.subr.bf16.mxu0 %v887
      %3112 = vmatpush1.bf16.msra.mxu0 %v886
      %3113 = vmatprep.subr.bf16.mxu0 %v890
      %3114 = vmatpush1.bf16.msra.mxu0 %v889
      %3115 = vmatprep.subr.bf16.mxu0 %v893
      %3116 = vmatpush1.bf16.msra.mxu0 %v892
      %3117 = vmatprep.subr.bf16.mxu0 %v896
      %3118 = vmatpush1.bf16.msra.mxu0 %v895
      %3119 = vmatprep.subr.bf16.mxu0 %v899
      %3120 = vmatpush1.bf16.msra.mxu0 %v898
      %3121 = vmatprep.subr.bf16.mxu0 0
      %3122 = vmatpush1.bf16.msra.mxu0 0
      %3123 = vmatprep.subr.bf16.mxu0 0
      %3124 = vmatpush1.bf16.msra.mxu0 0
      %3125 = vmatprep.subr.bf16.mxu0 0
      %3126 = vmatpush1.bf16.msra.mxu0 0
      %3127 = vmatprep.subr.bf16.mxu0 0
      %3128 = vmatpush1.bf16.msra.mxu0 0
      %3129 = vmatprep.subr.bf16.mxu0 0
      %3130 = vmatpush1.bf16.msra.mxu0 0
      %3131 = vmatprep.subr.bf16.mxu0 0
      %3132 = vmatpush1.bf16.msra.mxu0 0
      %3133 = vmatprep.subr.bf16.mxu0 0
      %3134 = vmatpush1.bf16.msra.mxu0 0
      %3135 = vmatprep.subr.bf16.mxu0 0
      %3136 = vmatpush1.bf16.msra.mxu0 0
      %3137 = vmatprep.mubr.bf16.mxu0 0
      %3138 = vmatmul.mubr.bf16.gmra.mrb[0].mxu0 %v3104
      %v3139 = vpop.f32.mrb[0].mxu0
      %v3140 = vadd.f32 0.0, %v3139
      %v3141 = vpop.f32.mrb[0].mxu0
      %v3142 = vadd.f32 0.0, %v3141
      %v3143 = vpop.f32.mrb[0].mxu0
      %v3144 = vadd.f32 0.0, %v3143
      %v3145 = vpop.f32.mrb[0].mxu0
      %v3146 = vadd.f32 0.0, %v3145
      %3147 = vdwg.mxu0
      %3148 = vmatprep.subr.bf16.mxu0 0
      %3149 = vmatpush1.bf16.msra.mxu0 %v879
      %3150 = vmatprep.subr.bf16.mxu0 0
      %3151 = vmatpush1.bf16.msra.mxu0 %v882
      %3152 = vmatprep.subr.bf16.mxu0 0
      %3153 = vmatpush1.bf16.msra.mxu0 %v885
      %3154 = vmatprep.subr.bf16.mxu0 0
      %3155 = vmatpush1.bf16.msra.mxu0 %v888
      %3156 = vmatprep.subr.bf16.mxu0 0
      %3157 = vmatpush1.bf16.msra.mxu0 %v891
      %3158 = vmatprep.subr.bf16.mxu0 0
      %3159 = vmatpush1.bf16.msra.mxu0 %v894
      %3160 = vmatprep.subr.bf16.mxu0 0
      %3161 = vmatpush1.bf16.msra.mxu0 %v897
      %3162 = vmatprep.subr.bf16.mxu0 0
      %3163 = vmatpush1.bf16.msra.mxu0 %v900
      %3164 = vmatprep.subr.bf16.mxu0 0
      %3165 = vmatpush1.bf16.msra.mxu0 0
      %3166 = vmatprep.subr.bf16.mxu0 0
      %3167 = vmatpush1.bf16.msra.mxu0 0
      %3168 = vmatprep.subr.bf16.mxu0 0
      %3169 = vmatpush1.bf16.msra.mxu0 0
      %3170 = vmatprep.subr.bf16.mxu0 0
      %3171 = vmatpush1.bf16.msra.mxu0 0
      %3172 = vmatprep.subr.bf16.mxu0 0
      %3173 = vmatpush1.bf16.msra.mxu0 0
      %3174 = vmatprep.subr.bf16.mxu0 0
      %3175 = vmatpush1.bf16.msra.mxu0 0
      %3176 = vmatprep.subr.bf16.mxu0 0
      %3177 = vmatpush1.bf16.msra.mxu0 0
      %3178 = vmatprep.subr.bf16.mxu0 0
      %3179 = vmatpush1.bf16.msra.mxu0 0
      %3180 = vmatprep.mubr.bf16.mxu0 0
      %3181 = vmatmul.mubr.bf16.gmra.mrb[0].mxu0 %v3104
      %v3182 = vpop.f32.mrb[0].mxu0
      %v3183 = vadd.f32 0.0, %v3182
      %v3184 = vpop.f32.mrb[0].mxu0
      %v3185 = vpop.f32.mrb[0].mxu0
      %v3186 = vadd.f32 0.0, %v3185
      %v3187 = vpop.f32.mrb[0].mxu0
      %3188 = vdwg.mxu0
      %v3189 = vadd.f32 %v589, %v3140
      %v3190 = vadd.f32 %v593, %v3144
      %v3191 = vxor.u32 %v3189, 2147483648
      %v3192 = vxor.u32 %v3190, 2147483648
      %v3193 = vmul.f32 %v3191, 1.442695
      %v3194 = vpow.pop %v3193
      %v3195 = vmul.f32 %v3192, 1.442695
      %v3196 = vpow.pop %v3195
      %v3197 = vadd.f32 %v3194, 1.0
      %v3198 = vadd.f32 %v3196, 1.0
      %v3199 = vrcp.pop %v3197
      %v3200 = vmul.f32 1.0, %v3199
      %v3201 = vrcp.pop %v3198
      %v3202 = vmul.f32 1.0, %v3201
      %v3203 = vadd.f32 %v591, %v3142
      %v3204 = vadd.f32 %v595, %v3146
      %v3205 = vxor.u32 %v3203, 2147483648
      %v3206 = vxor.u32 %v3204, 2147483648
      %v3207 = vmul.f32 %v3205, 1.442695
      %v3208 = vpow.pop %v3207
      %v3209 = vmul.f32 %v3206, 1.442695
      %v3210 = vpow.pop %v3209
      %v3211 = vadd.f32 %v3208, 1.0
      %v3212 = vadd.f32 %v3210, 1.0
      %v3213 = vrcp.pop %v3211
      %v3214 = vmul.f32 1.0, %v3213
      %v3215 = vrcp.pop %v3212
      %v3216 = vmul.f32 1.0, %v3215
      %v3217 = vadd.f32 %v3183, %v1041
      %v3218 = vadd.f32 %v3186, %v1041
      %v3219 = vmul.f32 %v3200, %v3217
      %v3220 = vmul.f32 %v3202, %v3218
      %v3221 = vadd.f32 %v752, %v3219
      %v3222 = vadd.f32 %v755, %v3220
      %v3223 = vtanh.pop %v3221
      %v3224 = vtanh.pop %v3222
      %v3225 = vsub.f32 1.0, %v3214
      %v3226 = vsub.f32 1.0, %v3216
      %v3227 = vmul.f32 %v3225, %v3223
      %v3228 = vmul.f32 %v3226, %v3224
      %v3229 = vmul.f32 %v3214, %v3102
      %v3230 = vmul.f32 %v3216, %v3103
      %v3231 = vadd.f32 %v3227, %v3229
      %v3232 = vadd.f32 %v3228, %v3230
      %s3233 = sadd.s32 %s795, 15
      %v3234 = vstv %s3233
      %vm3235 = vcmp.lt.s32.totalorder %v3234, %v791
      %vm3236 = vcmp.lt.s32.totalorder %v3234, %v792
      %v3237 = vsel %vm3235, 1, 0
      %v3238 = vsel %vm3236, 1, 0
      %3239 = vset.pattern.permute.xlu0 0
      %3240 = vperm.xlu0 %3239, %v3237
      %v3241 = vpop.permute.xlu0 %3240
      %3242 = vset.pattern.permute.xlu0 0
      %3243 = vperm.xlu0 %3242, %v3238
      %v3244 = vpop.permute.xlu0 %3243
      %vm3245 = vcmp.eq.s32.totalorder %v3241, 1
      %vm3246 = vcmp.eq.s32.totalorder %v3244, 1
      %v3247 = vsel %vm3245, %v3231, %v3102
      %v3248 = vsel %vm3246, %v3232, %v3103
      %3249 = vst [vmem:[#allocation2] sm:$0xff] %v3247
      %3250 = vst [vmem:[#allocation2 + $0x8] sm:$0xff] %v3248
    $region57: #{tpu_custom_call.1} parent=1 // pred_fallthru
      _
    // Predicated region
    $region58: #{tpu_custom_call.1} parent=1 // pred_check
      %p3251 = pneg %p88
    $region59: #{tpu_custom_call.1} parent=1 // pred_check_branch
      %3253 = sbr.rel (%p3251) target = $region61
    $region60: #{tpu_custom_call.1} parent=1 // pred_region
      %v3254 = vld [vmem:[#allocation2] sm:$0xff]
      %v3255 = vld [vmem:[#allocation2 + $0x8] sm:$0xff]
      %v3256 = vpack.c.bf16 %v3255, %v3254
      %v3257 = vld [vmem:[#allocation11] sm:$0xf]
      %v3258 = vld [vmem:[#allocation11 + $0x4] sm:$0xf]
      %v3259 = vld [vmem:[#allocation11 + $0x8] sm:$0xf]
      %v3260 = vld [vmem:[#allocation11 + $0xc] sm:$0xf]
      %v3261 = vld [vmem:[#allocation11 + $0x10] sm:$0xf]
      %v3262 = vld [vmem:[#allocation11 + $0x14] sm:$0xf]
      %v3263 = vld [vmem:[#allocation11 + $0x18] sm:$0xf]
      %v3264 = vld [vmem:[#allocation11 + $0x1c] sm:$0xf]
      %v3265 = vld [vmem:[#allocation11 + $0x20] sm:$0xf]
      %v3266 = vld [vmem:[#allocation11 + $0x24] sm:$0xf]
      %v3267 = vld [vmem:[#allocation11 + $0x28] sm:$0xf]
      %v3268 = vld [vmem:[#allocation11 + $0x2c] sm:$0xf]
      %v3269 = vld [vmem:[#allocation11 + $0x30] sm:$0xf]
      %v3270 = vld [vmem:[#allocation11 + $0x34] sm:$0xf]
      %v3271 = vld [vmem:[#allocation11 + $0x38] sm:$0xf]
      %v3272 = vld [vmem:[#allocation11 + $0x3c] sm:$0xf]
      %v3273 = vld [vmem:[%s8] sm:$0x1]
      %v3275 = vlaneseq
      %v3276 = vshrl.u32 %v3275, 7
      %v3277 = vsub.s32 0, %v3276
      %v3278 = vrot.slane %v3273, %v3277
      %v3296 = vunpack.c.l.b16 %v3257
      %v3297 = vunpack.c.l.b16 %v3258
      %v3298 = vunpack.c.l.b16 %v3259
      %v3299 = vunpack.c.l.b16 %v3260
      %v3300 = vunpack.c.l.b16 %v3261
      %v3301 = vunpack.c.l.b16 %v3262
      %v3302 = vunpack.c.l.b16 %v3263
      %v3303 = vunpack.c.l.b16 %v3264
      %v3304 = vunpack.c.l.b16 %v3265
      %v3305 = vunpack.c.l.b16 %v3266
      %v3306 = vunpack.c.l.b16 %v3267
      %v3307 = vunpack.c.l.b16 %v3268
      %v3308 = vunpack.c.l.b16 %v3269
      %v3309 = vunpack.c.l.b16 %v3270
      %v3310 = vunpack.c.l.b16 %v3271
      %v3311 = vunpack.c.l.b16 %v3272
      %v3312 = vpack.c.b16 %v3297, %v3296
      %v3313 = vpack.c.b16 %v3299, %v3298
      %v3314 = vpack.c.b16 %v3301, %v3300
      %v3315 = vpack.c.b16 %v3303, %v3302
      %v3316 = vpack.c.b16 %v3305, %v3304
      %v3317 = vpack.c.b16 %v3307, %v3306
      %v3318 = vpack.c.b16 %v3309, %v3308
      %v3319 = vpack.c.b16 %v3311, %v3310
      %3328 = vmatprep.subr.bf16.mxu0 0
      %3329 = vmatpush1.bf16.msra.mxu0 %v3312
      %3330 = vmatprep.subr.bf16.mxu0 0
      %3331 = vmatpush1.bf16.msra.mxu0 %v3313
      %3332 = vmatprep.subr.bf16.mxu0 0
      %3333 = vmatpush1.bf16.msra.mxu0 %v3314
      %3334 = vmatprep.subr.bf16.mxu0 0
      %3335 = vmatpush1.bf16.msra.mxu0 %v3315
      %3336 = vmatprep.subr.bf16.mxu0 0
      %3337 = vmatpush1.bf16.msra.mxu0 %v3316
      %3338 = vmatprep.subr.bf16.mxu0 0
      %3339 = vmatpush1.bf16.msra.mxu0 %v3317
      %3340 = vmatprep.subr.bf16.mxu0 0
      %3341 = vmatpush1.bf16.msra.mxu0 %v3318
      %3342 = vmatprep.subr.bf16.mxu0 0
      %3343 = vmatpush1.bf16.msra.mxu0 %v3319
      %3344 = vmatprep.subr.bf16.mxu0 0
      %3345 = vmatpush1.bf16.msra.mxu0 0
      %3346 = vmatprep.subr.bf16.mxu0 0
      %3347 = vmatpush1.bf16.msra.mxu0 0
      %3348 = vmatprep.subr.bf16.mxu0 0
      %3349 = vmatpush1.bf16.msra.mxu0 0
      %3350 = vmatprep.subr.bf16.mxu0 0
      %3351 = vmatpush1.bf16.msra.mxu0 0
      %3352 = vmatprep.subr.bf16.mxu0 0
      %3353 = vmatpush1.bf16.msra.mxu0 0
      %3354 = vmatprep.subr.bf16.mxu0 0
      %3355 = vmatpush1.bf16.msra.mxu0 0
      %3356 = vmatprep.subr.bf16.mxu0 0
      %3357 = vmatpush1.bf16.msra.mxu0 0
      %3358 = vmatprep.subr.bf16.mxu0 0
      %3359 = vmatpush1.bf16.msra.mxu0 0
      %3360 = vmatprep.mubr.bf16.mxu0 0
      %3361 = vmatmul.mubr.bf16.gmra.mrb[0].mxu0 %v3256
      %v3362 = vpop.f32.mrb[0].mxu0
      %v3363 = vadd.f32 %v3278, %v3362
      %v3364 = vpop.f32.mrb[0].mxu0
      %v3365 = vpop.f32.mrb[0].mxu0
      %v3366 = vadd.f32 %v3278, %v3365
      %v3367 = vpop.f32.mrb[0].mxu0
      %3368 = vdwg.mxu0
      %3369 = vst [vmem:[#allocation13] sm:$0xff] %v3363
      %3370 = vst [vmem:[#allocation13 + $0x8] sm:$0xff] %v3366
    $region61: #{tpu_custom_call.1} parent=1 // pred_fallthru
      _
    // Predicated region
    $region62: #{tpu_custom_call.1} parent=1 // pred_check
      _
    $region63: #{tpu_custom_call.1} parent=1 // pred_check_branch
      %3372 = sbr.rel (0) target = $region65
    $region64: #{tpu_custom_call.1} parent=1 // pred_region
      %s3374 = ssub.s32 256, 256
      %3375 = vsyncadd [#allocation7], %s3374
      %s3376 = sshll.u32 [#allocation13], 4
      %s3377 = int_to_ptr.vmem [resolvable:$true] %s3376
      %3382 = dma.vmem_to_hbm [thread:$0]  %s3377, 256, %s9, [#allocation7], 128, 128, 8
    $region65: #{tpu_custom_call.1} parent=1 // pred_fallthru
      _
    // Predicated region
    $region66: #{tpu_custom_call.1} parent=1 // pred_check
      _
    $region67: #{tpu_custom_call.1} parent=1 // pred_check_branch
      %3384 = sbr.rel (0) target = $region69
    $region68: #{tpu_custom_call.1} parent=1 // pred_region
      %3385 = dma.done [#allocation7], 256
    $region69: #{tpu_custom_call.1} parent=1 // pred_fallthru
      _
    %3386 = vsyncpa [#allocation6], 1
    %3387 = vsyncpa [#allocation9], 1
    %3388 = vsyncpa [#allocation12], 1
    %3389 = vsyncpa [#allocation7], 1

// kernel: tpu_custom_call.1
$region0: #{tpu_custom_call.1}
  #allocation0 [shape = 'u32[]', space=smem, size = 0x4, offset = 0x4, fixed_abs, tag = 'smem constant byte address 0x4 - core index']
  #allocation1 [shape = 'u32[144,128]{1,0:T(1,128)}', space=vmem, size = 0x12000, scoped, tag = 'internal scratch']
  #allocation2 [shape = 'f32[16,128]{1,0:T(8,128)}', space=vmem, size = 0x2000, scoped, tag = 'scratch operand']
  #allocation3 [shape = 's32[1]{0}', space=sflag, size = 0x4, scoped, tag = 'scoped memory for tpu_custom_call.1']
  #allocation4 [shape = 's32[1]{0:T(128)S(6)}', space=smem, size = 0x200, scoped, tag = 'prefetched SMEM operand 0']
  %s0 = inlined_call_operand.<no memory space> [shape: s32[1], index: 0, kind: input, shape index: {}]
  %s1 = inlined_call_operand.vmem [shape: s32[16,1], index: 1, kind: input, shape index: {}]
  %s2 = inlined_call_operand.hbm [shape: bf16[16,16,128], index: 2, kind: input, shape index: {}]
  %s3 = inlined_call_operand.hbm [shape: bf16[128,384], index: 3, kind: input, shape index: {}]
  %s4 = inlined_call_operand.hbm [shape: bf16[128,384], index: 4, kind: input, shape index: {}]
  %s5 = inlined_call_operand.vmem [shape: f32[1,384], index: 5, kind: input, shape index: {}]
  %s6 = inlined_call_operand.vmem [shape: f32[1,128], index: 6, kind: input, shape index: {}]
  %s7 = inlined_call_operand.hbm [shape: bf16[128,128], index: 7, kind: input, shape index: {}]
  %s8 = inlined_call_operand.vmem [shape: f32[1,128], index: 8, kind: input, shape index: {}]
  %s9 = inlined_call_operand.hbm [shape: f32[16,128], index: 9, kind: output, shape index: {}]
  %s10 = sld [smem:[#allocation0]]
  $region70: #{tpu_custom_call.1} parent=0
    _
  %s12 = ssub.s32 1, %s10
  %s13 = scalar_select 0, %s12, %s10
  %14 = sst [smem:[#allocation4]] %s0
  $region1: #{tpu_custom_call.1} parent=0
    #allocation5 [shape = 'u8[65536]{0}', space=vmem, size = 0x10000, scoped, tag = 'input window, operand 2, single buffered']
    #allocation6 [shape = 's32[1]{0}', space=sflag, size = 0x4, scoped, tag = 'scoped memory for tpu_custom_call.1']
    #allocation7 [shape = 's32[1]{0}', space=sflag, size = 0x4, scoped, tag = 'scoped memory for tpu_custom_call.1']
    #allocation8 [shape = 'u8[98304]{0}', space=vmem, size = 0x18000, scoped, tag = 'input window, operand 3, single buffered']
    #allocation9 [shape = 's32[1]{0}', space=sflag, size = 0x4, scoped, tag = 'scoped memory for tpu_custom_call.1']
    #allocation10 [shape = 'u8[98304]{0}', space=vmem, size = 0x18000, scoped, tag = 'input window, operand 4, single buffered']
    #allocation11 [shape = 'u8[32768]{0}', space=vmem, size = 0x8000, scoped, tag = 'input window, operand 7, single buffered']
    #allocation12 [shape = 's32[1]{0}', space=sflag, size = 0x4, scoped, tag = 'scoped memory for tpu_custom_call.1']
    #allocation13 [shape = 'u8[8192]{0}', space=vmem, size = 0x2000, scoped, tag = 'output window, operand 0, single buffered']
    %15 = vsyncpa [#allocation6], 0
    %16 = vsyncpa [#allocation9], 0
    %17 = vsyncpa [#allocation12], 0
    %18 = vsyncpa [#allocation7], 0
    // Predicated region
    $region2: #{tpu_custom_call.1} parent=1 // pred_check
      _
    $region3: #{tpu_custom_call.1} parent=1 // pred_check_branch
      %20 = sbr.rel (0) target = $region5
    $region4: #{tpu_custom_call.1} parent=1 // pred_region
      _
    $region5: #{tpu_custom_call.1} parent=1 // pred_fallthru
      _
    // Predicated region
    $region6: #{tpu_custom_call.1} parent=1 // pred_check
      _
    $region7: #{tpu_custom_call.1} parent=1 // pred_check_branch
      %22 = sbr.rel (0) target = $region9
    $region8: #{tpu_custom_call.1} parent=1 // pred_region
      %s24 = ssub.s32 2048, 2048
      %25 = vsyncadd [#allocation6], %s24
      %s26 = sshll.u32 [#allocation5], 4
      %s27 = int_to_ptr.vmem [resolvable:$true] %s26
      %32 = dma.hbm_to_vmem [thread:$0]  %s2, 2048, %s27, [#allocation6], 64, 64, 4
    $region9: #{tpu_custom_call.1} parent=1 // pred_fallthru
      _
    // Predicated region
    $region10: #{tpu_custom_call.1} parent=1 // pred_check
      _
    $region11: #{tpu_custom_call.1} parent=1 // pred_check_branch
      %34 = sbr.rel (0) target = $region13
    $region12: #{tpu_custom_call.1} parent=1 // pred_region
      %s36 = ssub.s32 3072, 3072
      %37 = vsyncadd [#allocation9], %s36
      %s38 = sshll.u32 [#allocation8], 4
      %s39 = int_to_ptr.vmem [resolvable:$true] %s38
      %44 = dma.hbm_to_vmem [thread:$0]  %s3, 3072, %s39, [#allocation9], 192, 192, 12
    $region13: #{tpu_custom_call.1} parent=1 // pred_fallthru
      _
    // Predicated region
    $region14: #{tpu_custom_call.1} parent=1 // pred_check
      _
    $region15: #{tpu_custom_call.1} parent=1 // pred_check_branch
      %46 = sbr.rel (0) target = $region17
    $region16: #{tpu_custom_call.1} parent=1 // pred_region
      %s48 = ssub.s32 3072, 3072
      %49 = vsyncadd [#allocation9], %s48
      %s50 = sshll.u32 [#allocation10], 4
      %s51 = int_to_ptr.vmem [resolvable:$true] %s50
      %56 = dma.hbm_to_vmem [thread:$0]  %s4, 3072, %s51, [#allocation9], 192, 192, 12
    $region17: #{tpu_custom_call.1} parent=1 // pred_fallthru
      _
    // Predicated region
    $region18: #{tpu_custom_call.1} parent=1 // pred_check
      _
    $region19: #{tpu_custom_call.1} parent=1 // pred_check_branch
      %58 = sbr.rel (0) target = $region21
    $region20: #{tpu_custom_call.1} parent=1 // pred_region
      _
    $region21: #{tpu_custom_call.1} parent=1 // pred_fallthru
      _
    // Predicated region
    $region22: #{tpu_custom_call.1} parent=1 // pred_check
      _
    $region23: #{tpu_custom_call.1} parent=1 // pred_check_branch
      %60 = sbr.rel (0) target = $region25
    $region24: #{tpu_custom_call.1} parent=1 // pred_region
      _
    $region25: #{tpu_custom_call.1} parent=1 // pred_fallthru
      _
    // Predicated region
    $region26: #{tpu_custom_call.1} parent=1 // pred_check
      _
    $region27: #{tpu_custom_call.1} parent=1 // pred_check_branch
      %62 = sbr.rel (0) target = $region29
    $region28: #{tpu_custom_call.1} parent=1 // pred_region
      %s64 = ssub.s32 1024, 1024
      %65 = vsyncadd [#allocation12], %s64
      %s66 = sshll.u32 [#allocation11], 4
      %s67 = int_to_ptr.vmem [resolvable:$true] %s66
      %72 = dma.hbm_to_vmem [thread:$0]  %s7, 1024, %s67, [#allocation12], 64, 64, 4
    $region29: #{tpu_custom_call.1} parent=1 // pred_fallthru
      _
    // Predicated region
    $region30: #{tpu_custom_call.1} parent=1 // pred_check
      _
    $region31: #{tpu_custom_call.1} parent=1 // pred_check_branch
      %74 = sbr.rel (0) target = $region33
    $region32: #{tpu_custom_call.1} parent=1 // pred_region
      _
    $region33: #{tpu_custom_call.1} parent=1 // pred_fallthru
      _
    // Predicated region
    $region34: #{tpu_custom_call.1} parent=1 // pred_check
      _
    $region35: #{tpu_custom_call.1} parent=1 // pred_check_branch
      %76 = sbr.rel (0) target = $region37
    $region36: #{tpu_custom_call.1} parent=1 // pred_region
      %77 = dma.done [#allocation6], 2048
    $region37: #{tpu_custom_call.1} parent=1 // pred_fallthru
      _
    // Predicated region
    $region38: #{tpu_custom_call.1} parent=1 // pred_check
      _
    $region39: #{tpu_custom_call.1} parent=1 // pred_check_branch
      %79 = sbr.rel (0) target = $region41
    $region40: #{tpu_custom_call.1} parent=1 // pred_region
      %80 = dma.done [#allocation9], 3072
    $region41: #{tpu_custom_call.1} parent=1 // pred_fallthru
      _
    // Predicated region
    $region42: #{tpu_custom_call.1} parent=1 // pred_check
      _
    $region43: #{tpu_custom_call.1} parent=1 // pred_check_branch
      %82 = sbr.rel (0) target = $region45
    $region44: #{tpu_custom_call.1} parent=1 // pred_region
      %83 = dma.done [#allocation9], 3072
    $region45: #{tpu_custom_call.1} parent=1 // pred_fallthru
      _
    // Predicated region
    $region46: #{tpu_custom_call.1} parent=1 // pred_check
      _
    $region47: #{tpu_custom_call.1} parent=1 // pred_check_branch
      %85 = sbr.rel (0) target = $region49
    $region48: #{tpu_custom_call.1} parent=1 // pred_region
      %86 = dma.done [#allocation12], 1024
    $region49: #{tpu_custom_call.1} parent=1 // pred_fallthru
      _
    %p88 = scmp.eq.s32.totalorder 0, 0
    // Predicated region
    $region50: #{tpu_custom_call.1} parent=1 // pred_check
      %p89 = pneg %p88
    $region51: #{tpu_custom_call.1} parent=1 // pred_check_branch
      %91 = sbr.rel (%p89) target = $region53
    $region52: #{tpu_custom_call.1} parent=1 // pred_region
      %92 = vst [vmem:[#allocation2] sm:$0xff] 0.0
      %93 = vst [vmem:[#allocation2 + $0x8] sm:$0xff] 0.0
    $region53: #{tpu_custom_call.1} parent=1 // pred_fallthru
      _
    %s94 = sld [smem:[#allocation4]]
    %p95 = scmp.lt.s32.totalorder 0, %s94
    // Predicated region
    $region54: #{tpu_custom_call.1} parent=1 // pred_check
      %p96 = pneg %p95
    $region55: #{tpu_custom_call.1} parent=1 // pred_check_branch
      %98 = sbr.rel (%p96) target = $region57
    $region56: #{tpu_custom_call.1} parent=1 // pred_region
      %v99 = vld [vmem:[#allocation5] sm:$0xf]
      %v100 = vld [vmem:[#allocation5 + $0x4] sm:$0xf]
      %v101 = vld [vmem:[#allocation5 + $0x8] sm:$0xf]
      %v102 = vld [vmem:[#allocation5 + $0xc] sm:$0xf]
      %v103 = vld [vmem:[#allocation5 + $0x10] sm:$0xf]
      %v104 = vld [vmem:[#allocation5 + $0x14] sm:$0xf]
      %v105 = vld [vmem:[#allocation5 + $0x18] sm:$0xf]
      %v106 = vld [vmem:[#allocation5 + $0x1c] sm:$0xf]
      %v107 = vld [vmem:[#allocation5 + $0x20] sm:$0xf]
      %v108 = vld [vmem:[#allocation5 + $0x24] sm:$0xf]
      %v109 = vld [vmem:[#allocation5 + $0x28] sm:$0xf]
      %v110 = vld [vmem:[#allocation5 + $0x2c] sm:$0xf]
      %v111 = vld [vmem:[#allocation5 + $0x30] sm:$0xf]
      %v112 = vld [vmem:[#allocation5 + $0x34] sm:$0xf]
      %v113 = vld [vmem:[#allocation5 + $0x38] sm:$0xf]
      %v114 = vld [vmem:[#allocation5 + $0x3c] sm:$0xf]
      %v115 = vld [vmem:[#allocation5 + $0x40] sm:$0xf]
      %v116 = vld [vmem:[#allocation5 + $0x44] sm:$0xf]
      %v117 = vld [vmem:[#allocation5 + $0x48] sm:$0xf]
      %v118 = vld [vmem:[#allocation5 + $0x4c] sm:$0xf]
      %v119 = vld [vmem:[#allocation5 + $0x50] sm:$0xf]
      %v120 = vld [vmem:[#allocation5 + $0x54] sm:$0xf]
      %v121 = vld [vmem:[#allocation5 + $0x58] sm:$0xf]
      %v122 = vld [vmem:[#allocation5 + $0x5c] sm:$0xf]
      %v123 = vld [vmem:[#allocation5 + $0x60] sm:$0xf]
      %v124 = vld [vmem:[#allocation5 + $0x64] sm:$0xf]
      %v125 = vld [vmem:[#allocation5 + $0x68] sm:$0xf]
      %v126 = vld [vmem:[#allocation5 + $0x6c] sm:$0xf]
      %v127 = vld [vmem:[#allocation5 + $0x70] sm:$0xf]
      %v128 = vld [vmem:[#allocation5 + $0x74] sm:$0xf]
      %v129 = vld [vmem:[#allocation5 + $0x78] sm:$0xf]
      %v130 = vld [vmem:[#allocation5 + $0x7c] sm:$0xf]
      %v131 = vld [vmem:[#allocation8] sm:$0xff]
      %v132 = vld [vmem:[#allocation8 + $0x8] sm:$0xf]
      %v133 = vld [vmem:[#allocation8 + $0xc] sm:$0xff]
      %v134 = vld [vmem:[#allocation8 + $0x14] sm:$0xf]
      %v135 = vld [vmem:[#allocation8 + $0x18] sm:$0xff]
      %v136 = vld [vmem:[#allocation8 + $0x20] sm:$0xf]
      %v137 = vld [vmem:[#allocation8 + $0x24] sm:$0xff]
      %v138 = vld [vmem:[#allocation8 + $0x2c] sm:$0xf]
      %v139 = vld [vmem:[#allocation8 + $0x30] sm:$0xff]
      %v140 = vld [vmem:[#allocation8 + $0x38] sm:$0xf]
      %v141 = vld [vmem:[#allocation8 + $0x3c] sm:$0xff]
      %v142 = vld [vmem:[#allocation8 + $0x44] sm:$0xf]
      %v143 = vld [vmem:[#allocation8 + $0x48] sm:$0xff]
      %v144 = vld [vmem:[#allocation8 + $0x50] sm:$0xf]
      %v145 = vld [vmem:[#allocation8 + $0x54] sm:$0xff]
      %v146 = vld [vmem:[#allocation8 + $0x5c] sm:$0xf]
      %v147 = vld [vmem:[#allocation8 + $0x60] sm:$0xff]
      %v148 = vld [vmem:[#allocation8 + $0x68] sm:$0xf]
      %v149 = vld [vmem:[#allocation8 + $0x6c] sm:$0xff]
      %v150 = vld [vmem:[#allocation8 + $0x74] sm:$0xf]
      %v151 = vld [vmem:[#allocation8 + $0x78] sm:$0xff]
      %v152 = vld [vmem:[#allocation8 + $0x80] sm:$0xf]
      %v153 = vld [vmem:[#allocation8 + $0x84] sm:$0xff]
      %v154 = vld [vmem:[#allocation8 + $0x8c] sm:$0xf]
      %v155 = vld [vmem:[#allocation8 + $0x90] sm:$0xff]
      %v156 = vld [vmem:[#allocation8 + $0x98] sm:$0xf]
      %v157 = vld [vmem:[#allocation8 + $0x9c] sm:$0xff]
      %v158 = vld [vmem:[#allocation8 + $0xa4] sm:$0xf]
      %v159 = vld [vmem:[#allocation8 + $0xa8] sm:$0xff]
      %v160 = vld [vmem:[#allocation8 + $0xb0] sm:$0xf]
      %v161 = vld [vmem:[#allocation8 + $0xb4] sm:$0xff]
      %v162 = vld [vmem:[#allocation8 + $0xbc] sm:$0xf]
      %v163 = vld [vmem:[%s5] sm:$0x7]
      %v165 = vlaneseq
      %v166 = vshrl.u32 %v165, 7
      %v167 = vsub.s32 0, %v166
      %v168 = vrot.slane %v163, %v167
      %v169 = vlaneseq
      %v170 = vshrl.u32 %v169, 7
      %v171 = vsub.s32 1, %v170
      %v172 = vrot.slane %v163, %v171
      %v173 = vlaneseq
      %v174 = vshrl.u32 %v173, 7
      %v175 = vsub.s32 2, %v174
      %v176 = vrot.slane %v163, %v175
      %v212 = vunpack.c.l.b16 %v99
      %v213 = vunpack.c.l.b16 %v100
      %v214 = vunpack.c.l.b16 %v101
      %v215 = vunpack.c.l.b16 %v102
      %v216 = vunpack.c.l.b16 %v103
      %v217 = vunpack.c.l.b16 %v104
      %v218 = vunpack.c.l.b16 %v105
      %v219 = vunpack.c.l.b16 %v106
      %v220 = vunpack.c.l.b16 %v107
      %v221 = vunpack.c.l.b16 %v108
      %v222 = vunpack.c.l.b16 %v109
      %v223 = vunpack.c.l.b16 %v110
      %v224 = vunpack.c.l.b16 %v111
      %v225 = vunpack.c.l.b16 %v112
      %v226 = vunpack.c.l.b16 %v113
      %v227 = vunpack.c.l.b16 %v114
      %v228 = vunpack.c.l.b16 %v115
      %v229 = vunpack.c.l.b16 %v116
      %v230 = vunpack.c.l.b16 %v117
      %v231 = vunpack.c.l.b16 %v118
      %v232 = vunpack.c.l.b16 %v119
      %v233 = vunpack.c.l.b16 %v120
      %v234 = vunpack.c.l.b16 %v121
      %v235 = vunpack.c.l.b16 %v122
      %v236 = vunpack.c.l.b16 %v123
      %v237 = vunpack.c.l.b16 %v124
      %v238 = vunpack.c.l.b16 %v125
      %v239 = vunpack.c.l.b16 %v126
      %v240 = vunpack.c.l.b16 %v127
      %v241 = vunpack.c.l.b16 %v128
      %v242 = vunpack.c.l.b16 %v129
      %v243 = vunpack.c.l.b16 %v130
      %v244 = vpack.c.b16 %v213, %v212
      %v245 = vpack.c.b16 %v215, %v214
      %v246 = vpack.c.b16 %v217, %v216
      %v247 = vpack.c.b16 %v219, %v218
      %v248 = vpack.c.b16 %v221, %v220
      %v249 = vpack.c.b16 %v223, %v222
      %v250 = vpack.c.b16 %v225, %v224
      %v251 = vpack.c.b16 %v227, %v226
      %v252 = vpack.c.b16 %v229, %v228
      %v253 = vpack.c.b16 %v231, %v230
      %v254 = vpack.c.b16 %v233, %v232
      %v255 = vpack.c.b16 %v235, %v234
      %v256 = vpack.c.b16 %v237, %v236
      %v257 = vpack.c.b16 %v239, %v238
      %v258 = vpack.c.b16 %v241, %v240
      %v259 = vpack.c.b16 %v243, %v242
      %v308 = vunpack.c.l.b16 %v131
      %v309 = vunpack.c.h.b16 %v131
      %v310 = vunpack.c.l.b16 %v132
      %v311 = vunpack.c.l.b16 %v133
      %v312 = vunpack.c.h.b16 %v133
      %v313 = vunpack.c.l.b16 %v134
      %v314 = vunpack.c.l.b16 %v135
      %v315 = vunpack.c.h.b16 %v135
      %v316 = vunpack.c.l.b16 %v136
      %v317 = vunpack.c.l.b16 %v137
      %v318 = vunpack.c.h.b16 %v137
      %v319 = vunpack.c.l.b16 %v138
      %v320 = vunpack.c.l.b16 %v139
      %v321 = vunpack.c.h.b16 %v139
      %v322 = vunpack.c.l.b16 %v140
      %v323 = vunpack.c.l.b16 %v141
      %v324 = vunpack.c.h.b16 %v141
      %v325 = vunpack.c.l.b16 %v142
      %v326 = vunpack.c.l.b16 %v143
      %v327 = vunpack.c.h.b16 %v143
      %v328 = vunpack.c.l.b16 %v144
      %v329 = vunpack.c.l.b16 %v145
      %v330 = vunpack.c.h.b16 %v145
      %v331 = vunpack.c.l.b16 %v146
      %v332 = vunpack.c.l.b16 %v147
      %v333 = vunpack.c.h.b16 %v147
      %v334 = vunpack.c.l.b16 %v148
      %v335 = vunpack.c.l.b16 %v149
      %v336 = vunpack.c.h.b16 %v149
      %v337 = vunpack.c.l.b16 %v150
      %v338 = vunpack.c.l.b16 %v151
      %v339 = vunpack.c.h.b16 %v151
      %v340 = vunpack.c.l.b16 %v152
      %v341 = vunpack.c.l.b16 %v153
      %v342 = vunpack.c.h.b16 %v153
      %v343 = vunpack.c.l.b16 %v154
      %v344 = vunpack.c.l.b16 %v155
      %v345 = vunpack.c.h.b16 %v155
      %v346 = vunpack.c.l.b16 %v156
      %v347 = vunpack.c.l.b16 %v157
      %v348 = vunpack.c.h.b16 %v157
      %v349 = vunpack.c.l.b16 %v158
      %v350 = vunpack.c.l.b16 %v159
      %v351 = vunpack.c.h.b16 %v159
      %v352 = vunpack.c.l.b16 %v160
      %v353 = vunpack.c.l.b16 %v161
      %v354 = vunpack.c.h.b16 %v161
      %v355 = vunpack.c.l.b16 %v162
      %v356 = vpack.c.b16 %v311, %v308
      %v357 = vpack.c.b16 %v312, %v309
      %v358 = vpack.c.b16 %v313, %v310
      %v359 = vpack.c.b16 %v317, %v314
      %v360 = vpack.c.b16 %v318, %v315
      %v361 = vpack.c.b16 %v319, %v316
      %v362 = vpack.c.b16 %v323, %v320
      %v363 = vpack.c.b16 %v324, %v321
      %v364 = vpack.c.b16 %v325, %v322
      %v365 = vpack.c.b16 %v329, %v326
      %v366 = vpack.c.b16 %v330, %v327
      %v367 = vpack.c.b16 %v331, %v328
      %v368 = vpack.c.b16 %v335, %v332
      %v369 = vpack.c.b16 %v336, %v333
      %v370 = vpack.c.b16 %v337, %v334
      %v371 = vpack.c.b16 %v341, %v338
      %v372 = vpack.c.b16 %v342, %v339
      %v373 = vpack.c.b16 %v343, %v340
      %v374 = vpack.c.b16 %v347, %v344
      %v375 = vpack.c.b16 %v348, %v345
      %v376 = vpack.c.b16 %v349, %v346
      %v377 = vpack.c.b16 %v353, %v350
      %v378 = vpack.c.b16 %v354, %v351
      %v379 = vpack.c.b16 %v355, %v352
      %404 = vmatprep.subr.bf16.mxu0 %v357
      %405 = vmatpush1.bf16.msra.mxu0 %v356
      %406 = vmatprep.subr.bf16.mxu0 %v360
      %407 = vmatpush1.bf16.msra.mxu0 %v359
      %408 = vmatprep.subr.bf16.mxu0 %v363
      %409 = vmatpush1.bf16.msra.mxu0 %v362
      %410 = vmatprep.subr.bf16.mxu0 %v366
      %411 = vmatpush1.bf16.msra.mxu0 %v365
      %412 = vmatprep.subr.bf16.mxu0 %v369
      %413 = vmatpush1.bf16.msra.mxu0 %v368
      %414 = vmatprep.subr.bf16.mxu0 %v372
      %415 = vmatpush1.bf16.msra.mxu0 %v371
      %416 = vmatprep.subr.bf16.mxu0 %v375
      %417 = vmatpush1.bf16.msra.mxu0 %v374
      %418 = vmatprep.subr.bf16.mxu0 %v378
      %419 = vmatpush1.bf16.msra.mxu0 %v377
      %420 = vmatprep.subr.bf16.mxu0 0
      %421 = vmatpush1.bf16.msra.mxu0 0
      %422 = vmatprep.subr.bf16.mxu0 0
      %423 = vmatpush1.bf16.msra.mxu0 0
      %424 = vmatprep.subr.bf16.mxu0 0
      %425 = vmatpush1.bf16.msra.mxu0 0
      %426 = vmatprep.subr.bf16.mxu0 0
      %427 = vmatpush1.bf16.msra.mxu0 0
      %428 = vmatprep.subr.bf16.mxu0 0
      %429 = vmatpush1.bf16.msra.mxu0 0
      %430 = vmatprep.subr.bf16.mxu0 0
      %431 = vmatpush1.bf16.msra.mxu0 0
      %432 = vmatprep.subr.bf16.mxu0 0
      %433 = vmatpush1.bf16.msra.mxu0 0
      %434 = vmatprep.subr.bf16.mxu0 0
      %435 = vmatpush1.bf16.msra.mxu0 0
      %436 = vmatprep.mubr.bf16.mxu0 0
      %437 = vmatmul.mubr.bf16.gmra.mrb[0].mxu0 %v244
      %v438 = vpop.f32.mrb[0].mxu0
      %v439 = vadd.f32 %v168, %v438
      %v440 = vpop.f32.mrb[0].mxu0
      %v441 = vadd.f32 %v172, %v440
      %v442 = vpop.f32.mrb[0].mxu0
      %v443 = vadd.f32 %v168, %v442
      %v444 = vpop.f32.mrb[0].mxu0
      %v445 = vadd.f32 %v172, %v444
      %446 = vmatprep.mubr.bf16.mxu0 0
      %447 = vmatmul.mubr.bf16.gmra.mrb[0].mxu0 %v245
      %v448 = vpop.f32.mrb[0].mxu0
      %v449 = vadd.f32 %v168, %v448
      %v450 = vpop.f32.mrb[0].mxu0
      %v451 = vadd.f32 %v172, %v450
      %v452 = vpop.f32.mrb[0].mxu0
      %v453 = vadd.f32 %v168, %v452
      %v454 = vpop.f32.mrb[0].mxu0
      %v455 = vadd.f32 %v172, %v454
      %456 = vmatprep.mubr.bf16.mxu0 0
      %457 = vmatmul.mubr.bf16.gmra.mrb[0].mxu0 %v246
      %v458 = vpop.f32.mrb[0].mxu0
      %v459 = vadd.f32 %v168, %v458
      %v460 = vpop.f32.mrb[0].mxu0
      %v461 = vadd.f32 %v172, %v460
      %v462 = vpop.f32.mrb[0].mxu0
      %v463 = vadd.f32 %v168, %v462
      %v464 = vpop.f32.mrb[0].mxu0
      %v465 = vadd.f32 %v172, %v464
      %466 = vmatprep.mubr.bf16.mxu0 0
      %467 = vmatmul.mubr.bf16.gmra.mrb[0].mxu0 %v247
      %v468 = vpop.f32.mrb[0].mxu0
      %v469 = vadd.f32 %v168, %v468
      %v470 = vpop.f32.mrb[0].mxu0
      %v471 = vadd.f32 %v172, %v470
      %v472 = vpop.f32.mrb[0].mxu0
      %v473 = vadd.f32 %v168, %v472
      %v474 = vpop.f32.mrb[0].mxu0
      %v475 = vadd.f32 %v172, %v474
      %476 = vmatprep.mubr.bf16.mxu0 0
      %477 = vmatmul.mubr.bf16.gmra.mrb[0].mxu0 %v248
      %v478 = vpop.f32.mrb[0].mxu0
      %v479 = vadd.f32 %v168, %v478
      %v480 = vpop.f32.mrb[0].mxu0
      %v481 = vadd.f32 %v172, %v480
      %v482 = vpop.f32.mrb[0].mxu0
      %v483 = vadd.f32 %v168, %v482
      %v484 = vpop.f32.mrb[0].mxu0
      %v485 = vadd.f32 %v172, %v484
      %486 = vmatprep.mubr.bf16.mxu0 0
      %487 = vmatmul.mubr.bf16.gmra.mrb[0].mxu0 %v249
      %v488 = vpop.f32.mrb[0].mxu0
      %v489 = vadd.f32 %v168, %v488
      %v490 = vpop.f32.mrb[0].mxu0
      %v491 = vadd.f32 %v172, %v490
      %v492 = vpop.f32.mrb[0].mxu0
      %v493 = vadd.f32 %v168, %v492
      %v494 = vpop.f32.mrb[0].mxu0
      %v495 = vadd.f32 %v172, %v494
      %496 = vmatprep.mubr.bf16.mxu0 0
      %497 = vmatmul.mubr.bf16.gmra.mrb[0].mxu0 %v250
      %v498 = vpop.f32.mrb[0].mxu0
      %v499 = vadd.f32 %v168, %v498
      %v500 = vpop.f32.mrb[0].mxu0
      %v501 = vadd.f32 %v172, %v500
      %v502 = vpop.f32.mrb[0].mxu0
      %v503 = vadd.f32 %v168, %v502
      %v504 = vpop.f32.mrb[0].mxu0
      %v505 = vadd.f32 %v172, %v504
      %506 = vmatprep.mubr.bf16.mxu0 0
      %507 = vmatmul.mubr.bf16.gmra.mrb[0].mxu0 %v251
      %v508 = vpop.f32.mrb[0].mxu0
      %v509 = vadd.f32 %v168, %v508
      %v510 = vpop.f32.mrb[0].mxu0
      %v511 = vadd.f32 %v172, %v510
      %v512 = vpop.f32.mrb[0].mxu0
      %v513 = vadd.f32 %v168, %v512
      %v514 = vpop.f32.mrb[0].mxu0
      %v515 = vadd.f32 %v172, %v514
      %516 = vmatprep.mubr.bf16.mxu0 0
      %517 = vmatmul.mubr.bf16.gmra.mrb[0].mxu0 %v252
      %v518 = vpop.f32.mrb[0].mxu0
      %v519 = vadd.f32 %v168, %v518
      %v520 = vpop.f32.mrb[0].mxu0
      %v521 = vadd.f32 %v172, %v520
      %v522 = vpop.f32.mrb[0].mxu0
      %v523 = vadd.f32 %v168, %v522
      %v524 = vpop.f32.mrb[0].mxu0
      %v525 = vadd.f32 %v172, %v524
      %526 = vmatprep.mubr.bf16.mxu0 0
      %527 = vmatmul.mubr.bf16.gmra.mrb[0].mxu0 %v253
      %v528 = vpop.f32.mrb[0].mxu0
      %v529 = vadd.f32 %v168, %v528
      %v530 = vpop.f32.mrb[0].mxu0
      %v531 = vadd.f32 %v172, %v530
      %v532 = vpop.f32.mrb[0].mxu0
      %v533 = vadd.f32 %v168, %v532
      %v534 = vpop.f32.mrb[0].mxu0
      %v535 = vadd.f32 %v172, %v534
      %536 = vmatprep.mubr.bf16.mxu0 0
      %537 = vmatmul.mubr.bf16.gmra.mrb[0].mxu0 %v254
      %v538 = vpop.f32.mrb[0].mxu0
      %v539 = vadd.f32 %v168, %v538
      %v540 = vpop.f32.mrb[0].mxu0
      %v541 = vadd.f32 %v172, %v540
      %v542 = vpop.f32.mrb[0].mxu0
      %v543 = vadd.f32 %v168, %v542
      %v544 = vpop.f32.mrb[0].mxu0
      %v545 = vadd.f32 %v172, %v544
      %546 = vmatprep.mubr.bf16.mxu0 0
      %547 = vmatmul.mubr.bf16.gmra.mrb[0].mxu0 %v255
      %v548 = vpop.f32.mrb[0].mxu0
      %v549 = vadd.f32 %v168, %v548
      %v550 = vpop.f32.mrb[0].mxu0
      %v551 = vadd.f32 %v172, %v550
      %v552 = vpop.f32.mrb[0].mxu0
      %v553 = vadd.f32 %v168, %v552
      %v554 = vpop.f32.mrb[0].mxu0
      %v555 = vadd.f32 %v172, %v554
      %556 = vmatprep.mubr.bf16.mxu0 0
      %557 = vmatmul.mubr.bf16.gmra.mrb[0].mxu0 %v256
      %v558 = vpop.f32.mrb[0].mxu0
      %v559 = vadd.f32 %v168, %v558
      %v560 = vpop.f32.mrb[0].mxu0
      %v561 = vadd.f32 %v172, %v560
      %v562 = vpop.f32.mrb[0].mxu0
      %v563 = vadd.f32 %v168, %v562
      %v564 = vpop.f32.mrb[0].mxu0
      %v565 = vadd.f32 %v172, %v564
      %566 = vmatprep.mubr.bf16.mxu0 0
      %567 = vmatmul.mubr.bf16.gmra.mrb[0].mxu0 %v257
      %v568 = vpop.f32.mrb[0].mxu0
      %v569 = vadd.f32 %v168, %v568
      %v570 = vpop.f32.mrb[0].mxu0
      %v571 = vadd.f32 %v172, %v570
      %v572 = vpop.f32.mrb[0].mxu0
      %v573 = vadd.f32 %v168, %v572
      %v574 = vpop.f32.mrb[0].mxu0
      %v575 = vadd.f32 %v172, %v574
      %576 = vmatprep.mubr.bf16.mxu0 0
      %577 = vmatmul.mubr.bf16.gmra.mrb[0].mxu0 %v258
      %v578 = vpop.f32.mrb[0].mxu0
      %v579 = vadd.f32 %v168, %v578
      %v580 = vpop.f32.mrb[0].mxu0
      %v581 = vadd.f32 %v172, %v580
      %v582 = vpop.f32.mrb[0].mxu0
      %v583 = vadd.f32 %v168, %v582
      %v584 = vpop.f32.mrb[0].mxu0
      %v585 = vadd.f32 %v172, %v584
      %586 = vmatprep.mubr.bf16.mxu0 0
      %587 = vmatmul.mubr.bf16.gmra.mrb[0].mxu0 %v259
      %v588 = vpop.f32.mrb[0].mxu0
      %v589 = vadd.f32 %v168, %v588
      %v590 = vpop.f32.mrb[0].mxu0
      %v591 = vadd.f32 %v172, %v590
      %v592 = vpop.f32.mrb[0].mxu0
      %v593 = vadd.f32 %v168, %v592
      %v594 = vpop.f32.mrb[0].mxu0
      %v595 = vadd.f32 %v172, %v594
      %596 = vdwg.mxu0
      %597 = vmatprep.subr.bf16.mxu0 0
      %598 = vmatpush1.bf16.msra.mxu0 %v358
      %599 = vmatprep.subr.bf16.mxu0 0
      %600 = vmatpush1.bf16.msra.mxu0 %v361
      %601 = vmatprep.subr.bf16.mxu0 0
      %602 = vmatpush1.bf16.msra.mxu0 %v364
      %603 = vmatprep.subr.bf16.mxu0 0
      %604 = vmatpush1.bf16.msra.mxu0 %v367
      %605 = vmatprep.subr.bf16.mxu0 0
      %606 = vmatpush1.bf16.msra.mxu0 %v370
      %607 = vmatprep.subr.bf16.mxu0 0
      %608 = vmatpush1.bf16.msra.mxu0 %v373
      %609 = vmatprep.subr.bf16.mxu0 0
      %610 = vmatpush1.bf16.msra.mxu0 %v376
      %611 = vmatprep.subr.bf16.mxu0 0
      %612 = vmatpush1.bf16.msra.mxu0 %v379
      %613 = vmatprep.subr.bf16.mxu0 0
      %614 = vmatpush1.bf16.msra.mxu0 0
      %615 = vmatprep.subr.bf16.mxu0 0
      %616 = vmatpush1.bf16.msra.mxu0 0
      %617 = vmatprep.subr.bf16.mxu0 0
      %618 = vmatpush1.bf16.msra.mxu0 0
      %619 = vmatprep.subr.bf16.mxu0 0
      %620 = vmatpush1.bf16.msra.mxu0 0
      %621 = vmatprep.subr.bf16.mxu0 0
      %622 = vmatpush1.bf16.msra.mxu0 0
      %623 = vmatprep.subr.bf16.mxu0 0
      %624 = vmatpush1.bf16.msra.mxu0 0
      %625 = vmatprep.subr.bf16.mxu0 0
      %626 = vmatpush1.bf16.msra.mxu0 0
      %627 = vmatprep.subr.bf16.mxu0 0
      %628 = vmatpush1.bf16.msra.mxu0 0
      %629 = vmatprep.mubr.bf16.mxu0 0
      %630 = vmatmul.mubr.bf16.gmra.mrb[0].mxu0 %v244
      %v631 = vpop.f32.mrb[0].mxu0
      %v632 = vadd.f32 %v176, %v631
      %v633 = vpop.f32.mrb[0].mxu0
      %v634 = vpop.f32.mrb[0].mxu0
      %v635 = vadd.f32 %v176, %v634
      %v636 = vpop.f32.mrb[0].mxu0
      %637 = vmatprep.mubr.bf16.mxu0 0
      %638 = vmatmul.mubr.bf16.gmra.mrb[0].mxu0 %v245
      %v639 = vpop.f32.mrb[0].mxu0
      %v640 = vadd.f32 %v176, %v639
      %v641 = vpop.f32.mrb[0].mxu0
      %v642 = vpop.f32.mrb[0].mxu0
      %v643 = vadd.f32 %v176, %v642
      %v644 = vpop.f32.mrb[0].mxu0
      %645 = vmatprep.mubr.bf16.mxu0 0
      %646 = vmatmul.mubr.bf16.gmra.mrb[0].mxu0 %v246
      %v647 = vpop.f32.mrb[0].mxu0
      %v648 = vadd.f32 %v176, %v647
      %v649 = vpop.f32.mrb[0].mxu0
      %v650 = vpop.f32.mrb[0].mxu0
      %v651 = vadd.f32 %v176, %v650
      %v652 = vpop.f32.mrb[0].mxu0
      %653 = vmatprep.mubr.bf16.mxu0 0
      %654 = vmatmul.mubr.bf16.gmra.mrb[0].mxu0 %v247
      %v655 = vpop.f32.mrb[0].mxu0
      %v656 = vadd.f32 %v176, %v655
      %v657 = vpop.f32.mrb[0].mxu0
      %v658 = vpop.f32.mrb[0].mxu0
      %v659 = vadd.f32 %v176, %v658
      %v660 = vpop.f32.mrb[0].mxu0
      %661 = vmatprep.mubr.bf16.mxu0 0
      %662 = vmatmul.mubr.bf16.gmra.mrb[0].mxu0 %v248
      %v663 = vpop.f32.mrb[0].mxu0
      %v664 = vadd.f32 %v176, %v663
      %v665 = vpop.f32.mrb[0].mxu0
      %v666 = vpop.f32.mrb[0].mxu0
      %v667 = vadd.f32 %v176, %v666
      %v668 = vpop.f32.mrb[0].mxu0
      %669 = vmatprep.mubr.bf16.mxu0 0
      %670 = vmatmul.mubr.bf16.gmra.mrb[0].mxu0 %v249
      %v671 = vpop.f32.mrb[0].mxu0
      %v672 = vadd.f32 %v176, %v671
      %v673 = vpop.f32.mrb[0].mxu0
      %v674 = vpop.f32.mrb[0].mxu0
      %v675 = vadd.f32 %v176, %v674
      %v676 = vpop.f32.mrb[0].mxu0
      %677 = vmatprep.mubr.bf16.mxu0 0
      %678 = vmatmul.mubr.bf16.gmra.mrb[0].mxu0 %v250
      %v679 = vpop.f32.mrb[0].mxu0
      %v680 = vadd.f32 %v176, %v679
      %v681 = vpop.f32.mrb[0].mxu0
      %v682 = vpop.f32.mrb[0].mxu0
      %v683 = vadd.f32 %v176, %v682
      %v684 = vpop.f32.mrb[0].mxu0
      %685 = vmatprep.mubr.bf16.mxu0 0
      %686 = vmatmul.mubr.bf16.gmra.mrb[0].mxu0 %v251
      %v687 = vpop.f32.mrb[0].mxu0
      %v688 = vadd.f32 %v176, %v687
      %v689 = vpop.f32.mrb[0].mxu0
      %v690 = vpop.f32.mrb[0].mxu0
      %v691 = vadd.f32 %v176, %v690
      %v692 = vpop.f32.mrb[0].mxu0
      %693 = vmatprep.mubr.bf16.mxu0 0
      %694 = vmatmul.mubr.bf16.gmra.mrb[0].mxu0 %v252
      %v695 = vpop.f32.mrb[0].mxu0
      %v696 = vadd.f32 %v176, %v695
      %v697 = vpop.f32.mrb[0].mxu0
      %v698 = vpop.f32.mrb[0].mxu0
      %v699 = vadd.f32 %v176, %v698
      %v700 = vpop.f32.mrb[0].mxu0
      %701 = vmatprep.mubr.bf16.mxu0 0
      %702 = vmatmul.mubr.bf16.gmra.mrb[0].mxu0 %v253
      %v703 = vpop.f32.mrb[0].mxu0
      %v704 = vadd.f32 %v176, %v703
      %v705 = vpop.f32.mrb[0].mxu0
      %v706 = vpop.f32.mrb[0].mxu0
      %v707 = vadd.f32 %v176, %v706
      %v708 = vpop.f32.mrb[0].mxu0
      %709 = vmatprep.mubr.bf16.mxu0 0
      %710 = vmatmul.mubr.bf16.gmra.mrb[0].mxu0 %v254
      %v711 = vpop.f32.mrb[0].mxu0
      %v712 = vadd.f32 %v176, %v711
      %v713 = vpop.f32.mrb[0].mxu0
      %v714 = vpop.f32.mrb[0].mxu0
      %v715 = vadd.f32 %v176, %v714
      %v716 = vpop.f32.mrb[0].mxu0
      %717 = vmatprep.mubr.bf16.mxu0 0
      %718 = vmatmul.mubr.bf16.gmra.mrb[0].mxu0 %v255
      %v719 = vpop.f32.mrb[0].mxu0
      %v720 = vadd.f32 %v176, %v719
      %v721 = vpop.f32.mrb[0].mxu0
      %v722 = vpop.f32.mrb[0].mxu0
      %v723 = vadd.f32 %v176, %v722
      %v724 = vpop.f32.mrb[0].mxu0
      %725 = vmatprep.mubr.bf16.mxu0 0
      %726 = vmatmul.mubr.bf16.gmra.mrb[0].mxu0 %v256
      %v727 = vpop.f32.mrb[0].mxu0
      %v728 = vadd.f32 %v176, %v727
      %v729 = vpop.f32.mrb[0].mxu0
      %v730 = vpop.f32.mrb[0].mxu0
      %v731 = vadd.f32 %v176, %v730
      %v732 = vpop.f32.mrb[0].mxu0
      %733 = vmatprep.mubr.bf16.mxu0 0
      %734 = vmatmul.mubr.bf16.gmra.mrb[0].mxu0 %v257
      %v735 = vpop.f32.mrb[0].mxu0
      %v736 = vadd.f32 %v176, %v735
      %v737 = vpop.f32.mrb[0].mxu0
      %v738 = vpop.f32.mrb[0].mxu0
      %v739 = vadd.f32 %v176, %v738
      %v740 = vpop.f32.mrb[0].mxu0
      %741 = vmatprep.mubr.bf16.mxu0 0
      %742 = vmatmul.mubr.bf16.gmra.mrb[0].mxu0 %v258
      %v743 = vpop.f32.mrb[0].mxu0
      %v744 = vadd.f32 %v176, %v743
      %v745 = vpop.f32.mrb[0].mxu0
      %v746 = vpop.f32.mrb[0].mxu0
      %v747 = vadd.f32 %v176, %v746
      %v748 = vpop.f32.mrb[0].mxu0
      %749 = vmatprep.mubr.bf16.mxu0 0
      %750 = vmatmul.mubr.bf16.gmra.mrb[0].mxu0 %v259
      %v751 = vpop.f32.mrb[0].mxu0
      %v752 = vadd.f32 %v176, %v751
      %v753 = vpop.f32.mrb[0].mxu0
      %v754 = vpop.f32.mrb[0].mxu0
      %v755 = vadd.f32 %v176, %v754
      %v756 = vpop.f32.mrb[0].mxu0
      %757 = vdwg.mxu0
      %v758 = vld [vmem:[#allocation10] sm:$0xff]
      %v759 = vld [vmem:[#allocation10 + $0x8] sm:$0xf]
      %v760 = vld [vmem:[#allocation10 + $0xc] sm:$0xff]
      %v761 = vld [vmem:[#allocation10 + $0x14] sm:$0xf]
      %v762 = vld [vmem:[#allocation10 + $0x18] sm:$0xff]
      %v763 = vld [vmem:[#allocation10 + $0x20] sm:$0xf]
      %v764 = vld [vmem:[#allocation10 + $0x24] sm:$0xff]
      %v765 = vld [vmem:[#allocation10 + $0x2c] sm:$0xf]
      %v766 = vld [vmem:[#allocation10 + $0x30] sm:$0xff]
      %v767 = vld [vmem:[#allocation10 + $0x38] sm:$0xf]
      %v768 = vld [vmem:[#allocation10 + $0x3c] sm:$0xff]
      %v769 = vld [vmem:[#allocation10 + $0x44] sm:$0xf]
      %v770 = vld [vmem:[#allocation10 + $0x48] sm:$0xff]
      %v771 = vld [vmem:[#allocation10 + $0x50] sm:$0xf]
      %v772 = vld [vmem:[#allocation10 + $0x54] sm:$0xff]
      %v773 = vld [vmem:[#allocation10 + $0x5c] sm:$0xf]
      %v774 = vld [vmem:[#allocation10 + $0x60] sm:$0xff]
      %v775 = vld [vmem:[#allocation10 + $0x68] sm:$0xf]
      %v776 = vld [vmem:[#allocation10 + $0x6c] sm:$0xff]
      %v777 = vld [vmem:[#allocation10 + $0x74] sm:$0xf]
      %v778 = vld [vmem:[#allocation10 + $0x78] sm:$0xff]
      %v779 = vld [vmem:[#allocation10 + $0x80] sm:$0xf]
      %v780 = vld [vmem:[#allocation10 + $0x84] sm:$0xff]
      %v781 = vld [vmem:[#allocation10 + $0x8c] sm:$0xf]
      %v782 = vld [vmem:[#allocation10 + $0x90] sm:$0xff]
      %v783 = vld [vmem:[#allocation10 + $0x98] sm:$0xf]
      %v784 = vld [vmem:[#allocation10 + $0x9c] sm:$0xff]
      %v785 = vld [vmem:[#allocation10 + $0xa4] sm:$0xf]
      %v786 = vld [vmem:[#allocation10 + $0xa8] sm:$0xff]
      %v787 = vld [vmem:[#allocation10 + $0xb0] sm:$0xf]
      %v788 = vld [vmem:[#allocation10 + $0xb4] sm:$0xff]
      %v789 = vld [vmem:[#allocation10 + $0xbc] sm:$0xf]
      %v790 = vld [vmem:[%s6] sm:$0x1]
      %v791 = vld [vmem:[%s1] sm:$0xff]
      %v792 = vld [vmem:[%s1 + $0x8] sm:$0xff]
      %v793 = vld [vmem:[#allocation2] sm:$0xff]
      %v794 = vld [vmem:[#allocation2 + $0x8] sm:$0xff]
      %s795 = smul.u32 0, 16
      %v796 = vpack.c.bf16 %v794, %v793
      %v829 = vunpack.c.l.b16 %v758
      %v830 = vunpack.c.h.b16 %v758
      %v831 = vunpack.c.l.b16 %v759
      %v832 = vunpack.c.l.b16 %v760
      %v833 = vunpack.c.h.b16 %v760
      %v834 = vunpack.c.l.b16 %v761
      %v835 = vunpack.c.l.b16 %v762
      %v836 = vunpack.c.h.b16 %v762
      %v837 = vunpack.c.l.b16 %v763
      %v838 = vunpack.c.l.b16 %v764
      %v839 = vunpack.c.h.b16 %v764
      %v840 = vunpack.c.l.b16 %v765
      %v841 = vunpack.c.l.b16 %v766
      %v842 = vunpack.c.h.b16 %v766
      %v843 = vunpack.c.l.b16 %v767
      %v844 = vunpack.c.l.b16 %v768
      %v845 = vunpack.c.h.b16 %v768
      %v846 = vunpack.c.l.b16 %v769
      %v847 = vunpack.c.l.b16 %v770
      %v848 = vunpack.c.h.b16 %v770
      %v849 = vunpack.c.l.b16 %v771
      %v850 = vunpack.c.l.b16 %v772
      %v851 = vunpack.c.h.b16 %v772
      %v852 = vunpack.c.l.b16 %v773
      %v853 = vunpack.c.l.b16 %v774
      %v854 = vunpack.c.h.b16 %v774
      %v855 = vunpack.c.l.b16 %v775
      %v856 = vunpack.c.l.b16 %v776
      %v857 = vunpack.c.h.b16 %v776
      %v858 = vunpack.c.l.b16 %v777
      %v859 = vunpack.c.l.b16 %v778
      %v860 = vunpack.c.h.b16 %v778
      %v861 = vunpack.c.l.b16 %v779
      %v862 = vunpack.c.l.b16 %v780
      %v863 = vunpack.c.h.b16 %v780
      %v864 = vunpack.c.l.b16 %v781
      %v865 = vunpack.c.l.b16 %v782
      %v866 = vunpack.c.h.b16 %v782
      %v867 = vunpack.c.l.b16 %v783
      %v868 = vunpack.c.l.b16 %v784
      %v869 = vunpack.c.h.b16 %v784
      %v870 = vunpack.c.l.b16 %v785
      %v871 = vunpack.c.l.b16 %v786
      %v872 = vunpack.c.h.b16 %v786
      %v873 = vunpack.c.l.b16 %v787
      %v874 = vunpack.c.l.b16 %v788
      %v875 = vunpack.c.h.b16 %v788
      %v876 = vunpack.c.l.b16 %v789
      %v877 = vpack.c.b16 %v832, %v829
      %v878 = vpack.c.b16 %v833, %v830
      %v879 = vpack.c.b16 %v834, %v831
      %v880 = vpack.c.b16 %v838, %v835
      %v881 = vpack.c.b16 %v839, %v836
      %v882 = vpack.c.b16 %v840, %v837
      %v883 = vpack.c.b16 %v844, %v841
      %v884 = vpack.c.b16 %v845, %v842
      %v885 = vpack.c.b16 %v846, %v843
      %v886 = vpack.c.b16 %v850, %v847
      %v887 = vpack.c.b16 %v851, %v848
      %v888 = vpack.c.b16 %v852, %v849
      %v889 = vpack.c.b16 %v856, %v853
      %v890 = vpack.c.b16 %v857, %v854
      %v891 = vpack.c.b16 %v858, %v855
      %v892 = vpack.c.b16 %v862, %v859
      %v893 = vpack.c.b16 %v863, %v860
      %v894 = vpack.c.b16 %v864, %v861
      %v895 = vpack.c.b16 %v868, %v865
      %v896 = vpack.c.b16 %v869, %v866
      %v897 = vpack.c.b16 %v870, %v867
      %v898 = vpack.c.b16 %v874, %v871
      %v899 = vpack.c.b16 %v875, %v872
      %v900 = vpack.c.b16 %v876, %v873
      %925 = vmatprep.subr.bf16.mxu0 %v878
      %926 = vmatpush1.bf16.msra.mxu0 %v877
      %927 = vmatprep.subr.bf16.mxu0 %v881
      %928 = vmatpush1.bf16.msra.mxu0 %v880
      %929 = vmatprep.subr.bf16.mxu0 %v884
      %930 = vmatpush1.bf16.msra.mxu0 %v883
      %931 = vmatprep.subr.bf16.mxu0 %v887
      %932 = vmatpush1.bf16.msra.mxu0 %v886
      %933 = vmatprep.subr.bf16.mxu0 %v890
      %934 = vmatpush1.bf16.msra.mxu0 %v889
      %935 = vmatprep.subr.bf16.mxu0 %v893
      %936 = vmatpush1.bf16.msra.mxu0 %v892
      %937 = vmatprep.subr.bf16.mxu0 %v896
      %938 = vmatpush1.bf16.msra.mxu0 %v895
      %939 = vmatprep.subr.bf16.mxu0 %v899
      %940 = vmatpush1.bf16.msra.mxu0 %v898
      %941 = vmatprep.subr.bf16.mxu0 0
      %942 = vmatpush1.bf16.msra.mxu0 0
      %943 = vmatprep.subr.bf16.mxu0 0
      %944 = vmatpush1.bf16.msra.mxu0 0
      %945 = vmatprep.subr.bf16.mxu0 0
      %946 = vmatpush1.bf16.msra.mxu0 0
      %947 = vmatprep.subr.bf16.mxu0 0
      %948 = vmatpush1.bf16.msra.mxu0 0
      %949 = vmatprep.subr.bf16.mxu0 0
      %950 = vmatpush1.bf16.msra.mxu0 0
      %951 = vmatprep.subr.bf16.mxu0 0
      %952 = vmatpush1.bf16.msra.mxu0 0
      %953 = vmatprep.subr.bf16.mxu0 0
      %954 = vmatpush1.bf16.msra.mxu0 0
      %955 = vmatprep.subr.bf16.mxu0 0
      %956 = vmatpush1.bf16.msra.mxu0 0
      %957 = vmatprep.mubr.bf16.mxu0 0
      %958 = vmatmul.mubr.bf16.gmra.mrb[0].mxu0 %v796
      %v959 = vpop.f32.mrb[0].mxu0
      %v960 = vadd.f32 0.0, %v959
      %v961 = vpop.f32.mrb[0].mxu0
      %v962 = vadd.f32 0.0, %v961
      %v963 = vpop.f32.mrb[0].mxu0
      %v964 = vadd.f32 0.0, %v963
      %v965 = vpop.f32.mrb[0].mxu0
      %v966 = vadd.f32 0.0, %v965
      %967 = vdwg.mxu0
      %968 = vmatprep.subr.bf16.mxu0 0
      %969 = vmatpush1.bf16.msra.mxu0 %v879
      %970 = vmatprep.subr.bf16.mxu0 0
      %971 = vmatpush1.bf16.msra.mxu0 %v882
      %972 = vmatprep.subr.bf16.mxu0 0
      %973 = vmatpush1.bf16.msra.mxu0 %v885
      %974 = vmatprep.subr.bf16.mxu0 0
      %975 = vmatpush1.bf16.msra.mxu0 %v888
      %976 = vmatprep.subr.bf16.mxu0 0
      %977 = vmatpush1.bf16.msra.mxu0 %v891
      %978 = vmatprep.subr.bf16.mxu0 0
      %979 = vmatpush1.bf16.msra.mxu0 %v894
      %980 = vmatprep.subr.bf16.mxu0 0
      %981 = vmatpush1.bf16.msra.mxu0 %v897
      %982 = vmatprep.subr.bf16.mxu0 0
      %983 = vmatpush1.bf16.msra.mxu0 %v900
      %984 = vmatprep.subr.bf16.mxu0 0
      %985 = vmatpush1.bf16.msra.mxu0 0
      %986 = vmatprep.subr.bf16.mxu0 0
      %987 = vmatpush1.bf16.msra.mxu0 0
      %988 = vmatprep.subr.bf16.mxu0 0
      %989 = vmatpush1.bf16.msra.mxu0 0
      %990 = vmatprep.subr.bf16.mxu0 0
      %991 = vmatpush1.bf16.msra.mxu0 0
      %992 = vmatprep.subr.bf16.mxu0 0
      %993 = vmatpush1.bf16.msra.mxu0 0
      %994 = vmatprep.subr.bf16.mxu0 0
      %995 = vmatpush1.bf16.msra.mxu0 0
      %996 = vmatprep.subr.bf16.mxu0 0
      %997 = vmatpush1.bf16.msra.mxu0 0
      %998 = vmatprep.subr.bf16.mxu0 0
      %999 = vmatpush1.bf16.msra.mxu0 0
      %1000 = vmatprep.mubr.bf16.mxu0 0
      %1001 = vmatmul.mubr.bf16.gmra.mrb[0].mxu0 %v796
      %v1002 = vpop.f32.mrb[0].mxu0
      %v1003 = vadd.f32 0.0, %v1002
      %v1004 = vpop.f32.mrb[0].mxu0
      %v1005 = vpop.f32.mrb[0].mxu0
      %v1006 = vadd.f32 0.0, %v1005
      %v1007 = vpop.f32.mrb[0].mxu0
      %1008 = vdwg.mxu0
      %v1009 = vadd.f32 %v439, %v960
      %v1010 = vadd.f32 %v443, %v964
      %v1011 = vxor.u32 %v1009, 2147483648
      %v1012 = vxor.u32 %v1010, 2147483648
      %v1013 = vmul.f32 %v1011, 1.442695
      %v1014 = vpow.pop %v1013
      %v1015 = vmul.f32 %v1012, 1.442695
      %v1016 = vpow.pop %v1015
      %v1017 = vadd.f32 %v1014, 1.0
      %v1018 = vadd.f32 %v1016, 1.0
      %v1019 = vrcp.pop %v1017
      %v1020 = vmul.f32 1.0, %v1019
      %v1021 = vrcp.pop %v1018
      %v1022 = vmul.f32 1.0, %v1021
      %v1023 = vadd.f32 %v441, %v962
      %v1024 = vadd.f32 %v445, %v966
      %v1025 = vxor.u32 %v1023, 2147483648
      %v1026 = vxor.u32 %v1024, 2147483648
      %v1027 = vmul.f32 %v1025, 1.442695
      %v1028 = vpow.pop %v1027
      %v1029 = vmul.f32 %v1026, 1.442695
      %v1030 = vpow.pop %v1029
      %v1031 = vadd.f32 %v1028, 1.0
      %v1032 = vadd.f32 %v1030, 1.0
      %v1033 = vrcp.pop %v1031
      %v1034 = vmul.f32 1.0, %v1033
      %v1035 = vrcp.pop %v1032
      %v1036 = vmul.f32 1.0, %v1035
      %v1038 = vlaneseq
      %v1039 = vshrl.u32 %v1038, 7
      %v1040 = vsub.s32 0, %v1039
      %v1041 = vrot.slane %v790, %v1040
      %v1043 = vadd.f32 %v1003, %v1041
      %v1044 = vadd.f32 %v1006, %v1041
      %v1045 = vmul.f32 %v1020, %v1043
      %v1046 = vmul.f32 %v1022, %v1044
      %v1047 = vadd.f32 %v632, %v1045
      %v1048 = vadd.f32 %v635, %v1046
      %v1049 = vtanh.pop %v1047
      %v1050 = vtanh.pop %v1048
      %v1051 = vsub.f32 1.0, %v1034
      %v1052 = vsub.f32 1.0, %v1036
      %v1053 = vmul.f32 %v1051, %v1049
      %v1054 = vmul.f32 %v1052, %v1050
      %v1055 = vmul.f32 %v1034, %v793
      %v1056 = vmul.f32 %v1036, %v794
      %v1057 = vadd.f32 %v1053, %v1055
      %v1058 = vadd.f32 %v1054, %v1056
      %v1059 = vstv %s795
      %vm1060 = vcmp.lt.s32.totalorder %v1059, %v791
      %vm1061 = vcmp.lt.s32.totalorder %v1059, %v792
      %v1062 = vsel %vm1060, 1, 0
      %v1063 = vsel %vm1061, 1, 0
      %1064 = vset.pattern.permute.xlu0 0
      %1065 = vperm.xlu0 %1064, %v1062
      %v1066 = vpop.permute.xlu0 %1065
      %1067 = vset.pattern.permute.xlu0 0
      %1068 = vperm.xlu0 %1067, %v1063
      %v1069 = vpop.permute.xlu0 %1068
      %vm1070 = vcmp.eq.s32.totalorder %v1066, 1
      %vm1071 = vcmp.eq.s32.totalorder %v1069, 1
      %v1072 = vsel %vm1070, %v1057, %v793
      %v1073 = vsel %vm1071, %v1058, %v794
      %v1074 = vpack.c.bf16 %v1073, %v1072
      %1075 = vmatprep.subr.bf16.mxu0 %v878
      %1076 = vmatpush1.bf16.msra.mxu0 %v877
      %1077 = vmatprep.subr.bf16.mxu0 %v881
      %1078 = vmatpush1.bf16.msra.mxu0 %v880
      %1079 = vmatprep.subr.bf16.mxu0 %v884
      %1080 = vmatpush1.bf16.msra.mxu0 %v883
      %1081 = vmatprep.subr.bf16.mxu0 %v887
      %1082 = vmatpush1.bf16.msra.mxu0 %v886
      %1083 = vmatprep.subr.bf16.mxu0 %v890
      %1084 = vmatpush1.bf16.msra.mxu0 %v889
      %1085 = vmatprep.subr.bf16.mxu0 %v893
      %1086 = vmatpush1.bf16.msra.mxu0 %v892
      %1087 = vmatprep.subr.bf16.mxu0 %v896
      %1088 = vmatpush1.bf16.msra.mxu0 %v895
      %1089 = vmatprep.subr.bf16.mxu0 %v899
      %1090 = vmatpush1.bf16.msra.mxu0 %v898
      %1091 = vmatprep.subr.bf16.mxu0 0
      %1092 = vmatpush1.bf16.msra.mxu0 0
      %1093 = vmatprep.subr.bf16.mxu0 0
      %1094 = vmatpush1.bf16.msra.mxu0 0
      %1095 = vmatprep.subr.bf16.mxu0 0
      %1096 = vmatpush1.bf16.msra.mxu0 0
      %1097 = vmatprep.subr.bf16.mxu0 0
      %1098 = vmatpush1.bf16.msra.mxu0 0
      %1099 = vmatprep.subr.bf16.mxu0 0
      %1100 = vmatpush1.bf16.msra.mxu0 0
      %1101 = vmatprep.subr.bf16.mxu0 0
      %1102 = vmatpush1.bf16.msra.mxu0 0
      %1103 = vmatprep.subr.bf16.mxu0 0
      %1104 = vmatpush1.bf16.msra.mxu0 0
      %1105 = vmatprep.subr.bf16.mxu0 0
      %1106 = vmatpush1.bf16.msra.mxu0 0
      %1107 = vmatprep.mubr.bf16.mxu0 0
      %1108 = vmatmul.mubr.bf16.gmra.mrb[0].mxu0 %v1074
      %v1109 = vpop.f32.mrb[0].mxu0
      %v1110 = vadd.f32 0.0, %v1109
      %v1111 = vpop.f32.mrb[0].mxu0
      %v1112 = vadd.f32 0.0, %v1111
      %v1113 = vpop.f32.mrb[0].mxu0
      %v1114 = vadd.f32 0.0, %v1113
      %v1115 = vpop.f32.mrb[0].mxu0
      %v1116 = vadd.f32 0.0, %v1115
      %1117 = vdwg.mxu0
      %1118 = vmatprep.subr.bf16.mxu0 0
      %1119 = vmatpush1.bf16.msra.mxu0 %v879
      %1120 = vmatprep.subr.bf16.mxu0 0
      %1121 = vmatpush1.bf16.msra.mxu0 %v882
      %1122 = vmatprep.subr.bf16.mxu0 0
      %1123 = vmatpush1.bf16.msra.mxu0 %v885
      %1124 = vmatprep.subr.bf16.mxu0 0
      %1125 = vmatpush1.bf16.msra.mxu0 %v888
      %1126 = vmatprep.subr.bf16.mxu0 0
      %1127 = vmatpush1.bf16.msra.mxu0 %v891
      %1128 = vmatprep.subr.bf16.mxu0 0
      %1129 = vmatpush1.bf16.msra.mxu0 %v894
      %1130 = vmatprep.subr.bf16.mxu0 0
      %1131 = vmatpush1.bf16.msra.mxu0 %v897
      %1132 = vmatprep.subr.bf16.mxu0 0
      %1133 = vmatpush1.bf16.msra.mxu0 %v900
      %1134 = vmatprep.subr.bf16.mxu0 0
      %1135 = vmatpush1.bf16.msra.mxu0 0
      %1136 = vmatprep.subr.bf16.mxu0 0
      %1137 = vmatpush1.bf16.msra.mxu0 0
      %1138 = vmatprep.subr.bf16.mxu0 0
      %1139 = vmatpush1.bf16.msra.mxu0 0
      %1140 = vmatprep.subr.bf16.mxu0 0
      %1141 = vmatpush1.bf16.msra.mxu0 0
      %1142 = vmatprep.subr.bf16.mxu0 0
      %1143 = vmatpush1.bf16.msra.mxu0 0
      %1144 = vmatprep.subr.bf16.mxu0 0
      %1145 = vmatpush1.bf16.msra.mxu0 0
      %1146 = vmatprep.subr.bf16.mxu0 0
      %1147 = vmatpush1.bf16.msra.mxu0 0
      %1148 = vmatprep.subr.bf16.mxu0 0
      %1149 = vmatpush1.bf16.msra.mxu0 0
      %1150 = vmatprep.mubr.bf16.mxu0 0
      %1151 = vmatmul.mubr.bf16.gmra.mrb[0].mxu0 %v1074
      %v1152 = vpop.f32.mrb[0].mxu0
      %v1153 = vadd.f32 0.0, %v1152
      %v1154 = vpop.f32.mrb[0].mxu0
      %v1155 = vpop.f32.mrb[0].mxu0
      %v1156 = vadd.f32 0.0, %v1155
      %v1157 = vpop.f32.mrb[0].mxu0
      %1158 = vdwg.mxu0
      %v1159 = vadd.f32 %v449, %v1110
      %v1160 = vadd.f32 %v453, %v1114
      %v1161 = vxor.u32 %v1159, 2147483648
      %v1162 = vxor.u32 %v1160, 2147483648
      %v1163 = vmul.f32 %v1161, 1.442695
      %v1164 = vpow.pop %v1163
      %v1165 = vmul.f32 %v1162, 1.442695
      %v1166 = vpow.pop %v1165
      %v1167 = vadd.f32 %v1164, 1.0
      %v1168 = vadd.f32 %v1166, 1.0
      %v1169 = vrcp.pop %v1167
      %v1170 = vmul.f32 1.0, %v1169
      %v1171 = vrcp.pop %v1168
      %v1172 = vmul.f32 1.0, %v1171
      %v1173 = vadd.f32 %v451, %v1112
      %v1174 = vadd.f32 %v455, %v1116
      %v1175 = vxor.u32 %v1173, 2147483648
      %v1176 = vxor.u32 %v1174, 2147483648
      %v1177 = vmul.f32 %v1175, 1.442695
      %v1178 = vpow.pop %v1177
      %v1179 = vmul.f32 %v1176, 1.442695
      %v1180 = vpow.pop %v1179
      %v1181 = vadd.f32 %v1178, 1.0
      %v1182 = vadd.f32 %v1180, 1.0
      %v1183 = vrcp.pop %v1181
      %v1184 = vmul.f32 1.0, %v1183
      %v1185 = vrcp.pop %v1182
      %v1186 = vmul.f32 1.0, %v1185
      %v1187 = vadd.f32 %v1153, %v1041
      %v1188 = vadd.f32 %v1156, %v1041
      %v1189 = vmul.f32 %v1170, %v1187
      %v1190 = vmul.f32 %v1172, %v1188
      %v1191 = vadd.f32 %v640, %v1189
      %v1192 = vadd.f32 %v643, %v1190
      %v1193 = vtanh.pop %v1191
      %v1194 = vtanh.pop %v1192
      %v1195 = vsub.f32 1.0, %v1184
      %v1196 = vsub.f32 1.0, %v1186
      %v1197 = vmul.f32 %v1195, %v1193
      %v1198 = vmul.f32 %v1196, %v1194
      %v1199 = vmul.f32 %v1184, %v1072
      %v1200 = vmul.f32 %v1186, %v1073
      %v1201 = vadd.f32 %v1197, %v1199
      %v1202 = vadd.f32 %v1198, %v1200
      %s1203 = sadd.s32 %s795, 1
      %v1204 = vstv %s1203
      %vm1205 = vcmp.lt.s32.totalorder %v1204, %v791
      %vm1206 = vcmp.lt.s32.totalorder %v1204, %v792
      %v1207 = vsel %vm1205, 1, 0
      %v1208 = vsel %vm1206, 1, 0
      %1209 = vset.pattern.permute.xlu0 0
      %1210 = vperm.xlu0 %1209, %v1207
      %v1211 = vpop.permute.xlu0 %1210
      %1212 = vset.pattern.permute.xlu0 0
      %1213 = vperm.xlu0 %1212, %v1208
      %v1214 = vpop.permute.xlu0 %1213
      %vm1215 = vcmp.eq.s32.totalorder %v1211, 1
      %vm1216 = vcmp.eq.s32.totalorder %v1214, 1
      %v1217 = vsel %vm1215, %v1201, %v1072
      %v1218 = vsel %vm1216, %v1202, %v1073
      %v1219 = vpack.c.bf16 %v1218, %v1217
      %1220 = vmatprep.subr.bf16.mxu0 %v878
      %1221 = vmatpush1.bf16.msra.mxu0 %v877
      %1222 = vmatprep.subr.bf16.mxu0 %v881
      %1223 = vmatpush1.bf16.msra.mxu0 %v880
      %1224 = vmatprep.subr.bf16.mxu0 %v884
      %1225 = vmatpush1.bf16.msra.mxu0 %v883
      %1226 = vmatprep.subr.bf16.mxu0 %v887
      %1227 = vmatpush1.bf16.msra.mxu0 %v886
      %1228 = vmatprep.subr.bf16.mxu0 %v890
      %1229 = vmatpush1.bf16.msra.mxu0 %v889
      %1230 = vmatprep.subr.bf16.mxu0 %v893
      %1231 = vmatpush1.bf16.msra.mxu0 %v892
      %1232 = vmatprep.subr.bf16.mxu0 %v896
      %1233 = vmatpush1.bf16.msra.mxu0 %v895
      %1234 = vmatprep.subr.bf16.mxu0 %v899
      %1235 = vmatpush1.bf16.msra.mxu0 %v898
      %1236 = vmatprep.subr.bf16.mxu0 0
      %1237 = vmatpush1.bf16.msra.mxu0 0
      %1238 = vmatprep.subr.bf16.mxu0 0
      %1239 = vmatpush1.bf16.msra.mxu0 0
      %1240 = vmatprep.subr.bf16.mxu0 0
      %1241 = vmatpush1.bf16.msra.mxu0 0
      %1242 = vmatprep.subr.bf16.mxu0 0
      %1243 = vmatpush1.bf16.msra.mxu0 0
      %1244 = vmatprep.subr.bf16.mxu0 0
      %1245 = vmatpush1.bf16.msra.mxu0 0
      %1246 = vmatprep.subr.bf16.mxu0 0
      %1247 = vmatpush1.bf16.msra.mxu0 0
      %1248 = vmatprep.subr.bf16.mxu0 0
      %1249 = vmatpush1.bf16.msra.mxu0 0
      %1250 = vmatprep.subr.bf16.mxu0 0
      %1251 = vmatpush1.bf16.msra.mxu0 0
      %1252 = vmatprep.mubr.bf16.mxu0 0
      %1253 = vmatmul.mubr.bf16.gmra.mrb[0].mxu0 %v1219
      %v1254 = vpop.f32.mrb[0].mxu0
      %v1255 = vadd.f32 0.0, %v1254
      %v1256 = vpop.f32.mrb[0].mxu0
      %v1257 = vadd.f32 0.0, %v1256
      %v1258 = vpop.f32.mrb[0].mxu0
      %v1259 = vadd.f32 0.0, %v1258
      %v1260 = vpop.f32.mrb[0].mxu0
      %v1261 = vadd.f32 0.0, %v1260
      %1262 = vdwg.mxu0
      %1263 = vmatprep.subr.bf16.mxu0 0
      %1264 = vmatpush1.bf16.msra.mxu0 %v879
      %1265 = vmatprep.subr.bf16.mxu0 0
      %1266 = vmatpush1.bf16.msra.mxu0 %v882
      %1267 = vmatprep.subr.bf16.mxu0 0
      %1268 = vmatpush1.bf16.msra.mxu0 %v885
      %1269 = vmatprep.subr.bf16.mxu0 0
      %1270 = vmatpush1.bf16.msra.mxu0 %v888
      %1271 = vmatprep.subr.bf16.mxu0 0
      %1272 = vmatpush1.bf16.msra.mxu0 %v891
      %1273 = vmatprep.subr.bf16.mxu0 0
      %1274 = vmatpush1.bf16.msra.mxu0 %v894
      %1275 = vmatprep.subr.bf16.mxu0 0
      %1276 = vmatpush1.bf16.msra.mxu0 %v897
      %1277 = vmatprep.subr.bf16.mxu0 0
      %1278 = vmatpush1.bf16.msra.mxu0 %v900
      %1279 = vmatprep.subr.bf16.mxu0 0
      %1280 = vmatpush1.bf16.msra.mxu0 0
      %1281 = vmatprep.subr.bf16.mxu0 0
      %1282 = vmatpush1.bf16.msra.mxu0 0
      %1283 = vmatprep.subr.bf16.mxu0 0
      %1284 = vmatpush1.bf16.msra.mxu0 0
      %1285 = vmatprep.subr.bf16.mxu0 0
      %1286 = vmatpush1.bf16.msra.mxu0 0
      %1287 = vmatprep.subr.bf16.mxu0 0
      %1288 = vmatpush1.bf16.msra.mxu0 0
      %1289 = vmatprep.subr.bf16.mxu0 0
      %1290 = vmatpush1.bf16.msra.mxu0 0
      %1291 = vmatprep.subr.bf16.mxu0 0
      %1292 = vmatpush1.bf16.msra.mxu0 0
      %1293 = vmatprep.subr.bf16.mxu0 0
      %1294 = vmatpush1.bf16.msra.mxu0 0
      %1295 = vmatprep.mubr.bf16.mxu0 0
      %1296 = vmatmul.mubr.bf16.gmra.mrb[0].mxu0 %v1219
      %v1297 = vpop.f32.mrb[0].mxu0
      %v1298 = vadd.f32 0.0, %v1297
      %v1299 = vpop.f32.mrb[0].mxu0
      %v1300 = vpop.f32.mrb[0].mxu0
      %v1301 = vadd.f32 0.0, %v1300
      %v1302 = vpop.f32.mrb[0].mxu0
      %1303 = vdwg.mxu0
      %v1304 = vadd.f32 %v459, %v1255
      %v1305 = vadd.f32 %v463, %v1259
      %v1306 = vxor.u32 %v1304, 2147483648
      %v1307 = vxor.u32 %v1305, 2147483648
      %v1308 = vmul.f32 %v1306, 1.442695
      %v1309 = vpow.pop %v1308
      %v1310 = vmul.f32 %v1307, 1.442695
      %v1311 = vpow.pop %v1310
      %v1312 = vadd.f32 %v1309, 1.0
      %v1313 = vadd.f32 %v1311, 1.0
      %v1314 = vrcp.pop %v1312
      %v1315 = vmul.f32 1.0, %v1314
      %v1316 = vrcp.pop %v1313
      %v1317 = vmul.f32 1.0, %v1316
      %v1318 = vadd.f32 %v461, %v1257
      %v1319 = vadd.f32 %v465, %v1261
      %v1320 = vxor.u32 %v1318, 2147483648
      %v1321 = vxor.u32 %v1319, 2147483648
      %v1322 = vmul.f32 %v1320, 1.442695
      %v1323 = vpow.pop %v1322
      %v1324 = vmul.f32 %v1321, 1.442695
      %v1325 = vpow.pop %v1324
      %v1326 = vadd.f32 %v1323, 1.0
      %v1327 = vadd.f32 %v1325, 1.0
      %v1328 = vrcp.pop %v1326
      %v1329 = vmul.f32 1.0, %v1328
      %v1330 = vrcp.pop %v1327
      %v1331 = vmul.f32 1.0, %v1330
      %v1332 = vadd.f32 %v1298, %v1041
      %v1333 = vadd.f32 %v1301, %v1041
      %v1334 = vmul.f32 %v1315, %v1332
      %v1335 = vmul.f32 %v1317, %v1333
      %v1336 = vadd.f32 %v648, %v1334
      %v1337 = vadd.f32 %v651, %v1335
      %v1338 = vtanh.pop %v1336
      %v1339 = vtanh.pop %v1337
      %v1340 = vsub.f32 1.0, %v1329
      %v1341 = vsub.f32 1.0, %v1331
      %v1342 = vmul.f32 %v1340, %v1338
      %v1343 = vmul.f32 %v1341, %v1339
      %v1344 = vmul.f32 %v1329, %v1217
      %v1345 = vmul.f32 %v1331, %v1218
      %v1346 = vadd.f32 %v1342, %v1344
      %v1347 = vadd.f32 %v1343, %v1345
      %s1348 = sadd.s32 %s795, 2
      %v1349 = vstv %s1348
      %vm1350 = vcmp.lt.s32.totalorder %v1349, %v791
      %vm1351 = vcmp.lt.s32.totalorder %v1349, %v792
      %v1352 = vsel %vm1350, 1, 0
      %v1353 = vsel %vm1351, 1, 0
      %1354 = vset.pattern.permute.xlu0 0
      %1355 = vperm.xlu0 %1354, %v1352
      %v1356 = vpop.permute.xlu0 %1355
      %1357 = vset.pattern.permute.xlu0 0
      %1358 = vperm.xlu0 %1357, %v1353
      %v1359 = vpop.permute.xlu0 %1358
      %vm1360 = vcmp.eq.s32.totalorder %v1356, 1
      %vm1361 = vcmp.eq.s32.totalorder %v1359, 1
      %v1362 = vsel %vm1360, %v1346, %v1217
      %v1363 = vsel %vm1361, %v1347, %v1218
      %v1364 = vpack.c.bf16 %v1363, %v1362
      %1365 = vmatprep.subr.bf16.mxu0 %v878
      %1366 = vmatpush1.bf16.msra.mxu0 %v877
      %1367 = vmatprep.subr.bf16.mxu0 %v881
      %1368 = vmatpush1.bf16.msra.mxu0 %v880
      %1369 = vmatprep.subr.bf16.mxu0 %v884
      %1370 = vmatpush1.bf16.msra.mxu0 %v883
      %1371 = vmatprep.subr.bf16.mxu0 %v887
      %1372 = vmatpush1.bf16.msra.mxu0 %v886
      %1373 = vmatprep.subr.bf16.mxu0 %v890
      %1374 = vmatpush1.bf16.msra.mxu0 %v889
      %1375 = vmatprep.subr.bf16.mxu0 %v893
      %1376 = vmatpush1.bf16.msra.mxu0 %v892
      %1377 = vmatprep.subr.bf16.mxu0 %v896
      %1378 = vmatpush1.bf16.msra.mxu0 %v895
      %1379 = vmatprep.subr.bf16.mxu0 %v899
      %1380 = vmatpush1.bf16.msra.mxu0 %v898
      %1381 = vmatprep.subr.bf16.mxu0 0
      %1382 = vmatpush1.bf16.msra.mxu0 0
      %1383 = vmatprep.subr.bf16.mxu0 0
      %1384 = vmatpush1.bf16.msra.mxu0 0
      %1385 = vmatprep.subr.bf16.mxu0 0
      %1386 = vmatpush1.bf16.msra.mxu0 0
      %1387 = vmatprep.subr.bf16.mxu0 0
      %1388 = vmatpush1.bf16.msra.mxu0 0
      %1389 = vmatprep.subr.bf16.mxu0 0
      %1390 = vmatpush1.bf16.msra.mxu0 0
      %1391 = vmatprep.subr.bf16.mxu0 0
      %1392 = vmatpush1.bf16.msra.mxu0 0
      %1393 = vmatprep.subr.bf16.mxu0 0
      %1394 = vmatpush1.bf16.msra.mxu0 0
      %1395 = vmatprep.subr.bf16.mxu0 0
      %1396 = vmatpush1.bf16.msra.mxu0 0
      %1397 = vmatprep.mubr.bf16.mxu0 0
      %1398 = vmatmul.mubr.bf16.gmra.mrb[0].mxu0 %v1364
      %v1399 = vpop.f32.mrb[0].mxu0
      %v1400 = vadd.f32 0.0, %v1399
      %v1401 = vpop.f32.mrb[0].mxu0
      %v1402 = vadd.f32 0.0, %v1401
      %v1403 = vpop.f32.mrb[0].mxu0
      %v1404 = vadd.f32 0.0, %v1403
      %v1405 = vpop.f32.mrb[0].mxu0
      %v1406 = vadd.f32 0.0, %v1405
      %1407 = vdwg.mxu0
      %1408 = vmatprep.subr.bf16.mxu0 0
      %1409 = vmatpush1.bf16.msra.mxu0 %v879
      %1410 = vmatprep.subr.bf16.mxu0 0
      %1411 = vmatpush1.bf16.msra.mxu0 %v882
      %1412 = vmatprep.subr.bf16.mxu0 0
      %1413 = vmatpush1.bf16.msra.mxu0 %v885
      %1414 = vmatprep.subr.bf16.mxu0 0
      %1415 = vmatpush1.bf16.msra.mxu0 %v888
      %1416 = vmatprep.subr.bf16.mxu0 0
      %1417 = vmatpush1.bf16.msra.mxu0 %v891
      %1418 = vmatprep.subr.bf16.mxu0 0
      %1419 = vmatpush1.bf16.msra.mxu0 %v894
      %1420 = vmatprep.subr.bf16.mxu0 0
      %1421 = vmatpush1.bf16.msra.mxu0 %v897
      %1422 = vmatprep.subr.bf16.mxu0 0
      %1423 = vmatpush1.bf16.msra.mxu0 %v900
      %1424 = vmatprep.subr.bf16.mxu0 0
      %1425 = vmatpush1.bf16.msra.mxu0 0
      %1426 = vmatprep.subr.bf16.mxu0 0
      %1427 = vmatpush1.bf16.msra.mxu0 0
      %1428 = vmatprep.subr.bf16.mxu0 0
      %1429 = vmatpush1.bf16.msra.mxu0 0
      %1430 = vmatprep.subr.bf16.mxu0 0
      %1431 = vmatpush1.bf16.msra.mxu0 0
      %1432 = vmatprep.subr.bf16.mxu0 0
      %1433 = vmatpush1.bf16.msra.mxu0 0
      %1434 = vmatprep.subr.bf16.mxu0 0
      %1435 = vmatpush1.bf16.msra.mxu0 0
      %1436 = vmatprep.subr.bf16.mxu0 0
      %1437 = vmatpush1.bf16.msra.mxu0 0
      %1438 = vmatprep.subr.bf16.mxu0 0
      %1439 = vmatpush1.bf16.msra.mxu0 0
      %1440 = vmatprep.mubr.bf16.mxu0 0
      %1441 = vmatmul.mubr.bf16.gmra.mrb[0].mxu0 %v1364
      %v1442 = vpop.f32.mrb[0].mxu0
      %v1443 = vadd.f32 0.0, %v1442
      %v1444 = vpop.f32.mrb[0].mxu0
      %v1445 = vpop.f32.mrb[0].mxu0
      %v1446 = vadd.f32 0.0, %v1445
      %v1447 = vpop.f32.mrb[0].mxu0
      %1448 = vdwg.mxu0
      %v1449 = vadd.f32 %v469, %v1400
      %v1450 = vadd.f32 %v473, %v1404
      %v1451 = vxor.u32 %v1449, 2147483648
      %v1452 = vxor.u32 %v1450, 2147483648
      %v1453 = vmul.f32 %v1451, 1.442695
      %v1454 = vpow.pop %v1453
      %v1455 = vmul.f32 %v1452, 1.442695
      %v1456 = vpow.pop %v1455
      %v1457 = vadd.f32 %v1454, 1.0
      %v1458 = vadd.f32 %v1456, 1.0
      %v1459 = vrcp.pop %v1457
      %v1460 = vmul.f32 1.0, %v1459
      %v1461 = vrcp.pop %v1458
      %v1462 = vmul.f32 1.0, %v1461
      %v1463 = vadd.f32 %v471, %v1402
      %v1464 = vadd.f32 %v475, %v1406
      %v1465 = vxor.u32 %v1463, 2147483648
      %v1466 = vxor.u32 %v1464, 2147483648
      %v1467 = vmul.f32 %v1465, 1.442695
      %v1468 = vpow.pop %v1467
      %v1469 = vmul.f32 %v1466, 1.442695
      %v1470 = vpow.pop %v1469
      %v1471 = vadd.f32 %v1468, 1.0
      %v1472 = vadd.f32 %v1470, 1.0
      %v1473 = vrcp.pop %v1471
      %v1474 = vmul.f32 1.0, %v1473
      %v1475 = vrcp.pop %v1472
      %v1476 = vmul.f32 1.0, %v1475
      %v1477 = vadd.f32 %v1443, %v1041
      %v1478 = vadd.f32 %v1446, %v1041
      %v1479 = vmul.f32 %v1460, %v1477
      %v1480 = vmul.f32 %v1462, %v1478
      %v1481 = vadd.f32 %v656, %v1479
      %v1482 = vadd.f32 %v659, %v1480
      %v1483 = vtanh.pop %v1481
      %v1484 = vtanh.pop %v1482
      %v1485 = vsub.f32 1.0, %v1474
      %v1486 = vsub.f32 1.0, %v1476
      %v1487 = vmul.f32 %v1485, %v1483
      %v1488 = vmul.f32 %v1486, %v1484
      %v1489 = vmul.f32 %v1474, %v1362
      %v1490 = vmul.f32 %v1476, %v1363
      %v1491 = vadd.f32 %v1487, %v1489
      %v1492 = vadd.f32 %v1488, %v1490
      %s1493 = sadd.s32 %s795, 3
      %v1494 = vstv %s1493
      %vm1495 = vcmp.lt.s32.totalorder %v1494, %v791
      %vm1496 = vcmp.lt.s32.totalorder %v1494, %v792
      %v1497 = vsel %vm1495, 1, 0
      %v1498 = vsel %vm1496, 1, 0
      %1499 = vset.pattern.permute.xlu0 0
      %1500 = vperm.xlu0 %1499, %v1497
      %v1501 = vpop.permute.xlu0 %1500
      %1502 = vset.pattern.permute.xlu0 0
      %1503 = vperm.xlu0 %1502, %v1498
      %v1504 = vpop.permute.xlu0 %1503
      %vm1505 = vcmp.eq.s32.totalorder %v1501, 1
      %vm1506 = vcmp.eq.s32.totalorder %v1504, 1
      %v1507 = vsel %vm1505, %v1491, %v1362
      %v1508 = vsel %vm1506, %v1492, %v1363
      %v1509 = vpack.c.bf16 %v1508, %v1507
      %1510 = vmatprep.subr.bf16.mxu0 %v878
      %1511 = vmatpush1.bf16.msra.mxu0 %v877
      %1512 = vmatprep.subr.bf16.mxu0 %v881
      %1513 = vmatpush1.bf16.msra.mxu0 %v880
      %1514 = vmatprep.subr.bf16.mxu0 %v884
      %1515 = vmatpush1.bf16.msra.mxu0 %v883
      %1516 = vmatprep.subr.bf16.mxu0 %v887
      %1517 = vmatpush1.bf16.msra.mxu0 %v886
      %1518 = vmatprep.subr.bf16.mxu0 %v890
      %1519 = vmatpush1.bf16.msra.mxu0 %v889
      %1520 = vmatprep.subr.bf16.mxu0 %v893
      %1521 = vmatpush1.bf16.msra.mxu0 %v892
      %1522 = vmatprep.subr.bf16.mxu0 %v896
      %1523 = vmatpush1.bf16.msra.mxu0 %v895
      %1524 = vmatprep.subr.bf16.mxu0 %v899
      %1525 = vmatpush1.bf16.msra.mxu0 %v898
      %1526 = vmatprep.subr.bf16.mxu0 0
      %1527 = vmatpush1.bf16.msra.mxu0 0
      %1528 = vmatprep.subr.bf16.mxu0 0
      %1529 = vmatpush1.bf16.msra.mxu0 0
      %1530 = vmatprep.subr.bf16.mxu0 0
      %1531 = vmatpush1.bf16.msra.mxu0 0
      %1532 = vmatprep.subr.bf16.mxu0 0
      %1533 = vmatpush1.bf16.msra.mxu0 0
      %1534 = vmatprep.subr.bf16.mxu0 0
      %1535 = vmatpush1.bf16.msra.mxu0 0
      %1536 = vmatprep.subr.bf16.mxu0 0
      %1537 = vmatpush1.bf16.msra.mxu0 0
      %1538 = vmatprep.subr.bf16.mxu0 0
      %1539 = vmatpush1.bf16.msra.mxu0 0
      %1540 = vmatprep.subr.bf16.mxu0 0
      %1541 = vmatpush1.bf16.msra.mxu0 0
      %1542 = vmatprep.mubr.bf16.mxu0 0
      %1543 = vmatmul.mubr.bf16.gmra.mrb[0].mxu0 %v1509
      %v1544 = vpop.f32.mrb[0].mxu0
      %v1545 = vadd.f32 0.0, %v1544
      %v1546 = vpop.f32.mrb[0].mxu0
      %v1547 = vadd.f32 0.0, %v1546
      %v1548 = vpop.f32.mrb[0].mxu0
      %v1549 = vadd.f32 0.0, %v1548
      %v1550 = vpop.f32.mrb[0].mxu0
      %v1551 = vadd.f32 0.0, %v1550
      %1552 = vdwg.mxu0
      %1553 = vmatprep.subr.bf16.mxu0 0
      %1554 = vmatpush1.bf16.msra.mxu0 %v879
      %1555 = vmatprep.subr.bf16.mxu0 0
      %1556 = vmatpush1.bf16.msra.mxu0 %v882
      %1557 = vmatprep.subr.bf16.mxu0 0
      %1558 = vmatpush1.bf16.msra.mxu0 %v885
      %1559 = vmatprep.subr.bf16.mxu0 0
      %1560 = vmatpush1.bf16.msra.mxu0 %v888
      %1561 = vmatprep.subr.bf16.mxu0 0
      %1562 = vmatpush1.bf16.msra.mxu0 %v891
      %1563 = vmatprep.subr.bf16.mxu0 0
      %1564 = vmatpush1.bf16.msra.mxu0 %v894
      %1565 = vmatprep.subr.bf16.mxu0 0
      %1566 = vmatpush1.bf16.msra.mxu0 %v897
      %1567 = vmatprep.subr.bf16.mxu0 0
      %1568 = vmatpush1.bf16.msra.mxu0 %v900
      %1569 = vmatprep.subr.bf16.mxu0 0
      %1570 = vmatpush1.bf16.msra.mxu0 0
      %1571 = vmatprep.subr.bf16.mxu0 0
      %1572 = vmatpush1.bf16.msra.mxu0 0
      %1573 = vmatprep.subr.bf16.mxu0 0
      %1574 = vmatpush1.bf16.msra.mxu0 0
      %1575 = vmatprep.subr.bf16.mxu0 0
      %1576 = vmatpush1.bf16.msra.mxu0 0
      %1577 = vmatprep.subr.bf16.mxu0 0
      %1578 = vmatpush1.bf16.msra.mxu0 0
      %1579 = vmatprep.subr.bf16.mxu0 0
      %1580 = vmatpush1.bf16.msra.mxu0 0
      %1581 = vmatprep.subr.bf16.mxu0 0
      %1582 = vmatpush1.bf16.msra.mxu0 0
      %1583 = vmatprep.subr.bf16.mxu0 0
      %1584 = vmatpush1.bf16.msra.mxu0 0
      %1585 = vmatprep.mubr.bf16.mxu0 0
      %1586 = vmatmul.mubr.bf16.gmra.mrb[0].mxu0 %v1509
      %v1587 = vpop.f32.mrb[0].mxu0
      %v1588 = vadd.f32 0.0, %v1587
      %v1589 = vpop.f32.mrb[0].mxu0
      %v1590 = vpop.f32.mrb[0].mxu0
      %v1591 = vadd.f32 0.0, %v1590
      %v1592 = vpop.f32.mrb[0].mxu0
      %1593 = vdwg.mxu0
      %v1594 = vadd.f32 %v479, %v1545
      %v1595 = vadd.f32 %v483, %v1549
      %v1596 = vxor.u32 %v1594, 2147483648
      %v1597 = vxor.u32 %v1595, 2147483648
      %v1598 = vmul.f32 %v1596, 1.442695
      %v1599 = vpow.pop %v1598
      %v1600 = vmul.f32 %v1597, 1.442695
      %v1601 = vpow.pop %v1600
      %v1602 = vadd.f32 %v1599, 1.0
      %v1603 = vadd.f32 %v1601, 1.0
      %v1604 = vrcp.pop %v1602
      %v1605 = vmul.f32 1.0, %v1604
      %v1606 = vrcp.pop %v1603
      %v1607 = vmul.f32 1.0, %v1606
      %v1608 = vadd.f32 %v481, %v1547
      %v1609 = vadd.f32 %v485, %v1551
      %v1610 = vxor.u32 %v1608, 2147483648
      %v1611 = vxor.u32 %v1609, 2147483648
      %v1612 = vmul.f32 %v1610, 1.442695
      %v1613 = vpow.pop %v1612
      %v1614 = vmul.f32 %v1611, 1.442695
      %v1615 = vpow.pop %v1614
      %v1616 = vadd.f32 %v1613, 1.0
      %v1617 = vadd.f32 %v1615, 1.0
      %v1618 = vrcp.pop %v1616
      %v1619 = vmul.f32 1.0, %v1618
      %v1620 = vrcp.pop %v1617
      %v1621 = vmul.f32 1.0, %v1620
      %v1622 = vadd.f32 %v1588, %v1041
      %v1623 = vadd.f32 %v1591, %v1041
      %v1624 = vmul.f32 %v1605, %v1622
      %v1625 = vmul.f32 %v1607, %v1623
      %v1626 = vadd.f32 %v664, %v1624
      %v1627 = vadd.f32 %v667, %v1625
      %v1628 = vtanh.pop %v1626
      %v1629 = vtanh.pop %v1627
      %v1630 = vsub.f32 1.0, %v1619
      %v1631 = vsub.f32 1.0, %v1621
      %v1632 = vmul.f32 %v1630, %v1628
      %v1633 = vmul.f32 %v1631, %v1629
      %v1634 = vmul.f32 %v1619, %v1507
      %v1635 = vmul.f32 %v1621, %v1508
      %v1636 = vadd.f32 %v1632, %v1634
      %v1637 = vadd.f32 %v1633, %v1635
      %s1638 = sadd.s32 %s795, 4
      %v1639 = vstv %s1638
      %vm1640 = vcmp.lt.s32.totalorder %v1639, %v791
      %vm1641 = vcmp.lt.s32.totalorder %v1639, %v792
      %v1642 = vsel %vm1640, 1, 0
      %v1643 = vsel %vm1641, 1, 0
      %1644 = vset.pattern.permute.xlu0 0
      %1645 = vperm.xlu0 %1644, %v1642
      %v1646 = vpop.permute.xlu0 %1645
      %1647 = vset.pattern.permute.xlu0 0
      %1648 = vperm.xlu0 %1647, %v1643
      %v1649 = vpop.permute.xlu0 %1648
      %vm1650 = vcmp.eq.s32.totalorder %v1646, 1
      %vm1651 = vcmp.eq.s32.totalorder %v1649, 1
      %v1652 = vsel %vm1650, %v1636, %v1507
      %v1653 = vsel %vm1651, %v1637, %v1508
      %v1654 = vpack.c.bf16 %v1653, %v1652
      %1655 = vmatprep.subr.bf16.mxu0 %v878
      %1656 = vmatpush1.bf16.msra.mxu0 %v877
      %1657 = vmatprep.subr.bf16.mxu0 %v881
      %1658 = vmatpush1.bf16.msra.mxu0 %v880
      %1659 = vmatprep.subr.bf16.mxu0 %v884
      %1660 = vmatpush1.bf16.msra.mxu0 %v883
      %1661 = vmatprep.subr.bf16.mxu0 %v887
      %1662 = vmatpush1.bf16.msra.mxu0 %v886
      %1663 = vmatprep.subr.bf16.mxu0 %v890
      %1664 = vmatpush1.bf16.msra.mxu0 %v889
      %1665 = vmatprep.subr.bf16.mxu0 %v893
      %1666 = vmatpush1.bf16.msra.mxu0 %v892
      %1667 = vmatprep.subr.bf16.mxu0 %v896
      %1668 = vmatpush1.bf16.msra.mxu0 %v895
      %1669 = vmatprep.subr.bf16.mxu0 %v899
      %1670 = vmatpush1.bf16.msra.mxu0 %v898
      %1671 = vmatprep.subr.bf16.mxu0 0
      %1672 = vmatpush1.bf16.msra.mxu0 0
      %1673 = vmatprep.subr.bf16.mxu0 0
      %1674 = vmatpush1.bf16.msra.mxu0 0
      %1675 = vmatprep.subr.bf16.mxu0 0
      %1676 = vmatpush1.bf16.msra.mxu0 0
      %1677 = vmatprep.subr.bf16.mxu0 0
      %1678 = vmatpush1.bf16.msra.mxu0 0
      %1679 = vmatprep.subr.bf16.mxu0 0
      %1680 = vmatpush1.bf16.msra.mxu0 0
      %1681 = vmatprep.subr.bf16.mxu0 0
      %1682 = vmatpush1.bf16.msra.mxu0 0
      %1683 = vmatprep.subr.bf16.mxu0 0
      %1684 = vmatpush1.bf16.msra.mxu0 0
      %1685 = vmatprep.subr.bf16.mxu0 0
      %1686 = vmatpush1.bf16.msra.mxu0 0
      %1687 = vmatprep.mubr.bf16.mxu0 0
      %1688 = vmatmul.mubr.bf16.gmra.mrb[0].mxu0 %v1654
      %v1689 = vpop.f32.mrb[0].mxu0
      %v1690 = vadd.f32 0.0, %v1689
      %v1691 = vpop.f32.mrb[0].mxu0
      %v1692 = vadd.f32 0.0, %v1691
      %v1693 = vpop.f32.mrb[0].mxu0
      %v1694 = vadd.f32 0.0, %v1693
      %v1695 = vpop.f32.mrb[0].mxu0
      %v1696 = vadd.f32 0.0, %v1695
      %1697 = vdwg.mxu0
      %1698 = vmatprep.subr.bf16.mxu0 0
      %1699 = vmatpush1.bf16.msra.mxu0 %v879
      %1700 = vmatprep.subr.bf16.mxu0 0
      %1701 = vmatpush1.bf16.msra.mxu0 %v882
      %1702 = vmatprep.subr.bf16.mxu0 0
      %1703 = vmatpush1.bf16.msra.mxu0 %v885
      %1704 = vmatprep.subr.bf16.mxu0 0
      %1705 = vmatpush1.bf16.msra.mxu0 %v888
      %1706 = vmatprep.subr.bf16.mxu0 0
      %1707 = vmatpush1.bf16.msra.mxu0 %v891
      %1708 = vmatprep.subr.bf16.mxu0 0
      %1709 = vmatpush1.bf16.msra.mxu0 %v894
      %1710 = vmatprep.subr.bf16.mxu0 0
      %1711 = vmatpush1.bf16.msra.mxu0 %v897
      %1712 = vmatprep.subr.bf16.mxu0 0
      %1713 = vmatpush1.bf16.msra.mxu0 %v900
      %1714 = vmatprep.subr.bf16.mxu0 0
      %1715 = vmatpush1.bf16.msra.mxu0 0
      %1716 = vmatprep.subr.bf16.mxu0 0
      %1717 = vmatpush1.bf16.msra.mxu0 0
      %1718 = vmatprep.subr.bf16.mxu0 0
      %1719 = vmatpush1.bf16.msra.mxu0 0
      %1720 = vmatprep.subr.bf16.mxu0 0
      %1721 = vmatpush1.bf16.msra.mxu0 0
      %1722 = vmatprep.subr.bf16.mxu0 0
      %1723 = vmatpush1.bf16.msra.mxu0 0
      %1724 = vmatprep.subr.bf16.mxu0 0
      %1725 = vmatpush1.bf16.msra.mxu0 0
      %1726 = vmatprep.subr.bf16.mxu0 0
      %1727 = vmatpush1.bf16.msra.mxu0 0
      %1728 = vmatprep.subr.bf16.mxu0 0
      %1729 = vmatpush1.bf16.msra.mxu0 0
      %1730 = vmatprep.mubr.bf16.mxu0 0
      %1731 = vmatmul.mubr.bf16.gmra.mrb[0].mxu0 %v1654
      %v1732 = vpop.f32.mrb[0].mxu0
      %v1733 = vadd.f32 0.0, %v1732
      %v1734 = vpop.f32.mrb[0].mxu0
      %v1735 = vpop.f32.mrb[0].mxu0
      %v1736 = vadd.f32 0.0, %v1735
      %v1737 = vpop.f32.mrb[0].mxu0
      %1738 = vdwg.mxu0
      %v1739 = vadd.f32 %v489, %v1690
      %v1740 = vadd.f32 %v493, %v1694
      %v1741 = vxor.u32 %v1739, 2147483648
      %v1742 = vxor.u32 %v1740, 2147483648
      %v1743 = vmul.f32 %v1741, 1.442695
      %v1744 = vpow.pop %v1743
      %v1745 = vmul.f32 %v1742, 1.442695
      %v1746 = vpow.pop %v1745
      %v1747 = vadd.f32 %v1744, 1.0
      %v1748 = vadd.f32 %v1746, 1.0
      %v1749 = vrcp.pop %v1747
      %v1750 = vmul.f32 1.0, %v1749
      %v1751 = vrcp.pop %v1748
      %v1752 = vmul.f32 1.0, %v1751
      %v1753 = vadd.f32 %v491, %v1692
      %v1754 = vadd.f32 %v495, %v1696
      %v1755 = vxor.u32 %v1753, 2147483648
      %v1756 = vxor.u32 %v1754, 2147483648
      %v1757 = vmul.f32 %v1755, 1.442695
      %v1758 = vpow.pop %v1757
      %v1759 = vmul.f32 %v1756, 1.442695
      %v1760 = vpow.pop %v1759
      %v1761 = vadd.f32 %v1758, 1.0
      %v1762 = vadd.f32 %v1760, 1.0
      %v1763 = vrcp.pop %v1761
      %v1764 = vmul.f32 1.0, %v1763
      %v1765 = vrcp.pop %v1762
      %v1766 = vmul.f32 1.0, %v1765
      %v1767 = vadd.f32 %v1733, %v1041
      %v1768 = vadd.f32 %v1736, %v1041
      %v1769 = vmul.f32 %v1750, %v1767
      %v1770 = vmul.f32 %v1752, %v1768
      %v1771 = vadd.f32 %v672, %v1769
      %v1772 = vadd.f32 %v675, %v1770
      %v1773 = vtanh.pop %v1771
      %v1774 = vtanh.pop %v1772
      %v1775 = vsub.f32 1.0, %v1764
      %v1776 = vsub.f32 1.0, %v1766
      %v1777 = vmul.f32 %v1775, %v1773
      %v1778 = vmul.f32 %v1776, %v1774
      %v1779 = vmul.f32 %v1764, %v1652
      %v1780 = vmul.f32 %v1766, %v1653
      %v1781 = vadd.f32 %v1777, %v1779
      %v1782 = vadd.f32 %v1778, %v1780
      %s1783 = sadd.s32 %s795, 5
      %v1784 = vstv %s1783
      %vm1785 = vcmp.lt.s32.totalorder %v1784, %v791
      %vm1786 = vcmp.lt.s32.totalorder %v1784, %v792
      %v1787 = vsel %vm1785, 1, 0
      %v1788 = vsel %vm1786, 1, 0
      %1789 = vset.pattern.permute.xlu0 0
      %1790 = vperm.xlu0 %1789, %v1787
      %v1791 = vpop.permute.xlu0 %1790
      %1792 = vset.pattern.permute.xlu0 0
      %1793 = vperm.xlu0 %1792, %v1788
      %v1794 = vpop.permute.xlu0 %1793
      %vm1795 = vcmp.eq.s32.totalorder %v1791, 1
      %vm1796 = vcmp.eq.s32.totalorder %v1794, 1
      %v1797 = vsel %vm1795, %v1781, %v1652
      %v1798 = vsel %vm1796, %v1782, %v1653
      %v1799 = vpack.c.bf16 %v1798, %v1797
      %1800 = vmatprep.subr.bf16.mxu0 %v878
      %1801 = vmatpush1.bf16.msra.mxu0 %v877
      %1802 = vmatprep.subr.bf16.mxu0 %v881
      %1803 = vmatpush1.bf16.msra.mxu0 %v880
      %1804 = vmatprep.subr.bf16.mxu0 %v884
      %1805 = vmatpush1.bf16.msra.mxu0 %v883
      %1806 = vmatprep.subr.bf16.mxu0 %v887
      %1807 = vmatpush1.bf16.msra.mxu0 %v886
      %1808 = vmatprep.subr.bf16.mxu0 %v890
      %1809 = vmatpush1.bf16.msra.mxu0 %v889
      %1810 = vmatprep.subr.bf16.mxu0 %v893
      %1811 = vmatpush1.bf16.msra.mxu0 %v892
      %1812 = vmatprep.subr.bf16.mxu0 %v896
      %1813 = vmatpush1.bf16.msra.mxu0 %v895
      %1814 = vmatprep.subr.bf16.mxu0 %v899
      %1815 = vmatpush1.bf16.msra.mxu0 %v898
      %1816 = vmatprep.subr.bf16.mxu0 0
      %1817 = vmatpush1.bf16.msra.mxu0 0
      %1818 = vmatprep.subr.bf16.mxu0 0
      %1819 = vmatpush1.bf16.msra.mxu0 0
      %1820 = vmatprep.subr.bf16.mxu0 0
      %1821 = vmatpush1.bf16.msra.mxu0 0
      %1822 = vmatprep.subr.bf16.mxu0 0
      %1823 = vmatpush1.bf16.msra.mxu0 0
      %1824 = vmatprep.subr.bf16.mxu0 0
      %1825 = vmatpush1.bf16.msra.mxu0 0
      %1826 = vmatprep.subr.bf16.mxu0 0
      %1827 = vmatpush1.bf16.msra.mxu0 0
      %1828 = vmatprep.subr.bf16.mxu0 0
      %1829 = vmatpush1.bf16.msra.mxu0 0
      %1830 = vmatprep.subr.bf16.mxu0 0
      %1831 = vmatpush1.bf16.msra.mxu0 0
      %1832 = vmatprep.mubr.bf16.mxu0 0
      %1833 = vmatmul.mubr.bf16.gmra.mrb[0].mxu0 %v1799
      %v1834 = vpop.f32.mrb[0].mxu0
      %v1835 = vadd.f32 0.0, %v1834
      %v1836 = vpop.f32.mrb[0].mxu0
      %v1837 = vadd.f32 0.0, %v1836
      %v1838 = vpop.f32.mrb[0].mxu0
      %v1839 = vadd.f32 0.0, %v1838
      %v1840 = vpop.f32.mrb[0].mxu0
      %v1841 = vadd.f32 0.0, %v1840
      %1842 = vdwg.mxu0
      %1843 = vmatprep.subr.bf16.mxu0 0
      %1844 = vmatpush1.bf16.msra.mxu0 %v879
      %1845 = vmatprep.subr.bf16.mxu0 0
      %1846 = vmatpush1.bf16.msra.mxu0 %v882
      %1847 = vmatprep.subr.bf16.mxu0 0
      %1848 = vmatpush1.bf16.msra.mxu0 %v885
      %1849 = vmatprep.subr.bf16.mxu0 0
      %1850 = vmatpush1.bf16.msra.mxu0 %v888
      %1851 = vmatprep.subr.bf16.mxu0 0
      %1852 = vmatpush1.bf16.msra.mxu0 %v891
      %1853 = vmatprep.subr.bf16.mxu0 0
      %1854 = vmatpush1.bf16.msra.mxu0 %v894
      %1855 = vmatprep.subr.bf16.mxu0 0
      %1856 = vmatpush1.bf16.msra.mxu0 %v897
      %1857 = vmatprep.subr.bf16.mxu0 0
      %1858 = vmatpush1.bf16.msra.mxu0 %v900
      %1859 = vmatprep.subr.bf16.mxu0 0
      %1860 = vmatpush1.bf16.msra.mxu0 0
      %1861 = vmatprep.subr.bf16.mxu0 0
      %1862 = vmatpush1.bf16.msra.mxu0 0
      %1863 = vmatprep.subr.bf16.mxu0 0
      %1864 = vmatpush1.bf16.msra.mxu0 0
      %1865 = vmatprep.subr.bf16.mxu0 0
      %1866 = vmatpush1.bf16.msra.mxu0 0
      %1867 = vmatprep.subr.bf16.mxu0 0
      %1868 = vmatpush1.bf16.msra.mxu0 0
      %1869 = vmatprep.subr.bf16.mxu0 0
      %1870 = vmatpush1.bf16.msra.mxu0 0
      %1871 = vmatprep.subr.bf16.mxu0 0
      %1872 = vmatpush1.bf16.msra.mxu0 0
      %1873 = vmatprep.subr.bf16.mxu0 0
      %1874 = vmatpush1.bf16.msra.mxu0 0
      %1875 = vmatprep.mubr.bf16.mxu0 0
      %1876 = vmatmul.mubr.bf16.gmra.mrb[0].mxu0 %v1799
      %v1877 = vpop.f32.mrb[0].mxu0
      %v1878 = vadd.f32 0.0, %v1877
      %v1879 = vpop.f32.mrb[0].mxu0
      %v1880 = vpop.f32.mrb[0].mxu0
      %v1881 = vadd.f32 0.0, %v1880
      %v1882 = vpop.f32.mrb[0].mxu0
      %1883 = vdwg.mxu0
      %v1884 = vadd.f32 %v499, %v1835
      %v1885 = vadd.f32 %v503, %v1839
      %v1886 = vxor.u32 %v1884, 2147483648
      %v1887 = vxor.u32 %v1885, 2147483648
      %v1888 = vmul.f32 %v1886, 1.442695
      %v1889 = vpow.pop %v1888
      %v1890 = vmul.f32 %v1887, 1.442695
      %v1891 = vpow.pop %v1890
      %v1892 = vadd.f32 %v1889, 1.0
      %v1893 = vadd.f32 %v1891, 1.0
      %v1894 = vrcp.pop %v1892
      %v1895 = vmul.f32 1.0, %v1894
      %v1896 = vrcp.pop %v1893
      %v1897 = vmul.f32 1.0, %v1896
      %v1898 = vadd.f32 %v501, %v1837
      %v1899 = vadd.f32 %v505, %v1841
      %v1900 = vxor.u32 %v1898, 2147483648
      %v1901 = vxor.u32 %v1899, 2147483648
      %v1902 = vmul.f32 %v1900, 1.442695
      %v1903 = vpow.pop %v1902
      %v1904 = vmul.f32 %v1901, 1.442695
      %v1905 = vpow.pop %v1904
      %v1906 = vadd.f32 %v1903, 1.0
      %v1907 = vadd.f32 %v1905, 1.0
      %v1908 = vrcp.pop %v1906
      %v1909 = vmul.f32 1.0, %v1908
      %v1910 = vrcp.pop %v1907
      %v1911 = vmul.f32 1.0, %v1910
      %v1912 = vadd.f32 %v1878, %v1041
      %v1913 = vadd.f32 %v1881, %v1041
      %v1914 = vmul.f32 %v1895, %v1912
      %v1915 = vmul.f32 %v1897, %v1913
      %v1916 = vadd.f32 %v680, %v1914
      %v1917 = vadd.f32 %v683, %v1915
      %v1918 = vtanh.pop %v1916
      %v1919 = vtanh.pop %v1917
      %v1920 = vsub.f32 1.0, %v1909
      %v1921 = vsub.f32 1.0, %v1911
      %v1922 = vmul.f32 %v1920, %v1918
      %v1923 = vmul.f32 %v1921, %v1919
      %v1924 = vmul.f32 %v1909, %v1797
      %v1925 = vmul.f32 %v1911, %v1798
      %v1926 = vadd.f32 %v1922, %v1924
      %v1927 = vadd.f32 %v1923, %v1925
      %s1928 = sadd.s32 %s795, 6
      %v1929 = vstv %s1928
      %vm1930 = vcmp.lt.s32.totalorder %v1929, %v791
      %vm1931 = vcmp.lt.s32.totalorder %v1929, %v792
      %v1932 = vsel %vm1930, 1, 0
      %v1933 = vsel %vm1931, 1, 0
      %1934 = vset.pattern.permute.xlu0 0
      %1935 = vperm.xlu0 %1934, %v1932
      %v1936 = vpop.permute.xlu0 %1935
      %1937 = vset.pattern.permute.xlu0 0
      %1938 = vperm.xlu0 %1937, %v1933
      %v1939 = vpop.permute.xlu0 %1938
      %vm1940 = vcmp.eq.s32.totalorder %v1936, 1
      %vm1941 = vcmp.eq.s32.totalorder %v1939, 1
      %v1942 = vsel %vm1940, %v1926, %v1797
      %v1943 = vsel %vm1941, %v1927, %v1798
      %v1944 = vpack.c.bf16 %v1943, %v1942
      %1945 = vmatprep.subr.bf16.mxu0 %v878
      %1946 = vmatpush1.bf16.msra.mxu0 %v877
      %1947 = vmatprep.subr.bf16.mxu0 %v881
      %1948 = vmatpush1.bf16.msra.mxu0 %v880
      %1949 = vmatprep.subr.bf16.mxu0 %v884
      %1950 = vmatpush1.bf16.msra.mxu0 %v883
      %1951 = vmatprep.subr.bf16.mxu0 %v887
      %1952 = vmatpush1.bf16.msra.mxu0 %v886
      %1953 = vmatprep.subr.bf16.mxu0 %v890
      %1954 = vmatpush1.bf16.msra.mxu0 %v889
      %1955 = vmatprep.subr.bf16.mxu0 %v893
      %1956 = vmatpush1.bf16.msra.mxu0 %v892
      %1957 = vmatprep.subr.bf16.mxu0 %v896
      %1958 = vmatpush1.bf16.msra.mxu0 %v895
      %1959 = vmatprep.subr.bf16.mxu0 %v899
      %1960 = vmatpush1.bf16.msra.mxu0 %v898
      %1961 = vmatprep.subr.bf16.mxu0 0
      %1962 = vmatpush1.bf16.msra.mxu0 0
      %1963 = vmatprep.subr.bf16.mxu0 0
      %1964 = vmatpush1.bf16.msra.mxu0 0
      %1965 = vmatprep.subr.bf16.mxu0 0
      %1966 = vmatpush1.bf16.msra.mxu0 0
      %1967 = vmatprep.subr.bf16.mxu0 0
      %1968 = vmatpush1.bf16.msra.mxu0 0
      %1969 = vmatprep.subr.bf16.mxu0 0
      %1970 = vmatpush1.bf16.msra.mxu0 0
      %1971 = vmatprep.subr.bf16.mxu0 0
      %1972 = vmatpush1.bf16.msra.mxu0 0
      %1973 = vmatprep.subr.bf16.mxu0 0
      %1974 = vmatpush1.bf16.msra.mxu0 0
      %1975 = vmatprep.subr.bf16.mxu0 0
      %1976 = vmatpush1.bf16.msra.mxu0 0
      %1977 = vmatprep.mubr.bf16.mxu0 0
      %1978 = vmatmul.mubr.bf16.gmra.mrb[0].mxu0 %v1944
      %v1979 = vpop.f32.mrb[0].mxu0
      %v1980 = vadd.f32 0.0, %v1979
      %v1981 = vpop.f32.mrb[0].mxu0
      %v1982 = vadd.f32 0.0, %v1981
      %v1983 = vpop.f32.mrb[0].mxu0
      %v1984 = vadd.f32 0.0, %v1983
      %v1985 = vpop.f32.mrb[0].mxu0
      %v1986 = vadd.f32 0.0, %v1985
      %1987 = vdwg.mxu0
      %1988 = vmatprep.subr.bf16.mxu0 0
      %1989 = vmatpush1.bf16.msra.mxu0 %v879
      %1990 = vmatprep.subr.bf16.mxu0 0
      %1991 = vmatpush1.bf16.msra.mxu0 %v882
      %1992 = vmatprep.subr.bf16.mxu0 0
      %1993 = vmatpush1.bf16.msra.mxu0 %v885
      %1994 = vmatprep.subr.bf16.mxu0 0
      %1995 = vmatpush1.bf16.msra.mxu0 %v888
      %1996 = vmatprep.subr.bf16.mxu0 0
      %1997 = vmatpush1.bf16.msra.mxu0 %v891
      %1998 = vmatprep.subr.bf16.mxu0 0
      %1999 = vmatpush1.bf16.msra.mxu0 %v894
      %2000 = vmatprep.subr.bf16.mxu0 0
      %2001 = vmatpush1.bf16.msra.mxu0 %v897
      %2002 = vmatprep.subr.bf16.mxu0 0
      %2003 = vmatpush1.bf16.msra.mxu0 %v900
      %2004 = vmatprep.subr.bf16.mxu0 0
      %2005 = vmatpush1.bf16.msra.mxu0 0
      %2006 = vmatprep.subr.bf16.mxu0 0
      %2007 = vmatpush1.bf16.msra.mxu0 0
      %2008 = vmatprep.subr.bf16.mxu0 0
      %2009 = vmatpush1.bf16.msra.mxu0 0
      %2010 = vmatprep.subr.bf16.mxu0 0
      %2011 = vmatpush1.bf16.msra.mxu0 0
      %2012 = vmatprep.subr.bf16.mxu0 0
      %2013 = vmatpush1.bf16.msra.mxu0 0
      %2014 = vmatprep.subr.bf16.mxu0 0
      %2015 = vmatpush1.bf16.msra.mxu0 0
      %2016 = vmatprep.subr.bf16.mxu0 0
      %2017 = vmatpush1.bf16.msra.mxu0 0
      %2018 = vmatprep.subr.bf16.mxu0 0
      %2019 = vmatpush1.bf16.msra.mxu0 0
      %2020 = vmatprep.mubr.bf16.mxu0 0
      %2021 = vmatmul.mubr.bf16.gmra.mrb[0].mxu0 %v1944
      %v2022 = vpop.f32.mrb[0].mxu0
      %v2023 = vadd.f32 0.0, %v2022
      %v2024 = vpop.f32.mrb[0].mxu0
      %v2025 = vpop.f32.mrb[0].mxu0
      %v2026 = vadd.f32 0.0, %v2025
      %v2027 = vpop.f32.mrb[0].mxu0
      %2028 = vdwg.mxu0
      %v2029 = vadd.f32 %v509, %v1980
      %v2030 = vadd.f32 %v513, %v1984
      %v2031 = vxor.u32 %v2029, 2147483648
      %v2032 = vxor.u32 %v2030, 2147483648
      %v2033 = vmul.f32 %v2031, 1.442695
      %v2034 = vpow.pop %v2033
      %v2035 = vmul.f32 %v2032, 1.442695
      %v2036 = vpow.pop %v2035
      %v2037 = vadd.f32 %v2034, 1.0
      %v2038 = vadd.f32 %v2036, 1.0
      %v2039 = vrcp.pop %v2037
      %v2040 = vmul.f32 1.0, %v2039
      %v2041 = vrcp.pop %v2038
      %v2042 = vmul.f32 1.0, %v2041
      %v2043 = vadd.f32 %v511, %v1982
      %v2044 = vadd.f32 %v515, %v1986
      %v2045 = vxor.u32 %v2043, 2147483648
      %v2046 = vxor.u32 %v2044, 2147483648
      %v2047 = vmul.f32 %v2045, 1.442695
      %v2048 = vpow.pop %v2047
      %v2049 = vmul.f32 %v2046, 1.442695
      %v2050 = vpow.pop %v2049
      %v2051 = vadd.f32 %v2048, 1.0
      %v2052 = vadd.f32 %v2050, 1.0
      %v2053 = vrcp.pop %v2051
      %v2054 = vmul.f32 1.0, %v2053
      %v2055 = vrcp.pop %v2052
      %v2056 = vmul.f32 1.0, %v2055
      %v2057 = vadd.f32 %v2023, %v1041
      %v2058 = vadd.f32 %v2026, %v1041
      %v2059 = vmul.f32 %v2040, %v2057
      %v2060 = vmul.f32 %v2042, %v2058
      %v2061 = vadd.f32 %v688, %v2059
      %v2062 = vadd.f32 %v691, %v2060
      %v2063 = vtanh.pop %v2061
      %v2064 = vtanh.pop %v2062
      %v2065 = vsub.f32 1.0, %v2054
      %v2066 = vsub.f32 1.0, %v2056
      %v2067 = vmul.f32 %v2065, %v2063
      %v2068 = vmul.f32 %v2066, %v2064
      %v2069 = vmul.f32 %v2054, %v1942
      %v2070 = vmul.f32 %v2056, %v1943
      %v2071 = vadd.f32 %v2067, %v2069
      %v2072 = vadd.f32 %v2068, %v2070
      %s2073 = sadd.s32 %s795, 7
      %v2074 = vstv %s2073
      %vm2075 = vcmp.lt.s32.totalorder %v2074, %v791
      %vm2076 = vcmp.lt.s32.totalorder %v2074, %v792
      %v2077 = vsel %vm2075, 1, 0
      %v2078 = vsel %vm2076, 1, 0
      %2079 = vset.pattern.permute.xlu0 0
      %2080 = vperm.xlu0 %2079, %v2077
      %v2081 = vpop.permute.xlu0 %2080
      %2082 = vset.pattern.permute.xlu0 0
      %2083 = vperm.xlu0 %2082, %v2078
      %v2084 = vpop.permute.xlu0 %2083
      %vm2085 = vcmp.eq.s32.totalorder %v2081, 1
      %vm2086 = vcmp.eq.s32.totalorder %v2084, 1
      %v2087 = vsel %vm2085, %v2071, %v1942
      %v2088 = vsel %vm2086, %v2072, %v1943
      %v2089 = vpack.c.bf16 %v2088, %v2087
      %2090 = vmatprep.subr.bf16.mxu0 %v878
      %2091 = vmatpush1.bf16.msra.mxu0 %v877
      %2092 = vmatprep.subr.bf16.mxu0 %v881
      %2093 = vmatpush1.bf16.msra.mxu0 %v880
      %2094 = vmatprep.subr.bf16.mxu0 %v884
      %2095 = vmatpush1.bf16.msra.mxu0 %v883
      %2096 = vmatprep.subr.bf16.mxu0 %v887
      %2097 = vmatpush1.bf16.msra.mxu0 %v886
      %2098 = vmatprep.subr.bf16.mxu0 %v890
      %2099 = vmatpush1.bf16.msra.mxu0 %v889
      %2100 = vmatprep.subr.bf16.mxu0 %v893
      %2101 = vmatpush1.bf16.msra.mxu0 %v892
      %2102 = vmatprep.subr.bf16.mxu0 %v896
      %2103 = vmatpush1.bf16.msra.mxu0 %v895
      %2104 = vmatprep.subr.bf16.mxu0 %v899
      %2105 = vmatpush1.bf16.msra.mxu0 %v898
      %2106 = vmatprep.subr.bf16.mxu0 0
      %2107 = vmatpush1.bf16.msra.mxu0 0
      %2108 = vmatprep.subr.bf16.mxu0 0
      %2109 = vmatpush1.bf16.msra.mxu0 0
      %2110 = vmatprep.subr.bf16.mxu0 0
      %2111 = vmatpush1.bf16.msra.mxu0 0
      %2112 = vmatprep.subr.bf16.mxu0 0
      %2113 = vmatpush1.bf16.msra.mxu0 0
      %2114 = vmatprep.subr.bf16.mxu0 0
      %2115 = vmatpush1.bf16.msra.mxu0 0
      %2116 = vmatprep.subr.bf16.mxu0 0
      %2117 = vmatpush1.bf16.msra.mxu0 0
      %2118 = vmatprep.subr.bf16.mxu0 0
      %2119 = vmatpush1.bf16.msra.mxu0 0
      %2120 = vmatprep.subr.bf16.mxu0 0
      %2121 = vmatpush1.bf16.msra.mxu0 0
      %2122 = vmatprep.mubr.bf16.mxu0 0
      %2123 = vmatmul.mubr.bf16.gmra.mrb[0].mxu0 %v2089
      %v2124 = vpop.f32.mrb[0].mxu0
      %v2125 = vadd.f32 0.0, %v2124
      %v2126 = vpop.f32.mrb[0].mxu0
      %v2127 = vadd.f32 0.0, %v2126
      %v2128 = vpop.f32.mrb[0].mxu0
      %v2129 = vadd.f32 0.0, %v2128
      %v2130 = vpop.f32.mrb[0].mxu0
      %v2131 = vadd.f32 0.0, %v2130
      %2132 = vdwg.mxu0
      %2133 = vmatprep.subr.bf16.mxu0 0
      %2134 = vmatpush1.bf16.msra.mxu0 %v879
      %2135 = vmatprep.subr.bf16.mxu0 0
      %2136 = vmatpush1.bf16.msra.mxu0 %v882
      %2137 = vmatprep.subr.bf16.mxu0 0
      %2138 = vmatpush1.bf16.msra.mxu0 %v885
      %2139 = vmatprep.subr.bf16.mxu0 0
      %2140 = vmatpush1.bf16.msra.mxu0 %v888
      %2141 = vmatprep.subr.bf16.mxu0 0
      %2142 = vmatpush1.bf16.msra.mxu0 %v891
      %2143 = vmatprep.subr.bf16.mxu0 0
      %2144 = vmatpush1.bf16.msra.mxu0 %v894
      %2145 = vmatprep.subr.bf16.mxu0 0
      %2146 = vmatpush1.bf16.msra.mxu0 %v897
      %2147 = vmatprep.subr.bf16.mxu0 0
      %2148 = vmatpush1.bf16.msra.mxu0 %v900
      %2149 = vmatprep.subr.bf16.mxu0 0
      %2150 = vmatpush1.bf16.msra.mxu0 0
      %2151 = vmatprep.subr.bf16.mxu0 0
      %2152 = vmatpush1.bf16.msra.mxu0 0
      %2153 = vmatprep.subr.bf16.mxu0 0
      %2154 = vmatpush1.bf16.msra.mxu0 0
      %2155 = vmatprep.subr.bf16.mxu0 0
      %2156 = vmatpush1.bf16.msra.mxu0 0
      %2157 = vmatprep.subr.bf16.mxu0 0
      %2158 = vmatpush1.bf16.msra.mxu0 0
      %2159 = vmatprep.subr.bf16.mxu0 0
      %2160 = vmatpush1.bf16.msra.mxu0 0
      %2161 = vmatprep.subr.bf16.mxu0 0
      %2162 = vmatpush1.bf16.msra.mxu0 0
      %2163 = vmatprep.subr.bf16.mxu0 0
      %2164 = vmatpush1.bf16.msra.mxu0 0
      %2165 = vmatprep.mubr.bf16.mxu0 0
      %2166 = vmatmul.mubr.bf16.gmra.mrb[0].mxu0 %v2089
      %v2167 = vpop.f32.mrb[0].mxu0
      %v2168 = vadd.f32 0.0, %v2167
      %v2169 = vpop.f32.mrb[0].mxu0
      %v2170 = vpop.f32.mrb[0].mxu0
      %v2171 = vadd.f32 0.0, %v2170
      %v2172 = vpop.f32.mrb[0].mxu0
      %2173 = vdwg.mxu0
      %v2174 = vadd.f32 %v519, %v2125
      %v2175 = vadd.f32 %v523, %v2129
      %v2176 = vxor.u32 %v2174, 2147483648
      %v2177 = vxor.u32 %v2175, 2147483648
      %v2178 = vmul.f32 %v2176, 1.442695
      %v2179 = vpow.pop %v2178
      %v2180 = vmul.f32 %v2177, 1.442695
      %v2181 = vpow.pop %v2180
      %v2182 = vadd.f32 %v2179, 1.0
      %v2183 = vadd.f32 %v2181, 1.0
      %v2184 = vrcp.pop %v2182
      %v2185 = vmul.f32 1.0, %v2184
      %v2186 = vrcp.pop %v2183
      %v2187 = vmul.f32 1.0, %v2186
      %v2188 = vadd.f32 %v521, %v2127
      %v2189 = vadd.f32 %v525, %v2131
      %v2190 = vxor.u32 %v2188, 2147483648
      %v2191 = vxor.u32 %v2189, 2147483648
      %v2192 = vmul.f32 %v2190, 1.442695
      %v2193 = vpow.pop %v2192
      %v2194 = vmul.f32 %v2191, 1.442695
      %v2195 = vpow.pop %v2194
      %v2196 = vadd.f32 %v2193, 1.0
      %v2197 = vadd.f32 %v2195, 1.0
      %v2198 = vrcp.pop %v2196
      %v2199 = vmul.f32 1.0, %v2198
      %v2200 = vrcp.pop %v2197
      %v2201 = vmul.f32 1.0, %v2200
      %v2202 = vadd.f32 %v2168, %v1041
      %v2203 = vadd.f32 %v2171, %v1041
      %v2204 = vmul.f32 %v2185, %v2202
      %v2205 = vmul.f32 %v2187, %v2203
      %v2206 = vadd.f32 %v696, %v2204
      %v2207 = vadd.f32 %v699, %v2205
      %v2208 = vtanh.pop %v2206
      %v2209 = vtanh.pop %v2207
      %v2210 = vsub.f32 1.0, %v2199
      %v2211 = vsub.f32 1.0, %v2201
      %v2212 = vmul.f32 %v2210, %v2208
      %v2213 = vmul.f32 %v2211, %v2209
      %v2214 = vmul.f32 %v2199, %v2087
      %v2215 = vmul.f32 %v2201, %v2088
      %v2216 = vadd.f32 %v2212, %v2214
      %v2217 = vadd.f32 %v2213, %v2215
      %s2218 = sadd.s32 %s795, 8
      %v2219 = vstv %s2218
      %vm2220 = vcmp.lt.s32.totalorder %v2219, %v791
      %vm2221 = vcmp.lt.s32.totalorder %v2219, %v792
      %v2222 = vsel %vm2220, 1, 0
      %v2223 = vsel %vm2221, 1, 0
      %2224 = vset.pattern.permute.xlu0 0
      %2225 = vperm.xlu0 %2224, %v2222
      %v2226 = vpop.permute.xlu0 %2225
      %2227 = vset.pattern.permute.xlu0 0
      %2228 = vperm.xlu0 %2227, %v2223
      %v2229 = vpop.permute.xlu0 %2228
      %vm2230 = vcmp.eq.s32.totalorder %v2226, 1
      %vm2231 = vcmp.eq.s32.totalorder %v2229, 1
      %v2232 = vsel %vm2230, %v2216, %v2087
      %v2233 = vsel %vm2231, %v2217, %v2088
      %v2234 = vpack.c.bf16 %v2233, %v2232
      %2235 = vmatprep.subr.bf16.mxu0 %v878
      %2236 = vmatpush1.bf16.msra.mxu0 %v877
      %2237 = vmatprep.subr.bf16.mxu0 %v881
      %2238 = vmatpush1.bf16.msra.mxu0 %v880
      %2239 = vmatprep.subr.bf16.mxu0 %v884
      %2240 = vmatpush1.bf16.msra.mxu0 %v883
      %2241 = vmatprep.subr.bf16.mxu0 %v887
      %2242 = vmatpush1.bf16.msra.mxu0 %v886
      %2243 = vmatprep.subr.bf16.mxu0 %v890
      %2244 = vmatpush1.bf16.msra.mxu0 %v889
      %2245 = vmatprep.subr.bf16.mxu0 %v893
      %2246 = vmatpush1.bf16.msra.mxu0 %v892
      %2247 = vmatprep.subr.bf16.mxu0 %v896
      %2248 = vmatpush1.bf16.msra.mxu0 %v895
      %2249 = vmatprep.subr.bf16.mxu0 %v899
      %2250 = vmatpush1.bf16.msra.mxu0 %v898
      %2251 = vmatprep.subr.bf16.mxu0 0
      %2252 = vmatpush1.bf16.msra.mxu0 0
      %2253 = vmatprep.subr.bf16.mxu0 0
      %2254 = vmatpush1.bf16.msra.mxu0 0
      %2255 = vmatprep.subr.bf16.mxu0 0
      %2256 = vmatpush1.bf16.msra.mxu0 0
      %2257 = vmatprep.subr.bf16.mxu0 0
      %2258 = vmatpush1.bf16.msra.mxu0 0
      %2259 = vmatprep.subr.bf16.mxu0 0
      %2260 = vmatpush1.bf16.msra.mxu0 0
      %2261 = vmatprep.subr.bf16.mxu0 0
      %2262 = vmatpush1.bf16.msra.mxu0 0
      %2263 = vmatprep.subr.bf16.mxu0 0
      %2264 = vmatpush1.bf16.msra.mxu0 0
      %2265 = vmatprep.subr.bf16.mxu0 0
      %2266 = vmatpush1.bf16.msra.mxu0 0
      %2267 = vmatprep.mubr.bf16.mxu0 0
      %2268 = vmatmul.mubr.bf16.gmra.mrb[0].mxu0 %v2234
      %v2269 = vpop.f32.mrb[0].mxu0
      %v2270 = vadd.f32 0.0, %v2269
      %v2271 = vpop.f32.mrb[0].mxu0
      %v2272 = vadd.f32 0.0, %v2271
      %v2273 = vpop.f32.mrb[0].mxu0
      %v2274 = vadd.f32 0.0, %v2273
      %v2275 = vpop.f32.mrb[0].mxu0
      %v2276 = vadd.f32 0.0, %v2275
      %2277 = vdwg.mxu0
      %2278 = vmatprep.subr.bf16.mxu0 0
      %2279 = vmatpush1.bf16.msra.mxu0 %v879
      %2280 = vmatprep.subr.bf16.mxu0 0
      %2281 = vmatpush1.bf16.msra.mxu0 %v882
      %2282 = vmatprep.subr.bf16.mxu0 0
      %2283 = vmatpush1.bf16.msra.mxu0 %v885
      %2284 = vmatprep.subr.bf16.mxu0 0
      %2285 = vmatpush1.bf16.msra.mxu0 %v888
      %2286 = vmatprep.subr.bf16.mxu0 0
      %2287 = vmatpush1.bf16.msra.mxu0 %v891
      %2288 = vmatprep.subr.bf16.mxu0 0
      %2289 = vmatpush1.bf16.msra.mxu0 %v894
      %2290 = vmatprep.subr.bf16.mxu0 0
      %2291 = vmatpush1.bf16.msra.mxu0 %v897
      %2292 = vmatprep.subr.bf16.mxu0 0
      %2293 = vmatpush1.bf16.msra.mxu0 %v900
      %2294 = vmatprep.subr.bf16.mxu0 0
      %2295 = vmatpush1.bf16.msra.mxu0 0
      %2296 = vmatprep.subr.bf16.mxu0 0
      %2297 = vmatpush1.bf16.msra.mxu0 0
      %2298 = vmatprep.subr.bf16.mxu0 0
      %2299 = vmatpush1.bf16.msra.mxu0 0
      %2300 = vmatprep.subr.bf16.mxu0 0
      %2301 = vmatpush1.bf16.msra.mxu0 0
      %2302 = vmatprep.subr.bf16.mxu0 0
      %2303 = vmatpush1.bf16.msra.mxu0 0
      %2304 = vmatprep.subr.bf16.mxu0 0
      %2305 = vmatpush1.bf16.msra.mxu0 0
      %2306 = vmatprep.subr.bf16.mxu0 0
      %2307 = vmatpush1.bf16.msra.mxu0 0
      %2308 = vmatprep.subr.bf16.mxu0 0
      %2309 = vmatpush1.bf16.msra.mxu0 0
      %2310 = vmatprep.mubr.bf16.mxu0 0
      %2311 = vmatmul.mubr.bf16.gmra.mrb[0].mxu0 %v2234
      %v2312 = vpop.f32.mrb[0].mxu0
      %v2313 = vadd.f32 0.0, %v2312
      %v2314 = vpop.f32.mrb[0].mxu0
      %v2315 = vpop.f32.mrb[0].mxu0
      %v2316 = vadd.f32 0.0, %v2315
      %v2317 = vpop.f32.mrb[0].mxu0
      %2318 = vdwg.mxu0
      %v2319 = vadd.f32 %v529, %v2270
      %v2320 = vadd.f32 %v533, %v2274
      %v2321 = vxor.u32 %v2319, 2147483648
      %v2322 = vxor.u32 %v2320, 2147483648
      %v2323 = vmul.f32 %v2321, 1.442695
      %v2324 = vpow.pop %v2323
      %v2325 = vmul.f32 %v2322, 1.442695
      %v2326 = vpow.pop %v2325
      %v2327 = vadd.f32 %v2324, 1.0
      %v2328 = vadd.f32 %v2326, 1.0
      %v2329 = vrcp.pop %v2327
      %v2330 = vmul.f32 1.0, %v2329
      %v2331 = vrcp.pop %v2328
      %v2332 = vmul.f32 1.0, %v2331
      %v2333 = vadd.f32 %v531, %v2272
      %v2334 = vadd.f32 %v535, %v2276
      %v2335 = vxor.u32 %v2333, 2147483648
      %v2336 = vxor.u32 %v2334, 2147483648
      %v2337 = vmul.f32 %v2335, 1.442695
      %v2338 = vpow.pop %v2337
      %v2339 = vmul.f32 %v2336, 1.442695
      %v2340 = vpow.pop %v2339
      %v2341 = vadd.f32 %v2338, 1.0
      %v2342 = vadd.f32 %v2340, 1.0
      %v2343 = vrcp.pop %v2341
      %v2344 = vmul.f32 1.0, %v2343
      %v2345 = vrcp.pop %v2342
      %v2346 = vmul.f32 1.0, %v2345
      %v2347 = vadd.f32 %v2313, %v1041
      %v2348 = vadd.f32 %v2316, %v1041
      %v2349 = vmul.f32 %v2330, %v2347
      %v2350 = vmul.f32 %v2332, %v2348
      %v2351 = vadd.f32 %v704, %v2349
      %v2352 = vadd.f32 %v707, %v2350
      %v2353 = vtanh.pop %v2351
      %v2354 = vtanh.pop %v2352
      %v2355 = vsub.f32 1.0, %v2344
      %v2356 = vsub.f32 1.0, %v2346
      %v2357 = vmul.f32 %v2355, %v2353
      %v2358 = vmul.f32 %v2356, %v2354
      %v2359 = vmul.f32 %v2344, %v2232
      %v2360 = vmul.f32 %v2346, %v2233
      %v2361 = vadd.f32 %v2357, %v2359
      %v2362 = vadd.f32 %v2358, %v2360
      %s2363 = sadd.s32 %s795, 9
      %v2364 = vstv %s2363
      %vm2365 = vcmp.lt.s32.totalorder %v2364, %v791
      %vm2366 = vcmp.lt.s32.totalorder %v2364, %v792
      %v2367 = vsel %vm2365, 1, 0
      %v2368 = vsel %vm2366, 1, 0
      %2369 = vset.pattern.permute.xlu0 0
      %2370 = vperm.xlu0 %2369, %v2367
      %v2371 = vpop.permute.xlu0 %2370
      %2372 = vset.pattern.permute.xlu0 0
      %2373 = vperm.xlu0 %2372, %v2368
      %v2374 = vpop.permute.xlu0 %2373
      %vm2375 = vcmp.eq.s32.totalorder %v2371, 1
      %vm2376 = vcmp.eq.s32.totalorder %v2374, 1
      %v2377 = vsel %vm2375, %v2361, %v2232
      %v2378 = vsel %vm2376, %v2362, %v2233
      %v2379 = vpack.c.bf16 %v2378, %v2377
      %2380 = vmatprep.subr.bf16.mxu0 %v878
      %2381 = vmatpush1.bf16.msra.mxu0 %v877
      %2382 = vmatprep.subr.bf16.mxu0 %v881
      %2383 = vmatpush1.bf16.msra.mxu0 %v880
      %2384 = vmatprep.subr.bf16.mxu0 %v884
      %2385 = vmatpush1.bf16.msra.mxu0 %v883
      %2386 = vmatprep.subr.bf16.mxu0 %v887
      %2387 = vmatpush1.bf16.msra.mxu0 %v886
      %2388 = vmatprep.subr.bf16.mxu0 %v890
      %2389 = vmatpush1.bf16.msra.mxu0 %v889
      %2390 = vmatprep.subr.bf16.mxu0 %v893
      %2391 = vmatpush1.bf16.msra.mxu0 %v892
      %2392 = vmatprep.subr.bf16.mxu0 %v896
      %2393 = vmatpush1.bf16.msra.mxu0 %v895
      %2394 = vmatprep.subr.bf16.mxu0 %v899
      %2395 = vmatpush1.bf16.msra.mxu0 %v898
      %2396 = vmatprep.subr.bf16.mxu0 0
      %2397 = vmatpush1.bf16.msra.mxu0 0
      %2398 = vmatprep.subr.bf16.mxu0 0
      %2399 = vmatpush1.bf16.msra.mxu0 0
      %2400 = vmatprep.subr.bf16.mxu0 0
      %2401 = vmatpush1.bf16.msra.mxu0 0
      %2402 = vmatprep.subr.bf16.mxu0 0
      %2403 = vmatpush1.bf16.msra.mxu0 0
      %2404 = vmatprep.subr.bf16.mxu0 0
      %2405 = vmatpush1.bf16.msra.mxu0 0
      %2406 = vmatprep.subr.bf16.mxu0 0
      %2407 = vmatpush1.bf16.msra.mxu0 0
      %2408 = vmatprep.subr.bf16.mxu0 0
      %2409 = vmatpush1.bf16.msra.mxu0 0
      %2410 = vmatprep.subr.bf16.mxu0 0
      %2411 = vmatpush1.bf16.msra.mxu0 0
      %2412 = vmatprep.mubr.bf16.mxu0 0
      %2413 = vmatmul.mubr.bf16.gmra.mrb[0].mxu0 %v2379
      %v2414 = vpop.f32.mrb[0].mxu0
      %v2415 = vadd.f32 0.0, %v2414
      %v2416 = vpop.f32.mrb[0].mxu0
      %v2417 = vadd.f32 0.0, %v2416
      %v2418 = vpop.f32.mrb[0].mxu0
      %v2419 = vadd.f32 0.0, %v2418
      %v2420 = vpop.f32.mrb[0].mxu0
      %v2421 = vadd.f32 0.0, %v2420
      %2422 = vdwg.mxu0
      %2423 = vmatprep.subr.bf16.mxu0 0
      %2424 = vmatpush1.bf16.msra.mxu0 %v879
      %2425 = vmatprep.subr.bf16.mxu0 0
      %2426 = vmatpush1.bf16.msra.mxu0 %v882
      %2427 = vmatprep.subr.bf16.mxu0 0
      %2428 = vmatpush1.bf16.msra.mxu0 %v885
      %2429 = vmatprep.subr.bf16.mxu0 0
      %2430 = vmatpush1.bf16.msra.mxu0 %v888
      %2431 = vmatprep.subr.bf16.mxu0 0
      %2432 = vmatpush1.bf16.msra.mxu0 %v891
      %2433 = vmatprep.subr.bf16.mxu0 0
      %2434 = vmatpush1.bf16.msra.mxu0 %v894
      %2435 = vmatprep.subr.bf16.mxu0 0
      %2436 = vmatpush1.bf16.msra.mxu0 %v897
      %2437 = vmatprep.subr.bf16.mxu0 0
      %2438 = vmatpush1.bf16.msra.mxu0 %v900
      %2439 = vmatprep.subr.bf16.mxu0 0
      %2440 = vmatpush1.bf16.msra.mxu0 0
      %2441 = vmatprep.subr.bf16.mxu0 0
      %2442 = vmatpush1.bf16.msra.mxu0 0
      %2443 = vmatprep.subr.bf16.mxu0 0
      %2444 = vmatpush1.bf16.msra.mxu0 0
      %2445 = vmatprep.subr.bf16.mxu0 0
      %2446 = vmatpush1.bf16.msra.mxu0 0
      %2447 = vmatprep.subr.bf16.mxu0 0
      %2448 = vmatpush1.bf16.msra.mxu0 0
      %2449 = vmatprep.subr.bf16.mxu0 0
      %2450 = vmatpush1.bf16.msra.mxu0 0
      %2451 = vmatprep.subr.bf16.mxu0 0
      %2452 = vmatpush1.bf16.msra.mxu0 0
      %2453 = vmatprep.subr.bf16.mxu0 0
      %2454 = vmatpush1.bf16.msra.mxu0 0
      %2455 = vmatprep.mubr.bf16.mxu0 0
      %2456 = vmatmul.mubr.bf16.gmra.mrb[0].mxu0 %v2379
      %v2457 = vpop.f32.mrb[0].mxu0
      %v2458 = vadd.f32 0.0, %v2457
      %v2459 = vpop.f32.mrb[0].mxu0
      %v2460 = vpop.f32.mrb[0].mxu0
      %v2461 = vadd.f32 0.0, %v2460
      %v2462 = vpop.f32.mrb[0].mxu0
      %2463 = vdwg.mxu0
      %v2464 = vadd.f32 %v539, %v2415
      %v2465 = vadd.f32 %v543, %v2419
      %v2466 = vxor.u32 %v2464, 2147483648
      %v2467 = vxor.u32 %v2465, 2147483648
      %v2468 = vmul.f32 %v2466, 1.442695
      %v2469 = vpow.pop %v2468
      %v2470 = vmul.f32 %v2467, 1.442695
      %v2471 = vpow.pop %v2470
      %v2472 = vadd.f32 %v2469, 1.0
      %v2473 = vadd.f32 %v2471, 1.0
      %v2474 = vrcp.pop %v2472
      %v2475 = vmul.f32 1.0, %v2474
      %v2476 = vrcp.pop %v2473
      %v2477 = vmul.f32 1.0, %v2476
      %v2478 = vadd.f32 %v541, %v2417
      %v2479 = vadd.f32 %v545, %v2421
      %v2480 = vxor.u32 %v2478, 2147483648
      %v2481 = vxor.u32 %v2479, 2147483648
      %v2482 = vmul.f32 %v2480, 1.442695
      %v2483 = vpow.pop %v2482
      %v2484 = vmul.f32 %v2481, 1.442695
      %v2485 = vpow.pop %v2484
      %v2486 = vadd.f32 %v2483, 1.0
      %v2487 = vadd.f32 %v2485, 1.0
      %v2488 = vrcp.pop %v2486
      %v2489 = vmul.f32 1.0, %v2488
      %v2490 = vrcp.pop %v2487
      %v2491 = vmul.f32 1.0, %v2490
      %v2492 = vadd.f32 %v2458, %v1041
      %v2493 = vadd.f32 %v2461, %v1041
      %v2494 = vmul.f32 %v2475, %v2492
      %v2495 = vmul.f32 %v2477, %v2493
      %v2496 = vadd.f32 %v712, %v2494
      %v2497 = vadd.f32 %v715, %v2495
      %v2498 = vtanh.pop %v2496
      %v2499 = vtanh.pop %v2497
      %v2500 = vsub.f32 1.0, %v2489
      %v2501 = vsub.f32 1.0, %v2491
      %v2502 = vmul.f32 %v2500, %v2498
      %v2503 = vmul.f32 %v2501, %v2499
      %v2504 = vmul.f32 %v2489, %v2377
      %v2505 = vmul.f32 %v2491, %v2378
      %v2506 = vadd.f32 %v2502, %v2504
      %v2507 = vadd.f32 %v2503, %v2505
      %s2508 = sadd.s32 %s795, 10
      %v2509 = vstv %s2508
      %vm2510 = vcmp.lt.s32.totalorder %v2509, %v791
      %vm2511 = vcmp.lt.s32.totalorder %v2509, %v792
      %v2512 = vsel %vm2510, 1, 0
      %v2513 = vsel %vm2511, 1, 0
      %2514 = vset.pattern.permute.xlu0 0
      %2515 = vperm.xlu0 %2514, %v2512
      %v2516 = vpop.permute.xlu0 %2515
      %2517 = vset.pattern.permute.xlu0 0
      %2518 = vperm.xlu0 %2517, %v2513
      %v2519 = vpop.permute.xlu0 %2518
      %vm2520 = vcmp.eq.s32.totalorder %v2516, 1
      %vm2521 = vcmp.eq.s32.totalorder %v2519, 1
      %v2522 = vsel %vm2520, %v2506, %v2377
      %v2523 = vsel %vm2521, %v2507, %v2378
      %v2524 = vpack.c.bf16 %v2523, %v2522
      %2525 = vmatprep.subr.bf16.mxu0 %v878
      %2526 = vmatpush1.bf16.msra.mxu0 %v877
      %2527 = vmatprep.subr.bf16.mxu0 %v881
      %2528 = vmatpush1.bf16.msra.mxu0 %v880
      %2529 = vmatprep.subr.bf16.mxu0 %v884
      %2530 = vmatpush1.bf16.msra.mxu0 %v883
      %2531 = vmatprep.subr.bf16.mxu0 %v887
      %2532 = vmatpush1.bf16.msra.mxu0 %v886
      %2533 = vmatprep.subr.bf16.mxu0 %v890
      %2534 = vmatpush1.bf16.msra.mxu0 %v889
      %2535 = vmatprep.subr.bf16.mxu0 %v893
      %2536 = vmatpush1.bf16.msra.mxu0 %v892
      %2537 = vmatprep.subr.bf16.mxu0 %v896
      %2538 = vmatpush1.bf16.msra.mxu0 %v895
      %2539 = vmatprep.subr.bf16.mxu0 %v899
      %2540 = vmatpush1.bf16.msra.mxu0 %v898
      %2541 = vmatprep.subr.bf16.mxu0 0
      %2542 = vmatpush1.bf16.msra.mxu0 0
      %2543 = vmatprep.subr.bf16.mxu0 0
      %2544 = vmatpush1.bf16.msra.mxu0 0
      %2545 = vmatprep.subr.bf16.mxu0 0
      %2546 = vmatpush1.bf16.msra.mxu0 0
      %2547 = vmatprep.subr.bf16.mxu0 0
      %2548 = vmatpush1.bf16.msra.mxu0 0
      %2549 = vmatprep.subr.bf16.mxu0 0
      %2550 = vmatpush1.bf16.msra.mxu0 0
      %2551 = vmatprep.subr.bf16.mxu0 0
      %2552 = vmatpush1.bf16.msra.mxu0 0
      %2553 = vmatprep.subr.bf16.mxu0 0
      %2554 = vmatpush1.bf16.msra.mxu0 0
      %2555 = vmatprep.subr.bf16.mxu0 0
      %2556 = vmatpush1.bf16.msra.mxu0 0
      %2557 = vmatprep.mubr.bf16.mxu0 0
      %2558 = vmatmul.mubr.bf16.gmra.mrb[0].mxu0 %v2524
      %v2559 = vpop.f32.mrb[0].mxu0
      %v2560 = vadd.f32 0.0, %v2559
      %v2561 = vpop.f32.mrb[0].mxu0
      %v2562 = vadd.f32 0.0, %v2561
      %v2563 = vpop.f32.mrb[0].mxu0
      %v2564 = vadd.f32 0.0, %v2563
      %v2565 = vpop.f32.mrb[0].mxu0
      %v2566 = vadd.f32 0.0, %v2565
      %2567 = vdwg.mxu0
      %2568 = vmatprep.subr.bf16.mxu0 0
      %2569 = vmatpush1.bf16.msra.mxu0 %v879
      %2570 = vmatprep.subr.bf16.mxu0 0
      %2571 = vmatpush1.bf16.msra.mxu0 %v882
      %2572 = vmatprep.subr.bf16.mxu0 0
      %2573 = vmatpush1.bf16.msra.mxu0 %v885
      %2574 = vmatprep.subr.bf16.mxu0 0
      %2575 = vmatpush1.bf16.msra.mxu0 %v888
      %2576 = vmatprep.subr.bf16.mxu0 0
      %2577 = vmatpush1.bf16.msra.mxu0 %v891
      %2578 = vmatprep.subr.bf16.mxu0 0
      %2579 = vmatpush1.bf16.msra.mxu0 %v894
      %2580 = vmatprep.subr.bf16.mxu0 0
      %2581 = vmatpush1.bf16.msra.mxu0 %v897
      %2582 = vmatprep.subr.bf16.mxu0 0
      %2583 = vmatpush1.bf16.msra.mxu0 %v900
      %2584 = vmatprep.subr.bf16.mxu0 0
      %2585 = vmatpush1.bf16.msra.mxu0 0
      %2586 = vmatprep.subr.bf16.mxu0 0
      %2587 = vmatpush1.bf16.msra.mxu0 0
      %2588 = vmatprep.subr.bf16.mxu0 0
      %2589 = vmatpush1.bf16.msra.mxu0 0
      %2590 = vmatprep.subr.bf16.mxu0 0
      %2591 = vmatpush1.bf16.msra.mxu0 0
      %2592 = vmatprep.subr.bf16.mxu0 0
      %2593 = vmatpush1.bf16.msra.mxu0 0
      %2594 = vmatprep.subr.bf16.mxu0 0
      %2595 = vmatpush1.bf16.msra.mxu0 0
      %2596 = vmatprep.subr.bf16.mxu0 0
      %2597 = vmatpush1.bf16.msra.mxu0 0
      %2598 = vmatprep.subr.bf16.mxu0 0
      %2599 = vmatpush1.bf16.msra.mxu0 0
      %2600 = vmatprep.mubr.bf16.mxu0 0
      %2601 = vmatmul.mubr.bf16.gmra.mrb[0].mxu0 %v2524
      %v2602 = vpop.f32.mrb[0].mxu0
      %v2603 = vadd.f32 0.0, %v2602
      %v2604 = vpop.f32.mrb[0].mxu0
      %v2605 = vpop.f32.mrb[0].mxu0
      %v2606 = vadd.f32 0.0, %v2605
      %v2607 = vpop.f32.mrb[0].mxu0
      %2608 = vdwg.mxu0
      %v2609 = vadd.f32 %v549, %v2560
      %v2610 = vadd.f32 %v553, %v2564
      %v2611 = vxor.u32 %v2609, 2147483648
      %v2612 = vxor.u32 %v2610, 2147483648
      %v2613 = vmul.f32 %v2611, 1.442695
      %v2614 = vpow.pop %v2613
      %v2615 = vmul.f32 %v2612, 1.442695
      %v2616 = vpow.pop %v2615
      %v2617 = vadd.f32 %v2614, 1.0
      %v2618 = vadd.f32 %v2616, 1.0
      %v2619 = vrcp.pop %v2617
      %v2620 = vmul.f32 1.0, %v2619
      %v2621 = vrcp.pop %v2618
      %v2622 = vmul.f32 1.0, %v2621
      %v2623 = vadd.f32 %v551, %v2562
      %v2624 = vadd.f32 %v555, %v2566
      %v2625 = vxor.u32 %v2623, 2147483648
      %v2626 = vxor.u32 %v2624, 2147483648
      %v2627 = vmul.f32 %v2625, 1.442695
      %v2628 = vpow.pop %v2627
      %v2629 = vmul.f32 %v2626, 1.442695
      %v2630 = vpow.pop %v2629
      %v2631 = vadd.f32 %v2628, 1.0
      %v2632 = vadd.f32 %v2630, 1.0
      %v2633 = vrcp.pop %v2631
      %v2634 = vmul.f32 1.0, %v2633
      %v2635 = vrcp.pop %v2632
      %v2636 = vmul.f32 1.0, %v2635
      %v2637 = vadd.f32 %v2603, %v1041
      %v2638 = vadd.f32 %v2606, %v1041
      %v2639 = vmul.f32 %v2620, %v2637
      %v2640 = vmul.f32 %v2622, %v2638
      %v2641 = vadd.f32 %v720, %v2639
      %v2642 = vadd.f32 %v723, %v2640
      %v2643 = vtanh.pop %v2641
      %v2644 = vtanh.pop %v2642
      %v2645 = vsub.f32 1.0, %v2634
      %v2646 = vsub.f32 1.0, %v2636
      %v2647 = vmul.f32 %v2645, %v2643
      %v2648 = vmul.f32 %v2646, %v2644
      %v2649 = vmul.f32 %v2634, %v2522
      %v2650 = vmul.f32 %v2636, %v2523
      %v2651 = vadd.f32 %v2647, %v2649
      %v2652 = vadd.f32 %v2648, %v2650
      %s2653 = sadd.s32 %s795, 11
      %v2654 = vstv %s2653
      %vm2655 = vcmp.lt.s32.totalorder %v2654, %v791
      %vm2656 = vcmp.lt.s32.totalorder %v2654, %v792
      %v2657 = vsel %vm2655, 1, 0
      %v2658 = vsel %vm2656, 1, 0
      %2659 = vset.pattern.permute.xlu0 0
      %2660 = vperm.xlu0 %2659, %v2657
      %v2661 = vpop.permute.xlu0 %2660
      %2662 = vset.pattern.permute.xlu0 0
      %2663 = vperm.xlu0 %2662, %v2658
      %v2664 = vpop.permute.xlu0 %2663
      %vm2665 = vcmp.eq.s32.totalorder %v2661, 1
      %vm2666 = vcmp.eq.s32.totalorder %v2664, 1
      %v2667 = vsel %vm2665, %v2651, %v2522
      %v2668 = vsel %vm2666, %v2652, %v2523
      %v2669 = vpack.c.bf16 %v2668, %v2667
      %2670 = vmatprep.subr.bf16.mxu0 %v878
      %2671 = vmatpush1.bf16.msra.mxu0 %v877
      %2672 = vmatprep.subr.bf16.mxu0 %v881
      %2673 = vmatpush1.bf16.msra.mxu0 %v880
      %2674 = vmatprep.subr.bf16.mxu0 %v884
      %2675 = vmatpush1.bf16.msra.mxu0 %v883
      %2676 = vmatprep.subr.bf16.mxu0 %v887
      %2677 = vmatpush1.bf16.msra.mxu0 %v886
      %2678 = vmatprep.subr.bf16.mxu0 %v890
      %2679 = vmatpush1.bf16.msra.mxu0 %v889
      %2680 = vmatprep.subr.bf16.mxu0 %v893
      %2681 = vmatpush1.bf16.msra.mxu0 %v892
      %2682 = vmatprep.subr.bf16.mxu0 %v896
      %2683 = vmatpush1.bf16.msra.mxu0 %v895
      %2684 = vmatprep.subr.bf16.mxu0 %v899
      %2685 = vmatpush1.bf16.msra.mxu0 %v898
      %2686 = vmatprep.subr.bf16.mxu0 0
      %2687 = vmatpush1.bf16.msra.mxu0 0
      %2688 = vmatprep.subr.bf16.mxu0 0
      %2689 = vmatpush1.bf16.msra.mxu0 0
      %2690 = vmatprep.subr.bf16.mxu0 0
      %2691 = vmatpush1.bf16.msra.mxu0 0
      %2692 = vmatprep.subr.bf16.mxu0 0
      %2693 = vmatpush1.bf16.msra.mxu0 0
      %2694 = vmatprep.subr.bf16.mxu0 0
      %2695 = vmatpush1.bf16.msra.mxu0 0
      %2696 = vmatprep.subr.bf16.mxu0 0
      %2697 = vmatpush1.bf16.msra.mxu0 0
      %2698 = vmatprep.subr.bf16.mxu0 0
      %2699 = vmatpush1.bf16.msra.mxu0 0
      %2700 = vmatprep.subr.bf16.mxu0 0
      %2701 = vmatpush1.bf16.msra.mxu0 0
      %2702 = vmatprep.mubr.bf16.mxu0 0
      %2703 = vmatmul.mubr.bf16.gmra.mrb[0].mxu0 %v2669
      %v2704 = vpop.f32.mrb[0].mxu0
      %v2705 = vadd.f32 0.0, %v2704
      %v2706 = vpop.f32.mrb[0].mxu0
      %v2707 = vadd.f32 0.0, %v2706
      %v2708 = vpop.f32.mrb[0].mxu0
      %v2709 = vadd.f32 0.0, %v2708
      %v2710 = vpop.f32.mrb[0].mxu0
      %v2711 = vadd.f32 0.0, %v2710
      %2712 = vdwg.mxu0
      %2713 = vmatprep.subr.bf16.mxu0 0
      %2714 = vmatpush1.bf16.msra.mxu0 %v879
      %2715 = vmatprep.subr.bf16.mxu0 0
      %2716 = vmatpush1.bf16.msra.mxu0 %v882
      %2717 = vmatprep.subr.bf16.mxu0 0
      %2718 = vmatpush1.bf16.msra.mxu0 %v885
      %2719 = vmatprep.subr.bf16.mxu0 0
      %2720 = vmatpush1.bf16.msra.mxu0 %v888
      %2721 = vmatprep.subr.bf16.mxu0 0
      %2722 = vmatpush1.bf16.msra.mxu0 %v891
      %2723 = vmatprep.subr.bf16.mxu0 0
      %2724 = vmatpush1.bf16.msra.mxu0 %v894
      %2725 = vmatprep.subr.bf16.mxu0 0
      %2726 = vmatpush1.bf16.msra.mxu0 %v897
      %2727 = vmatprep.subr.bf16.mxu0 0
      %2728 = vmatpush1.bf16.msra.mxu0 %v900
      %2729 = vmatprep.subr.bf16.mxu0 0
      %2730 = vmatpush1.bf16.msra.mxu0 0
      %2731 = vmatprep.subr.bf16.mxu0 0
      %2732 = vmatpush1.bf16.msra.mxu0 0
      %2733 = vmatprep.subr.bf16.mxu0 0
      %2734 = vmatpush1.bf16.msra.mxu0 0
      %2735 = vmatprep.subr.bf16.mxu0 0
      %2736 = vmatpush1.bf16.msra.mxu0 0
      %2737 = vmatprep.subr.bf16.mxu0 0
      %2738 = vmatpush1.bf16.msra.mxu0 0
      %2739 = vmatprep.subr.bf16.mxu0 0
      %2740 = vmatpush1.bf16.msra.mxu0 0
      %2741 = vmatprep.subr.bf16.mxu0 0
      %2742 = vmatpush1.bf16.msra.mxu0 0
      %2743 = vmatprep.subr.bf16.mxu0 0
      %2744 = vmatpush1.bf16.msra.mxu0 0
      %2745 = vmatprep.mubr.bf16.mxu0 0
      %2746 = vmatmul.mubr.bf16.gmra.mrb[0].mxu0 %v2669
      %v2747 = vpop.f32.mrb[0].mxu0
      %v2748 = vadd.f32 0.0, %v2747
      %v2749 = vpop.f32.mrb[0].mxu0
      %v2750 = vpop.f32.mrb[0].mxu0
      %v2751 = vadd.f32 0.0, %v2750
      %v2752 = vpop.f32.mrb[0].mxu0
      %2753 = vdwg.mxu0
      %v2754 = vadd.f32 %v559, %v2705
      %v2755 = vadd.f32 %v563, %v2709
      %v2756 = vxor.u32 %v2754, 2147483648
      %v2757 = vxor.u32 %v2755, 2147483648
      %v2758 = vmul.f32 %v2756, 1.442695
      %v2759 = vpow.pop %v2758
      %v2760 = vmul.f32 %v2757, 1.442695
      %v2761 = vpow.pop %v2760
      %v2762 = vadd.f32 %v2759, 1.0
      %v2763 = vadd.f32 %v2761, 1.0
      %v2764 = vrcp.pop %v2762
      %v2765 = vmul.f32 1.0, %v2764
      %v2766 = vrcp.pop %v2763
      %v2767 = vmul.f32 1.0, %v2766
      %v2768 = vadd.f32 %v561, %v2707
      %v2769 = vadd.f32 %v565, %v2711
      %v2770 = vxor.u32 %v2768, 2147483648
      %v2771 = vxor.u32 %v2769, 2147483648
      %v2772 = vmul.f32 %v2770, 1.442695
      %v2773 = vpow.pop %v2772
      %v2774 = vmul.f32 %v2771, 1.442695
      %v2775 = vpow.pop %v2774
      %v2776 = vadd.f32 %v2773, 1.0
      %v2777 = vadd.f32 %v2775, 1.0
      %v2778 = vrcp.pop %v2776
      %v2779 = vmul.f32 1.0, %v2778
      %v2780 = vrcp.pop %v2777
      %v2781 = vmul.f32 1.0, %v2780
      %v2782 = vadd.f32 %v2748, %v1041
      %v2783 = vadd.f32 %v2751, %v1041
      %v2784 = vmul.f32 %v2765, %v2782
      %v2785 = vmul.f32 %v2767, %v2783
      %v2786 = vadd.f32 %v728, %v2784
      %v2787 = vadd.f32 %v731, %v2785
      %v2788 = vtanh.pop %v2786
      %v2789 = vtanh.pop %v2787
      %v2790 = vsub.f32 1.0, %v2779
      %v2791 = vsub.f32 1.0, %v2781
      %v2792 = vmul.f32 %v2790, %v2788
      %v2793 = vmul.f32 %v2791, %v2789
      %v2794 = vmul.f32 %v2779, %v2667
      %v2795 = vmul.f32 %v2781, %v2668
      %v2796 = vadd.f32 %v2792, %v2794
      %v2797 = vadd.f32 %v2793, %v2795
      %s2798 = sadd.s32 %s795, 12
      %v2799 = vstv %s2798
      %vm2800 = vcmp.lt.s32.totalorder %v2799, %v791
      %vm2801 = vcmp.lt.s32.totalorder %v2799, %v792
      %v2802 = vsel %vm2800, 1, 0
      %v2803 = vsel %vm2801, 1, 0
      %2804 = vset.pattern.permute.xlu0 0
      %2805 = vperm.xlu0 %2804, %v2802
      %v2806 = vpop.permute.xlu0 %2805
      %2807 = vset.pattern.permute.xlu0 0
      %2808 = vperm.xlu0 %2807, %v2803
      %v2809 = vpop.permute.xlu0 %2808
      %vm2810 = vcmp.eq.s32.totalorder %v2806, 1
      %vm2811 = vcmp.eq.s32.totalorder %v2809, 1
      %v2812 = vsel %vm2810, %v2796, %v2667
      %v2813 = vsel %vm2811, %v2797, %v2668
      %v2814 = vpack.c.bf16 %v2813, %v2812
      %2815 = vmatprep.subr.bf16.mxu0 %v878
      %2816 = vmatpush1.bf16.msra.mxu0 %v877
      %2817 = vmatprep.subr.bf16.mxu0 %v881
      %2818 = vmatpush1.bf16.msra.mxu0 %v880
      %2819 = vmatprep.subr.bf16.mxu0 %v884
      %2820 = vmatpush1.bf16.msra.mxu0 %v883
      %2821 = vmatprep.subr.bf16.mxu0 %v887
      %2822 = vmatpush1.bf16.msra.mxu0 %v886
      %2823 = vmatprep.subr.bf16.mxu0 %v890
      %2824 = vmatpush1.bf16.msra.mxu0 %v889
      %2825 = vmatprep.subr.bf16.mxu0 %v893
      %2826 = vmatpush1.bf16.msra.mxu0 %v892
      %2827 = vmatprep.subr.bf16.mxu0 %v896
      %2828 = vmatpush1.bf16.msra.mxu0 %v895
      %2829 = vmatprep.subr.bf16.mxu0 %v899
      %2830 = vmatpush1.bf16.msra.mxu0 %v898
      %2831 = vmatprep.subr.bf16.mxu0 0
      %2832 = vmatpush1.bf16.msra.mxu0 0
      %2833 = vmatprep.subr.bf16.mxu0 0
      %2834 = vmatpush1.bf16.msra.mxu0 0
      %2835 = vmatprep.subr.bf16.mxu0 0
      %2836 = vmatpush1.bf16.msra.mxu0 0
      %2837 = vmatprep.subr.bf16.mxu0 0
      %2838 = vmatpush1.bf16.msra.mxu0 0
      %2839 = vmatprep.subr.bf16.mxu0 0
      %2840 = vmatpush1.bf16.msra.mxu0 0
      %2841 = vmatprep.subr.bf16.mxu0 0
      %2842 = vmatpush1.bf16.msra.mxu0 0
      %2843 = vmatprep.subr.bf16.mxu0 0
      %2844 = vmatpush1.bf16.msra.mxu0 0
      %2845 = vmatprep.subr.bf16.mxu0 0
      %2846 = vmatpush1.bf16.msra.mxu0 0
      %2847 = vmatprep.mubr.bf16.mxu0 0
      %2848 = vmatmul.mubr.bf16.gmra.mrb[0].mxu0 %v2814
      %v2849 = vpop.f32.mrb[0].mxu0
      %v2850 = vadd.f32 0.0, %v2849
      %v2851 = vpop.f32.mrb[0].mxu0
      %v2852 = vadd.f32 0.0, %v2851
      %v2853 = vpop.f32.mrb[0].mxu0
      %v2854 = vadd.f32 0.0, %v2853
      %v2855 = vpop.f32.mrb[0].mxu0
      %v2856 = vadd.f32 0.0, %v2855
      %2857 = vdwg.mxu0
      %2858 = vmatprep.subr.bf16.mxu0 0
      %2859 = vmatpush1.bf16.msra.mxu0 %v879
      %2860 = vmatprep.subr.bf16.mxu0 0
      %2861 = vmatpush1.bf16.msra.mxu0 %v882
      %2862 = vmatprep.subr.bf16.mxu0 0
      %2863 = vmatpush1.bf16.msra.mxu0 %v885
      %2864 = vmatprep.subr.bf16.mxu0 0
      %2865 = vmatpush1.bf16.msra.mxu0 %v888
      %2866 = vmatprep.subr.bf16.mxu0 0
      %2867 = vmatpush1.bf16.msra.mxu0 %v891
      %2868 = vmatprep.subr.bf16.mxu0 0
      %2869 = vmatpush1.bf16.msra.mxu0 %v894
      %2870 = vmatprep.subr.bf16.mxu0 0
      %2871 = vmatpush1.bf16.msra.mxu0 %v897
      %2872 = vmatprep.subr.bf16.mxu0 0
      %2873 = vmatpush1.bf16.msra.mxu0 %v900
      %2874 = vmatprep.subr.bf16.mxu0 0
      %2875 = vmatpush1.bf16.msra.mxu0 0
      %2876 = vmatprep.subr.bf16.mxu0 0
      %2877 = vmatpush1.bf16.msra.mxu0 0
      %2878 = vmatprep.subr.bf16.mxu0 0
      %2879 = vmatpush1.bf16.msra.mxu0 0
      %2880 = vmatprep.subr.bf16.mxu0 0
      %2881 = vmatpush1.bf16.msra.mxu0 0
      %2882 = vmatprep.subr.bf16.mxu0 0
      %2883 = vmatpush1.bf16.msra.mxu0 0
      %2884 = vmatprep.subr.bf16.mxu0 0
      %2885 = vmatpush1.bf16.msra.mxu0 0
      %2886 = vmatprep.subr.bf16.mxu0 0
      %2887 = vmatpush1.bf16.msra.mxu0 0
      %2888 = vmatprep.subr.bf16.mxu0 0
      %2889 = vmatpush1.bf16.msra.mxu0 0
      %2890 = vmatprep.mubr.bf16.mxu0 0
      %2891 = vmatmul.mubr.bf16.gmra.mrb[0].mxu0 %v2814
      %v2892 = vpop.f32.mrb[0].mxu0
      %v2893 = vadd.f32 0.0, %v2892
      %v2894 = vpop.f32.mrb[0].mxu0
      %v2895 = vpop.f32.mrb[0].mxu0
      %v2896 = vadd.f32 0.0, %v2895
      %v2897 = vpop.f32.mrb[0].mxu0
      %2898 = vdwg.mxu0
      %v2899 = vadd.f32 %v569, %v2850
      %v2900 = vadd.f32 %v573, %v2854
      %v2901 = vxor.u32 %v2899, 2147483648
      %v2902 = vxor.u32 %v2900, 2147483648
      %v2903 = vmul.f32 %v2901, 1.442695
      %v2904 = vpow.pop %v2903
      %v2905 = vmul.f32 %v2902, 1.442695
      %v2906 = vpow.pop %v2905
      %v2907 = vadd.f32 %v2904, 1.0
      %v2908 = vadd.f32 %v2906, 1.0
      %v2909 = vrcp.pop %v2907
      %v2910 = vmul.f32 1.0, %v2909
      %v2911 = vrcp.pop %v2908
      %v2912 = vmul.f32 1.0, %v2911
      %v2913 = vadd.f32 %v571, %v2852
      %v2914 = vadd.f32 %v575, %v2856
      %v2915 = vxor.u32 %v2913, 2147483648
      %v2916 = vxor.u32 %v2914, 2147483648
      %v2917 = vmul.f32 %v2915, 1.442695
      %v2918 = vpow.pop %v2917
      %v2919 = vmul.f32 %v2916, 1.442695
      %v2920 = vpow.pop %v2919
      %v2921 = vadd.f32 %v2918, 1.0
      %v2922 = vadd.f32 %v2920, 1.0
      %v2923 = vrcp.pop %v2921
      %v2924 = vmul.f32 1.0, %v2923
      %v2925 = vrcp.pop %v2922
      %v2926 = vmul.f32 1.0, %v2925
      %v2927 = vadd.f32 %v2893, %v1041
      %v2928 = vadd.f32 %v2896, %v1041
      %v2929 = vmul.f32 %v2910, %v2927
      %v2930 = vmul.f32 %v2912, %v2928
      %v2931 = vadd.f32 %v736, %v2929
      %v2932 = vadd.f32 %v739, %v2930
      %v2933 = vtanh.pop %v2931
      %v2934 = vtanh.pop %v2932
      %v2935 = vsub.f32 1.0, %v2924
      %v2936 = vsub.f32 1.0, %v2926
      %v2937 = vmul.f32 %v2935, %v2933
      %v2938 = vmul.f32 %v2936, %v2934
      %v2939 = vmul.f32 %v2924, %v2812
      %v2940 = vmul.f32 %v2926, %v2813
      %v2941 = vadd.f32 %v2937, %v2939
      %v2942 = vadd.f32 %v2938, %v2940
      %s2943 = sadd.s32 %s795, 13
      %v2944 = vstv %s2943
      %vm2945 = vcmp.lt.s32.totalorder %v2944, %v791
      %vm2946 = vcmp.lt.s32.totalorder %v2944, %v792
      %v2947 = vsel %vm2945, 1, 0
      %v2948 = vsel %vm2946, 1, 0
      %2949 = vset.pattern.permute.xlu0 0
      %2950 = vperm.xlu0 %2949, %v2947
      %v2951 = vpop.permute.xlu0 %2950
      %2952 = vset.pattern.permute.xlu0 0
      %2953 = vperm.xlu0 %2952, %v2948
      %v2954 = vpop.permute.xlu0 %2953
      %vm2955 = vcmp.eq.s32.totalorder %v2951, 1
      %vm2956 = vcmp.eq.s32.totalorder %v2954, 1
      %v2957 = vsel %vm2955, %v2941, %v2812
      %v2958 = vsel %vm2956, %v2942, %v2813
      %v2959 = vpack.c.bf16 %v2958, %v2957
      %2960 = vmatprep.subr.bf16.mxu0 %v878
      %2961 = vmatpush1.bf16.msra.mxu0 %v877
      %2962 = vmatprep.subr.bf16.mxu0 %v881
      %2963 = vmatpush1.bf16.msra.mxu0 %v880
      %2964 = vmatprep.subr.bf16.mxu0 %v884
      %2965 = vmatpush1.bf16.msra.mxu0 %v883
      %2966 = vmatprep.subr.bf16.mxu0 %v887
      %2967 = vmatpush1.bf16.msra.mxu0 %v886
      %2968 = vmatprep.subr.bf16.mxu0 %v890
      %2969 = vmatpush1.bf16.msra.mxu0 %v889
      %2970 = vmatprep.subr.bf16.mxu0 %v893
      %2971 = vmatpush1.bf16.msra.mxu0 %v892
      %2972 = vmatprep.subr.bf16.mxu0 %v896
      %2973 = vmatpush1.bf16.msra.mxu0 %v895
      %2974 = vmatprep.subr.bf16.mxu0 %v899
      %2975 = vmatpush1.bf16.msra.mxu0 %v898
      %2976 = vmatprep.subr.bf16.mxu0 0
      %2977 = vmatpush1.bf16.msra.mxu0 0
      %2978 = vmatprep.subr.bf16.mxu0 0
      %2979 = vmatpush1.bf16.msra.mxu0 0
      %2980 = vmatprep.subr.bf16.mxu0 0
      %2981 = vmatpush1.bf16.msra.mxu0 0
      %2982 = vmatprep.subr.bf16.mxu0 0
      %2983 = vmatpush1.bf16.msra.mxu0 0
      %2984 = vmatprep.subr.bf16.mxu0 0
      %2985 = vmatpush1.bf16.msra.mxu0 0
      %2986 = vmatprep.subr.bf16.mxu0 0
      %2987 = vmatpush1.bf16.msra.mxu0 0
      %2988 = vmatprep.subr.bf16.mxu0 0
      %2989 = vmatpush1.bf16.msra.mxu0 0
      %2990 = vmatprep.subr.bf16.mxu0 0
      %2991 = vmatpush1.bf16.msra.mxu0 0
      %2992 = vmatprep.mubr.bf16.mxu0 0
      %2993 = vmatmul.mubr.bf16.gmra.mrb[0].mxu0 %v2959
      %v2994 = vpop.f32.mrb[0].mxu0
      %v2995 = vadd.f32 0.0, %v2994
      %v2996 = vpop.f32.mrb[0].mxu0
      %v2997 = vadd.f32 0.0, %v2996
      %v2998 = vpop.f32.mrb[0].mxu0
      %v2999 = vadd.f32 0.0, %v2998
      %v3000 = vpop.f32.mrb[0].mxu0
      %v3001 = vadd.f32 0.0, %v3000
      %3002 = vdwg.mxu0
      %3003 = vmatprep.subr.bf16.mxu0 0
      %3004 = vmatpush1.bf16.msra.mxu0 %v879
      %3005 = vmatprep.subr.bf16.mxu0 0
      %3006 = vmatpush1.bf16.msra.mxu0 %v882
      %3007 = vmatprep.subr.bf16.mxu0 0
      %3008 = vmatpush1.bf16.msra.mxu0 %v885
      %3009 = vmatprep.subr.bf16.mxu0 0
      %3010 = vmatpush1.bf16.msra.mxu0 %v888
      %3011 = vmatprep.subr.bf16.mxu0 0
      %3012 = vmatpush1.bf16.msra.mxu0 %v891
      %3013 = vmatprep.subr.bf16.mxu0 0
      %3014 = vmatpush1.bf16.msra.mxu0 %v894
      %3015 = vmatprep.subr.bf16.mxu0 0
      %3016 = vmatpush1.bf16.msra.mxu0 %v897
      %3017 = vmatprep.subr.bf16.mxu0 0
      %3018 = vmatpush1.bf16.msra.mxu0 %v900
      %3019 = vmatprep.subr.bf16.mxu0 0
      %3020 = vmatpush1.bf16.msra.mxu0 0
      %3021 = vmatprep.subr.bf16.mxu0 0
      %3022 = vmatpush1.bf16.msra.mxu0 0
      %3023 = vmatprep.subr.bf16.mxu0 0
      %3024 = vmatpush1.bf16.msra.mxu0 0
      %3025 = vmatprep.subr.bf16.mxu0 0
      %3026 = vmatpush1.bf16.msra.mxu0 0
      %3027 = vmatprep.subr.bf16.mxu0 0
      %3028 = vmatpush1.bf16.msra.mxu0 0
      %3029 = vmatprep.subr.bf16.mxu0 0
      %3030 = vmatpush1.bf16.msra.mxu0 0
      %3031 = vmatprep.subr.bf16.mxu0 0
      %3032 = vmatpush1.bf16.msra.mxu0 0
      %3033 = vmatprep.subr.bf16.mxu0 0
      %3034 = vmatpush1.bf16.msra.mxu0 0
      %3035 = vmatprep.mubr.bf16.mxu0 0
      %3036 = vmatmul.mubr.bf16.gmra.mrb[0].mxu0 %v2959
      %v3037 = vpop.f32.mrb[0].mxu0
      %v3038 = vadd.f32 0.0, %v3037
      %v3039 = vpop.f32.mrb[0].mxu0
      %v3040 = vpop.f32.mrb[0].mxu0
      %v3041 = vadd.f32 0.0, %v3040
      %v3042 = vpop.f32.mrb[0].mxu0
      %3043 = vdwg.mxu0
      %v3044 = vadd.f32 %v579, %v2995
      %v3045 = vadd.f32 %v583, %v2999
      %v3046 = vxor.u32 %v3044, 2147483648
      %v3047 = vxor.u32 %v3045, 2147483648
      %v3048 = vmul.f32 %v3046, 1.442695
      %v3049 = vpow.pop %v3048
      %v3050 = vmul.f32 %v3047, 1.442695
      %v3051 = vpow.pop %v3050
      %v3052 = vadd.f32 %v3049, 1.0
      %v3053 = vadd.f32 %v3051, 1.0
      %v3054 = vrcp.pop %v3052
      %v3055 = vmul.f32 1.0, %v3054
      %v3056 = vrcp.pop %v3053
      %v3057 = vmul.f32 1.0, %v3056
      %v3058 = vadd.f32 %v581, %v2997
      %v3059 = vadd.f32 %v585, %v3001
      %v3060 = vxor.u32 %v3058, 2147483648
      %v3061 = vxor.u32 %v3059, 2147483648
      %v3062 = vmul.f32 %v3060, 1.442695
      %v3063 = vpow.pop %v3062
      %v3064 = vmul.f32 %v3061, 1.442695
      %v3065 = vpow.pop %v3064
      %v3066 = vadd.f32 %v3063, 1.0
      %v3067 = vadd.f32 %v3065, 1.0
      %v3068 = vrcp.pop %v3066
      %v3069 = vmul.f32 1.0, %v3068
      %v3070 = vrcp.pop %v3067
      %v3071 = vmul.f32 1.0, %v3070
      %v3072 = vadd.f32 %v3038, %v1041
      %v3073 = vadd.f32 %v3041, %v1041
      %v3074 = vmul.f32 %v3055, %v3072
      %v3075 = vmul.f32 %v3057, %v3073
      %v3076 = vadd.f32 %v744, %v3074
      %v3077 = vadd.f32 %v747, %v3075
      %v3078 = vtanh.pop %v3076
      %v3079 = vtanh.pop %v3077
      %v3080 = vsub.f32 1.0, %v3069
      %v3081 = vsub.f32 1.0, %v3071
      %v3082 = vmul.f32 %v3080, %v3078
      %v3083 = vmul.f32 %v3081, %v3079
      %v3084 = vmul.f32 %v3069, %v2957
      %v3085 = vmul.f32 %v3071, %v2958
      %v3086 = vadd.f32 %v3082, %v3084
      %v3087 = vadd.f32 %v3083, %v3085
      %s3088 = sadd.s32 %s795, 14
      %v3089 = vstv %s3088
      %vm3090 = vcmp.lt.s32.totalorder %v3089, %v791
      %vm3091 = vcmp.lt.s32.totalorder %v3089, %v792
      %v3092 = vsel %vm3090, 1, 0
      %v3093 = vsel %vm3091, 1, 0
      %3094 = vset.pattern.permute.xlu0 0
      %3095 = vperm.xlu0 %3094, %v3092
      %v3096 = vpop.permute.xlu0 %3095
      %3097 = vset.pattern.permute.xlu0 0
      %3098 = vperm.xlu0 %3097, %v3093
      %v3099 = vpop.permute.xlu0 %3098
      %vm3100 = vcmp.eq.s32.totalorder %v3096, 1
      %vm3101 = vcmp.eq.s32.totalorder %v3099, 1
      %v3102 = vsel %vm3100, %v3086, %v2957
      %v3103 = vsel %vm3101, %v3087, %v2958
      %v3104 = vpack.c.bf16 %v3103, %v3102
      %3105 = vmatprep.subr.bf16.mxu0 %v878
      %3106 = vmatpush1.bf16.msra.mxu0 %v877
      %3107 = vmatprep.subr.bf16.mxu0 %v881
      %3108 = vmatpush1.bf16.msra.mxu0 %v880
      %3109 = vmatprep.subr.bf16.mxu0 %v884
      %3110 = vmatpush1.bf16.msra.mxu0 %v883
      %3111 = vmatprep.subr.bf16.mxu0 %v887
      %3112 = vmatpush1.bf16.msra.mxu0 %v886
      %3113 = vmatprep.subr.bf16.mxu0 %v890
      %3114 = vmatpush1.bf16.msra.mxu0 %v889
      %3115 = vmatprep.subr.bf16.mxu0 %v893
      %3116 = vmatpush1.bf16.msra.mxu0 %v892
      %3117 = vmatprep.subr.bf16.mxu0 %v896
      %3118 = vmatpush1.bf16.msra.mxu0 %v895
      %3119 = vmatprep.subr.bf16.mxu0 %v899
      %3120 = vmatpush1.bf16.msra.mxu0 %v898
      %3121 = vmatprep.subr.bf16.mxu0 0
      %3122 = vmatpush1.bf16.msra.mxu0 0
      %3123 = vmatprep.subr.bf16.mxu0 0
      %3124 = vmatpush1.bf16.msra.mxu0 0
      %3125 = vmatprep.subr.bf16.mxu0 0
      %3126 = vmatpush1.bf16.msra.mxu0 0
      %3127 = vmatprep.subr.bf16.mxu0 0
      %3128 = vmatpush1.bf16.msra.mxu0 0
      %3129 = vmatprep.subr.bf16.mxu0 0
      %3130 = vmatpush1.bf16.msra.mxu0 0
      %3131 = vmatprep.subr.bf16.mxu0 0
      %3132 = vmatpush1.bf16.msra.mxu0 0
      %3133 = vmatprep.subr.bf16.mxu0 0
      %3134 = vmatpush1.bf16.msra.mxu0 0
      %3135 = vmatprep.subr.bf16.mxu0 0
      %3136 = vmatpush1.bf16.msra.mxu0 0
      %3137 = vmatprep.mubr.bf16.mxu0 0
      %3138 = vmatmul.mubr.bf16.gmra.mrb[0].mxu0 %v3104
      %v3139 = vpop.f32.mrb[0].mxu0
      %v3140 = vadd.f32 0.0, %v3139
      %v3141 = vpop.f32.mrb[0].mxu0
      %v3142 = vadd.f32 0.0, %v3141
      %v3143 = vpop.f32.mrb[0].mxu0
      %v3144 = vadd.f32 0.0, %v3143
      %v3145 = vpop.f32.mrb[0].mxu0
      %v3146 = vadd.f32 0.0, %v3145
      %3147 = vdwg.mxu0
      %3148 = vmatprep.subr.bf16.mxu0 0
      %3149 = vmatpush1.bf16.msra.mxu0 %v879
      %3150 = vmatprep.subr.bf16.mxu0 0
      %3151 = vmatpush1.bf16.msra.mxu0 %v882
      %3152 = vmatprep.subr.bf16.mxu0 0
      %3153 = vmatpush1.bf16.msra.mxu0 %v885
      %3154 = vmatprep.subr.bf16.mxu0 0
      %3155 = vmatpush1.bf16.msra.mxu0 %v888
      %3156 = vmatprep.subr.bf16.mxu0 0
      %3157 = vmatpush1.bf16.msra.mxu0 %v891
      %3158 = vmatprep.subr.bf16.mxu0 0
      %3159 = vmatpush1.bf16.msra.mxu0 %v894
      %3160 = vmatprep.subr.bf16.mxu0 0
      %3161 = vmatpush1.bf16.msra.mxu0 %v897
      %3162 = vmatprep.subr.bf16.mxu0 0
      %3163 = vmatpush1.bf16.msra.mxu0 %v900
      %3164 = vmatprep.subr.bf16.mxu0 0
      %3165 = vmatpush1.bf16.msra.mxu0 0
      %3166 = vmatprep.subr.bf16.mxu0 0
      %3167 = vmatpush1.bf16.msra.mxu0 0
      %3168 = vmatprep.subr.bf16.mxu0 0
      %3169 = vmatpush1.bf16.msra.mxu0 0
      %3170 = vmatprep.subr.bf16.mxu0 0
      %3171 = vmatpush1.bf16.msra.mxu0 0
      %3172 = vmatprep.subr.bf16.mxu0 0
      %3173 = vmatpush1.bf16.msra.mxu0 0
      %3174 = vmatprep.subr.bf16.mxu0 0
      %3175 = vmatpush1.bf16.msra.mxu0 0
      %3176 = vmatprep.subr.bf16.mxu0 0
      %3177 = vmatpush1.bf16.msra.mxu0 0
      %3178 = vmatprep.subr.bf16.mxu0 0
      %3179 = vmatpush1.bf16.msra.mxu0 0
      %3180 = vmatprep.mubr.bf16.mxu0 0
      %3181 = vmatmul.mubr.bf16.gmra.mrb[0].mxu0 %v3104
      %v3182 = vpop.f32.mrb[0].mxu0
      %v3183 = vadd.f32 0.0, %v3182
      %v3184 = vpop.f32.mrb[0].mxu0
      %v3185 = vpop.f32.mrb[0].mxu0
      %v3186 = vadd.f32 0.0, %v3185
      %v3187 = vpop.f32.mrb[0].mxu0
      %3188 = vdwg.mxu0
      %v3189 = vadd.f32 %v589, %v3140
      %v3190 = vadd.f32 %v593, %v3144
      %v3191 = vxor.u32 %v3189, 2147483648
      %v3192 = vxor.u32 %v3190, 2147483648
      %v3193 = vmul.f32 %v3191, 1.442695
      %v3194 = vpow.pop %v3193
      %v3195 = vmul.f32 %v3192, 1.442695
      %v3196 = vpow.pop %v3195
      %v3197 = vadd.f32 %v3194, 1.0
      %v3198 = vadd.f32 %v3196, 1.0
      %v3199 = vrcp.pop %v3197
      %v3200 = vmul.f32 1.0, %v3199
      %v3201 = vrcp.pop %v3198
      %v3202 = vmul.f32 1.0, %v3201
      %v3203 = vadd.f32 %v591, %v3142
      %v3204 = vadd.f32 %v595, %v3146
      %v3205 = vxor.u32 %v3203, 2147483648
      %v3206 = vxor.u32 %v3204, 2147483648
      %v3207 = vmul.f32 %v3205, 1.442695
      %v3208 = vpow.pop %v3207
      %v3209 = vmul.f32 %v3206, 1.442695
      %v3210 = vpow.pop %v3209
      %v3211 = vadd.f32 %v3208, 1.0
      %v3212 = vadd.f32 %v3210, 1.0
      %v3213 = vrcp.pop %v3211
      %v3214 = vmul.f32 1.0, %v3213
      %v3215 = vrcp.pop %v3212
      %v3216 = vmul.f32 1.0, %v3215
      %v3217 = vadd.f32 %v3183, %v1041
      %v3218 = vadd.f32 %v3186, %v1041
      %v3219 = vmul.f32 %v3200, %v3217
      %v3220 = vmul.f32 %v3202, %v3218
      %v3221 = vadd.f32 %v752, %v3219
      %v3222 = vadd.f32 %v755, %v3220
      %v3223 = vtanh.pop %v3221
      %v3224 = vtanh.pop %v3222
      %v3225 = vsub.f32 1.0, %v3214
      %v3226 = vsub.f32 1.0, %v3216
      %v3227 = vmul.f32 %v3225, %v3223
      %v3228 = vmul.f32 %v3226, %v3224
      %v3229 = vmul.f32 %v3214, %v3102
      %v3230 = vmul.f32 %v3216, %v3103
      %v3231 = vadd.f32 %v3227, %v3229
      %v3232 = vadd.f32 %v3228, %v3230
      %s3233 = sadd.s32 %s795, 15
      %v3234 = vstv %s3233
      %vm3235 = vcmp.lt.s32.totalorder %v3234, %v791
      %vm3236 = vcmp.lt.s32.totalorder %v3234, %v792
      %v3237 = vsel %vm3235, 1, 0
      %v3238 = vsel %vm3236, 1, 0
      %3239 = vset.pattern.permute.xlu0 0
      %3240 = vperm.xlu0 %3239, %v3237
      %v3241 = vpop.permute.xlu0 %3240
      %3242 = vset.pattern.permute.xlu0 0
      %3243 = vperm.xlu0 %3242, %v3238
      %v3244 = vpop.permute.xlu0 %3243
      %vm3245 = vcmp.eq.s32.totalorder %v3241, 1
      %vm3246 = vcmp.eq.s32.totalorder %v3244, 1
      %v3247 = vsel %vm3245, %v3231, %v3102
      %v3248 = vsel %vm3246, %v3232, %v3103
      %3249 = vst [vmem:[#allocation2] sm:$0xff] %v3247
      %3250 = vst [vmem:[#allocation2 + $0x8] sm:$0xff] %v3248
    $region57: #{tpu_custom_call.1} parent=1 // pred_fallthru
      _
    // Predicated region
    $region58: #{tpu_custom_call.1} parent=1 // pred_check
      %p3251 = pneg %p88
    $region59: #{tpu_custom_call.1} parent=1 // pred_check_branch
      %3253 = sbr.rel (%p3251) target = $region61
    $region60: #{tpu_custom_call.1} parent=1 // pred_region
      %v3254 = vld [vmem:[#allocation2] sm:$0xff]
      %v3255 = vld [vmem:[#allocation2 + $0x8] sm:$0xff]
      %v3256 = vpack.c.bf16 %v3255, %v3254
      %v3257 = vld [vmem:[#allocation11] sm:$0xf]
      %v3258 = vld [vmem:[#allocation11 + $0x4] sm:$0xf]
      %v3259 = vld [vmem:[#allocation11 + $0x8] sm:$0xf]
      %v3260 = vld [vmem:[#allocation11 + $0xc] sm:$0xf]
      %v3261 = vld [vmem:[#allocation11 + $0x10] sm:$0xf]
      %v3262 = vld [vmem:[#allocation11 + $0x14] sm:$0xf]
      %v3263 = vld [vmem:[#allocation11 + $0x18] sm:$0xf]
      %v3264 = vld [vmem:[#allocation11 + $0x1c] sm:$0xf]
      %v3265 = vld [vmem:[#allocation11 + $0x20] sm:$0xf]
      %v3266 = vld [vmem:[#allocation11 + $0x24] sm:$0xf]
      %v3267 = vld [vmem:[#allocation11 + $0x28] sm:$0xf]
      %v3268 = vld [vmem:[#allocation11 + $0x2c] sm:$0xf]
      %v3269 = vld [vmem:[#allocation11 + $0x30] sm:$0xf]
      %v3270 = vld [vmem:[#allocation11 + $0x34] sm:$0xf]
      %v3271 = vld [vmem:[#allocation11 + $0x38] sm:$0xf]
      %v3272 = vld [vmem:[#allocation11 + $0x3c] sm:$0xf]
      %v3273 = vld [vmem:[%s8] sm:$0x1]
      %v3275 = vlaneseq
      %v3276 = vshrl.u32 %v3275, 7
      %v3277 = vsub.s32 0, %v3276
      %v3278 = vrot.slane %v3273, %v3277
      %v3296 = vunpack.c.l.b16 %v3257
      %v3297 = vunpack.c.l.b16 %v3258
      %v3298 = vunpack.c.l.b16 %v3259
      %v3299 = vunpack.c.l.b16 %v3260
      %v3300 = vunpack.c.l.b16 %v3261
      %v3301 = vunpack.c.l.b16 %v3262
      %v3302 = vunpack.c.l.b16 %v3263
      %v3303 = vunpack.c.l.b16 %v3264
      %v3304 = vunpack.c.l.b16 %v3265
      %v3305 = vunpack.c.l.b16 %v3266
      %v3306 = vunpack.c.l.b16 %v3267
      %v3307 = vunpack.c.l.b16 %v3268
      %v3308 = vunpack.c.l.b16 %v3269
      %v3309 = vunpack.c.l.b16 %v3270
      %v3310 = vunpack.c.l.b16 %v3271
      %v3311 = vunpack.c.l.b16 %v3272
      %v3312 = vpack.c.b16 %v3297, %v3296
      %v3313 = vpack.c.b16 %v3299, %v3298
      %v3314 = vpack.c.b16 %v3301, %v3300
      %v3315 = vpack.c.b16 %v3303, %v3302
      %v3316 = vpack.c.b16 %v3305, %v3304
      %v3317 = vpack.c.b16 %v3307, %v3306
      %v3318 = vpack.c.b16 %v3309, %v3308
      %v3319 = vpack.c.b16 %v3311, %v3310
      %3328 = vmatprep.subr.bf16.mxu0 0
      %3329 = vmatpush1.bf16.msra.mxu0 %v3312
      %3330 = vmatprep.subr.bf16.mxu0 0
      %3331 = vmatpush1.bf16.msra.mxu0 %v3313
      %3332 = vmatprep.subr.bf16.mxu0 0
      %3333 = vmatpush1.bf16.msra.mxu0 %v3314
      %3334 = vmatprep.subr.bf16.mxu0 0
      %3335 = vmatpush1.bf16.msra.mxu0 %v3315
      %3336 = vmatprep.subr.bf16.mxu0 0
      %3337 = vmatpush1.bf16.msra.mxu0 %v3316
      %3338 = vmatprep.subr.bf16.mxu0 0
      %3339 = vmatpush1.bf16.msra.mxu0 %v3317
      %3340 = vmatprep.subr.bf16.mxu0 0
      %3341 = vmatpush1.bf16.msra.mxu0 %v3318
      %3342 = vmatprep.subr.bf16.mxu0 0
      %3343 = vmatpush1.bf16.msra.mxu0 %v3319
      %3344 = vmatprep.subr.bf16.mxu0 0
      %3345 = vmatpush1.bf16.msra.mxu0 0
      %3346 = vmatprep.subr.bf16.mxu0 0
      %3347 = vmatpush1.bf16.msra.mxu0 0
      %3348 = vmatprep.subr.bf16.mxu0 0
      %3349 = vmatpush1.bf16.msra.mxu0 0
      %3350 = vmatprep.subr.bf16.mxu0 0
      %3351 = vmatpush1.bf16.msra.mxu0 0
      %3352 = vmatprep.subr.bf16.mxu0 0
      %3353 = vmatpush1.bf16.msra.mxu0 0
      %3354 = vmatprep.subr.bf16.mxu0 0
      %3355 = vmatpush1.bf16.msra.mxu0 0
      %3356 = vmatprep.subr.bf16.mxu0 0
      %3357 = vmatpush1.bf16.msra.mxu0 0
      %3358 = vmatprep.subr.bf16.mxu0 0
      %3359 = vmatpush1.bf16.msra.mxu0 0
      %3360 = vmatprep.mubr.bf16.mxu0 0
      %3361 = vmatmul.mubr.bf16.gmra.mrb[0].mxu0 %v3256
      %v3362 = vpop.f32.mrb[0].mxu0
      %v3363 = vadd.f32 %v3278, %v3362
      %v3364 = vpop.f32.mrb[0].mxu0
      %v3365 = vpop.f32.mrb[0].mxu0
      %v3366 = vadd.f32 %v3278, %v3365
      %v3367 = vpop.f32.mrb[0].mxu0
      %3368 = vdwg.mxu0
      %3369 = vst [vmem:[#allocation13] sm:$0xff] %v3363
      %3370 = vst [vmem:[#allocation13 + $0x8] sm:$0xff] %v3366
    $region61: #{tpu_custom_call.1} parent=1 // pred_fallthru
      _
    // Predicated region
    $region62: #{tpu_custom_call.1} parent=1 // pred_check
      _
    $region63: #{tpu_custom_call.1} parent=1 // pred_check_branch
      %3372 = sbr.rel (0) target = $region65
    $region64: #{tpu_custom_call.1} parent=1 // pred_region
      %s3374 = ssub.s32 256, 256
      %3375 = vsyncadd [#allocation7], %s3374
      %s3376 = sshll.u32 [#allocation13], 4
      %s3377 = int_to_ptr.vmem [resolvable:$true] %s3376
      %3382 = dma.vmem_to_hbm [thread:$0]  %s3377, 256, %s9, [#allocation7], 128, 128, 8
    $region65: #{tpu_custom_call.1} parent=1 // pred_fallthru
      _
    // Predicated region
    $region66: #{tpu_custom_call.1} parent=1 // pred_check
      _
    $region67: #{tpu_custom_call.1} parent=1 // pred_check_branch
      %3384 = sbr.rel (0) target = $region69
    $region68: #{tpu_custom_call.1} parent=1 // pred_region
      %3385 = dma.done [#allocation7], 256
    $region69: #{tpu_custom_call.1} parent=1 // pred_fallthru
      _
    %3386 = vsyncpa [#allocation6], 1
    %3387 = vsyncpa [#allocation9], 1
    %3388 = vsyncpa [#allocation12], 1
    %3389 = vsyncpa [#allocation7], 1

</llo_original>
